<compile_context>
chip_gen: v7x
topology: tpu7x:2x2x1
jax: 0.10.0
libtpu: 0.0.40
codegen_flags: <defaults>
</compile_context>

<pallas_src>
import functools

import jax
import jax.numpy as jnp
from jax.experimental import pallas as pl
from jax.experimental.pallas import tpu as pltpu


# ------------------------------ fused kernel --------------------------------

def _fused_net_dgm_kernel(tx_ref, wtx_ref, ball_ref,
                          wzgr1_ref, wh1_ref,
                          wzgr2_ref, wh2_ref,
                          wzgr3_ref, wh3_ref,
                          wout_ref, bout_ref,
                          out_ref, *, compute_dtype):
    """Feature-major: activations are [features, TB] (batch on lanes)."""
    dS = wh1_ref.shape[0]
    cd = compute_dtype

    def mm(w_ref, a):
        # W @ a with f32 accumulation on the MXU regardless of compute dtype.
        return jnp.dot(w_ref[...].astype(cd), a.astype(cd),
                       preferred_element_type=jnp.float32)

    def act(pre):
        return jnp.tanh(pre.astype(cd))

    tx = tx_ref[...]                                     # [dim_x+1, TB]

    # One MXU push for every tx-side projection of the whole network
    # (input layer + Z/G/R/H of all 3 DGM layers); all biases folded in.
    txp = mm(wtx_ref, tx) + ball_ref[...]                # [13*dS, TB]

    s = act(txp[0:dS, :])                                # S1 = input layer

    def dgm_layer(s, base, wzgr_ref, wh_ref):
        # Z/G/R with a single stacked [3*dS, dS] matmul; all slices below are
        # sublane slices at multiples of dS=32 -> free extracts.
        zgr = act(txp[base:base + 3 * dS, :] + mm(wzgr_ref, s))
        z = zgr[0:dS, :]
        g = zgr[dS:2 * dS, :]
        r = zgr[2 * dS:3 * dS, :]
        h = act(txp[base + 3 * dS:base + 4 * dS, :] + mm(wh_ref, s * r))
        return (1.0 - g) * h + z * s

    s = dgm_layer(s, dS, wzgr1_ref, wh1_ref)             # S2
    s = dgm_layer(s, 5 * dS, wzgr2_ref, wh2_ref)         # S3
    s = dgm_layer(s, 9 * dS, wzgr3_ref, wh3_ref)         # S4

    # Output layer: elementwise multiply by the [dS,1] output column +
    # sublane reduce -> lane-dense [1, TB] row.  b_out comes from SMEM.
    s32 = s.astype(jnp.float32)
    out_ref[...] = (jnp.sum(s32 * wout_ref[...], axis=0, keepdims=True)
                    + bout_ref[0, 0])


# ------------------------------ parameter packing ---------------------------

def _pack_params(params):
    """Stacks all weights into the feature-major ([out, in]) operands."""
    def zgr_x(p):   # [3*dS, dim_x+1]
        return jnp.concatenate([p["wzx"].T, p["wgx"].T, p["wrx"].T], axis=0)

    def zgr_s(p):   # [3*dS, dS]
        return jnp.concatenate([p["wzs"].T, p["wgs"].T, p["wrs"].T], axis=0)

    def zgr_b(p):   # [3*dS, 1]
        return jnp.concatenate([p["bz"].T, p["bg"].T, p["br"].T], axis=0)

    w_rows, b_rows = [params["w_in"].T], [params["b_in"].T]
    for l in (1, 2, 3):
        p = params[f"dgm{l}"]
        w_rows += [zgr_x(p), p["whx"].T]
        b_rows += [zgr_b(p), p["bh"].T]

    return {
        "w_tx": jnp.concatenate(w_rows, axis=0),    # [13*dS, dim_x+1]
        "b_all": jnp.concatenate(b_rows, axis=0),   # [13*dS, 1]
        "wzgr1": zgr_s(params["dgm1"]), "wh1": params["dgm1"]["whs"].T,
        "wzgr2": zgr_s(params["dgm2"]), "wh2": params["dgm2"]["whs"].T,
        "wzgr3": zgr_s(params["dgm3"]), "wh3": params["dgm3"]["whs"].T,
        "w_out_col": params["w_out"],               # [dS, 1]
        "b_out": params["b_out"],                   # [1, 1]
    }


def _round_up(n, m):
    return ((n + m - 1) // m) * m


# ------------------------------ forward wrapper ------------------------------

def net_dgm_forward(t, x, params, batch_tile=None, compute_dtype=jnp.float32):
    """t: [B,1], x: [B,dim_x] -> [B,1]  (matches Net_DGM.forward).

    compute_dtype=jnp.bfloat16 is an optional speedup for v6e/v7x (bf16
    VPU/EUP/MXU); keep float32 on v5e.  f32 accumulation is always used.
    """
    t = t.astype(jnp.float32)
    x = x.astype(jnp.float32)
    B = t.shape[0]
    dX1 = 1 + x.shape[1]

    packed = _pack_params(params)

    # Batch tile (lane dimension): multiple of 128.  Default targets ~1024
    # lanes per grid step with an EVEN grid (>=2) so the "parallel" axis can
    # shard across v7x's 2 TensorCores, while keeping padding waste small
    # (B=3000 -> TB=768, grid=4).  VMEM footprint is tiny either way
    # (weights <100 KB, txp at TB=1024 is ~1.7 MB f32).
    if batch_tile is None:
        n_tiles = max(2, pl.cdiv(B, 1024))
        if n_tiles % 2:
            n_tiles += 1
        TB = _round_up(pl.cdiv(B, n_tiles), 128)
    else:
        TB = _round_up(batch_tile, 128)
    B_pad = _round_up(B, TB)
    grid = (B_pad // TB,)

    # Feature-major input: [dim_x+1, B_pad] (batch on lanes).
    tx_fm = jnp.concatenate([t.T, x.T], axis=0)
    if B_pad != B:
        tx_fm = jnp.pad(tx_fm, ((0, 0), (0, B_pad - B)))

    weight_names = ("w_tx", "b_all",
                    "wzgr1", "wh1", "wzgr2", "wh2", "wzgr3", "wh3",
                    "w_out_col")
    weights = [packed[n] for n in weight_names]

    def resident_spec(a):
        # Full-array block, same block every grid step -> stays in VMEM.
        return pl.BlockSpec(a.shape, lambda i: (0, 0))

    kernel = functools.partial(_fused_net_dgm_kernel,
                               compute_dtype=compute_dtype)

    out = pl.pallas_call(
        kernel,
        out_shape=jax.ShapeDtypeStruct((1, B_pad), jnp.float32),
        grid=grid,
        in_specs=[pl.BlockSpec((dX1, TB), lambda i: (0, i))]
                 + [resident_spec(a) for a in weights]
                 + [pl.BlockSpec(memory_space=pltpu.MemorySpace.SMEM)],
        out_specs=pl.BlockSpec((1, TB), lambda i: (0, i)),
        compiler_params=pltpu.CompilerParams(
            dimension_semantics=("parallel",)),
    )(tx_fm, *weights, packed["b_out"])

    # Lane-dense [1, B_pad] slab back to the module's [B, 1] shape.
    return out[0, :B].reshape(B, 1)


# ------------------------------ parameter init -------------------------------

def _linear_params(key, n_in, n_out):
    # PyTorch Linear default init: U(-1/sqrt(n_in), 1/sqrt(n_in)).
    kw, kb = jax.random.split(key)
    bound = 1.0 / jnp.sqrt(jnp.float32(n_in))
    w = jax.random.uniform(kw, (n_in, n_out), jnp.float32, -bound, bound)
    b = jax.random.uniform(kb, (1, n_out), jnp.float32, -bound, bound)
    return w, b


def _dgm_params(key, dim_x1, dim_s):
    keys = jax.random.split(key, 4)
    p = {}
    for k, n in zip(keys, ["z", "g", "r", "h"]):
        w, b = _linear_params(k, dim_x1 + dim_s, dim_s)
        # Split the [dim_x1 + dim_s, dim_s] weight into the tx-part and S-part.
        p[f"w{n}x"] = w[:dim_x1, :]
        p[f"w{n}s"] = w[dim_x1:, :]
        p[f"b{n}"] = b
    return p


def init_net_dgm_params(key, dim_x, dim_s):
    dim_x1 = dim_x + 1
    k_in, k1, k2, k3, k_out = jax.random.split(key, 5)
    w_in, b_in = _linear_params(k_in, dim_x1, dim_s)
    w_out, b_out = _linear_params(k_out, dim_s, 1)
    return {
        "w_in": w_in, "b_in": b_in,
        "dgm1": _dgm_params(k1, dim_x1, dim_s),
        "dgm2": _dgm_params(k2, dim_x1, dim_s),
        "dgm3": _dgm_params(k3, dim_x1, dim_s),
        "w_out": w_out, "b_out": b_out,
    }


# ------------------------------ pure-JAX reference ---------------------------

def _ref_dgm(tx, s, p):
    z = jnp.tanh(tx @ p["wzx"] + s @ p["wzs"] + p["bz"])
    g = jnp.tanh(tx @ p["wgx"] + s @ p["wgs"] + p["bg"])
    r = jnp.tanh(tx @ p["wrx"] + s @ p["wrs"] + p["br"])
    h = jnp.tanh(tx @ p["whx"] + (s * r) @ p["whs"] + p["bh"])
    return (1.0 - g) * h + z * s


def net_dgm_ref(t, x, params):
    tx = jnp.concatenate([t, x], axis=1)
    s1 = jnp.tanh(tx @ params["w_in"] + params["b_in"])
    s2 = _ref_dgm(tx, s1, params["dgm1"])
    s3 = _ref_dgm(tx, s2, params["dgm2"])
    s4 = _ref_dgm(tx, s3, params["dgm3"])
    return s4 @ params["w_out"] + params["b_out"]


# ----------------------------------- main ------------------------------------

if __name__ == "__main__":
    # Full-precision reference matmuls so the f32 kernel/ref comparison is
    # not polluted by XLA's default reduced-precision dot.
    jax.config.update("jax_default_matmul_precision", "highest")

    B = 200      # small batch (module uses b_size=3000; kept small here);
                 # pads to 256 and runs a 2-step grid -> exercises tiling,
                 # padding and the parallel batch axis.
    dim_x = 2    # matches H = R = np.identity(2) in the source script
    dim_S = 32

    key = jax.random.PRNGKey(0)
    k_params, k_t, k_x = jax.random.split(key, 3)

    params = init_net_dgm_params(k_params, dim_x, dim_S)
    t = jax.random.uniform(k_t, (B, 1), jnp.float32)
    x = jax.random.normal(k_x, (B, dim_x), jnp.float32)

    out = net_dgm_forward(t, x, params, batch_tile=128)
    out = jax.block_until_ready(out)

    ref = net_dgm_ref(t, x, params)
    assert out.shape == (B, 1), out.shape
    assert jnp.allclose(out, ref, atol=1e-4, rtol=1e-4), (
        float(jnp.max(jnp.abs(out - ref)))
    )
    print("KERNEL_OK")
</pallas_src>

<mosaic_0001>
module attributes {stable_mosaic.version = 11 : i64} {
  func.func @_fused_net_dgm_kernel(%arg0: i32, %arg1: memref<3x128xf32, #tpu.memory_space<vmem>>, %arg2: memref<416x3xf32, #tpu.memory_space<vmem>>, %arg3: memref<416x1xf32, #tpu.memory_space<vmem>>, %arg4: memref<96x32xf32, #tpu.memory_space<vmem>>, %arg5: memref<32x32xf32, #tpu.memory_space<vmem>>, %arg6: memref<96x32xf32, #tpu.memory_space<vmem>>, %arg7: memref<32x32xf32, #tpu.memory_space<vmem>>, %arg8: memref<96x32xf32, #tpu.memory_space<vmem>>, %arg9: memref<32x32xf32, #tpu.memory_space<vmem>>, %arg10: memref<32x1xf32, #tpu.memory_space<vmem>>, %arg11: memref<1x1xf32, #tpu.memory_space<smem>>, %arg12: memref<1x128xf32, #tpu.memory_space<vmem>>) attributes {dimension_semantics = [#tpu.dimension_semantics<parallel>], iteration_bounds = array<i64: 2>, scalar_prefetch = 0 : i64, scratch_operands = 0 : i64, tpu.core_type = #tpu.core_type<tc>, window_params = [{transform_indices = @transform_0, window_bounds = array<i64: 3, 128>}, {pipeline_mode = #tpu.pipeline_mode<synchronous>, transform_indices = @transform_1, window_bounds = array<i64: 416, 3>}, {pipeline_mode = #tpu.pipeline_mode<synchronous>, transform_indices = @transform_2, window_bounds = array<i64: 416, 1>}, {pipeline_mode = #tpu.pipeline_mode<synchronous>, transform_indices = @transform_3, window_bounds = array<i64: 96, 32>}, {pipeline_mode = #tpu.pipeline_mode<synchronous>, transform_indices = @transform_4, window_bounds = array<i64: 32, 32>}, {pipeline_mode = #tpu.pipeline_mode<synchronous>, transform_indices = @transform_5, window_bounds = array<i64: 96, 32>}, {pipeline_mode = #tpu.pipeline_mode<synchronous>, transform_indices = @transform_6, window_bounds = array<i64: 32, 32>}, {pipeline_mode = #tpu.pipeline_mode<synchronous>, transform_indices = @transform_7, window_bounds = array<i64: 96, 32>}, {pipeline_mode = #tpu.pipeline_mode<synchronous>, transform_indices = @transform_8, window_bounds = array<i64: 32, 32>}, {pipeline_mode = #tpu.pipeline_mode<synchronous>, transform_indices = @transform_9, window_bounds = array<i64: 32, 1>}, {transform_indices = @transform_10, window_bounds = array<i64: 1, 1>}, {transform_indices = @transform_11, window_bounds = array<i64: 1, 128>}]} {
    %c0 = arith.constant 0 : index
    %c0_0 = arith.constant 0 : index
    %0 = vector.load %arg1[%c0, %c0_0] : memref<3x128xf32, #tpu.memory_space<vmem>>, vector<3x128xf32>
    %c0_1 = arith.constant 0 : index
    %c0_2 = arith.constant 0 : index
    %1 = vector.load %arg2[%c0_1, %c0_2] : memref<416x3xf32, #tpu.memory_space<vmem>>, vector<416x3xf32>
    %cst = arith.constant dense<0.000000e+00> : vector<416x128xf32>
    %2 = tpu.matmul %1, %0, %cst {dimension_numbers = #tpu.dot_dimension_numbers<[1], [0], [0], [1], [0, 0, 1, 1], [], []>, precision = #tpu.contract_precision<fp32>} : vector<416x3xf32>, vector<3x128xf32>, vector<416x128xf32> -> vector<416x128xf32>
    %c0_3 = arith.constant 0 : index
    %c0_4 = arith.constant 0 : index
    %3 = vector.load %arg3[%c0_3, %c0_4] : memref<416x1xf32, #tpu.memory_space<vmem>>, vector<416x1xf32>
    %4 = vector.broadcast %3 : vector<416x1xf32> to vector<416x128xf32>
    %5 = arith.addf %2, %4 : vector<416x128xf32>
    %6 = vector.extract_strided_slice %5 {offsets = [0, 0], sizes = [32, 128], strides = [1, 1]} : vector<416x128xf32> to vector<32x128xf32>
    %7 = math.tanh %6 : vector<32x128xf32>
    %8 = vector.extract_strided_slice %5 {offsets = [32, 0], sizes = [96, 128], strides = [1, 1]} : vector<416x128xf32> to vector<96x128xf32>
    %c0_5 = arith.constant 0 : index
    %c0_6 = arith.constant 0 : index
    %9 = vector.load %arg4[%c0_5, %c0_6] : memref<96x32xf32, #tpu.memory_space<vmem>>, vector<96x32xf32>
    %cst_7 = arith.constant dense<0.000000e+00> : vector<96x128xf32>
    %10 = tpu.matmul %9, %7, %cst_7 {dimension_numbers = #tpu.dot_dimension_numbers<[1], [0], [0], [1], [0, 0, 1, 1], [], []>, precision = #tpu.contract_precision<fp32>} : vector<96x32xf32>, vector<32x128xf32>, vector<96x128xf32> -> vector<96x128xf32>
    %11 = arith.addf %8, %10 : vector<96x128xf32>
    %12 = math.tanh %11 : vector<96x128xf32>
    %13 = vector.extract_strided_slice %12 {offsets = [0, 0], sizes = [32, 128], strides = [1, 1]} : vector<96x128xf32> to vector<32x128xf32>
    %14 = vector.extract_strided_slice %12 {offsets = [32, 0], sizes = [32, 128], strides = [1, 1]} : vector<96x128xf32> to vector<32x128xf32>
    %15 = vector.extract_strided_slice %12 {offsets = [64, 0], sizes = [32, 128], strides = [1, 1]} : vector<96x128xf32> to vector<32x128xf32>
    %16 = vector.extract_strided_slice %5 {offsets = [128, 0], sizes = [32, 128], strides = [1, 1]} : vector<416x128xf32> to vector<32x128xf32>
    %17 = arith.mulf %7, %15 : vector<32x128xf32>
    %c0_8 = arith.constant 0 : index
    %c0_9 = arith.constant 0 : index
    %18 = vector.load %arg5[%c0_8, %c0_9] : memref<32x32xf32, #tpu.memory_space<vmem>>, vector<32x32xf32>
    %cst_10 = arith.constant dense<0.000000e+00> : vector<32x128xf32>
    %19 = tpu.matmul %18, %17, %cst_10 {dimension_numbers = #tpu.dot_dimension_numbers<[1], [0], [0], [1], [0, 0, 1, 1], [], []>, precision = #tpu.contract_precision<fp32>} : vector<32x32xf32>, vector<32x128xf32>, vector<32x128xf32> -> vector<32x128xf32>
    %20 = arith.addf %16, %19 : vector<32x128xf32>
    %21 = math.tanh %20 : vector<32x128xf32>
    %cst_11 = arith.constant 1.000000e+00 : f32
    %22 = vector.broadcast %cst_11 : f32 to vector<32x128xf32>
    %23 = arith.subf %22, %14 : vector<32x128xf32>
    %24 = arith.mulf %23, %21 : vector<32x128xf32>
    %25 = arith.mulf %13, %7 : vector<32x128xf32>
    %26 = arith.addf %24, %25 : vector<32x128xf32>
    %27 = vector.extract_strided_slice %5 {offsets = [160, 0], sizes = [96, 128], strides = [1, 1]} : vector<416x128xf32> to vector<96x128xf32>
    %c0_12 = arith.constant 0 : index
    %c0_13 = arith.constant 0 : index
    %28 = vector.load %arg6[%c0_12, %c0_13] : memref<96x32xf32, #tpu.memory_space<vmem>>, vector<96x32xf32>
    %cst_14 = arith.constant dense<0.000000e+00> : vector<96x128xf32>
    %29 = tpu.matmul %28, %26, %cst_14 {dimension_numbers = #tpu.dot_dimension_numbers<[1], [0], [0], [1], [0, 0, 1, 1], [], []>, precision = #tpu.contract_precision<fp32>} : vector<96x32xf32>, vector<32x128xf32>, vector<96x128xf32> -> vector<96x128xf32>
    %30 = arith.addf %27, %29 : vector<96x128xf32>
    %31 = math.tanh %30 : vector<96x128xf32>
    %32 = vector.extract_strided_slice %31 {offsets = [0, 0], sizes = [32, 128], strides = [1, 1]} : vector<96x128xf32> to vector<32x128xf32>
    %33 = vector.extract_strided_slice %31 {offsets = [32, 0], sizes = [32, 128], strides = [1, 1]} : vector<96x128xf32> to vector<32x128xf32>
    %34 = vector.extract_strided_slice %31 {offsets = [64, 0], sizes = [32, 128], strides = [1, 1]} : vector<96x128xf32> to vector<32x128xf32>
    %35 = vector.extract_strided_slice %5 {offsets = [256, 0], sizes = [32, 128], strides = [1, 1]} : vector<416x128xf32> to vector<32x128xf32>
    %36 = arith.mulf %26, %34 : vector<32x128xf32>
    %c0_15 = arith.constant 0 : index
    %c0_16 = arith.constant 0 : index
    %37 = vector.load %arg7[%c0_15, %c0_16] : memref<32x32xf32, #tpu.memory_space<vmem>>, vector<32x32xf32>
    %cst_17 = arith.constant dense<0.000000e+00> : vector<32x128xf32>
    %38 = tpu.matmul %37, %36, %cst_17 {dimension_numbers = #tpu.dot_dimension_numbers<[1], [0], [0], [1], [0, 0, 1, 1], [], []>, precision = #tpu.contract_precision<fp32>} : vector<32x32xf32>, vector<32x128xf32>, vector<32x128xf32> -> vector<32x128xf32>
    %39 = arith.addf %35, %38 : vector<32x128xf32>
    %40 = math.tanh %39 : vector<32x128xf32>
    %cst_18 = arith.constant 1.000000e+00 : f32
    %41 = vector.broadcast %cst_18 : f32 to vector<32x128xf32>
    %42 = arith.subf %41, %33 : vector<32x128xf32>
    %43 = arith.mulf %42, %40 : vector<32x128xf32>
    %44 = arith.mulf %32, %26 : vector<32x128xf32>
    %45 = arith.addf %43, %44 : vector<32x128xf32>
    %46 = vector.extract_strided_slice %5 {offsets = [288, 0], sizes = [96, 128], strides = [1, 1]} : vector<416x128xf32> to vector<96x128xf32>
    %c0_19 = arith.constant 0 : index
    %c0_20 = arith.constant 0 : index
    %47 = vector.load %arg8[%c0_19, %c0_20] : memref<96x32xf32, #tpu.memory_space<vmem>>, vector<96x32xf32>
    %cst_21 = arith.constant dense<0.000000e+00> : vector<96x128xf32>
    %48 = tpu.matmul %47, %45, %cst_21 {dimension_numbers = #tpu.dot_dimension_numbers<[1], [0], [0], [1], [0, 0, 1, 1], [], []>, precision = #tpu.contract_precision<fp32>} : vector<96x32xf32>, vector<32x128xf32>, vector<96x128xf32> -> vector<96x128xf32>
    %49 = arith.addf %46, %48 : vector<96x128xf32>
    %50 = math.tanh %49 : vector<96x128xf32>
    %51 = vector.extract_strided_slice %50 {offsets = [0, 0], sizes = [32, 128], strides = [1, 1]} : vector<96x128xf32> to vector<32x128xf32>
    %52 = vector.extract_strided_slice %50 {offsets = [32, 0], sizes = [32, 128], strides = [1, 1]} : vector<96x128xf32> to vector<32x128xf32>
    %53 = vector.extract_strided_slice %50 {offsets = [64, 0], sizes = [32, 128], strides = [1, 1]} : vector<96x128xf32> to vector<32x128xf32>
    %54 = vector.extract_strided_slice %5 {offsets = [384, 0], sizes = [32, 128], strides = [1, 1]} : vector<416x128xf32> to vector<32x128xf32>
    %55 = arith.mulf %45, %53 : vector<32x128xf32>
    %c0_22 = arith.constant 0 : index
    %c0_23 = arith.constant 0 : index
    %56 = vector.load %arg9[%c0_22, %c0_23] : memref<32x32xf32, #tpu.memory_space<vmem>>, vector<32x32xf32>
    %cst_24 = arith.constant dense<0.000000e+00> : vector<32x128xf32>
    %57 = tpu.matmul %56, %55, %cst_24 {dimension_numbers = #tpu.dot_dimension_numbers<[1], [0], [0], [1], [0, 0, 1, 1], [], []>, precision = #tpu.contract_precision<fp32>} : vector<32x32xf32>, vector<32x128xf32>, vector<32x128xf32> -> vector<32x128xf32>
    %58 = arith.addf %54, %57 : vector<32x128xf32>
    %59 = math.tanh %58 : vector<32x128xf32>
    %cst_25 = arith.constant 1.000000e+00 : f32
    %60 = vector.broadcast %cst_25 : f32 to vector<32x128xf32>
    %61 = arith.subf %60, %52 : vector<32x128xf32>
    %62 = arith.mulf %61, %59 : vector<32x128xf32>
    %63 = arith.mulf %51, %45 : vector<32x128xf32>
    %64 = arith.addf %62, %63 : vector<32x128xf32>
    %c0_26 = arith.constant 0 : index
    %c0_27 = arith.constant 0 : index
    %65 = vector.load %arg10[%c0_26, %c0_27] : memref<32x1xf32, #tpu.memory_space<vmem>>, vector<32x1xf32>
    %66 = vector.broadcast %65 : vector<32x1xf32> to vector<32x128xf32>
    %67 = arith.mulf %64, %66 : vector<32x128xf32>
    %cst_28 = arith.constant dense<0.000000e+00> : vector<128xf32>
    %68 = vector.multi_reduction <add>, %67, %cst_28 [0] : vector<32x128xf32> to vector<128xf32>
    %69 = vector.shape_cast %68 : vector<128xf32> to vector<1x128xf32>
    %c0_29 = arith.constant 0 : index
    %c0_30 = arith.constant 0 : index
    %70 = memref.load %arg11[%c0_29, %c0_30] : memref<1x1xf32, #tpu.memory_space<smem>>
    %71 = vector.broadcast %70 : f32 to vector<1x128xf32>
    %72 = arith.addf %69, %71 : vector<1x128xf32>
    %c0_31 = arith.constant 0 : index
    %c0_32 = arith.constant 0 : index
    %73 = vector.load %arg12[%c0_31, %c0_32] : memref<1x128xf32, #tpu.memory_space<vmem>>, vector<1x128xf32>
    tpu.vector_store %arg12[%c0_31, %c0_32], %72 {strides = array<i32>} : memref<1x128xf32, #tpu.memory_space<vmem>>, vector<1x128xf32>,
    return
  }
  func.func @transform_0(%arg0: i32) -> (i32, i32) {
    %c0_i32 = arith.constant 0 : i32
    %c0_i32_0 = arith.constant 0 : i32
    return %c0_i32, %arg0 : i32, i32
  }
  func.func @transform_1(%arg0: i32) -> (i32, i32) {
    %c0_i32 = arith.constant 0 : i32
    %c0_i32_0 = arith.constant 0 : i32
    %c0_i32_1 = arith.constant 0 : i32
    return %c0_i32, %c0_i32_0 : i32, i32
  }
  func.func @transform_2(%arg0: i32) -> (i32, i32) {
    %c0_i32 = arith.constant 0 : i32
    %c0_i32_0 = arith.constant 0 : i32
    %c0_i32_1 = arith.constant 0 : i32
    return %c0_i32, %c0_i32_0 : i32, i32
  }
  func.func @transform_3(%arg0: i32) -> (i32, i32) {
    %c0_i32 = arith.constant 0 : i32
    %c0_i32_0 = arith.constant 0 : i32
    %c0_i32_1 = arith.constant 0 : i32
    return %c0_i32, %c0_i32_0 : i32, i32
  }
  func.func @transform_4(%arg0: i32) -> (i32, i32) {
    %c0_i32 = arith.constant 0 : i32
    %c0_i32_0 = arith.constant 0 : i32
    %c0_i32_1 = arith.constant 0 : i32
    return %c0_i32, %c0_i32_0 : i32, i32
  }
  func.func @transform_5(%arg0: i32) -> (i32, i32) {
    %c0_i32 = arith.constant 0 : i32
    %c0_i32_0 = arith.constant 0 : i32
    %c0_i32_1 = arith.constant 0 : i32
    return %c0_i32, %c0_i32_0 : i32, i32
  }
  func.func @transform_6(%arg0: i32) -> (i32, i32) {
    %c0_i32 = arith.constant 0 : i32
    %c0_i32_0 = arith.constant 0 : i32
    %c0_i32_1 = arith.constant 0 : i32
    return %c0_i32, %c0_i32_0 : i32, i32
  }
  func.func @transform_7(%arg0: i32) -> (i32, i32) {
    %c0_i32 = arith.constant 0 : i32
    %c0_i32_0 = arith.constant 0 : i32
    %c0_i32_1 = arith.constant 0 : i32
    return %c0_i32, %c0_i32_0 : i32, i32
  }
  func.func @transform_8(%arg0: i32) -> (i32, i32) {
    %c0_i32 = arith.constant 0 : i32
    %c0_i32_0 = arith.constant 0 : i32
    %c0_i32_1 = arith.constant 0 : i32
    return %c0_i32, %c0_i32_0 : i32, i32
  }
  func.func @transform_9(%arg0: i32) -> (i32, i32) {
    %c0_i32 = arith.constant 0 : i32
    %c0_i32_0 = arith.constant 0 : i32
    %c0_i32_1 = arith.constant 0 : i32
    return %c0_i32, %c0_i32_0 : i32, i32
  }
  func.func @transform_10(%arg0: i32) -> (i32, i32) {
    %c0_i32 = arith.constant 0 : i32
    %c0_i32_0 = arith.constant 0 : i32
    %c0_i32_1 = arith.constant 0 : i32
    return %c0_i32, %c0_i32_0 : i32, i32
  }
  func.func @transform_11(%arg0: i32) -> (i32, i32) {
    %c0_i32 = arith.constant 0 : i32
    %c0_i32_0 = arith.constant 0 : i32
    return %c0_i32, %arg0 : i32, i32
  }
}

</mosaic_0001>

<llo_original>
// kernel: tpu_custom_call.1
$region0: #{tpu_custom_call.1}
  #allocation0 [shape = 'u32[]', space=smem, size = 0x4, offset = 0x4, fixed_abs, tag = 'smem constant byte address 0x4 - core index']
  #allocation1 [shape = 'u32[144,128]{1,0:T(1,128)}', space=vmem, size = 0x12000, scoped, tag = 'internal scratch']
  #allocation2 [shape = 'f32[1,1]{1,0:T(1,128)S(6)}', space=smem, size = 0x200, scoped, tag = 'scoped memory for tpu_custom_call.1']
  %s0 = inlined_call_operand.vmem [shape: f32[3,256], index: 0, kind: input, shape index: {}]
  %s1 = inlined_call_operand.vmem [shape: f32[416,3], index: 1, kind: input, shape index: {}]
  %s2 = inlined_call_operand.vmem [shape: f32[416,1], index: 2, kind: input, shape index: {}]
  %s3 = inlined_call_operand.vmem [shape: f32[96,32], index: 3, kind: input, shape index: {}]
  %s4 = inlined_call_operand.vmem [shape: f32[32,32], index: 4, kind: input, shape index: {}]
  %s5 = inlined_call_operand.vmem [shape: f32[96,32], index: 5, kind: input, shape index: {}]
  %s6 = inlined_call_operand.vmem [shape: f32[32,32], index: 6, kind: input, shape index: {}]
  %s7 = inlined_call_operand.vmem [shape: f32[96,32], index: 7, kind: input, shape index: {}]
  %s8 = inlined_call_operand.vmem [shape: f32[32,32], index: 8, kind: input, shape index: {}]
  %s9 = inlined_call_operand.vmem [shape: f32[32,1], index: 9, kind: input, shape index: {}]
  %s10 = inlined_call_operand.<no memory space> [shape: f32[1,1], index: 10, kind: input, shape index: {}]
  %s11 = inlined_call_operand.hbm [shape: f32[1,256], index: 11, kind: output, shape index: {}]
  %s12 = sld [smem:[#allocation0]]
  $region77: #{tpu_custom_call.1} parent=0
    _
  %s14 = ssub.s32 1, %s12
  %s15 = scalar_select 0, %s14, %s12
  %16 = sst [smem:[#allocation2]] %s10
  $region1: #{tpu_custom_call.1} parent=0
    #allocation3 [shape = 'u8[1024]{0}', space=vmem, size = 0x400, scoped, tag = 'output window, operand 0']
    #allocation4 [shape = 's32[2]{0}', space=sflag, size = 0x8, scoped, tag = 'scoped memory for tpu_custom_call.1']
    %17 = vsyncpa [#allocation4], 0
    %s18 = scalar_lea.sflag [#allocation4], 1
    %19 = vsyncpa %s18, 0
    loop: start=0, step=1, limit=4
    $region2: #{tpu_custom_call.1} parent=1 // loop_pre_header
      _
    $region3: #{tpu_custom_call.1} parent=1 // loop_header
      %s21 = sphi 0, %s25
      %p22 = scmp.ge.s32.totalorder %s21, 4
      %s31 = sphi 0, %s33
      %s34 = sphi 0, %s31
      %s35 = sphi 0, %s34
      %s51 = sphi 0, %s35
      %s55 = sphi 0, %s55
      %s57 = sphi 0, %s55
      %s58 = sphi 0, %s57
      %s72 = sphi 0, %s58
      %s76 = sphi 0, %s76
      %s78 = sphi 0, %s76
      %s79 = sphi 0, %s78
      %s93 = sphi 0, %s79
      %s97 = sphi 0, %s97
      %s99 = sphi 0, %s97
      %s100 = sphi 0, %s99
      %s114 = sphi 0, %s100
      %s118 = sphi 0, %s118
      %s120 = sphi 0, %s118
      %s121 = sphi 0, %s120
      %s135 = sphi 0, %s121
      %s139 = sphi 0, %s139
      %s141 = sphi 0, %s139
      %s142 = sphi 0, %s141
      %s156 = sphi 0, %s142
      %s160 = sphi 0, %s160
      %s162 = sphi 0, %s160
      %s163 = sphi 0, %s162
      %s177 = sphi 0, %s163
      %s181 = sphi 0, %s181
      %s183 = sphi 0, %s181
      %s184 = sphi 0, %s183
      %s198 = sphi 0, %s184
      %s202 = sphi 0, %s202
      %s204 = sphi 0, %s202
      %s205 = sphi 0, %s204
      %s219 = sphi 0, %s205
      %s223 = sphi 0, %s223
      %s225 = sphi 0, %s223
      %s226 = sphi 0, %s225
      %s240 = sphi 0, %s226
      %s244 = sphi 0, %s244
      %s246 = sphi 0, %s244
      %s247 = sphi 0, %s246
      %s261 = sphi 0, %s247
      %s267 = sphi 0, %s269
      %s270 = sphi 0, %s267
      %s271 = sphi 0, %s270
      %s287 = sphi 0, %s271
    $region4: #{tpu_custom_call.1} parent=1 // loop_header_branch
      %24 = sbr.rel (%p22) target = $region8
    $region5: #{tpu_custom_call.1} parent=1 // loop_body
      %s26 = ssub.s32 %s21, 1
      %s27 = ssub.s32 %s21, 2
      %s28 = sadd.s32 %s21, 1
      %s29 = ssub.s32 %s21, %s28
      %p30 = scmp.eq.s32.totalorder %s29, 0
      %s32 = sadd.s32 %s31, 1
      %s33 = scalar_select %p30, %s31, %s32
      %p36 = pneg %p30
      %p37 = scmp.eq.s32.totalorder %s21, 1
      %p38 = por %p36, %p37
      %p39 = scmp.ne.s32.totalorder %s31, %s34
      %p40 = scmp.eq.s32.totalorder %s21, 0
      %p41 = por %p39, %p40
      %p42 = scmp.ne.s32.totalorder %s31, %s34
      %p43 = scmp.eq.s32.totalorder %s26, 1
      %p44 = por %p42, %p43
      %p45 = scmp.ne.s32.totalorder %s34, %s35
      %p46 = scmp.eq.s32.totalorder %s26, 0
      %p47 = por %p45, %p46
      %p48 = scmp.ne.s32.totalorder %s34, %s35
      %p49 = scmp.eq.s32.totalorder %s27, 1
      %p50 = por %p48, %p49
      %p52 = scmp.ne.s32.totalorder %s35, %s51
      %p53 = scmp.eq.s32.totalorder %s27, 0
      %p54 = por %p52, %p53
      %s56 = sadd.s32 %s55, 1
      %p59 = scmp.eq.s32.totalorder %s21, 1
      %p60 = scmp.ne.s32.totalorder %s55, %s57
      %p61 = scmp.eq.s32.totalorder %s21, 0
      %p62 = por %p60, %p61
      %p63 = scmp.ne.s32.totalorder %s55, %s57
      %p64 = scmp.eq.s32.totalorder %s26, 1
      %p65 = por %p63, %p64
      %p66 = scmp.ne.s32.totalorder %s57, %s58
      %p67 = scmp.eq.s32.totalorder %s26, 0
      %p68 = por %p66, %p67
      %p69 = scmp.ne.s32.totalorder %s57, %s58
      %p70 = scmp.eq.s32.totalorder %s27, 1
      %p71 = por %p69, %p70
      %p73 = scmp.ne.s32.totalorder %s58, %s72
      %p74 = scmp.eq.s32.totalorder %s27, 0
      %p75 = por %p73, %p74
      %s77 = sadd.s32 %s76, 1
      %p80 = scmp.eq.s32.totalorder %s21, 1
      %p81 = scmp.ne.s32.totalorder %s76, %s78
      %p82 = scmp.eq.s32.totalorder %s21, 0
      %p83 = por %p81, %p82
      %p84 = scmp.ne.s32.totalorder %s76, %s78
      %p85 = scmp.eq.s32.totalorder %s26, 1
      %p86 = por %p84, %p85
      %p87 = scmp.ne.s32.totalorder %s78, %s79
      %p88 = scmp.eq.s32.totalorder %s26, 0
      %p89 = por %p87, %p88
      %p90 = scmp.ne.s32.totalorder %s78, %s79
      %p91 = scmp.eq.s32.totalorder %s27, 1
      %p92 = por %p90, %p91
      %p94 = scmp.ne.s32.totalorder %s79, %s93
      %p95 = scmp.eq.s32.totalorder %s27, 0
      %p96 = por %p94, %p95
      %s98 = sadd.s32 %s97, 1
      %p101 = scmp.eq.s32.totalorder %s21, 1
      %p102 = scmp.ne.s32.totalorder %s97, %s99
      %p103 = scmp.eq.s32.totalorder %s21, 0
      %p104 = por %p102, %p103
      %p105 = scmp.ne.s32.totalorder %s97, %s99
      %p106 = scmp.eq.s32.totalorder %s26, 1
      %p107 = por %p105, %p106
      %p108 = scmp.ne.s32.totalorder %s99, %s100
      %p109 = scmp.eq.s32.totalorder %s26, 0
      %p110 = por %p108, %p109
      %p111 = scmp.ne.s32.totalorder %s99, %s100
      %p112 = scmp.eq.s32.totalorder %s27, 1
      %p113 = por %p111, %p112
      %p115 = scmp.ne.s32.totalorder %s100, %s114
      %p116 = scmp.eq.s32.totalorder %s27, 0
      %p117 = por %p115, %p116
      %s119 = sadd.s32 %s118, 1
      %p122 = scmp.eq.s32.totalorder %s21, 1
      %p123 = scmp.ne.s32.totalorder %s118, %s120
      %p124 = scmp.eq.s32.totalorder %s21, 0
      %p125 = por %p123, %p124
      %p126 = scmp.ne.s32.totalorder %s118, %s120
      %p127 = scmp.eq.s32.totalorder %s26, 1
      %p128 = por %p126, %p127
      %p129 = scmp.ne.s32.totalorder %s120, %s121
      %p130 = scmp.eq.s32.totalorder %s26, 0
      %p131 = por %p129, %p130
      %p132 = scmp.ne.s32.totalorder %s120, %s121
      %p133 = scmp.eq.s32.totalorder %s27, 1
      %p134 = por %p132, %p133
      %p136 = scmp.ne.s32.totalorder %s121, %s135
      %p137 = scmp.eq.s32.totalorder %s27, 0
      %p138 = por %p136, %p137
      %s140 = sadd.s32 %s139, 1
      %p143 = scmp.eq.s32.totalorder %s21, 1
      %p144 = scmp.ne.s32.totalorder %s139, %s141
      %p145 = scmp.eq.s32.totalorder %s21, 0
      %p146 = por %p144, %p145
      %p147 = scmp.ne.s32.totalorder %s139, %s141
      %p148 = scmp.eq.s32.totalorder %s26, 1
      %p149 = por %p147, %p148
      %p150 = scmp.ne.s32.totalorder %s141, %s142
      %p151 = scmp.eq.s32.totalorder %s26, 0
      %p152 = por %p150, %p151
      %p153 = scmp.ne.s32.totalorder %s141, %s142
      %p154 = scmp.eq.s32.totalorder %s27, 1
      %p155 = por %p153, %p154
      %p157 = scmp.ne.s32.totalorder %s142, %s156
      %p158 = scmp.eq.s32.totalorder %s27, 0
      %p159 = por %p157, %p158
      %s161 = sadd.s32 %s160, 1
      %p164 = scmp.eq.s32.totalorder %s21, 1
      %p165 = scmp.ne.s32.totalorder %s160, %s162
      %p166 = scmp.eq.s32.totalorder %s21, 0
      %p167 = por %p165, %p166
      %p168 = scmp.ne.s32.totalorder %s160, %s162
      %p169 = scmp.eq.s32.totalorder %s26, 1
      %p170 = por %p168, %p169
      %p171 = scmp.ne.s32.totalorder %s162, %s163
      %p172 = scmp.eq.s32.totalorder %s26, 0
      %p173 = por %p171, %p172
      %p174 = scmp.ne.s32.totalorder %s162, %s163
      %p175 = scmp.eq.s32.totalorder %s27, 1
      %p176 = por %p174, %p175
      %p178 = scmp.ne.s32.totalorder %s163, %s177
      %p179 = scmp.eq.s32.totalorder %s27, 0
      %p180 = por %p178, %p179
      %s182 = sadd.s32 %s181, 1
      %p185 = scmp.eq.s32.totalorder %s21, 1
      %p186 = scmp.ne.s32.totalorder %s181, %s183
      %p187 = scmp.eq.s32.totalorder %s21, 0
      %p188 = por %p186, %p187
      %p189 = scmp.ne.s32.totalorder %s181, %s183
      %p190 = scmp.eq.s32.totalorder %s26, 1
      %p191 = por %p189, %p190
      %p192 = scmp.ne.s32.totalorder %s183, %s184
      %p193 = scmp.eq.s32.totalorder %s26, 0
      %p194 = por %p192, %p193
      %p195 = scmp.ne.s32.totalorder %s183, %s184
      %p196 = scmp.eq.s32.totalorder %s27, 1
      %p197 = por %p195, %p196
      %p199 = scmp.ne.s32.totalorder %s184, %s198
      %p200 = scmp.eq.s32.totalorder %s27, 0
      %p201 = por %p199, %p200
      %s203 = sadd.s32 %s202, 1
      %p206 = scmp.eq.s32.totalorder %s21, 1
      %p207 = scmp.ne.s32.totalorder %s202, %s204
      %p208 = scmp.eq.s32.totalorder %s21, 0
      %p209 = por %p207, %p208
      %p210 = scmp.ne.s32.totalorder %s202, %s204
      %p211 = scmp.eq.s32.totalorder %s26, 1
      %p212 = por %p210, %p211
      %p213 = scmp.ne.s32.totalorder %s204, %s205
      %p214 = scmp.eq.s32.totalorder %s26, 0
      %p215 = por %p213, %p214
      %p216 = scmp.ne.s32.totalorder %s204, %s205
      %p217 = scmp.eq.s32.totalorder %s27, 1
      %p218 = por %p216, %p217
      %p220 = scmp.ne.s32.totalorder %s205, %s219
      %p221 = scmp.eq.s32.totalorder %s27, 0
      %p222 = por %p220, %p221
      %s224 = sadd.s32 %s223, 1
      %p227 = scmp.eq.s32.totalorder %s21, 1
      %p228 = scmp.ne.s32.totalorder %s223, %s225
      %p229 = scmp.eq.s32.totalorder %s21, 0
      %p230 = por %p228, %p229
      %p231 = scmp.ne.s32.totalorder %s223, %s225
      %p232 = scmp.eq.s32.totalorder %s26, 1
      %p233 = por %p231, %p232
      %p234 = scmp.ne.s32.totalorder %s225, %s226
      %p235 = scmp.eq.s32.totalorder %s26, 0
      %p236 = por %p234, %p235
      %p237 = scmp.ne.s32.totalorder %s225, %s226
      %p238 = scmp.eq.s32.totalorder %s27, 1
      %p239 = por %p237, %p238
      %p241 = scmp.ne.s32.totalorder %s226, %s240
      %p242 = scmp.eq.s32.totalorder %s27, 0
      %p243 = por %p241, %p242
      %s245 = sadd.s32 %s244, 1
      %p248 = scmp.eq.s32.totalorder %s21, 1
      %p249 = scmp.ne.s32.totalorder %s244, %s246
      %p250 = scmp.eq.s32.totalorder %s21, 0
      %p251 = por %p249, %p250
      %p252 = scmp.ne.s32.totalorder %s244, %s246
      %p253 = scmp.eq.s32.totalorder %s26, 1
      %p254 = por %p252, %p253
      %p255 = scmp.ne.s32.totalorder %s246, %s247
      %p256 = scmp.eq.s32.totalorder %s26, 0
      %p257 = por %p255, %p256
      %p258 = scmp.ne.s32.totalorder %s246, %s247
      %p259 = scmp.eq.s32.totalorder %s27, 1
      %p260 = por %p258, %p259
      %p262 = scmp.ne.s32.totalorder %s247, %s261
      %p263 = scmp.eq.s32.totalorder %s27, 0
      %p264 = por %p262, %p263
      %s265 = ssub.s32 %s21, %s28
      %p266 = scmp.eq.s32.totalorder %s265, 0
      %s268 = sadd.s32 %s267, 1
      %s269 = scalar_select %p266, %s267, %s268
      %p272 = pneg %p266
      %p273 = scmp.eq.s32.totalorder %s21, 1
      %p274 = por %p272, %p273
      %p275 = scmp.ne.s32.totalorder %s267, %s270
      %p276 = scmp.eq.s32.totalorder %s21, 0
      %p277 = por %p275, %p276
      %p278 = scmp.ne.s32.totalorder %s267, %s270
      %p279 = scmp.eq.s32.totalorder %s26, 1
      %p280 = por %p278, %p279
      %p281 = scmp.ne.s32.totalorder %s270, %s271
      %p282 = scmp.eq.s32.totalorder %s26, 0
      %p283 = por %p281, %p282
      %p284 = scmp.ne.s32.totalorder %s270, %s271
      %p285 = scmp.eq.s32.totalorder %s27, 1
      %p286 = por %p284, %p285
      %p288 = scmp.ne.s32.totalorder %s271, %s287
      %p289 = scmp.eq.s32.totalorder %s27, 0
      %p290 = por %p288, %p289
      %p291 = scmp.le.s32.totalorder 1, %s21
      %p292 = scmp.lt.s32.totalorder %s21, 3
      %p293 = pnand %p291, %p292
      %p294 = pneg %p293
      // Predicated region
      $region9: #{tpu_custom_call.1} parent=5 // pred_check
        _
      $region10: #{tpu_custom_call.1} parent=5 // pred_check_branch
        %296 = sbr.rel (%p293) target = $region12
      $region11: #{tpu_custom_call.1} parent=5 // pred_region
        %s297 = ssub.s32 %s21, 1
        // Predicated region
        $region13: #{tpu_custom_call.1} parent=11 // pred_check
          %p298 = pneg %p68
        $region14: #{tpu_custom_call.1} parent=11 // pred_check_branch
          %300 = sbr.rel (%p298) target = $region16
        $region15: #{tpu_custom_call.1} parent=11 // pred_region
          _
        $region16: #{tpu_custom_call.1} parent=11 // pred_fallthru
          _
        // Predicated region
        $region17: #{tpu_custom_call.1} parent=11 // pred_check
          %p301 = pneg %p89
        $region18: #{tpu_custom_call.1} parent=11 // pred_check_branch
          %303 = sbr.rel (%p301) target = $region20
        $region19: #{tpu_custom_call.1} parent=11 // pred_region
          _
        $region20: #{tpu_custom_call.1} parent=11 // pred_fallthru
          _
        // Predicated region
        $region21: #{tpu_custom_call.1} parent=11 // pred_check
          %p304 = pneg %p110
        $region22: #{tpu_custom_call.1} parent=11 // pred_check_branch
          %306 = sbr.rel (%p304) target = $region24
        $region23: #{tpu_custom_call.1} parent=11 // pred_region
          _
        $region24: #{tpu_custom_call.1} parent=11 // pred_fallthru
          _
        // Predicated region
        $region25: #{tpu_custom_call.1} parent=11 // pred_check
          %p307 = pneg %p131
        $region26: #{tpu_custom_call.1} parent=11 // pred_check_branch
          %309 = sbr.rel (%p307) target = $region28
        $region27: #{tpu_custom_call.1} parent=11 // pred_region
          _
        $region28: #{tpu_custom_call.1} parent=11 // pred_fallthru
          _
        // Predicated region
        $region29: #{tpu_custom_call.1} parent=11 // pred_check
          %p310 = pneg %p152
        $region30: #{tpu_custom_call.1} parent=11 // pred_check_branch
          %312 = sbr.rel (%p310) target = $region32
        $region31: #{tpu_custom_call.1} parent=11 // pred_region
          _
        $region32: #{tpu_custom_call.1} parent=11 // pred_fallthru
          _
        // Predicated region
        $region33: #{tpu_custom_call.1} parent=11 // pred_check
          %p313 = pneg %p173
        $region34: #{tpu_custom_call.1} parent=11 // pred_check_branch
          %315 = sbr.rel (%p313) target = $region36
        $region35: #{tpu_custom_call.1} parent=11 // pred_region
          _
        $region36: #{tpu_custom_call.1} parent=11 // pred_fallthru
          _
        // Predicated region
        $region37: #{tpu_custom_call.1} parent=11 // pred_check
          %p316 = pneg %p194
        $region38: #{tpu_custom_call.1} parent=11 // pred_check_branch
          %318 = sbr.rel (%p316) target = $region40
        $region39: #{tpu_custom_call.1} parent=11 // pred_region
          _
        $region40: #{tpu_custom_call.1} parent=11 // pred_fallthru
          _
        // Predicated region
        $region41: #{tpu_custom_call.1} parent=11 // pred_check
          %p319 = pneg %p215
        $region42: #{tpu_custom_call.1} parent=11 // pred_check_branch
          %321 = sbr.rel (%p319) target = $region44
        $region43: #{tpu_custom_call.1} parent=11 // pred_region
          _
        $region44: #{tpu_custom_call.1} parent=11 // pred_fallthru
          _
        // Predicated region
        $region45: #{tpu_custom_call.1} parent=11 // pred_check
          %p322 = pneg %p236
        $region46: #{tpu_custom_call.1} parent=11 // pred_check_branch
          %324 = sbr.rel (%p322) target = $region48
        $region47: #{tpu_custom_call.1} parent=11 // pred_region
          _
        $region48: #{tpu_custom_call.1} parent=11 // pred_fallthru
          _
        // Predicated region
        $region49: #{tpu_custom_call.1} parent=11 // pred_check
          %p325 = pneg %p257
        $region50: #{tpu_custom_call.1} parent=11 // pred_check_branch
          %327 = sbr.rel (%p325) target = $region52
        $region51: #{tpu_custom_call.1} parent=11 // pred_region
          _
        $region52: #{tpu_custom_call.1} parent=11 // pred_fallthru
          _
      $region12: #{tpu_custom_call.1} parent=5 // pred_fallthru
        _
      %p328 = scmp.lt.s32.totalorder %s21, 2
      // Predicated region
      $region53: #{tpu_custom_call.1} parent=5 // pred_check
        %p329 = pneg %p328
      $region54: #{tpu_custom_call.1} parent=5 // pred_check_branch
        %331 = sbr.rel (%p329) target = $region56
      $region55: #{tpu_custom_call.1} parent=5 // pred_region
        // Predicated region
        $region57: #{tpu_custom_call.1} parent=55 // pred_check
          %p332 = pneg %p41
        $region58: #{tpu_custom_call.1} parent=55 // pred_check_branch
          %334 = sbr.rel (%p332) target = $region60
        $region59: #{tpu_custom_call.1} parent=55 // pred_region
          %p335 = scmp.lt.s32.totalorder %s21, 1
          %s336 = scalar_select %p335, %s21, 1
          %s337 = smul.addr %s336, 4
          %s338 = scalar_lea.vmem %s0, %s337
        $region60: #{tpu_custom_call.1} parent=55 // pred_fallthru
          _
      $region56: #{tpu_custom_call.1} parent=5 // pred_fallthru
        _
      %p339 = scmp.le.s32.totalorder 1, %s21
      %p340 = scmp.lt.s32.totalorder %s21, 3
      %p341 = pnand %p339, %p340
      %p342 = pneg %p341
      // Predicated region
      $region61: #{tpu_custom_call.1} parent=5 // pred_check
        _
      $region62: #{tpu_custom_call.1} parent=5 // pred_check_branch
        %344 = sbr.rel (%p341) target = $region64
      $region63: #{tpu_custom_call.1} parent=5 // pred_region
        %s345 = ssub.s32 %s21, 1
        %p346 = scmp.lt.s32.totalorder %s26, 1
        %s347 = scalar_select %p346, %s26, 1
        %s348 = smul.addr %s347, 4
        %s349 = scalar_lea.vmem %s0, %s348
        %p350 = pneg %p47
        %p351 = pneg %p44
        %p352 = pneg %p68
        %p353 = pneg %p65
        %p354 = pneg %p89
        %p355 = pneg %p86
        %p356 = pneg %p110
        %p357 = pneg %p107
        %p358 = pneg %p131
        %p359 = pneg %p128
        %p360 = pneg %p152
        %p361 = pneg %p149
        %p362 = pneg %p173
        %p363 = pneg %p170
        %p364 = pneg %p194
        %p365 = pneg %p191
        %p366 = pneg %p215
        %p367 = pneg %p212
        %p368 = pneg %p236
        %p369 = pneg %p233
        %p370 = pneg %p257
        %p371 = pneg %p254
        %p372 = pneg %p283
        %p373 = pneg %p280
        %s374 = sand.u32 %s270, 1
        %s375 = scalar_lea.sflag [#allocation4], %s374
        %s376 = sand.u32 %s270, 1
        %s377 = scalar_lea.vmem [#allocation3], %s376
        %p378 = scmp.lt.s32.totalorder %s26, 1
        %s379 = scalar_select %p378, %s26, 1
        %s380 = smul.addr %s379, 4
        %s381 = scalar_lea.vmem %s0, %s380
        %v382 = vld [vmem:[%s381] sm:$0x7]
        %v383 = vld [vmem:[%s1] sm:$0xff]
        %v384 = vld [vmem:[%s1 + $0x8] sm:$0xff]
        %v385 = vld [vmem:[%s1 + $0x10] sm:$0xff]
        %v386 = vld [vmem:[%s1 + $0x18] sm:$0xff]
        %v387 = vld [vmem:[%s1 + $0x20] sm:$0xff]
        %v388 = vld [vmem:[%s1 + $0x28] sm:$0xff]
        %v389 = vld [vmem:[%s1 + $0x30] sm:$0xff]
        %v390 = vld [vmem:[%s1 + $0x38] sm:$0xff]
        %v391 = vld [vmem:[%s1 + $0x40] sm:$0xff]
        %v392 = vld [vmem:[%s1 + $0x48] sm:$0xff]
        %v393 = vld [vmem:[%s1 + $0x50] sm:$0xff]
        %v394 = vld [vmem:[%s1 + $0x58] sm:$0xff]
        %v395 = vld [vmem:[%s1 + $0x60] sm:$0xff]
        %v396 = vld [vmem:[%s1 + $0x68] sm:$0xff]
        %v397 = vld [vmem:[%s1 + $0x70] sm:$0xff]
        %v398 = vld [vmem:[%s1 + $0x78] sm:$0xff]
        %v399 = vld [vmem:[%s1 + $0x80] sm:$0xff]
        %v400 = vld [vmem:[%s1 + $0x88] sm:$0xff]
        %v401 = vld [vmem:[%s1 + $0x90] sm:$0xff]
        %v402 = vld [vmem:[%s1 + $0x98] sm:$0xff]
        %v403 = vld [vmem:[%s1 + $0xa0] sm:$0xff]
        %v404 = vld [vmem:[%s1 + $0xa8] sm:$0xff]
        %v405 = vld [vmem:[%s1 + $0xb0] sm:$0xff]
        %v406 = vld [vmem:[%s1 + $0xb8] sm:$0xff]
        %v407 = vld [vmem:[%s1 + $0xc0] sm:$0xff]
        %v408 = vld [vmem:[%s1 + $0xc8] sm:$0xff]
        %v409 = vld [vmem:[%s1 + $0xd0] sm:$0xff]
        %v410 = vld [vmem:[%s1 + $0xd8] sm:$0xff]
        %v411 = vld [vmem:[%s1 + $0xe0] sm:$0xff]
        %v412 = vld [vmem:[%s1 + $0xe8] sm:$0xff]
        %v413 = vld [vmem:[%s1 + $0xf0] sm:$0xff]
        %v414 = vld [vmem:[%s1 + $0xf8] sm:$0xff]
        %v415 = vld [vmem:[%s1 + $0x100] sm:$0xff]
        %v416 = vld [vmem:[%s1 + $0x108] sm:$0xff]
        %v417 = vld [vmem:[%s1 + $0x110] sm:$0xff]
        %v418 = vld [vmem:[%s1 + $0x118] sm:$0xff]
        %v419 = vld [vmem:[%s1 + $0x120] sm:$0xff]
        %v420 = vld [vmem:[%s1 + $0x128] sm:$0xff]
        %v421 = vld [vmem:[%s1 + $0x130] sm:$0xff]
        %v422 = vld [vmem:[%s1 + $0x138] sm:$0xff]
        %v423 = vld [vmem:[%s1 + $0x140] sm:$0xff]
        %v424 = vld [vmem:[%s1 + $0x148] sm:$0xff]
        %v425 = vld [vmem:[%s1 + $0x150] sm:$0xff]
        %v426 = vld [vmem:[%s1 + $0x158] sm:$0xff]
        %v427 = vld [vmem:[%s1 + $0x160] sm:$0xff]
        %v428 = vld [vmem:[%s1 + $0x168] sm:$0xff]
        %v429 = vld [vmem:[%s1 + $0x170] sm:$0xff]
        %v430 = vld [vmem:[%s1 + $0x178] sm:$0xff]
        %v431 = vld [vmem:[%s1 + $0x180] sm:$0xff]
        %v432 = vld [vmem:[%s1 + $0x188] sm:$0xff]
        %v433 = vld [vmem:[%s1 + $0x190] sm:$0xff]
        %v434 = vld [vmem:[%s1 + $0x198] sm:$0xff]
        %v435 = vld [vmem:[%s2] sm:$0xff]
        %v436 = vld [vmem:[%s2 + $0x8] sm:$0xff]
        %v437 = vld [vmem:[%s2 + $0x10] sm:$0xff]
        %v438 = vld [vmem:[%s2 + $0x18] sm:$0xff]
        %v439 = vld [vmem:[%s2 + $0x20] sm:$0xff]
        %v440 = vld [vmem:[%s2 + $0x28] sm:$0xff]
        %v441 = vld [vmem:[%s2 + $0x30] sm:$0xff]
        %v442 = vld [vmem:[%s2 + $0x38] sm:$0xff]
        %v443 = vld [vmem:[%s2 + $0x40] sm:$0xff]
        %v444 = vld [vmem:[%s2 + $0x48] sm:$0xff]
        %v445 = vld [vmem:[%s2 + $0x50] sm:$0xff]
        %v446 = vld [vmem:[%s2 + $0x58] sm:$0xff]
        %v447 = vld [vmem:[%s2 + $0x60] sm:$0xff]
        %v448 = vld [vmem:[%s2 + $0x68] sm:$0xff]
        %v449 = vld [vmem:[%s2 + $0x70] sm:$0xff]
        %v450 = vld [vmem:[%s2 + $0x78] sm:$0xff]
        %v451 = vld [vmem:[%s2 + $0x80] sm:$0xff]
        %v452 = vld [vmem:[%s2 + $0x88] sm:$0xff]
        %v453 = vld [vmem:[%s2 + $0x90] sm:$0xff]
        %v454 = vld [vmem:[%s2 + $0x98] sm:$0xff]
        %v455 = vld [vmem:[%s2 + $0xa0] sm:$0xff]
        %v456 = vld [vmem:[%s2 + $0xa8] sm:$0xff]
        %v457 = vld [vmem:[%s2 + $0xb0] sm:$0xff]
        %v458 = vld [vmem:[%s2 + $0xb8] sm:$0xff]
        %v459 = vld [vmem:[%s2 + $0xc0] sm:$0xff]
        %v460 = vld [vmem:[%s2 + $0xc8] sm:$0xff]
        %v461 = vld [vmem:[%s2 + $0xd0] sm:$0xff]
        %v462 = vld [vmem:[%s2 + $0xd8] sm:$0xff]
        %v463 = vld [vmem:[%s2 + $0xe0] sm:$0xff]
        %v464 = vld [vmem:[%s2 + $0xe8] sm:$0xff]
        %v465 = vld [vmem:[%s2 + $0xf0] sm:$0xff]
        %v466 = vld [vmem:[%s2 + $0xf8] sm:$0xff]
        %v467 = vld [vmem:[%s2 + $0x100] sm:$0xff]
        %v468 = vld [vmem:[%s2 + $0x108] sm:$0xff]
        %v469 = vld [vmem:[%s2 + $0x110] sm:$0xff]
        %v470 = vld [vmem:[%s2 + $0x118] sm:$0xff]
        %v471 = vld [vmem:[%s2 + $0x120] sm:$0xff]
        %v472 = vld [vmem:[%s2 + $0x128] sm:$0xff]
        %v473 = vld [vmem:[%s2 + $0x130] sm:$0xff]
        %v474 = vld [vmem:[%s2 + $0x138] sm:$0xff]
        %v475 = vld [vmem:[%s2 + $0x140] sm:$0xff]
        %v476 = vld [vmem:[%s2 + $0x148] sm:$0xff]
        %v477 = vld [vmem:[%s2 + $0x150] sm:$0xff]
        %v478 = vld [vmem:[%s2 + $0x158] sm:$0xff]
        %v479 = vld [vmem:[%s2 + $0x160] sm:$0xff]
        %v480 = vld [vmem:[%s2 + $0x168] sm:$0xff]
        %v481 = vld [vmem:[%s2 + $0x170] sm:$0xff]
        %v482 = vld [vmem:[%s2 + $0x178] sm:$0xff]
        %v483 = vld [vmem:[%s2 + $0x180] sm:$0xff]
        %v484 = vld [vmem:[%s2 + $0x188] sm:$0xff]
        %v485 = vld [vmem:[%s2 + $0x190] sm:$0xff]
        %v486 = vld [vmem:[%s2 + $0x198] sm:$0xff]
        %488 = vset.pattern.permute.xlu0 0
        %489 = vperm.xlu0 %488, %v435
        %v490 = vpop.permute.xlu0 %489
        %493 = vset.pattern.permute.xlu0 0
        %494 = vperm.xlu0 %493, %v436
        %v495 = vpop.permute.xlu0 %494
        %498 = vset.pattern.permute.xlu0 0
        %499 = vperm.xlu0 %498, %v437
        %v500 = vpop.permute.xlu0 %499
        %503 = vset.pattern.permute.xlu0 0
        %504 = vperm.xlu0 %503, %v438
        %v505 = vpop.permute.xlu0 %504
        %508 = vset.pattern.permute.xlu0 0
        %509 = vperm.xlu0 %508, %v439
        %v510 = vpop.permute.xlu0 %509
        %513 = vset.pattern.permute.xlu0 0
        %514 = vperm.xlu0 %513, %v440
        %v515 = vpop.permute.xlu0 %514
        %518 = vset.pattern.permute.xlu0 0
        %519 = vperm.xlu0 %518, %v441
        %v520 = vpop.permute.xlu0 %519
        %523 = vset.pattern.permute.xlu0 0
        %524 = vperm.xlu0 %523, %v442
        %v525 = vpop.permute.xlu0 %524
        %528 = vset.pattern.permute.xlu0 0
        %529 = vperm.xlu0 %528, %v443
        %v530 = vpop.permute.xlu0 %529
        %533 = vset.pattern.permute.xlu0 0
        %534 = vperm.xlu0 %533, %v444
        %v535 = vpop.permute.xlu0 %534
        %538 = vset.pattern.permute.xlu0 0
        %539 = vperm.xlu0 %538, %v445
        %v540 = vpop.permute.xlu0 %539
        %543 = vset.pattern.permute.xlu0 0
        %544 = vperm.xlu0 %543, %v446
        %v545 = vpop.permute.xlu0 %544
        %548 = vset.pattern.permute.xlu0 0
        %549 = vperm.xlu0 %548, %v447
        %v550 = vpop.permute.xlu0 %549
        %553 = vset.pattern.permute.xlu0 0
        %554 = vperm.xlu0 %553, %v448
        %v555 = vpop.permute.xlu0 %554
        %558 = vset.pattern.permute.xlu0 0
        %559 = vperm.xlu0 %558, %v449
        %v560 = vpop.permute.xlu0 %559
        %563 = vset.pattern.permute.xlu0 0
        %564 = vperm.xlu0 %563, %v450
        %v565 = vpop.permute.xlu0 %564
        %568 = vset.pattern.permute.xlu0 0
        %569 = vperm.xlu0 %568, %v451
        %v570 = vpop.permute.xlu0 %569
        %573 = vset.pattern.permute.xlu0 0
        %574 = vperm.xlu0 %573, %v452
        %v575 = vpop.permute.xlu0 %574
        %578 = vset.pattern.permute.xlu0 0
        %579 = vperm.xlu0 %578, %v453
        %v580 = vpop.permute.xlu0 %579
        %583 = vset.pattern.permute.xlu0 0
        %584 = vperm.xlu0 %583, %v454
        %v585 = vpop.permute.xlu0 %584
        %588 = vset.pattern.permute.xlu0 0
        %589 = vperm.xlu0 %588, %v455
        %v590 = vpop.permute.xlu0 %589
        %593 = vset.pattern.permute.xlu0 0
        %594 = vperm.xlu0 %593, %v456
        %v595 = vpop.permute.xlu0 %594
        %598 = vset.pattern.permute.xlu0 0
        %599 = vperm.xlu0 %598, %v457
        %v600 = vpop.permute.xlu0 %599
        %603 = vset.pattern.permute.xlu0 0
        %604 = vperm.xlu0 %603, %v458
        %v605 = vpop.permute.xlu0 %604
        %608 = vset.pattern.permute.xlu0 0
        %609 = vperm.xlu0 %608, %v459
        %v610 = vpop.permute.xlu0 %609
        %613 = vset.pattern.permute.xlu0 0
        %614 = vperm.xlu0 %613, %v460
        %v615 = vpop.permute.xlu0 %614
        %618 = vset.pattern.permute.xlu0 0
        %619 = vperm.xlu0 %618, %v461
        %v620 = vpop.permute.xlu0 %619
        %623 = vset.pattern.permute.xlu0 0
        %624 = vperm.xlu0 %623, %v462
        %v625 = vpop.permute.xlu0 %624
        %628 = vset.pattern.permute.xlu0 0
        %629 = vperm.xlu0 %628, %v463
        %v630 = vpop.permute.xlu0 %629
        %633 = vset.pattern.permute.xlu0 0
        %634 = vperm.xlu0 %633, %v464
        %v635 = vpop.permute.xlu0 %634
        %638 = vset.pattern.permute.xlu0 0
        %639 = vperm.xlu0 %638, %v465
        %v640 = vpop.permute.xlu0 %639
        %643 = vset.pattern.permute.xlu0 0
        %644 = vperm.xlu0 %643, %v466
        %v645 = vpop.permute.xlu0 %644
        %648 = vset.pattern.permute.xlu0 0
        %649 = vperm.xlu0 %648, %v467
        %v650 = vpop.permute.xlu0 %649
        %653 = vset.pattern.permute.xlu0 0
        %654 = vperm.xlu0 %653, %v468
        %v655 = vpop.permute.xlu0 %654
        %658 = vset.pattern.permute.xlu0 0
        %659 = vperm.xlu0 %658, %v469
        %v660 = vpop.permute.xlu0 %659
        %663 = vset.pattern.permute.xlu0 0
        %664 = vperm.xlu0 %663, %v470
        %v665 = vpop.permute.xlu0 %664
        %668 = vset.pattern.permute.xlu0 0
        %669 = vperm.xlu0 %668, %v471
        %v670 = vpop.permute.xlu0 %669
        %673 = vset.pattern.permute.xlu0 0
        %674 = vperm.xlu0 %673, %v472
        %v675 = vpop.permute.xlu0 %674
        %678 = vset.pattern.permute.xlu0 0
        %679 = vperm.xlu0 %678, %v473
        %v680 = vpop.permute.xlu0 %679
        %683 = vset.pattern.permute.xlu0 0
        %684 = vperm.xlu0 %683, %v474
        %v685 = vpop.permute.xlu0 %684
        %688 = vset.pattern.permute.xlu0 0
        %689 = vperm.xlu0 %688, %v475
        %v690 = vpop.permute.xlu0 %689
        %693 = vset.pattern.permute.xlu0 0
        %694 = vperm.xlu0 %693, %v476
        %v695 = vpop.permute.xlu0 %694
        %698 = vset.pattern.permute.xlu0 0
        %699 = vperm.xlu0 %698, %v477
        %v700 = vpop.permute.xlu0 %699
        %703 = vset.pattern.permute.xlu0 0
        %704 = vperm.xlu0 %703, %v478
        %v705 = vpop.permute.xlu0 %704
        %708 = vset.pattern.permute.xlu0 0
        %709 = vperm.xlu0 %708, %v479
        %v710 = vpop.permute.xlu0 %709
        %713 = vset.pattern.permute.xlu0 0
        %714 = vperm.xlu0 %713, %v480
        %v715 = vpop.permute.xlu0 %714
        %718 = vset.pattern.permute.xlu0 0
        %719 = vperm.xlu0 %718, %v481
        %v720 = vpop.permute.xlu0 %719
        %723 = vset.pattern.permute.xlu0 0
        %724 = vperm.xlu0 %723, %v482
        %v725 = vpop.permute.xlu0 %724
        %728 = vset.pattern.permute.xlu0 0
        %729 = vperm.xlu0 %728, %v483
        %v730 = vpop.permute.xlu0 %729
        %733 = vset.pattern.permute.xlu0 0
        %734 = vperm.xlu0 %733, %v484
        %v735 = vpop.permute.xlu0 %734
        %738 = vset.pattern.permute.xlu0 0
        %739 = vperm.xlu0 %738, %v485
        %v740 = vpop.permute.xlu0 %739
        %743 = vset.pattern.permute.xlu0 0
        %744 = vperm.xlu0 %743, %v486
        %v745 = vpop.permute.xlu0 %744
        %vm747 = vcmask 23552
        %v749 = vsel %vm747, %v383, 0
        %v752 = vsel %vm747, %v384, 0
        %v755 = vsel %vm747, %v385, 0
        %v758 = vsel %vm747, %v386, 0
        %v761 = vsel %vm747, %v387, 0
        %v764 = vsel %vm747, %v388, 0
        %v767 = vsel %vm747, %v389, 0
        %v770 = vsel %vm747, %v390, 0
        %v773 = vsel %vm747, %v391, 0
        %v776 = vsel %vm747, %v392, 0
        %v779 = vsel %vm747, %v393, 0
        %v782 = vsel %vm747, %v394, 0
        %v785 = vsel %vm747, %v395, 0
        %v788 = vsel %vm747, %v396, 0
        %v791 = vsel %vm747, %v397, 0
        %v794 = vsel %vm747, %v398, 0
        %v797 = vsel %vm747, %v399, 0
        %v800 = vsel %vm747, %v400, 0
        %v803 = vsel %vm747, %v401, 0
        %v806 = vsel %vm747, %v402, 0
        %v809 = vsel %vm747, %v403, 0
        %v812 = vsel %vm747, %v404, 0
        %v815 = vsel %vm747, %v405, 0
        %v818 = vsel %vm747, %v406, 0
        %v821 = vsel %vm747, %v407, 0
        %v824 = vsel %vm747, %v408, 0
        %v827 = vsel %vm747, %v409, 0
        %v830 = vsel %vm747, %v410, 0
        %v833 = vsel %vm747, %v411, 0
        %v836 = vsel %vm747, %v412, 0
        %v839 = vsel %vm747, %v413, 0
        %v842 = vsel %vm747, %v414, 0
        %v845 = vsel %vm747, %v415, 0
        %v848 = vsel %vm747, %v416, 0
        %v851 = vsel %vm747, %v417, 0
        %v854 = vsel %vm747, %v418, 0
        %v857 = vsel %vm747, %v419, 0
        %v860 = vsel %vm747, %v420, 0
        %v863 = vsel %vm747, %v421, 0
        %v866 = vsel %vm747, %v422, 0
        %v869 = vsel %vm747, %v423, 0
        %v872 = vsel %vm747, %v424, 0
        %v875 = vsel %vm747, %v425, 0
        %v878 = vsel %vm747, %v426, 0
        %v881 = vsel %vm747, %v427, 0
        %v884 = vsel %vm747, %v428, 0
        %v887 = vsel %vm747, %v429, 0
        %v890 = vsel %vm747, %v430, 0
        %v893 = vsel %vm747, %v431, 0
        %v896 = vsel %vm747, %v432, 0
        %v899 = vsel %vm747, %v433, 0
        %v902 = vsel %vm747, %v434, 0
        %vm904 = vcmask 1042432
        %v906 = vsel %vm904, %v382, 0
        %908 = vmatprep.subr.mxu0 0.0
        %v909 = vand.u32 %v906, 4294901760
        %910 = vmatpush1.msra.mxu0 %v909
        %911 = vmatprep.subr.mxu0 0.0
        %912 = vmatpush1.msra.mxu0 0.0
        %913 = vmatprep.subr.mxu0 0.0
        %914 = vmatpush1.msra.mxu0 0.0
        %915 = vmatprep.subr.mxu0 0.0
        %916 = vmatpush1.msra.mxu0 0.0
        %917 = vmatprep.subr.mxu0 0.0
        %918 = vmatpush1.msra.mxu0 0.0
        %919 = vmatprep.subr.mxu0 0.0
        %920 = vmatpush1.msra.mxu0 0.0
        %921 = vmatprep.subr.mxu0 0.0
        %922 = vmatpush1.msra.mxu0 0.0
        %923 = vmatprep.subr.mxu0 0.0
        %924 = vmatpush1.msra.mxu0 0.0
        %925 = vmatprep.subr.mxu0 0.0
        %926 = vmatpush1.msra.mxu0 0.0
        %927 = vmatprep.subr.mxu0 0.0
        %928 = vmatpush1.msra.mxu0 0.0
        %929 = vmatprep.subr.mxu0 0.0
        %930 = vmatpush1.msra.mxu0 0.0
        %931 = vmatprep.subr.mxu0 0.0
        %932 = vmatpush1.msra.mxu0 0.0
        %933 = vmatprep.subr.mxu0 0.0
        %934 = vmatpush1.msra.mxu0 0.0
        %935 = vmatprep.subr.mxu0 0.0
        %936 = vmatpush1.msra.mxu0 0.0
        %937 = vmatprep.subr.mxu0 0.0
        %938 = vmatpush1.msra.mxu0 0.0
        %939 = vmatprep.subr.mxu0 0.0
        %940 = vmatpush1.msra.mxu0 0.0
        %941 = vmatprep.subr.mxu0 0.0
        %942 = vmatpush1.msra.mxu0 0.0
        %943 = vmatprep.subr.mxu0 0.0
        %944 = vmatpush1.msra.mxu0 0.0
        %945 = vmatprep.subr.mxu0 0.0
        %946 = vmatpush1.msra.mxu0 0.0
        %947 = vmatprep.subr.mxu0 0.0
        %948 = vmatpush1.msra.mxu0 0.0
        %949 = vmatprep.subr.mxu0 0.0
        %950 = vmatpush1.msra.mxu0 0.0
        %951 = vmatprep.subr.mxu0 0.0
        %952 = vmatpush1.msra.mxu0 0.0
        %953 = vmatprep.subr.mxu0 0.0
        %954 = vmatpush1.msra.mxu0 0.0
        %955 = vmatprep.subr.mxu0 0.0
        %956 = vmatpush1.msra.mxu0 0.0
        %957 = vmatprep.subr.mxu0 0.0
        %958 = vmatpush1.msra.mxu0 0.0
        %959 = vmatprep.subr.mxu0 0.0
        %960 = vmatpush1.msra.mxu0 0.0
        %961 = vmatprep.subr.mxu0 0.0
        %962 = vmatpush1.msra.mxu0 0.0
        %963 = vmatprep.subr.mxu0 0.0
        %964 = vmatpush1.msra.mxu0 0.0
        %965 = vmatprep.subr.mxu0 0.0
        %966 = vmatpush1.msra.mxu0 0.0
        %967 = vmatprep.subr.mxu0 0.0
        %968 = vmatpush1.msra.mxu0 0.0
        %969 = vmatprep.subr.mxu0 0.0
        %970 = vmatpush1.msra.mxu0 0.0
        %971 = vmatprep.subr.mxu0 0.0
        %972 = vmatpush1.msra.mxu0 0.0
        %973 = vmatprep.mubr.f32.mxu0 0.0
        %v974 = vand.u32 %v749, 4294901760
        %v975 = vsub.f32 %v749, %v974
        %v976 = vand.u32 %v975, 4294901760
        %v977 = vsub.f32 %v975, %v976
        %v978 = vand.u32 %v977, 4294901760
        %979 = vmatmul.mubr.f32.gmra.mrb[0].mxu0 %v978
        %v980 = vpop.f32.mrb[0].mxu0
        %v981 = vadd.f32 %v490, %v980
        %v982 = vpop.f32.mrb[0].mxu0
        %983 = vmatprep.mubr.f32.mxu0 0.0
        %v984 = vand.u32 %v752, 4294901760
        %v985 = vsub.f32 %v752, %v984
        %v986 = vand.u32 %v985, 4294901760
        %v987 = vsub.f32 %v985, %v986
        %v988 = vand.u32 %v987, 4294901760
        %989 = vmatmul.mubr.f32.gmra.mrb[0].mxu0 %v988
        %v990 = vpop.f32.mrb[0].mxu0
        %v991 = vadd.f32 %v495, %v990
        %v992 = vpop.f32.mrb[0].mxu0
        %993 = vmatprep.mubr.f32.mxu0 0.0
        %v994 = vand.u32 %v755, 4294901760
        %v995 = vsub.f32 %v755, %v994
        %v996 = vand.u32 %v995, 4294901760
        %v997 = vsub.f32 %v995, %v996
        %v998 = vand.u32 %v997, 4294901760
        %999 = vmatmul.mubr.f32.gmra.mrb[0].mxu0 %v998
        %v1000 = vpop.f32.mrb[0].mxu0
        %v1001 = vadd.f32 %v500, %v1000
        %v1002 = vpop.f32.mrb[0].mxu0
        %1003 = vmatprep.mubr.f32.mxu0 0.0
        %v1004 = vand.u32 %v758, 4294901760
        %v1005 = vsub.f32 %v758, %v1004
        %v1006 = vand.u32 %v1005, 4294901760
        %v1007 = vsub.f32 %v1005, %v1006
        %v1008 = vand.u32 %v1007, 4294901760
        %1009 = vmatmul.mubr.f32.gmra.mrb[0].mxu0 %v1008
        %v1010 = vpop.f32.mrb[0].mxu0
        %v1011 = vadd.f32 %v505, %v1010
        %v1012 = vpop.f32.mrb[0].mxu0
        %1013 = vmatprep.mubr.f32.mxu0 0.0
        %v1014 = vand.u32 %v761, 4294901760
        %v1015 = vsub.f32 %v761, %v1014
        %v1016 = vand.u32 %v1015, 4294901760
        %v1017 = vsub.f32 %v1015, %v1016
        %v1018 = vand.u32 %v1017, 4294901760
        %1019 = vmatmul.mubr.f32.gmra.mrb[0].mxu0 %v1018
        %v1020 = vpop.f32.mrb[0].mxu0
        %v1021 = vadd.f32 %v510, %v1020
        %v1022 = vpop.f32.mrb[0].mxu0
        %1023 = vmatprep.mubr.f32.mxu0 0.0
        %v1024 = vand.u32 %v764, 4294901760
        %v1025 = vsub.f32 %v764, %v1024
        %v1026 = vand.u32 %v1025, 4294901760
        %v1027 = vsub.f32 %v1025, %v1026
        %v1028 = vand.u32 %v1027, 4294901760
        %1029 = vmatmul.mubr.f32.gmra.mrb[0].mxu0 %v1028
        %v1030 = vpop.f32.mrb[0].mxu0
        %v1031 = vadd.f32 %v515, %v1030
        %v1032 = vpop.f32.mrb[0].mxu0
        %1033 = vmatprep.mubr.f32.mxu0 0.0
        %v1034 = vand.u32 %v767, 4294901760
        %v1035 = vsub.f32 %v767, %v1034
        %v1036 = vand.u32 %v1035, 4294901760
        %v1037 = vsub.f32 %v1035, %v1036
        %v1038 = vand.u32 %v1037, 4294901760
        %1039 = vmatmul.mubr.f32.gmra.mrb[0].mxu0 %v1038
        %v1040 = vpop.f32.mrb[0].mxu0
        %v1041 = vadd.f32 %v520, %v1040
        %v1042 = vpop.f32.mrb[0].mxu0
        %1043 = vmatprep.mubr.f32.mxu0 0.0
        %v1044 = vand.u32 %v770, 4294901760
        %v1045 = vsub.f32 %v770, %v1044
        %v1046 = vand.u32 %v1045, 4294901760
        %v1047 = vsub.f32 %v1045, %v1046
        %v1048 = vand.u32 %v1047, 4294901760
        %1049 = vmatmul.mubr.f32.gmra.mrb[0].mxu0 %v1048
        %v1050 = vpop.f32.mrb[0].mxu0
        %v1051 = vadd.f32 %v525, %v1050
        %v1052 = vpop.f32.mrb[0].mxu0
        %1053 = vmatprep.mubr.f32.mxu0 0.0
        %v1054 = vand.u32 %v773, 4294901760
        %v1055 = vsub.f32 %v773, %v1054
        %v1056 = vand.u32 %v1055, 4294901760
        %v1057 = vsub.f32 %v1055, %v1056
        %v1058 = vand.u32 %v1057, 4294901760
        %1059 = vmatmul.mubr.f32.gmra.mrb[0].mxu0 %v1058
        %v1060 = vpop.f32.mrb[0].mxu0
        %v1061 = vadd.f32 %v530, %v1060
        %v1062 = vpop.f32.mrb[0].mxu0
        %1063 = vmatprep.mubr.f32.mxu0 0.0
        %v1064 = vand.u32 %v776, 4294901760
        %v1065 = vsub.f32 %v776, %v1064
        %v1066 = vand.u32 %v1065, 4294901760
        %v1067 = vsub.f32 %v1065, %v1066
        %v1068 = vand.u32 %v1067, 4294901760
        %1069 = vmatmul.mubr.f32.gmra.mrb[0].mxu0 %v1068
        %v1070 = vpop.f32.mrb[0].mxu0
        %v1071 = vadd.f32 %v535, %v1070
        %v1072 = vpop.f32.mrb[0].mxu0
        %1073 = vmatprep.mubr.f32.mxu0 0.0
        %v1074 = vand.u32 %v779, 4294901760
        %v1075 = vsub.f32 %v779, %v1074
        %v1076 = vand.u32 %v1075, 4294901760
        %v1077 = vsub.f32 %v1075, %v1076
        %v1078 = vand.u32 %v1077, 4294901760
        %1079 = vmatmul.mubr.f32.gmra.mrb[0].mxu0 %v1078
        %v1080 = vpop.f32.mrb[0].mxu0
        %v1081 = vadd.f32 %v540, %v1080
        %v1082 = vpop.f32.mrb[0].mxu0
        %1083 = vmatprep.mubr.f32.mxu0 0.0
        %v1084 = vand.u32 %v782, 4294901760
        %v1085 = vsub.f32 %v782, %v1084
        %v1086 = vand.u32 %v1085, 4294901760
        %v1087 = vsub.f32 %v1085, %v1086
        %v1088 = vand.u32 %v1087, 4294901760
        %1089 = vmatmul.mubr.f32.gmra.mrb[0].mxu0 %v1088
        %v1090 = vpop.f32.mrb[0].mxu0
        %v1091 = vadd.f32 %v545, %v1090
        %v1092 = vpop.f32.mrb[0].mxu0
        %1093 = vmatprep.mubr.f32.mxu0 0.0
        %v1094 = vand.u32 %v785, 4294901760
        %v1095 = vsub.f32 %v785, %v1094
        %v1096 = vand.u32 %v1095, 4294901760
        %v1097 = vsub.f32 %v1095, %v1096
        %v1098 = vand.u32 %v1097, 4294901760
        %1099 = vmatmul.mubr.f32.gmra.mrb[0].mxu0 %v1098
        %v1100 = vpop.f32.mrb[0].mxu0
        %v1101 = vadd.f32 %v550, %v1100
        %v1102 = vpop.f32.mrb[0].mxu0
        %1103 = vmatprep.mubr.f32.mxu0 0.0
        %v1104 = vand.u32 %v788, 4294901760
        %v1105 = vsub.f32 %v788, %v1104
        %v1106 = vand.u32 %v1105, 4294901760
        %v1107 = vsub.f32 %v1105, %v1106
        %v1108 = vand.u32 %v1107, 4294901760
        %1109 = vmatmul.mubr.f32.gmra.mrb[0].mxu0 %v1108
        %v1110 = vpop.f32.mrb[0].mxu0
        %v1111 = vadd.f32 %v555, %v1110
        %v1112 = vpop.f32.mrb[0].mxu0
        %1113 = vmatprep.mubr.f32.mxu0 0.0
        %v1114 = vand.u32 %v791, 4294901760
        %v1115 = vsub.f32 %v791, %v1114
        %v1116 = vand.u32 %v1115, 4294901760
        %v1117 = vsub.f32 %v1115, %v1116
        %v1118 = vand.u32 %v1117, 4294901760
        %1119 = vmatmul.mubr.f32.gmra.mrb[0].mxu0 %v1118
        %v1120 = vpop.f32.mrb[0].mxu0
        %v1121 = vadd.f32 %v560, %v1120
        %v1122 = vpop.f32.mrb[0].mxu0
        %1123 = vmatprep.mubr.f32.mxu0 0.0
        %v1124 = vand.u32 %v794, 4294901760
        %v1125 = vsub.f32 %v794, %v1124
        %v1126 = vand.u32 %v1125, 4294901760
        %v1127 = vsub.f32 %v1125, %v1126
        %v1128 = vand.u32 %v1127, 4294901760
        %1129 = vmatmul.mubr.f32.gmra.mrb[0].mxu0 %v1128
        %v1130 = vpop.f32.mrb[0].mxu0
        %v1131 = vadd.f32 %v565, %v1130
        %v1132 = vpop.f32.mrb[0].mxu0
        %1133 = vmatprep.mubr.f32.mxu0 0.0
        %v1134 = vand.u32 %v797, 4294901760
        %v1135 = vsub.f32 %v797, %v1134
        %v1136 = vand.u32 %v1135, 4294901760
        %v1137 = vsub.f32 %v1135, %v1136
        %v1138 = vand.u32 %v1137, 4294901760
        %1139 = vmatmul.mubr.f32.gmra.mrb[0].mxu0 %v1138
        %v1140 = vpop.f32.mrb[0].mxu0
        %v1141 = vadd.f32 %v570, %v1140
        %v1142 = vpop.f32.mrb[0].mxu0
        %1143 = vmatprep.mubr.f32.mxu0 0.0
        %v1144 = vand.u32 %v800, 4294901760
        %v1145 = vsub.f32 %v800, %v1144
        %v1146 = vand.u32 %v1145, 4294901760
        %v1147 = vsub.f32 %v1145, %v1146
        %v1148 = vand.u32 %v1147, 4294901760
        %1149 = vmatmul.mubr.f32.gmra.mrb[0].mxu0 %v1148
        %v1150 = vpop.f32.mrb[0].mxu0
        %v1151 = vadd.f32 %v575, %v1150
        %v1152 = vpop.f32.mrb[0].mxu0
        %1153 = vmatprep.mubr.f32.mxu0 0.0
        %v1154 = vand.u32 %v803, 4294901760
        %v1155 = vsub.f32 %v803, %v1154
        %v1156 = vand.u32 %v1155, 4294901760
        %v1157 = vsub.f32 %v1155, %v1156
        %v1158 = vand.u32 %v1157, 4294901760
        %1159 = vmatmul.mubr.f32.gmra.mrb[0].mxu0 %v1158
        %v1160 = vpop.f32.mrb[0].mxu0
        %v1161 = vadd.f32 %v580, %v1160
        %v1162 = vpop.f32.mrb[0].mxu0
        %1163 = vmatprep.mubr.f32.mxu0 0.0
        %v1164 = vand.u32 %v806, 4294901760
        %v1165 = vsub.f32 %v806, %v1164
        %v1166 = vand.u32 %v1165, 4294901760
        %v1167 = vsub.f32 %v1165, %v1166
        %v1168 = vand.u32 %v1167, 4294901760
        %1169 = vmatmul.mubr.f32.gmra.mrb[0].mxu0 %v1168
        %v1170 = vpop.f32.mrb[0].mxu0
        %v1171 = vadd.f32 %v585, %v1170
        %v1172 = vpop.f32.mrb[0].mxu0
        %1173 = vmatprep.mubr.f32.mxu0 0.0
        %v1174 = vand.u32 %v809, 4294901760
        %v1175 = vsub.f32 %v809, %v1174
        %v1176 = vand.u32 %v1175, 4294901760
        %v1177 = vsub.f32 %v1175, %v1176
        %v1178 = vand.u32 %v1177, 4294901760
        %1179 = vmatmul.mubr.f32.gmra.mrb[0].mxu0 %v1178
        %v1180 = vpop.f32.mrb[0].mxu0
        %v1181 = vadd.f32 %v590, %v1180
        %v1182 = vpop.f32.mrb[0].mxu0
        %1183 = vmatprep.mubr.f32.mxu0 0.0
        %v1184 = vand.u32 %v812, 4294901760
        %v1185 = vsub.f32 %v812, %v1184
        %v1186 = vand.u32 %v1185, 4294901760
        %v1187 = vsub.f32 %v1185, %v1186
        %v1188 = vand.u32 %v1187, 4294901760
        %1189 = vmatmul.mubr.f32.gmra.mrb[0].mxu0 %v1188
        %v1190 = vpop.f32.mrb[0].mxu0
        %v1191 = vadd.f32 %v595, %v1190
        %v1192 = vpop.f32.mrb[0].mxu0
        %1193 = vmatprep.mubr.f32.mxu0 0.0
        %v1194 = vand.u32 %v815, 4294901760
        %v1195 = vsub.f32 %v815, %v1194
        %v1196 = vand.u32 %v1195, 4294901760
        %v1197 = vsub.f32 %v1195, %v1196
        %v1198 = vand.u32 %v1197, 4294901760
        %1199 = vmatmul.mubr.f32.gmra.mrb[0].mxu0 %v1198
        %v1200 = vpop.f32.mrb[0].mxu0
        %v1201 = vadd.f32 %v600, %v1200
        %v1202 = vpop.f32.mrb[0].mxu0
        %1203 = vmatprep.mubr.f32.mxu0 0.0
        %v1204 = vand.u32 %v818, 4294901760
        %v1205 = vsub.f32 %v818, %v1204
        %v1206 = vand.u32 %v1205, 4294901760
        %v1207 = vsub.f32 %v1205, %v1206
        %v1208 = vand.u32 %v1207, 4294901760
        %1209 = vmatmul.mubr.f32.gmra.mrb[0].mxu0 %v1208
        %v1210 = vpop.f32.mrb[0].mxu0
        %v1211 = vadd.f32 %v605, %v1210
        %v1212 = vpop.f32.mrb[0].mxu0
        %1213 = vmatprep.mubr.f32.mxu0 0.0
        %v1214 = vand.u32 %v821, 4294901760
        %v1215 = vsub.f32 %v821, %v1214
        %v1216 = vand.u32 %v1215, 4294901760
        %v1217 = vsub.f32 %v1215, %v1216
        %v1218 = vand.u32 %v1217, 4294901760
        %1219 = vmatmul.mubr.f32.gmra.mrb[0].mxu0 %v1218
        %v1220 = vpop.f32.mrb[0].mxu0
        %v1221 = vadd.f32 %v610, %v1220
        %v1222 = vpop.f32.mrb[0].mxu0
        %1223 = vmatprep.mubr.f32.mxu0 0.0
        %v1224 = vand.u32 %v824, 4294901760
        %v1225 = vsub.f32 %v824, %v1224
        %v1226 = vand.u32 %v1225, 4294901760
        %v1227 = vsub.f32 %v1225, %v1226
        %v1228 = vand.u32 %v1227, 4294901760
        %1229 = vmatmul.mubr.f32.gmra.mrb[0].mxu0 %v1228
        %v1230 = vpop.f32.mrb[0].mxu0
        %v1231 = vadd.f32 %v615, %v1230
        %v1232 = vpop.f32.mrb[0].mxu0
        %1233 = vmatprep.mubr.f32.mxu0 0.0
        %v1234 = vand.u32 %v827, 4294901760
        %v1235 = vsub.f32 %v827, %v1234
        %v1236 = vand.u32 %v1235, 4294901760
        %v1237 = vsub.f32 %v1235, %v1236
        %v1238 = vand.u32 %v1237, 4294901760
        %1239 = vmatmul.mubr.f32.gmra.mrb[0].mxu0 %v1238
        %v1240 = vpop.f32.mrb[0].mxu0
        %v1241 = vadd.f32 %v620, %v1240
        %v1242 = vpop.f32.mrb[0].mxu0
        %1243 = vmatprep.mubr.f32.mxu0 0.0
        %v1244 = vand.u32 %v830, 4294901760
        %v1245 = vsub.f32 %v830, %v1244
        %v1246 = vand.u32 %v1245, 4294901760
        %v1247 = vsub.f32 %v1245, %v1246
        %v1248 = vand.u32 %v1247, 4294901760
        %1249 = vmatmul.mubr.f32.gmra.mrb[0].mxu0 %v1248
        %v1250 = vpop.f32.mrb[0].mxu0
        %v1251 = vadd.f32 %v625, %v1250
        %v1252 = vpop.f32.mrb[0].mxu0
        %1253 = vmatprep.mubr.f32.mxu0 0.0
        %v1254 = vand.u32 %v833, 4294901760
        %v1255 = vsub.f32 %v833, %v1254
        %v1256 = vand.u32 %v1255, 4294901760
        %v1257 = vsub.f32 %v1255, %v1256
        %v1258 = vand.u32 %v1257, 4294901760
        %1259 = vmatmul.mubr.f32.gmra.mrb[0].mxu0 %v1258
        %v1260 = vpop.f32.mrb[0].mxu0
        %v1261 = vadd.f32 %v630, %v1260
        %v1262 = vpop.f32.mrb[0].mxu0
        %1263 = vmatprep.mubr.f32.mxu0 0.0
        %v1264 = vand.u32 %v836, 4294901760
        %v1265 = vsub.f32 %v836, %v1264
        %v1266 = vand.u32 %v1265, 4294901760
        %v1267 = vsub.f32 %v1265, %v1266
        %v1268 = vand.u32 %v1267, 4294901760
        %1269 = vmatmul.mubr.f32.gmra.mrb[0].mxu0 %v1268
        %v1270 = vpop.f32.mrb[0].mxu0
        %v1271 = vadd.f32 %v635, %v1270
        %v1272 = vpop.f32.mrb[0].mxu0
        %1273 = vmatprep.mubr.f32.mxu0 0.0
        %v1274 = vand.u32 %v839, 4294901760
        %v1275 = vsub.f32 %v839, %v1274
        %v1276 = vand.u32 %v1275, 4294901760
        %v1277 = vsub.f32 %v1275, %v1276
        %v1278 = vand.u32 %v1277, 4294901760
        %1279 = vmatmul.mubr.f32.gmra.mrb[0].mxu0 %v1278
        %v1280 = vpop.f32.mrb[0].mxu0
        %v1281 = vadd.f32 %v640, %v1280
        %v1282 = vpop.f32.mrb[0].mxu0
        %1283 = vmatprep.mubr.f32.mxu0 0.0
        %v1284 = vand.u32 %v842, 4294901760
        %v1285 = vsub.f32 %v842, %v1284
        %v1286 = vand.u32 %v1285, 4294901760
        %v1287 = vsub.f32 %v1285, %v1286
        %v1288 = vand.u32 %v1287, 4294901760
        %1289 = vmatmul.mubr.f32.gmra.mrb[0].mxu0 %v1288
        %v1290 = vpop.f32.mrb[0].mxu0
        %v1291 = vadd.f32 %v645, %v1290
        %v1292 = vpop.f32.mrb[0].mxu0
        %1293 = vmatprep.mubr.f32.mxu0 0.0
        %v1294 = vand.u32 %v845, 4294901760
        %v1295 = vsub.f32 %v845, %v1294
        %v1296 = vand.u32 %v1295, 4294901760
        %v1297 = vsub.f32 %v1295, %v1296
        %v1298 = vand.u32 %v1297, 4294901760
        %1299 = vmatmul.mubr.f32.gmra.mrb[0].mxu0 %v1298
        %v1300 = vpop.f32.mrb[0].mxu0
        %v1301 = vadd.f32 %v650, %v1300
        %v1302 = vpop.f32.mrb[0].mxu0
        %1303 = vmatprep.mubr.f32.mxu0 0.0
        %v1304 = vand.u32 %v848, 4294901760
        %v1305 = vsub.f32 %v848, %v1304
        %v1306 = vand.u32 %v1305, 4294901760
        %v1307 = vsub.f32 %v1305, %v1306
        %v1308 = vand.u32 %v1307, 4294901760
        %1309 = vmatmul.mubr.f32.gmra.mrb[0].mxu0 %v1308
        %v1310 = vpop.f32.mrb[0].mxu0
        %v1311 = vadd.f32 %v655, %v1310
        %v1312 = vpop.f32.mrb[0].mxu0
        %1313 = vmatprep.mubr.f32.mxu0 0.0
        %v1314 = vand.u32 %v851, 4294901760
        %v1315 = vsub.f32 %v851, %v1314
        %v1316 = vand.u32 %v1315, 4294901760
        %v1317 = vsub.f32 %v1315, %v1316
        %v1318 = vand.u32 %v1317, 4294901760
        %1319 = vmatmul.mubr.f32.gmra.mrb[0].mxu0 %v1318
        %v1320 = vpop.f32.mrb[0].mxu0
        %v1321 = vadd.f32 %v660, %v1320
        %v1322 = vpop.f32.mrb[0].mxu0
        %1323 = vmatprep.mubr.f32.mxu0 0.0
        %v1324 = vand.u32 %v854, 4294901760
        %v1325 = vsub.f32 %v854, %v1324
        %v1326 = vand.u32 %v1325, 4294901760
        %v1327 = vsub.f32 %v1325, %v1326
        %v1328 = vand.u32 %v1327, 4294901760
        %1329 = vmatmul.mubr.f32.gmra.mrb[0].mxu0 %v1328
        %v1330 = vpop.f32.mrb[0].mxu0
        %v1331 = vadd.f32 %v665, %v1330
        %v1332 = vpop.f32.mrb[0].mxu0
        %1333 = vmatprep.mubr.f32.mxu0 0.0
        %v1334 = vand.u32 %v857, 4294901760
        %v1335 = vsub.f32 %v857, %v1334
        %v1336 = vand.u32 %v1335, 4294901760
        %v1337 = vsub.f32 %v1335, %v1336
        %v1338 = vand.u32 %v1337, 4294901760
        %1339 = vmatmul.mubr.f32.gmra.mrb[0].mxu0 %v1338
        %v1340 = vpop.f32.mrb[0].mxu0
        %v1341 = vadd.f32 %v670, %v1340
        %v1342 = vpop.f32.mrb[0].mxu0
        %1343 = vmatprep.mubr.f32.mxu0 0.0
        %v1344 = vand.u32 %v860, 4294901760
        %v1345 = vsub.f32 %v860, %v1344
        %v1346 = vand.u32 %v1345, 4294901760
        %v1347 = vsub.f32 %v1345, %v1346
        %v1348 = vand.u32 %v1347, 4294901760
        %1349 = vmatmul.mubr.f32.gmra.mrb[0].mxu0 %v1348
        %v1350 = vpop.f32.mrb[0].mxu0
        %v1351 = vadd.f32 %v675, %v1350
        %v1352 = vpop.f32.mrb[0].mxu0
        %1353 = vmatprep.mubr.f32.mxu0 0.0
        %v1354 = vand.u32 %v863, 4294901760
        %v1355 = vsub.f32 %v863, %v1354
        %v1356 = vand.u32 %v1355, 4294901760
        %v1357 = vsub.f32 %v1355, %v1356
        %v1358 = vand.u32 %v1357, 4294901760
        %1359 = vmatmul.mubr.f32.gmra.mrb[0].mxu0 %v1358
        %v1360 = vpop.f32.mrb[0].mxu0
        %v1361 = vadd.f32 %v680, %v1360
        %v1362 = vpop.f32.mrb[0].mxu0
        %1363 = vmatprep.mubr.f32.mxu0 0.0
        %v1364 = vand.u32 %v866, 4294901760
        %v1365 = vsub.f32 %v866, %v1364
        %v1366 = vand.u32 %v1365, 4294901760
        %v1367 = vsub.f32 %v1365, %v1366
        %v1368 = vand.u32 %v1367, 4294901760
        %1369 = vmatmul.mubr.f32.gmra.mrb[0].mxu0 %v1368
        %v1370 = vpop.f32.mrb[0].mxu0
        %v1371 = vadd.f32 %v685, %v1370
        %v1372 = vpop.f32.mrb[0].mxu0
        %1373 = vmatprep.mubr.f32.mxu0 0.0
        %v1374 = vand.u32 %v869, 4294901760
        %v1375 = vsub.f32 %v869, %v1374
        %v1376 = vand.u32 %v1375, 4294901760
        %v1377 = vsub.f32 %v1375, %v1376
        %v1378 = vand.u32 %v1377, 4294901760
        %1379 = vmatmul.mubr.f32.gmra.mrb[0].mxu0 %v1378
        %v1380 = vpop.f32.mrb[0].mxu0
        %v1381 = vadd.f32 %v690, %v1380
        %v1382 = vpop.f32.mrb[0].mxu0
        %1383 = vmatprep.mubr.f32.mxu0 0.0
        %v1384 = vand.u32 %v872, 4294901760
        %v1385 = vsub.f32 %v872, %v1384
        %v1386 = vand.u32 %v1385, 4294901760
        %v1387 = vsub.f32 %v1385, %v1386
        %v1388 = vand.u32 %v1387, 4294901760
        %1389 = vmatmul.mubr.f32.gmra.mrb[0].mxu0 %v1388
        %v1390 = vpop.f32.mrb[0].mxu0
        %v1391 = vadd.f32 %v695, %v1390
        %v1392 = vpop.f32.mrb[0].mxu0
        %1393 = vmatprep.mubr.f32.mxu0 0.0
        %v1394 = vand.u32 %v875, 4294901760
        %v1395 = vsub.f32 %v875, %v1394
        %v1396 = vand.u32 %v1395, 4294901760
        %v1397 = vsub.f32 %v1395, %v1396
        %v1398 = vand.u32 %v1397, 4294901760
        %1399 = vmatmul.mubr.f32.gmra.mrb[0].mxu0 %v1398
        %v1400 = vpop.f32.mrb[0].mxu0
        %v1401 = vadd.f32 %v700, %v1400
        %v1402 = vpop.f32.mrb[0].mxu0
        %1403 = vmatprep.mubr.f32.mxu0 0.0
        %v1404 = vand.u32 %v878, 4294901760
        %v1405 = vsub.f32 %v878, %v1404
        %v1406 = vand.u32 %v1405, 4294901760
        %v1407 = vsub.f32 %v1405, %v1406
        %v1408 = vand.u32 %v1407, 4294901760
        %1409 = vmatmul.mubr.f32.gmra.mrb[0].mxu0 %v1408
        %v1410 = vpop.f32.mrb[0].mxu0
        %v1411 = vadd.f32 %v705, %v1410
        %v1412 = vpop.f32.mrb[0].mxu0
        %1413 = vmatprep.mubr.f32.mxu0 0.0
        %v1414 = vand.u32 %v881, 4294901760
        %v1415 = vsub.f32 %v881, %v1414
        %v1416 = vand.u32 %v1415, 4294901760
        %v1417 = vsub.f32 %v1415, %v1416
        %v1418 = vand.u32 %v1417, 4294901760
        %1419 = vmatmul.mubr.f32.gmra.mrb[0].mxu0 %v1418
        %v1420 = vpop.f32.mrb[0].mxu0
        %v1421 = vadd.f32 %v710, %v1420
        %v1422 = vpop.f32.mrb[0].mxu0
        %1423 = vmatprep.mubr.f32.mxu0 0.0
        %v1424 = vand.u32 %v884, 4294901760
        %v1425 = vsub.f32 %v884, %v1424
        %v1426 = vand.u32 %v1425, 4294901760
        %v1427 = vsub.f32 %v1425, %v1426
        %v1428 = vand.u32 %v1427, 4294901760
        %1429 = vmatmul.mubr.f32.gmra.mrb[0].mxu0 %v1428
        %v1430 = vpop.f32.mrb[0].mxu0
        %v1431 = vadd.f32 %v715, %v1430
        %v1432 = vpop.f32.mrb[0].mxu0
        %1433 = vmatprep.mubr.f32.mxu0 0.0
        %v1434 = vand.u32 %v887, 4294901760
        %v1435 = vsub.f32 %v887, %v1434
        %v1436 = vand.u32 %v1435, 4294901760
        %v1437 = vsub.f32 %v1435, %v1436
        %v1438 = vand.u32 %v1437, 4294901760
        %1439 = vmatmul.mubr.f32.gmra.mrb[0].mxu0 %v1438
        %v1440 = vpop.f32.mrb[0].mxu0
        %v1441 = vadd.f32 %v720, %v1440
        %v1442 = vpop.f32.mrb[0].mxu0
        %1443 = vmatprep.mubr.f32.mxu0 0.0
        %v1444 = vand.u32 %v890, 4294901760
        %v1445 = vsub.f32 %v890, %v1444
        %v1446 = vand.u32 %v1445, 4294901760
        %v1447 = vsub.f32 %v1445, %v1446
        %v1448 = vand.u32 %v1447, 4294901760
        %1449 = vmatmul.mubr.f32.gmra.mrb[0].mxu0 %v1448
        %v1450 = vpop.f32.mrb[0].mxu0
        %v1451 = vadd.f32 %v725, %v1450
        %v1452 = vpop.f32.mrb[0].mxu0
        %1453 = vmatprep.mubr.f32.mxu0 0.0
        %v1454 = vand.u32 %v893, 4294901760
        %v1455 = vsub.f32 %v893, %v1454
        %v1456 = vand.u32 %v1455, 4294901760
        %v1457 = vsub.f32 %v1455, %v1456
        %v1458 = vand.u32 %v1457, 4294901760
        %1459 = vmatmul.mubr.f32.gmra.mrb[0].mxu0 %v1458
        %v1460 = vpop.f32.mrb[0].mxu0
        %v1461 = vadd.f32 %v730, %v1460
        %v1462 = vpop.f32.mrb[0].mxu0
        %1463 = vmatprep.mubr.f32.mxu0 0.0
        %v1464 = vand.u32 %v896, 4294901760
        %v1465 = vsub.f32 %v896, %v1464
        %v1466 = vand.u32 %v1465, 4294901760
        %v1467 = vsub.f32 %v1465, %v1466
        %v1468 = vand.u32 %v1467, 4294901760
        %1469 = vmatmul.mubr.f32.gmra.mrb[0].mxu0 %v1468
        %v1470 = vpop.f32.mrb[0].mxu0
        %v1471 = vadd.f32 %v735, %v1470
        %v1472 = vpop.f32.mrb[0].mxu0
        %1473 = vmatprep.mubr.f32.mxu0 0.0
        %v1474 = vand.u32 %v899, 4294901760
        %v1475 = vsub.f32 %v899, %v1474
        %v1476 = vand.u32 %v1475, 4294901760
        %v1477 = vsub.f32 %v1475, %v1476
        %v1478 = vand.u32 %v1477, 4294901760
        %1479 = vmatmul.mubr.f32.gmra.mrb[0].mxu0 %v1478
        %v1480 = vpop.f32.mrb[0].mxu0
        %v1481 = vadd.f32 %v740, %v1480
        %v1482 = vpop.f32.mrb[0].mxu0
        %1483 = vmatprep.mubr.f32.mxu0 0.0
        %v1484 = vand.u32 %v902, 4294901760
        %v1485 = vsub.f32 %v902, %v1484
        %v1486 = vand.u32 %v1485, 4294901760
        %v1487 = vsub.f32 %v1485, %v1486
        %v1488 = vand.u32 %v1487, 4294901760
        %1489 = vmatmul.mubr.f32.gmra.mrb[0].mxu0 %v1488
        %v1490 = vpop.f32.mrb[0].mxu0
        %v1491 = vadd.f32 %v745, %v1490
        %v1492 = vpop.f32.mrb[0].mxu0
        %1493 = vdwg.mxu0
        %1494 = vmatprep.subr.mxu0 0.0
        %v1495 = vand.u32 %v906, 4294901760
        %v1496 = vsub.f32 %v906, %v1495
        %v1497 = vand.u32 %v1496, 4294901760
        %v1498 = vsub.f32 %v1496, %v1497
        %v1499 = vand.u32 %v1498, 4294901760
        %1500 = vmatpush1.msra.mxu0 %v1499
        %1501 = vmatprep.subr.mxu0 0.0
        %1502 = vmatpush1.msra.mxu0 0.0
        %1503 = vmatprep.subr.mxu0 0.0
        %1504 = vmatpush1.msra.mxu0 0.0
        %1505 = vmatprep.subr.mxu0 0.0
        %1506 = vmatpush1.msra.mxu0 0.0
        %1507 = vmatprep.subr.mxu0 0.0
        %1508 = vmatpush1.msra.mxu0 0.0
        %1509 = vmatprep.subr.mxu0 0.0
        %1510 = vmatpush1.msra.mxu0 0.0
        %1511 = vmatprep.subr.mxu0 0.0
        %1512 = vmatpush1.msra.mxu0 0.0
        %1513 = vmatprep.subr.mxu0 0.0
        %1514 = vmatpush1.msra.mxu0 0.0
        %1515 = vmatprep.subr.mxu0 0.0
        %1516 = vmatpush1.msra.mxu0 0.0
        %1517 = vmatprep.subr.mxu0 0.0
        %1518 = vmatpush1.msra.mxu0 0.0
        %1519 = vmatprep.subr.mxu0 0.0
        %1520 = vmatpush1.msra.mxu0 0.0
        %1521 = vmatprep.subr.mxu0 0.0
        %1522 = vmatpush1.msra.mxu0 0.0
        %1523 = vmatprep.subr.mxu0 0.0
        %1524 = vmatpush1.msra.mxu0 0.0
        %1525 = vmatprep.subr.mxu0 0.0
        %1526 = vmatpush1.msra.mxu0 0.0
        %1527 = vmatprep.subr.mxu0 0.0
        %1528 = vmatpush1.msra.mxu0 0.0
        %1529 = vmatprep.subr.mxu0 0.0
        %1530 = vmatpush1.msra.mxu0 0.0
        %1531 = vmatprep.subr.mxu0 0.0
        %1532 = vmatpush1.msra.mxu0 0.0
        %1533 = vmatprep.subr.mxu0 0.0
        %1534 = vmatpush1.msra.mxu0 0.0
        %1535 = vmatprep.subr.mxu0 0.0
        %1536 = vmatpush1.msra.mxu0 0.0
        %1537 = vmatprep.subr.mxu0 0.0
        %1538 = vmatpush1.msra.mxu0 0.0
        %1539 = vmatprep.subr.mxu0 0.0
        %1540 = vmatpush1.msra.mxu0 0.0
        %1541 = vmatprep.subr.mxu0 0.0
        %1542 = vmatpush1.msra.mxu0 0.0
        %1543 = vmatprep.subr.mxu0 0.0
        %1544 = vmatpush1.msra.mxu0 0.0
        %1545 = vmatprep.subr.mxu0 0.0
        %1546 = vmatpush1.msra.mxu0 0.0
        %1547 = vmatprep.subr.mxu0 0.0
        %1548 = vmatpush1.msra.mxu0 0.0
        %1549 = vmatprep.subr.mxu0 0.0
        %1550 = vmatpush1.msra.mxu0 0.0
        %1551 = vmatprep.subr.mxu0 0.0
        %1552 = vmatpush1.msra.mxu0 0.0
        %1553 = vmatprep.subr.mxu0 0.0
        %1554 = vmatpush1.msra.mxu0 0.0
        %1555 = vmatprep.subr.mxu0 0.0
        %1556 = vmatpush1.msra.mxu0 0.0
        %1557 = vmatprep.subr.mxu0 0.0
        %1558 = vmatpush1.msra.mxu0 0.0
        %1559 = vmatprep.subr.mxu0 0.0
        %1560 = vmatpush1.msra.mxu0 0.0
        %1561 = vmatprep.subr.mxu0 0.0
        %1562 = vmatpush1.msra.mxu0 0.0
        %1563 = vmatprep.mubr.f32.mxu0 0.0
        %v1564 = vand.u32 %v749, 4294901760
        %1565 = vmatmul.mubr.f32.gmra.mrb[0].mxu0 %v1564
        %v1566 = vpop.f32.mrb[0].mxu0
        %v1567 = vadd.f32 %v981, %v1566
        %v1568 = vpop.f32.mrb[0].mxu0
        %1569 = vmatprep.mubr.f32.mxu0 0.0
        %v1570 = vand.u32 %v752, 4294901760
        %1571 = vmatmul.mubr.f32.gmra.mrb[0].mxu0 %v1570
        %v1572 = vpop.f32.mrb[0].mxu0
        %v1573 = vadd.f32 %v991, %v1572
        %v1574 = vpop.f32.mrb[0].mxu0
        %1575 = vmatprep.mubr.f32.mxu0 0.0
        %v1576 = vand.u32 %v755, 4294901760
        %1577 = vmatmul.mubr.f32.gmra.mrb[0].mxu0 %v1576
        %v1578 = vpop.f32.mrb[0].mxu0
        %v1579 = vadd.f32 %v1001, %v1578
        %v1580 = vpop.f32.mrb[0].mxu0
        %1581 = vmatprep.mubr.f32.mxu0 0.0
        %v1582 = vand.u32 %v758, 4294901760
        %1583 = vmatmul.mubr.f32.gmra.mrb[0].mxu0 %v1582
        %v1584 = vpop.f32.mrb[0].mxu0
        %v1585 = vadd.f32 %v1011, %v1584
        %v1586 = vpop.f32.mrb[0].mxu0
        %1587 = vmatprep.mubr.f32.mxu0 0.0
        %v1588 = vand.u32 %v761, 4294901760
        %1589 = vmatmul.mubr.f32.gmra.mrb[0].mxu0 %v1588
        %v1590 = vpop.f32.mrb[0].mxu0
        %v1591 = vadd.f32 %v1021, %v1590
        %v1592 = vpop.f32.mrb[0].mxu0
        %1593 = vmatprep.mubr.f32.mxu0 0.0
        %v1594 = vand.u32 %v764, 4294901760
        %1595 = vmatmul.mubr.f32.gmra.mrb[0].mxu0 %v1594
        %v1596 = vpop.f32.mrb[0].mxu0
        %v1597 = vadd.f32 %v1031, %v1596
        %v1598 = vpop.f32.mrb[0].mxu0
        %1599 = vmatprep.mubr.f32.mxu0 0.0
        %v1600 = vand.u32 %v767, 4294901760
        %1601 = vmatmul.mubr.f32.gmra.mrb[0].mxu0 %v1600
        %v1602 = vpop.f32.mrb[0].mxu0
        %v1603 = vadd.f32 %v1041, %v1602
        %v1604 = vpop.f32.mrb[0].mxu0
        %1605 = vmatprep.mubr.f32.mxu0 0.0
        %v1606 = vand.u32 %v770, 4294901760
        %1607 = vmatmul.mubr.f32.gmra.mrb[0].mxu0 %v1606
        %v1608 = vpop.f32.mrb[0].mxu0
        %v1609 = vadd.f32 %v1051, %v1608
        %v1610 = vpop.f32.mrb[0].mxu0
        %1611 = vmatprep.mubr.f32.mxu0 0.0
        %v1612 = vand.u32 %v773, 4294901760
        %1613 = vmatmul.mubr.f32.gmra.mrb[0].mxu0 %v1612
        %v1614 = vpop.f32.mrb[0].mxu0
        %v1615 = vadd.f32 %v1061, %v1614
        %v1616 = vpop.f32.mrb[0].mxu0
        %1617 = vmatprep.mubr.f32.mxu0 0.0
        %v1618 = vand.u32 %v776, 4294901760
        %1619 = vmatmul.mubr.f32.gmra.mrb[0].mxu0 %v1618
        %v1620 = vpop.f32.mrb[0].mxu0
        %v1621 = vadd.f32 %v1071, %v1620
        %v1622 = vpop.f32.mrb[0].mxu0
        %1623 = vmatprep.mubr.f32.mxu0 0.0
        %v1624 = vand.u32 %v779, 4294901760
        %1625 = vmatmul.mubr.f32.gmra.mrb[0].mxu0 %v1624
        %v1626 = vpop.f32.mrb[0].mxu0
        %v1627 = vadd.f32 %v1081, %v1626
        %v1628 = vpop.f32.mrb[0].mxu0
        %1629 = vmatprep.mubr.f32.mxu0 0.0
        %v1630 = vand.u32 %v782, 4294901760
        %1631 = vmatmul.mubr.f32.gmra.mrb[0].mxu0 %v1630
        %v1632 = vpop.f32.mrb[0].mxu0
        %v1633 = vadd.f32 %v1091, %v1632
        %v1634 = vpop.f32.mrb[0].mxu0
        %1635 = vmatprep.mubr.f32.mxu0 0.0
        %v1636 = vand.u32 %v785, 4294901760
        %1637 = vmatmul.mubr.f32.gmra.mrb[0].mxu0 %v1636
        %v1638 = vpop.f32.mrb[0].mxu0
        %v1639 = vadd.f32 %v1101, %v1638
        %v1640 = vpop.f32.mrb[0].mxu0
        %1641 = vmatprep.mubr.f32.mxu0 0.0
        %v1642 = vand.u32 %v788, 4294901760
        %1643 = vmatmul.mubr.f32.gmra.mrb[0].mxu0 %v1642
        %v1644 = vpop.f32.mrb[0].mxu0
        %v1645 = vadd.f32 %v1111, %v1644
        %v1646 = vpop.f32.mrb[0].mxu0
        %1647 = vmatprep.mubr.f32.mxu0 0.0
        %v1648 = vand.u32 %v791, 4294901760
        %1649 = vmatmul.mubr.f32.gmra.mrb[0].mxu0 %v1648
        %v1650 = vpop.f32.mrb[0].mxu0
        %v1651 = vadd.f32 %v1121, %v1650
        %v1652 = vpop.f32.mrb[0].mxu0
        %1653 = vmatprep.mubr.f32.mxu0 0.0
        %v1654 = vand.u32 %v794, 4294901760
        %1655 = vmatmul.mubr.f32.gmra.mrb[0].mxu0 %v1654
        %v1656 = vpop.f32.mrb[0].mxu0
        %v1657 = vadd.f32 %v1131, %v1656
        %v1658 = vpop.f32.mrb[0].mxu0
        %1659 = vmatprep.mubr.f32.mxu0 0.0
        %v1660 = vand.u32 %v797, 4294901760
        %1661 = vmatmul.mubr.f32.gmra.mrb[0].mxu0 %v1660
        %v1662 = vpop.f32.mrb[0].mxu0
        %v1663 = vadd.f32 %v1141, %v1662
        %v1664 = vpop.f32.mrb[0].mxu0
        %1665 = vmatprep.mubr.f32.mxu0 0.0
        %v1666 = vand.u32 %v800, 4294901760
        %1667 = vmatmul.mubr.f32.gmra.mrb[0].mxu0 %v1666
        %v1668 = vpop.f32.mrb[0].mxu0
        %v1669 = vadd.f32 %v1151, %v1668
        %v1670 = vpop.f32.mrb[0].mxu0
        %1671 = vmatprep.mubr.f32.mxu0 0.0
        %v1672 = vand.u32 %v803, 4294901760
        %1673 = vmatmul.mubr.f32.gmra.mrb[0].mxu0 %v1672
        %v1674 = vpop.f32.mrb[0].mxu0
        %v1675 = vadd.f32 %v1161, %v1674
        %v1676 = vpop.f32.mrb[0].mxu0
        %1677 = vmatprep.mubr.f32.mxu0 0.0
        %v1678 = vand.u32 %v806, 4294901760
        %1679 = vmatmul.mubr.f32.gmra.mrb[0].mxu0 %v1678
        %v1680 = vpop.f32.mrb[0].mxu0
        %v1681 = vadd.f32 %v1171, %v1680
        %v1682 = vpop.f32.mrb[0].mxu0
        %1683 = vmatprep.mubr.f32.mxu0 0.0
        %v1684 = vand.u32 %v809, 4294901760
        %1685 = vmatmul.mubr.f32.gmra.mrb[0].mxu0 %v1684
        %v1686 = vpop.f32.mrb[0].mxu0
        %v1687 = vadd.f32 %v1181, %v1686
        %v1688 = vpop.f32.mrb[0].mxu0
        %1689 = vmatprep.mubr.f32.mxu0 0.0
        %v1690 = vand.u32 %v812, 4294901760
        %1691 = vmatmul.mubr.f32.gmra.mrb[0].mxu0 %v1690
        %v1692 = vpop.f32.mrb[0].mxu0
        %v1693 = vadd.f32 %v1191, %v1692
        %v1694 = vpop.f32.mrb[0].mxu0
        %1695 = vmatprep.mubr.f32.mxu0 0.0
        %v1696 = vand.u32 %v815, 4294901760
        %1697 = vmatmul.mubr.f32.gmra.mrb[0].mxu0 %v1696
        %v1698 = vpop.f32.mrb[0].mxu0
        %v1699 = vadd.f32 %v1201, %v1698
        %v1700 = vpop.f32.mrb[0].mxu0
        %1701 = vmatprep.mubr.f32.mxu0 0.0
        %v1702 = vand.u32 %v818, 4294901760
        %1703 = vmatmul.mubr.f32.gmra.mrb[0].mxu0 %v1702
        %v1704 = vpop.f32.mrb[0].mxu0
        %v1705 = vadd.f32 %v1211, %v1704
        %v1706 = vpop.f32.mrb[0].mxu0
        %1707 = vmatprep.mubr.f32.mxu0 0.0
        %v1708 = vand.u32 %v821, 4294901760
        %1709 = vmatmul.mubr.f32.gmra.mrb[0].mxu0 %v1708
        %v1710 = vpop.f32.mrb[0].mxu0
        %v1711 = vadd.f32 %v1221, %v1710
        %v1712 = vpop.f32.mrb[0].mxu0
        %1713 = vmatprep.mubr.f32.mxu0 0.0
        %v1714 = vand.u32 %v824, 4294901760
        %1715 = vmatmul.mubr.f32.gmra.mrb[0].mxu0 %v1714
        %v1716 = vpop.f32.mrb[0].mxu0
        %v1717 = vadd.f32 %v1231, %v1716
        %v1718 = vpop.f32.mrb[0].mxu0
        %1719 = vmatprep.mubr.f32.mxu0 0.0
        %v1720 = vand.u32 %v827, 4294901760
        %1721 = vmatmul.mubr.f32.gmra.mrb[0].mxu0 %v1720
        %v1722 = vpop.f32.mrb[0].mxu0
        %v1723 = vadd.f32 %v1241, %v1722
        %v1724 = vpop.f32.mrb[0].mxu0
        %1725 = vmatprep.mubr.f32.mxu0 0.0
        %v1726 = vand.u32 %v830, 4294901760
        %1727 = vmatmul.mubr.f32.gmra.mrb[0].mxu0 %v1726
        %v1728 = vpop.f32.mrb[0].mxu0
        %v1729 = vadd.f32 %v1251, %v1728
        %v1730 = vpop.f32.mrb[0].mxu0
        %1731 = vmatprep.mubr.f32.mxu0 0.0
        %v1732 = vand.u32 %v833, 4294901760
        %1733 = vmatmul.mubr.f32.gmra.mrb[0].mxu0 %v1732
        %v1734 = vpop.f32.mrb[0].mxu0
        %v1735 = vadd.f32 %v1261, %v1734
        %v1736 = vpop.f32.mrb[0].mxu0
        %1737 = vmatprep.mubr.f32.mxu0 0.0
        %v1738 = vand.u32 %v836, 4294901760
        %1739 = vmatmul.mubr.f32.gmra.mrb[0].mxu0 %v1738
        %v1740 = vpop.f32.mrb[0].mxu0
        %v1741 = vadd.f32 %v1271, %v1740
        %v1742 = vpop.f32.mrb[0].mxu0
        %1743 = vmatprep.mubr.f32.mxu0 0.0
        %v1744 = vand.u32 %v839, 4294901760
        %1745 = vmatmul.mubr.f32.gmra.mrb[0].mxu0 %v1744
        %v1746 = vpop.f32.mrb[0].mxu0
        %v1747 = vadd.f32 %v1281, %v1746
        %v1748 = vpop.f32.mrb[0].mxu0
        %1749 = vmatprep.mubr.f32.mxu0 0.0
        %v1750 = vand.u32 %v842, 4294901760
        %1751 = vmatmul.mubr.f32.gmra.mrb[0].mxu0 %v1750
        %v1752 = vpop.f32.mrb[0].mxu0
        %v1753 = vadd.f32 %v1291, %v1752
        %v1754 = vpop.f32.mrb[0].mxu0
        %1755 = vmatprep.mubr.f32.mxu0 0.0
        %v1756 = vand.u32 %v845, 4294901760
        %1757 = vmatmul.mubr.f32.gmra.mrb[0].mxu0 %v1756
        %v1758 = vpop.f32.mrb[0].mxu0
        %v1759 = vadd.f32 %v1301, %v1758
        %v1760 = vpop.f32.mrb[0].mxu0
        %1761 = vmatprep.mubr.f32.mxu0 0.0
        %v1762 = vand.u32 %v848, 4294901760
        %1763 = vmatmul.mubr.f32.gmra.mrb[0].mxu0 %v1762
        %v1764 = vpop.f32.mrb[0].mxu0
        %v1765 = vadd.f32 %v1311, %v1764
        %v1766 = vpop.f32.mrb[0].mxu0
        %1767 = vmatprep.mubr.f32.mxu0 0.0
        %v1768 = vand.u32 %v851, 4294901760
        %1769 = vmatmul.mubr.f32.gmra.mrb[0].mxu0 %v1768
        %v1770 = vpop.f32.mrb[0].mxu0
        %v1771 = vadd.f32 %v1321, %v1770
        %v1772 = vpop.f32.mrb[0].mxu0
        %1773 = vmatprep.mubr.f32.mxu0 0.0
        %v1774 = vand.u32 %v854, 4294901760
        %1775 = vmatmul.mubr.f32.gmra.mrb[0].mxu0 %v1774
        %v1776 = vpop.f32.mrb[0].mxu0
        %v1777 = vadd.f32 %v1331, %v1776
        %v1778 = vpop.f32.mrb[0].mxu0
        %1779 = vmatprep.mubr.f32.mxu0 0.0
        %v1780 = vand.u32 %v857, 4294901760
        %1781 = vmatmul.mubr.f32.gmra.mrb[0].mxu0 %v1780
        %v1782 = vpop.f32.mrb[0].mxu0
        %v1783 = vadd.f32 %v1341, %v1782
        %v1784 = vpop.f32.mrb[0].mxu0
        %1785 = vmatprep.mubr.f32.mxu0 0.0
        %v1786 = vand.u32 %v860, 4294901760
        %1787 = vmatmul.mubr.f32.gmra.mrb[0].mxu0 %v1786
        %v1788 = vpop.f32.mrb[0].mxu0
        %v1789 = vadd.f32 %v1351, %v1788
        %v1790 = vpop.f32.mrb[0].mxu0
        %1791 = vmatprep.mubr.f32.mxu0 0.0
        %v1792 = vand.u32 %v863, 4294901760
        %1793 = vmatmul.mubr.f32.gmra.mrb[0].mxu0 %v1792
        %v1794 = vpop.f32.mrb[0].mxu0
        %v1795 = vadd.f32 %v1361, %v1794
        %v1796 = vpop.f32.mrb[0].mxu0
        %1797 = vmatprep.mubr.f32.mxu0 0.0
        %v1798 = vand.u32 %v866, 4294901760
        %1799 = vmatmul.mubr.f32.gmra.mrb[0].mxu0 %v1798
        %v1800 = vpop.f32.mrb[0].mxu0
        %v1801 = vadd.f32 %v1371, %v1800
        %v1802 = vpop.f32.mrb[0].mxu0
        %1803 = vmatprep.mubr.f32.mxu0 0.0
        %v1804 = vand.u32 %v869, 4294901760
        %1805 = vmatmul.mubr.f32.gmra.mrb[0].mxu0 %v1804
        %v1806 = vpop.f32.mrb[0].mxu0
        %v1807 = vadd.f32 %v1381, %v1806
        %v1808 = vpop.f32.mrb[0].mxu0
        %1809 = vmatprep.mubr.f32.mxu0 0.0
        %v1810 = vand.u32 %v872, 4294901760
        %1811 = vmatmul.mubr.f32.gmra.mrb[0].mxu0 %v1810
        %v1812 = vpop.f32.mrb[0].mxu0
        %v1813 = vadd.f32 %v1391, %v1812
        %v1814 = vpop.f32.mrb[0].mxu0
        %1815 = vmatprep.mubr.f32.mxu0 0.0
        %v1816 = vand.u32 %v875, 4294901760
        %1817 = vmatmul.mubr.f32.gmra.mrb[0].mxu0 %v1816
        %v1818 = vpop.f32.mrb[0].mxu0
        %v1819 = vadd.f32 %v1401, %v1818
        %v1820 = vpop.f32.mrb[0].mxu0
        %1821 = vmatprep.mubr.f32.mxu0 0.0
        %v1822 = vand.u32 %v878, 4294901760
        %1823 = vmatmul.mubr.f32.gmra.mrb[0].mxu0 %v1822
        %v1824 = vpop.f32.mrb[0].mxu0
        %v1825 = vadd.f32 %v1411, %v1824
        %v1826 = vpop.f32.mrb[0].mxu0
        %1827 = vmatprep.mubr.f32.mxu0 0.0
        %v1828 = vand.u32 %v881, 4294901760
        %1829 = vmatmul.mubr.f32.gmra.mrb[0].mxu0 %v1828
        %v1830 = vpop.f32.mrb[0].mxu0
        %v1831 = vadd.f32 %v1421, %v1830
        %v1832 = vpop.f32.mrb[0].mxu0
        %1833 = vmatprep.mubr.f32.mxu0 0.0
        %v1834 = vand.u32 %v884, 4294901760
        %1835 = vmatmul.mubr.f32.gmra.mrb[0].mxu0 %v1834
        %v1836 = vpop.f32.mrb[0].mxu0
        %v1837 = vadd.f32 %v1431, %v1836
        %v1838 = vpop.f32.mrb[0].mxu0
        %1839 = vmatprep.mubr.f32.mxu0 0.0
        %v1840 = vand.u32 %v887, 4294901760
        %1841 = vmatmul.mubr.f32.gmra.mrb[0].mxu0 %v1840
        %v1842 = vpop.f32.mrb[0].mxu0
        %v1843 = vadd.f32 %v1441, %v1842
        %v1844 = vpop.f32.mrb[0].mxu0
        %1845 = vmatprep.mubr.f32.mxu0 0.0
        %v1846 = vand.u32 %v890, 4294901760
        %1847 = vmatmul.mubr.f32.gmra.mrb[0].mxu0 %v1846
        %v1848 = vpop.f32.mrb[0].mxu0
        %v1849 = vadd.f32 %v1451, %v1848
        %v1850 = vpop.f32.mrb[0].mxu0
        %1851 = vmatprep.mubr.f32.mxu0 0.0
        %v1852 = vand.u32 %v893, 4294901760
        %1853 = vmatmul.mubr.f32.gmra.mrb[0].mxu0 %v1852
        %v1854 = vpop.f32.mrb[0].mxu0
        %v1855 = vadd.f32 %v1461, %v1854
        %v1856 = vpop.f32.mrb[0].mxu0
        %1857 = vmatprep.mubr.f32.mxu0 0.0
        %v1858 = vand.u32 %v896, 4294901760
        %1859 = vmatmul.mubr.f32.gmra.mrb[0].mxu0 %v1858
        %v1860 = vpop.f32.mrb[0].mxu0
        %v1861 = vadd.f32 %v1471, %v1860
        %v1862 = vpop.f32.mrb[0].mxu0
        %1863 = vmatprep.mubr.f32.mxu0 0.0
        %v1864 = vand.u32 %v899, 4294901760
        %1865 = vmatmul.mubr.f32.gmra.mrb[0].mxu0 %v1864
        %v1866 = vpop.f32.mrb[0].mxu0
        %v1867 = vadd.f32 %v1481, %v1866
        %v1868 = vpop.f32.mrb[0].mxu0
        %1869 = vmatprep.mubr.f32.mxu0 0.0
        %v1870 = vand.u32 %v902, 4294901760
        %1871 = vmatmul.mubr.f32.gmra.mrb[0].mxu0 %v1870
        %v1872 = vpop.f32.mrb[0].mxu0
        %v1873 = vadd.f32 %v1491, %v1872
        %v1874 = vpop.f32.mrb[0].mxu0
        %1875 = vdwg.mxu0
        %1876 = vmatprep.subr.mxu0 0.0
        %v1877 = vand.u32 %v906, 4294901760
        %v1878 = vsub.f32 %v906, %v1877
        %1879 = vmatpush1.msra.mxu0 %v1878
        %1880 = vmatprep.subr.mxu0 0.0
        %1881 = vmatpush1.msra.mxu0 0.0
        %1882 = vmatprep.subr.mxu0 0.0
        %1883 = vmatpush1.msra.mxu0 0.0
        %1884 = vmatprep.subr.mxu0 0.0
        %1885 = vmatpush1.msra.mxu0 0.0
        %1886 = vmatprep.subr.mxu0 0.0
        %1887 = vmatpush1.msra.mxu0 0.0
        %1888 = vmatprep.subr.mxu0 0.0
        %1889 = vmatpush1.msra.mxu0 0.0
        %1890 = vmatprep.subr.mxu0 0.0
        %1891 = vmatpush1.msra.mxu0 0.0
        %1892 = vmatprep.subr.mxu0 0.0
        %1893 = vmatpush1.msra.mxu0 0.0
        %1894 = vmatprep.subr.mxu0 0.0
        %1895 = vmatpush1.msra.mxu0 0.0
        %1896 = vmatprep.subr.mxu0 0.0
        %1897 = vmatpush1.msra.mxu0 0.0
        %1898 = vmatprep.subr.mxu0 0.0
        %1899 = vmatpush1.msra.mxu0 0.0
        %1900 = vmatprep.subr.mxu0 0.0
        %1901 = vmatpush1.msra.mxu0 0.0
        %1902 = vmatprep.subr.mxu0 0.0
        %1903 = vmatpush1.msra.mxu0 0.0
        %1904 = vmatprep.subr.mxu0 0.0
        %1905 = vmatpush1.msra.mxu0 0.0
        %1906 = vmatprep.subr.mxu0 0.0
        %1907 = vmatpush1.msra.mxu0 0.0
        %1908 = vmatprep.subr.mxu0 0.0
        %1909 = vmatpush1.msra.mxu0 0.0
        %1910 = vmatprep.subr.mxu0 0.0
        %1911 = vmatpush1.msra.mxu0 0.0
        %1912 = vmatprep.subr.mxu0 0.0
        %1913 = vmatpush1.msra.mxu0 0.0
        %1914 = vmatprep.subr.mxu0 0.0
        %1915 = vmatpush1.msra.mxu0 0.0
        %1916 = vmatprep.subr.mxu0 0.0
        %1917 = vmatpush1.msra.mxu0 0.0
        %1918 = vmatprep.subr.mxu0 0.0
        %1919 = vmatpush1.msra.mxu0 0.0
        %1920 = vmatprep.subr.mxu0 0.0
        %1921 = vmatpush1.msra.mxu0 0.0
        %1922 = vmatprep.subr.mxu0 0.0
        %1923 = vmatpush1.msra.mxu0 0.0
        %1924 = vmatprep.subr.mxu0 0.0
        %1925 = vmatpush1.msra.mxu0 0.0
        %1926 = vmatprep.subr.mxu0 0.0
        %1927 = vmatpush1.msra.mxu0 0.0
        %1928 = vmatprep.subr.mxu0 0.0
        %1929 = vmatpush1.msra.mxu0 0.0
        %1930 = vmatprep.subr.mxu0 0.0
        %1931 = vmatpush1.msra.mxu0 0.0
        %1932 = vmatprep.subr.mxu0 0.0
        %1933 = vmatpush1.msra.mxu0 0.0
        %1934 = vmatprep.subr.mxu0 0.0
        %1935 = vmatpush1.msra.mxu0 0.0
        %1936 = vmatprep.subr.mxu0 0.0
        %1937 = vmatpush1.msra.mxu0 0.0
        %1938 = vmatprep.subr.mxu0 0.0
        %1939 = vmatpush1.msra.mxu0 0.0
        %1940 = vmatprep.subr.mxu0 0.0
        %1941 = vmatpush1.msra.mxu0 0.0
        %1942 = vmatprep.mubr.f32.mxu0 0.0
        %v1943 = vand.u32 %v749, 4294901760
        %v1944 = vsub.f32 %v749, %v1943
        %1945 = vmatmul.mubr.f32.gmra.mrb[0].mxu0 %v1944
        %v1946 = vpop.f32.mrb[0].mxu0
        %v1947 = vadd.f32 %v1567, %v1946
        %v1948 = vpop.f32.mrb[0].mxu0
        %1949 = vmatprep.mubr.f32.mxu0 0.0
        %v1950 = vand.u32 %v752, 4294901760
        %v1951 = vsub.f32 %v752, %v1950
        %1952 = vmatmul.mubr.f32.gmra.mrb[0].mxu0 %v1951
        %v1953 = vpop.f32.mrb[0].mxu0
        %v1954 = vadd.f32 %v1573, %v1953
        %v1955 = vpop.f32.mrb[0].mxu0
        %1956 = vmatprep.mubr.f32.mxu0 0.0
        %v1957 = vand.u32 %v755, 4294901760
        %v1958 = vsub.f32 %v755, %v1957
        %1959 = vmatmul.mubr.f32.gmra.mrb[0].mxu0 %v1958
        %v1960 = vpop.f32.mrb[0].mxu0
        %v1961 = vadd.f32 %v1579, %v1960
        %v1962 = vpop.f32.mrb[0].mxu0
        %1963 = vmatprep.mubr.f32.mxu0 0.0
        %v1964 = vand.u32 %v758, 4294901760
        %v1965 = vsub.f32 %v758, %v1964
        %1966 = vmatmul.mubr.f32.gmra.mrb[0].mxu0 %v1965
        %v1967 = vpop.f32.mrb[0].mxu0
        %v1968 = vadd.f32 %v1585, %v1967
        %v1969 = vpop.f32.mrb[0].mxu0
        %1970 = vmatprep.mubr.f32.mxu0 0.0
        %v1971 = vand.u32 %v761, 4294901760
        %v1972 = vsub.f32 %v761, %v1971
        %1973 = vmatmul.mubr.f32.gmra.mrb[0].mxu0 %v1972
        %v1974 = vpop.f32.mrb[0].mxu0
        %v1975 = vadd.f32 %v1591, %v1974
        %v1976 = vpop.f32.mrb[0].mxu0
        %1977 = vmatprep.mubr.f32.mxu0 0.0
        %v1978 = vand.u32 %v764, 4294901760
        %v1979 = vsub.f32 %v764, %v1978
        %1980 = vmatmul.mubr.f32.gmra.mrb[0].mxu0 %v1979
        %v1981 = vpop.f32.mrb[0].mxu0
        %v1982 = vadd.f32 %v1597, %v1981
        %v1983 = vpop.f32.mrb[0].mxu0
        %1984 = vmatprep.mubr.f32.mxu0 0.0
        %v1985 = vand.u32 %v767, 4294901760
        %v1986 = vsub.f32 %v767, %v1985
        %1987 = vmatmul.mubr.f32.gmra.mrb[0].mxu0 %v1986
        %v1988 = vpop.f32.mrb[0].mxu0
        %v1989 = vadd.f32 %v1603, %v1988
        %v1990 = vpop.f32.mrb[0].mxu0
        %1991 = vmatprep.mubr.f32.mxu0 0.0
        %v1992 = vand.u32 %v770, 4294901760
        %v1993 = vsub.f32 %v770, %v1992
        %1994 = vmatmul.mubr.f32.gmra.mrb[0].mxu0 %v1993
        %v1995 = vpop.f32.mrb[0].mxu0
        %v1996 = vadd.f32 %v1609, %v1995
        %v1997 = vpop.f32.mrb[0].mxu0
        %1998 = vmatprep.mubr.f32.mxu0 0.0
        %v1999 = vand.u32 %v773, 4294901760
        %v2000 = vsub.f32 %v773, %v1999
        %2001 = vmatmul.mubr.f32.gmra.mrb[0].mxu0 %v2000
        %v2002 = vpop.f32.mrb[0].mxu0
        %v2003 = vadd.f32 %v1615, %v2002
        %v2004 = vpop.f32.mrb[0].mxu0
        %2005 = vmatprep.mubr.f32.mxu0 0.0
        %v2006 = vand.u32 %v776, 4294901760
        %v2007 = vsub.f32 %v776, %v2006
        %2008 = vmatmul.mubr.f32.gmra.mrb[0].mxu0 %v2007
        %v2009 = vpop.f32.mrb[0].mxu0
        %v2010 = vadd.f32 %v1621, %v2009
        %v2011 = vpop.f32.mrb[0].mxu0
        %2012 = vmatprep.mubr.f32.mxu0 0.0
        %v2013 = vand.u32 %v779, 4294901760
        %v2014 = vsub.f32 %v779, %v2013
        %2015 = vmatmul.mubr.f32.gmra.mrb[0].mxu0 %v2014
        %v2016 = vpop.f32.mrb[0].mxu0
        %v2017 = vadd.f32 %v1627, %v2016
        %v2018 = vpop.f32.mrb[0].mxu0
        %2019 = vmatprep.mubr.f32.mxu0 0.0
        %v2020 = vand.u32 %v782, 4294901760
        %v2021 = vsub.f32 %v782, %v2020
        %2022 = vmatmul.mubr.f32.gmra.mrb[0].mxu0 %v2021
        %v2023 = vpop.f32.mrb[0].mxu0
        %v2024 = vadd.f32 %v1633, %v2023
        %v2025 = vpop.f32.mrb[0].mxu0
        %2026 = vmatprep.mubr.f32.mxu0 0.0
        %v2027 = vand.u32 %v785, 4294901760
        %v2028 = vsub.f32 %v785, %v2027
        %2029 = vmatmul.mubr.f32.gmra.mrb[0].mxu0 %v2028
        %v2030 = vpop.f32.mrb[0].mxu0
        %v2031 = vadd.f32 %v1639, %v2030
        %v2032 = vpop.f32.mrb[0].mxu0
        %2033 = vmatprep.mubr.f32.mxu0 0.0
        %v2034 = vand.u32 %v788, 4294901760
        %v2035 = vsub.f32 %v788, %v2034
        %2036 = vmatmul.mubr.f32.gmra.mrb[0].mxu0 %v2035
        %v2037 = vpop.f32.mrb[0].mxu0
        %v2038 = vadd.f32 %v1645, %v2037
        %v2039 = vpop.f32.mrb[0].mxu0
        %2040 = vmatprep.mubr.f32.mxu0 0.0
        %v2041 = vand.u32 %v791, 4294901760
        %v2042 = vsub.f32 %v791, %v2041
        %2043 = vmatmul.mubr.f32.gmra.mrb[0].mxu0 %v2042
        %v2044 = vpop.f32.mrb[0].mxu0
        %v2045 = vadd.f32 %v1651, %v2044
        %v2046 = vpop.f32.mrb[0].mxu0
        %2047 = vmatprep.mubr.f32.mxu0 0.0
        %v2048 = vand.u32 %v794, 4294901760
        %v2049 = vsub.f32 %v794, %v2048
        %2050 = vmatmul.mubr.f32.gmra.mrb[0].mxu0 %v2049
        %v2051 = vpop.f32.mrb[0].mxu0
        %v2052 = vadd.f32 %v1657, %v2051
        %v2053 = vpop.f32.mrb[0].mxu0
        %2054 = vmatprep.mubr.f32.mxu0 0.0
        %v2055 = vand.u32 %v797, 4294901760
        %v2056 = vsub.f32 %v797, %v2055
        %2057 = vmatmul.mubr.f32.gmra.mrb[0].mxu0 %v2056
        %v2058 = vpop.f32.mrb[0].mxu0
        %v2059 = vadd.f32 %v1663, %v2058
        %v2060 = vpop.f32.mrb[0].mxu0
        %2061 = vmatprep.mubr.f32.mxu0 0.0
        %v2062 = vand.u32 %v800, 4294901760
        %v2063 = vsub.f32 %v800, %v2062
        %2064 = vmatmul.mubr.f32.gmra.mrb[0].mxu0 %v2063
        %v2065 = vpop.f32.mrb[0].mxu0
        %v2066 = vadd.f32 %v1669, %v2065
        %v2067 = vpop.f32.mrb[0].mxu0
        %2068 = vmatprep.mubr.f32.mxu0 0.0
        %v2069 = vand.u32 %v803, 4294901760
        %v2070 = vsub.f32 %v803, %v2069
        %2071 = vmatmul.mubr.f32.gmra.mrb[0].mxu0 %v2070
        %v2072 = vpop.f32.mrb[0].mxu0
        %v2073 = vadd.f32 %v1675, %v2072
        %v2074 = vpop.f32.mrb[0].mxu0
        %2075 = vmatprep.mubr.f32.mxu0 0.0
        %v2076 = vand.u32 %v806, 4294901760
        %v2077 = vsub.f32 %v806, %v2076
        %2078 = vmatmul.mubr.f32.gmra.mrb[0].mxu0 %v2077
        %v2079 = vpop.f32.mrb[0].mxu0
        %v2080 = vadd.f32 %v1681, %v2079
        %v2081 = vpop.f32.mrb[0].mxu0
        %2082 = vmatprep.mubr.f32.mxu0 0.0
        %v2083 = vand.u32 %v809, 4294901760
        %v2084 = vsub.f32 %v809, %v2083
        %2085 = vmatmul.mubr.f32.gmra.mrb[0].mxu0 %v2084
        %v2086 = vpop.f32.mrb[0].mxu0
        %v2087 = vadd.f32 %v1687, %v2086
        %v2088 = vpop.f32.mrb[0].mxu0
        %2089 = vmatprep.mubr.f32.mxu0 0.0
        %v2090 = vand.u32 %v812, 4294901760
        %v2091 = vsub.f32 %v812, %v2090
        %2092 = vmatmul.mubr.f32.gmra.mrb[0].mxu0 %v2091
        %v2093 = vpop.f32.mrb[0].mxu0
        %v2094 = vadd.f32 %v1693, %v2093
        %v2095 = vpop.f32.mrb[0].mxu0
        %2096 = vmatprep.mubr.f32.mxu0 0.0
        %v2097 = vand.u32 %v815, 4294901760
        %v2098 = vsub.f32 %v815, %v2097
        %2099 = vmatmul.mubr.f32.gmra.mrb[0].mxu0 %v2098
        %v2100 = vpop.f32.mrb[0].mxu0
        %v2101 = vadd.f32 %v1699, %v2100
        %v2102 = vpop.f32.mrb[0].mxu0
        %2103 = vmatprep.mubr.f32.mxu0 0.0
        %v2104 = vand.u32 %v818, 4294901760
        %v2105 = vsub.f32 %v818, %v2104
        %2106 = vmatmul.mubr.f32.gmra.mrb[0].mxu0 %v2105
        %v2107 = vpop.f32.mrb[0].mxu0
        %v2108 = vadd.f32 %v1705, %v2107
        %v2109 = vpop.f32.mrb[0].mxu0
        %2110 = vmatprep.mubr.f32.mxu0 0.0
        %v2111 = vand.u32 %v821, 4294901760
        %v2112 = vsub.f32 %v821, %v2111
        %2113 = vmatmul.mubr.f32.gmra.mrb[0].mxu0 %v2112
        %v2114 = vpop.f32.mrb[0].mxu0
        %v2115 = vadd.f32 %v1711, %v2114
        %v2116 = vpop.f32.mrb[0].mxu0
        %2117 = vmatprep.mubr.f32.mxu0 0.0
        %v2118 = vand.u32 %v824, 4294901760
        %v2119 = vsub.f32 %v824, %v2118
        %2120 = vmatmul.mubr.f32.gmra.mrb[0].mxu0 %v2119
        %v2121 = vpop.f32.mrb[0].mxu0
        %v2122 = vadd.f32 %v1717, %v2121
        %v2123 = vpop.f32.mrb[0].mxu0
        %2124 = vmatprep.mubr.f32.mxu0 0.0
        %v2125 = vand.u32 %v827, 4294901760
        %v2126 = vsub.f32 %v827, %v2125
        %2127 = vmatmul.mubr.f32.gmra.mrb[0].mxu0 %v2126
        %v2128 = vpop.f32.mrb[0].mxu0
        %v2129 = vadd.f32 %v1723, %v2128
        %v2130 = vpop.f32.mrb[0].mxu0
        %2131 = vmatprep.mubr.f32.mxu0 0.0
        %v2132 = vand.u32 %v830, 4294901760
        %v2133 = vsub.f32 %v830, %v2132
        %2134 = vmatmul.mubr.f32.gmra.mrb[0].mxu0 %v2133
        %v2135 = vpop.f32.mrb[0].mxu0
        %v2136 = vadd.f32 %v1729, %v2135
        %v2137 = vpop.f32.mrb[0].mxu0
        %2138 = vmatprep.mubr.f32.mxu0 0.0
        %v2139 = vand.u32 %v833, 4294901760
        %v2140 = vsub.f32 %v833, %v2139
        %2141 = vmatmul.mubr.f32.gmra.mrb[0].mxu0 %v2140
        %v2142 = vpop.f32.mrb[0].mxu0
        %v2143 = vadd.f32 %v1735, %v2142
        %v2144 = vpop.f32.mrb[0].mxu0
        %2145 = vmatprep.mubr.f32.mxu0 0.0
        %v2146 = vand.u32 %v836, 4294901760
        %v2147 = vsub.f32 %v836, %v2146
        %2148 = vmatmul.mubr.f32.gmra.mrb[0].mxu0 %v2147
        %v2149 = vpop.f32.mrb[0].mxu0
        %v2150 = vadd.f32 %v1741, %v2149
        %v2151 = vpop.f32.mrb[0].mxu0
        %2152 = vmatprep.mubr.f32.mxu0 0.0
        %v2153 = vand.u32 %v839, 4294901760
        %v2154 = vsub.f32 %v839, %v2153
        %2155 = vmatmul.mubr.f32.gmra.mrb[0].mxu0 %v2154
        %v2156 = vpop.f32.mrb[0].mxu0
        %v2157 = vadd.f32 %v1747, %v2156
        %v2158 = vpop.f32.mrb[0].mxu0
        %2159 = vmatprep.mubr.f32.mxu0 0.0
        %v2160 = vand.u32 %v842, 4294901760
        %v2161 = vsub.f32 %v842, %v2160
        %2162 = vmatmul.mubr.f32.gmra.mrb[0].mxu0 %v2161
        %v2163 = vpop.f32.mrb[0].mxu0
        %v2164 = vadd.f32 %v1753, %v2163
        %v2165 = vpop.f32.mrb[0].mxu0
        %2166 = vmatprep.mubr.f32.mxu0 0.0
        %v2167 = vand.u32 %v845, 4294901760
        %v2168 = vsub.f32 %v845, %v2167
        %2169 = vmatmul.mubr.f32.gmra.mrb[0].mxu0 %v2168
        %v2170 = vpop.f32.mrb[0].mxu0
        %v2171 = vadd.f32 %v1759, %v2170
        %v2172 = vpop.f32.mrb[0].mxu0
        %2173 = vmatprep.mubr.f32.mxu0 0.0
        %v2174 = vand.u32 %v848, 4294901760
        %v2175 = vsub.f32 %v848, %v2174
        %2176 = vmatmul.mubr.f32.gmra.mrb[0].mxu0 %v2175
        %v2177 = vpop.f32.mrb[0].mxu0
        %v2178 = vadd.f32 %v1765, %v2177
        %v2179 = vpop.f32.mrb[0].mxu0
        %2180 = vmatprep.mubr.f32.mxu0 0.0
        %v2181 = vand.u32 %v851, 4294901760
        %v2182 = vsub.f32 %v851, %v2181
        %2183 = vmatmul.mubr.f32.gmra.mrb[0].mxu0 %v2182
        %v2184 = vpop.f32.mrb[0].mxu0
        %v2185 = vadd.f32 %v1771, %v2184
        %v2186 = vpop.f32.mrb[0].mxu0
        %2187 = vmatprep.mubr.f32.mxu0 0.0
        %v2188 = vand.u32 %v854, 4294901760
        %v2189 = vsub.f32 %v854, %v2188
        %2190 = vmatmul.mubr.f32.gmra.mrb[0].mxu0 %v2189
        %v2191 = vpop.f32.mrb[0].mxu0
        %v2192 = vadd.f32 %v1777, %v2191
        %v2193 = vpop.f32.mrb[0].mxu0
        %2194 = vmatprep.mubr.f32.mxu0 0.0
        %v2195 = vand.u32 %v857, 4294901760
        %v2196 = vsub.f32 %v857, %v2195
        %2197 = vmatmul.mubr.f32.gmra.mrb[0].mxu0 %v2196
        %v2198 = vpop.f32.mrb[0].mxu0
        %v2199 = vadd.f32 %v1783, %v2198
        %v2200 = vpop.f32.mrb[0].mxu0
        %2201 = vmatprep.mubr.f32.mxu0 0.0
        %v2202 = vand.u32 %v860, 4294901760
        %v2203 = vsub.f32 %v860, %v2202
        %2204 = vmatmul.mubr.f32.gmra.mrb[0].mxu0 %v2203
        %v2205 = vpop.f32.mrb[0].mxu0
        %v2206 = vadd.f32 %v1789, %v2205
        %v2207 = vpop.f32.mrb[0].mxu0
        %2208 = vmatprep.mubr.f32.mxu0 0.0
        %v2209 = vand.u32 %v863, 4294901760
        %v2210 = vsub.f32 %v863, %v2209
        %2211 = vmatmul.mubr.f32.gmra.mrb[0].mxu0 %v2210
        %v2212 = vpop.f32.mrb[0].mxu0
        %v2213 = vadd.f32 %v1795, %v2212
        %v2214 = vpop.f32.mrb[0].mxu0
        %2215 = vmatprep.mubr.f32.mxu0 0.0
        %v2216 = vand.u32 %v866, 4294901760
        %v2217 = vsub.f32 %v866, %v2216
        %2218 = vmatmul.mubr.f32.gmra.mrb[0].mxu0 %v2217
        %v2219 = vpop.f32.mrb[0].mxu0
        %v2220 = vadd.f32 %v1801, %v2219
        %v2221 = vpop.f32.mrb[0].mxu0
        %2222 = vmatprep.mubr.f32.mxu0 0.0
        %v2223 = vand.u32 %v869, 4294901760
        %v2224 = vsub.f32 %v869, %v2223
        %2225 = vmatmul.mubr.f32.gmra.mrb[0].mxu0 %v2224
        %v2226 = vpop.f32.mrb[0].mxu0
        %v2227 = vadd.f32 %v1807, %v2226
        %v2228 = vpop.f32.mrb[0].mxu0
        %2229 = vmatprep.mubr.f32.mxu0 0.0
        %v2230 = vand.u32 %v872, 4294901760
        %v2231 = vsub.f32 %v872, %v2230
        %2232 = vmatmul.mubr.f32.gmra.mrb[0].mxu0 %v2231
        %v2233 = vpop.f32.mrb[0].mxu0
        %v2234 = vadd.f32 %v1813, %v2233
        %v2235 = vpop.f32.mrb[0].mxu0
        %2236 = vmatprep.mubr.f32.mxu0 0.0
        %v2237 = vand.u32 %v875, 4294901760
        %v2238 = vsub.f32 %v875, %v2237
        %2239 = vmatmul.mubr.f32.gmra.mrb[0].mxu0 %v2238
        %v2240 = vpop.f32.mrb[0].mxu0
        %v2241 = vadd.f32 %v1819, %v2240
        %v2242 = vpop.f32.mrb[0].mxu0
        %2243 = vmatprep.mubr.f32.mxu0 0.0
        %v2244 = vand.u32 %v878, 4294901760
        %v2245 = vsub.f32 %v878, %v2244
        %2246 = vmatmul.mubr.f32.gmra.mrb[0].mxu0 %v2245
        %v2247 = vpop.f32.mrb[0].mxu0
        %v2248 = vadd.f32 %v1825, %v2247
        %v2249 = vpop.f32.mrb[0].mxu0
        %2250 = vmatprep.mubr.f32.mxu0 0.0
        %v2251 = vand.u32 %v881, 4294901760
        %v2252 = vsub.f32 %v881, %v2251
        %2253 = vmatmul.mubr.f32.gmra.mrb[0].mxu0 %v2252
        %v2254 = vpop.f32.mrb[0].mxu0
        %v2255 = vadd.f32 %v1831, %v2254
        %v2256 = vpop.f32.mrb[0].mxu0
        %2257 = vmatprep.mubr.f32.mxu0 0.0
        %v2258 = vand.u32 %v884, 4294901760
        %v2259 = vsub.f32 %v884, %v2258
        %2260 = vmatmul.mubr.f32.gmra.mrb[0].mxu0 %v2259
        %v2261 = vpop.f32.mrb[0].mxu0
        %v2262 = vadd.f32 %v1837, %v2261
        %v2263 = vpop.f32.mrb[0].mxu0
        %2264 = vmatprep.mubr.f32.mxu0 0.0
        %v2265 = vand.u32 %v887, 4294901760
        %v2266 = vsub.f32 %v887, %v2265
        %2267 = vmatmul.mubr.f32.gmra.mrb[0].mxu0 %v2266
        %v2268 = vpop.f32.mrb[0].mxu0
        %v2269 = vadd.f32 %v1843, %v2268
        %v2270 = vpop.f32.mrb[0].mxu0
        %2271 = vmatprep.mubr.f32.mxu0 0.0
        %v2272 = vand.u32 %v890, 4294901760
        %v2273 = vsub.f32 %v890, %v2272
        %2274 = vmatmul.mubr.f32.gmra.mrb[0].mxu0 %v2273
        %v2275 = vpop.f32.mrb[0].mxu0
        %v2276 = vadd.f32 %v1849, %v2275
        %v2277 = vpop.f32.mrb[0].mxu0
        %2278 = vmatprep.mubr.f32.mxu0 0.0
        %v2279 = vand.u32 %v893, 4294901760
        %v2280 = vsub.f32 %v893, %v2279
        %2281 = vmatmul.mubr.f32.gmra.mrb[0].mxu0 %v2280
        %v2282 = vpop.f32.mrb[0].mxu0
        %v2283 = vadd.f32 %v1855, %v2282
        %v2284 = vpop.f32.mrb[0].mxu0
        %2285 = vmatprep.mubr.f32.mxu0 0.0
        %v2286 = vand.u32 %v896, 4294901760
        %v2287 = vsub.f32 %v896, %v2286
        %2288 = vmatmul.mubr.f32.gmra.mrb[0].mxu0 %v2287
        %v2289 = vpop.f32.mrb[0].mxu0
        %v2290 = vadd.f32 %v1861, %v2289
        %v2291 = vpop.f32.mrb[0].mxu0
        %2292 = vmatprep.mubr.f32.mxu0 0.0
        %v2293 = vand.u32 %v899, 4294901760
        %v2294 = vsub.f32 %v899, %v2293
        %2295 = vmatmul.mubr.f32.gmra.mrb[0].mxu0 %v2294
        %v2296 = vpop.f32.mrb[0].mxu0
        %v2297 = vadd.f32 %v1867, %v2296
        %v2298 = vpop.f32.mrb[0].mxu0
        %2299 = vmatprep.mubr.f32.mxu0 0.0
        %v2300 = vand.u32 %v902, 4294901760
        %v2301 = vsub.f32 %v902, %v2300
        %2302 = vmatmul.mubr.f32.gmra.mrb[0].mxu0 %v2301
        %v2303 = vpop.f32.mrb[0].mxu0
        %v2304 = vadd.f32 %v1873, %v2303
        %v2305 = vpop.f32.mrb[0].mxu0
        %2306 = vdwg.mxu0
        %2307 = vmatprep.subr.mxu0 0.0
        %v2308 = vand.u32 %v906, 4294901760
        %2309 = vmatpush1.msra.mxu0 %v2308
        %2310 = vmatprep.subr.mxu0 0.0
        %2311 = vmatpush1.msra.mxu0 0.0
        %2312 = vmatprep.subr.mxu0 0.0
        %2313 = vmatpush1.msra.mxu0 0.0
        %2314 = vmatprep.subr.mxu0 0.0
        %2315 = vmatpush1.msra.mxu0 0.0
        %2316 = vmatprep.subr.mxu0 0.0
        %2317 = vmatpush1.msra.mxu0 0.0
        %2318 = vmatprep.subr.mxu0 0.0
        %2319 = vmatpush1.msra.mxu0 0.0
        %2320 = vmatprep.subr.mxu0 0.0
        %2321 = vmatpush1.msra.mxu0 0.0
        %2322 = vmatprep.subr.mxu0 0.0
        %2323 = vmatpush1.msra.mxu0 0.0
        %2324 = vmatprep.subr.mxu0 0.0
        %2325 = vmatpush1.msra.mxu0 0.0
        %2326 = vmatprep.subr.mxu0 0.0
        %2327 = vmatpush1.msra.mxu0 0.0
        %2328 = vmatprep.subr.mxu0 0.0
        %2329 = vmatpush1.msra.mxu0 0.0
        %2330 = vmatprep.subr.mxu0 0.0
        %2331 = vmatpush1.msra.mxu0 0.0
        %2332 = vmatprep.subr.mxu0 0.0
        %2333 = vmatpush1.msra.mxu0 0.0
        %2334 = vmatprep.subr.mxu0 0.0
        %2335 = vmatpush1.msra.mxu0 0.0
        %2336 = vmatprep.subr.mxu0 0.0
        %2337 = vmatpush1.msra.mxu0 0.0
        %2338 = vmatprep.subr.mxu0 0.0
        %2339 = vmatpush1.msra.mxu0 0.0
        %2340 = vmatprep.subr.mxu0 0.0
        %2341 = vmatpush1.msra.mxu0 0.0
        %2342 = vmatprep.subr.mxu0 0.0
        %2343 = vmatpush1.msra.mxu0 0.0
        %2344 = vmatprep.subr.mxu0 0.0
        %2345 = vmatpush1.msra.mxu0 0.0
        %2346 = vmatprep.subr.mxu0 0.0
        %2347 = vmatpush1.msra.mxu0 0.0
        %2348 = vmatprep.subr.mxu0 0.0
        %2349 = vmatpush1.msra.mxu0 0.0
        %2350 = vmatprep.subr.mxu0 0.0
        %2351 = vmatpush1.msra.mxu0 0.0
        %2352 = vmatprep.subr.mxu0 0.0
        %2353 = vmatpush1.msra.mxu0 0.0
        %2354 = vmatprep.subr.mxu0 0.0
        %2355 = vmatpush1.msra.mxu0 0.0
        %2356 = vmatprep.subr.mxu0 0.0
        %2357 = vmatpush1.msra.mxu0 0.0
        %2358 = vmatprep.subr.mxu0 0.0
        %2359 = vmatpush1.msra.mxu0 0.0
        %2360 = vmatprep.subr.mxu0 0.0
        %2361 = vmatpush1.msra.mxu0 0.0
        %2362 = vmatprep.subr.mxu0 0.0
        %2363 = vmatpush1.msra.mxu0 0.0
        %2364 = vmatprep.subr.mxu0 0.0
        %2365 = vmatpush1.msra.mxu0 0.0
        %2366 = vmatprep.subr.mxu0 0.0
        %2367 = vmatpush1.msra.mxu0 0.0
        %2368 = vmatprep.subr.mxu0 0.0
        %2369 = vmatpush1.msra.mxu0 0.0
        %2370 = vmatprep.subr.mxu0 0.0
        %2371 = vmatpush1.msra.mxu0 0.0
        %2372 = vmatprep.mubr.f32.mxu0 0.0
        %v2373 = vand.u32 %v749, 4294901760
        %v2374 = vsub.f32 %v749, %v2373
        %v2375 = vand.u32 %v2374, 4294901760
        %2376 = vmatmul.mubr.f32.gmra.mrb[0].mxu0 %v2375
        %v2377 = vpop.f32.mrb[0].mxu0
        %v2378 = vadd.f32 %v1947, %v2377
        %v2379 = vpop.f32.mrb[0].mxu0
        %2380 = vmatprep.mubr.f32.mxu0 0.0
        %v2381 = vand.u32 %v752, 4294901760
        %v2382 = vsub.f32 %v752, %v2381
        %v2383 = vand.u32 %v2382, 4294901760
        %2384 = vmatmul.mubr.f32.gmra.mrb[0].mxu0 %v2383
        %v2385 = vpop.f32.mrb[0].mxu0
        %v2386 = vadd.f32 %v1954, %v2385
        %v2387 = vpop.f32.mrb[0].mxu0
        %2388 = vmatprep.mubr.f32.mxu0 0.0
        %v2389 = vand.u32 %v755, 4294901760
        %v2390 = vsub.f32 %v755, %v2389
        %v2391 = vand.u32 %v2390, 4294901760
        %2392 = vmatmul.mubr.f32.gmra.mrb[0].mxu0 %v2391
        %v2393 = vpop.f32.mrb[0].mxu0
        %v2394 = vadd.f32 %v1961, %v2393
        %v2395 = vpop.f32.mrb[0].mxu0
        %2396 = vmatprep.mubr.f32.mxu0 0.0
        %v2397 = vand.u32 %v758, 4294901760
        %v2398 = vsub.f32 %v758, %v2397
        %v2399 = vand.u32 %v2398, 4294901760
        %2400 = vmatmul.mubr.f32.gmra.mrb[0].mxu0 %v2399
        %v2401 = vpop.f32.mrb[0].mxu0
        %v2402 = vadd.f32 %v1968, %v2401
        %v2403 = vpop.f32.mrb[0].mxu0
        %2404 = vmatprep.mubr.f32.mxu0 0.0
        %v2405 = vand.u32 %v761, 4294901760
        %v2406 = vsub.f32 %v761, %v2405
        %v2407 = vand.u32 %v2406, 4294901760
        %2408 = vmatmul.mubr.f32.gmra.mrb[0].mxu0 %v2407
        %v2409 = vpop.f32.mrb[0].mxu0
        %v2410 = vadd.f32 %v1975, %v2409
        %v2411 = vpop.f32.mrb[0].mxu0
        %2412 = vmatprep.mubr.f32.mxu0 0.0
        %v2413 = vand.u32 %v764, 4294901760
        %v2414 = vsub.f32 %v764, %v2413
        %v2415 = vand.u32 %v2414, 4294901760
        %2416 = vmatmul.mubr.f32.gmra.mrb[0].mxu0 %v2415
        %v2417 = vpop.f32.mrb[0].mxu0
        %v2418 = vadd.f32 %v1982, %v2417
        %v2419 = vpop.f32.mrb[0].mxu0
        %2420 = vmatprep.mubr.f32.mxu0 0.0
        %v2421 = vand.u32 %v767, 4294901760
        %v2422 = vsub.f32 %v767, %v2421
        %v2423 = vand.u32 %v2422, 4294901760
        %2424 = vmatmul.mubr.f32.gmra.mrb[0].mxu0 %v2423
        %v2425 = vpop.f32.mrb[0].mxu0
        %v2426 = vadd.f32 %v1989, %v2425
        %v2427 = vpop.f32.mrb[0].mxu0
        %2428 = vmatprep.mubr.f32.mxu0 0.0
        %v2429 = vand.u32 %v770, 4294901760
        %v2430 = vsub.f32 %v770, %v2429
        %v2431 = vand.u32 %v2430, 4294901760
        %2432 = vmatmul.mubr.f32.gmra.mrb[0].mxu0 %v2431
        %v2433 = vpop.f32.mrb[0].mxu0
        %v2434 = vadd.f32 %v1996, %v2433
        %v2435 = vpop.f32.mrb[0].mxu0
        %2436 = vmatprep.mubr.f32.mxu0 0.0
        %v2437 = vand.u32 %v773, 4294901760
        %v2438 = vsub.f32 %v773, %v2437
        %v2439 = vand.u32 %v2438, 4294901760
        %2440 = vmatmul.mubr.f32.gmra.mrb[0].mxu0 %v2439
        %v2441 = vpop.f32.mrb[0].mxu0
        %v2442 = vadd.f32 %v2003, %v2441
        %v2443 = vpop.f32.mrb[0].mxu0
        %2444 = vmatprep.mubr.f32.mxu0 0.0
        %v2445 = vand.u32 %v776, 4294901760
        %v2446 = vsub.f32 %v776, %v2445
        %v2447 = vand.u32 %v2446, 4294901760
        %2448 = vmatmul.mubr.f32.gmra.mrb[0].mxu0 %v2447
        %v2449 = vpop.f32.mrb[0].mxu0
        %v2450 = vadd.f32 %v2010, %v2449
        %v2451 = vpop.f32.mrb[0].mxu0
        %2452 = vmatprep.mubr.f32.mxu0 0.0
        %v2453 = vand.u32 %v779, 4294901760
        %v2454 = vsub.f32 %v779, %v2453
        %v2455 = vand.u32 %v2454, 4294901760
        %2456 = vmatmul.mubr.f32.gmra.mrb[0].mxu0 %v2455
        %v2457 = vpop.f32.mrb[0].mxu0
        %v2458 = vadd.f32 %v2017, %v2457
        %v2459 = vpop.f32.mrb[0].mxu0
        %2460 = vmatprep.mubr.f32.mxu0 0.0
        %v2461 = vand.u32 %v782, 4294901760
        %v2462 = vsub.f32 %v782, %v2461
        %v2463 = vand.u32 %v2462, 4294901760
        %2464 = vmatmul.mubr.f32.gmra.mrb[0].mxu0 %v2463
        %v2465 = vpop.f32.mrb[0].mxu0
        %v2466 = vadd.f32 %v2024, %v2465
        %v2467 = vpop.f32.mrb[0].mxu0
        %2468 = vmatprep.mubr.f32.mxu0 0.0
        %v2469 = vand.u32 %v785, 4294901760
        %v2470 = vsub.f32 %v785, %v2469
        %v2471 = vand.u32 %v2470, 4294901760
        %2472 = vmatmul.mubr.f32.gmra.mrb[0].mxu0 %v2471
        %v2473 = vpop.f32.mrb[0].mxu0
        %v2474 = vadd.f32 %v2031, %v2473
        %v2475 = vpop.f32.mrb[0].mxu0
        %2476 = vmatprep.mubr.f32.mxu0 0.0
        %v2477 = vand.u32 %v788, 4294901760
        %v2478 = vsub.f32 %v788, %v2477
        %v2479 = vand.u32 %v2478, 4294901760
        %2480 = vmatmul.mubr.f32.gmra.mrb[0].mxu0 %v2479
        %v2481 = vpop.f32.mrb[0].mxu0
        %v2482 = vadd.f32 %v2038, %v2481
        %v2483 = vpop.f32.mrb[0].mxu0
        %2484 = vmatprep.mubr.f32.mxu0 0.0
        %v2485 = vand.u32 %v791, 4294901760
        %v2486 = vsub.f32 %v791, %v2485
        %v2487 = vand.u32 %v2486, 4294901760
        %2488 = vmatmul.mubr.f32.gmra.mrb[0].mxu0 %v2487
        %v2489 = vpop.f32.mrb[0].mxu0
        %v2490 = vadd.f32 %v2045, %v2489
        %v2491 = vpop.f32.mrb[0].mxu0
        %2492 = vmatprep.mubr.f32.mxu0 0.0
        %v2493 = vand.u32 %v794, 4294901760
        %v2494 = vsub.f32 %v794, %v2493
        %v2495 = vand.u32 %v2494, 4294901760
        %2496 = vmatmul.mubr.f32.gmra.mrb[0].mxu0 %v2495
        %v2497 = vpop.f32.mrb[0].mxu0
        %v2498 = vadd.f32 %v2052, %v2497
        %v2499 = vpop.f32.mrb[0].mxu0
        %2500 = vmatprep.mubr.f32.mxu0 0.0
        %v2501 = vand.u32 %v797, 4294901760
        %v2502 = vsub.f32 %v797, %v2501
        %v2503 = vand.u32 %v2502, 4294901760
        %2504 = vmatmul.mubr.f32.gmra.mrb[0].mxu0 %v2503
        %v2505 = vpop.f32.mrb[0].mxu0
        %v2506 = vadd.f32 %v2059, %v2505
        %v2507 = vpop.f32.mrb[0].mxu0
        %2508 = vmatprep.mubr.f32.mxu0 0.0
        %v2509 = vand.u32 %v800, 4294901760
        %v2510 = vsub.f32 %v800, %v2509
        %v2511 = vand.u32 %v2510, 4294901760
        %2512 = vmatmul.mubr.f32.gmra.mrb[0].mxu0 %v2511
        %v2513 = vpop.f32.mrb[0].mxu0
        %v2514 = vadd.f32 %v2066, %v2513
        %v2515 = vpop.f32.mrb[0].mxu0
        %2516 = vmatprep.mubr.f32.mxu0 0.0
        %v2517 = vand.u32 %v803, 4294901760
        %v2518 = vsub.f32 %v803, %v2517
        %v2519 = vand.u32 %v2518, 4294901760
        %2520 = vmatmul.mubr.f32.gmra.mrb[0].mxu0 %v2519
        %v2521 = vpop.f32.mrb[0].mxu0
        %v2522 = vadd.f32 %v2073, %v2521
        %v2523 = vpop.f32.mrb[0].mxu0
        %2524 = vmatprep.mubr.f32.mxu0 0.0
        %v2525 = vand.u32 %v806, 4294901760
        %v2526 = vsub.f32 %v806, %v2525
        %v2527 = vand.u32 %v2526, 4294901760
        %2528 = vmatmul.mubr.f32.gmra.mrb[0].mxu0 %v2527
        %v2529 = vpop.f32.mrb[0].mxu0
        %v2530 = vadd.f32 %v2080, %v2529
        %v2531 = vpop.f32.mrb[0].mxu0
        %2532 = vmatprep.mubr.f32.mxu0 0.0
        %v2533 = vand.u32 %v809, 4294901760
        %v2534 = vsub.f32 %v809, %v2533
        %v2535 = vand.u32 %v2534, 4294901760
        %2536 = vmatmul.mubr.f32.gmra.mrb[0].mxu0 %v2535
        %v2537 = vpop.f32.mrb[0].mxu0
        %v2538 = vadd.f32 %v2087, %v2537
        %v2539 = vpop.f32.mrb[0].mxu0
        %2540 = vmatprep.mubr.f32.mxu0 0.0
        %v2541 = vand.u32 %v812, 4294901760
        %v2542 = vsub.f32 %v812, %v2541
        %v2543 = vand.u32 %v2542, 4294901760
        %2544 = vmatmul.mubr.f32.gmra.mrb[0].mxu0 %v2543
        %v2545 = vpop.f32.mrb[0].mxu0
        %v2546 = vadd.f32 %v2094, %v2545
        %v2547 = vpop.f32.mrb[0].mxu0
        %2548 = vmatprep.mubr.f32.mxu0 0.0
        %v2549 = vand.u32 %v815, 4294901760
        %v2550 = vsub.f32 %v815, %v2549
        %v2551 = vand.u32 %v2550, 4294901760
        %2552 = vmatmul.mubr.f32.gmra.mrb[0].mxu0 %v2551
        %v2553 = vpop.f32.mrb[0].mxu0
        %v2554 = vadd.f32 %v2101, %v2553
        %v2555 = vpop.f32.mrb[0].mxu0
        %2556 = vmatprep.mubr.f32.mxu0 0.0
        %v2557 = vand.u32 %v818, 4294901760
        %v2558 = vsub.f32 %v818, %v2557
        %v2559 = vand.u32 %v2558, 4294901760
        %2560 = vmatmul.mubr.f32.gmra.mrb[0].mxu0 %v2559
        %v2561 = vpop.f32.mrb[0].mxu0
        %v2562 = vadd.f32 %v2108, %v2561
        %v2563 = vpop.f32.mrb[0].mxu0
        %2564 = vmatprep.mubr.f32.mxu0 0.0
        %v2565 = vand.u32 %v821, 4294901760
        %v2566 = vsub.f32 %v821, %v2565
        %v2567 = vand.u32 %v2566, 4294901760
        %2568 = vmatmul.mubr.f32.gmra.mrb[0].mxu0 %v2567
        %v2569 = vpop.f32.mrb[0].mxu0
        %v2570 = vadd.f32 %v2115, %v2569
        %v2571 = vpop.f32.mrb[0].mxu0
        %2572 = vmatprep.mubr.f32.mxu0 0.0
        %v2573 = vand.u32 %v824, 4294901760
        %v2574 = vsub.f32 %v824, %v2573
        %v2575 = vand.u32 %v2574, 4294901760
        %2576 = vmatmul.mubr.f32.gmra.mrb[0].mxu0 %v2575
        %v2577 = vpop.f32.mrb[0].mxu0
        %v2578 = vadd.f32 %v2122, %v2577
        %v2579 = vpop.f32.mrb[0].mxu0
        %2580 = vmatprep.mubr.f32.mxu0 0.0
        %v2581 = vand.u32 %v827, 4294901760
        %v2582 = vsub.f32 %v827, %v2581
        %v2583 = vand.u32 %v2582, 4294901760
        %2584 = vmatmul.mubr.f32.gmra.mrb[0].mxu0 %v2583
        %v2585 = vpop.f32.mrb[0].mxu0
        %v2586 = vadd.f32 %v2129, %v2585
        %v2587 = vpop.f32.mrb[0].mxu0
        %2588 = vmatprep.mubr.f32.mxu0 0.0
        %v2589 = vand.u32 %v830, 4294901760
        %v2590 = vsub.f32 %v830, %v2589
        %v2591 = vand.u32 %v2590, 4294901760
        %2592 = vmatmul.mubr.f32.gmra.mrb[0].mxu0 %v2591
        %v2593 = vpop.f32.mrb[0].mxu0
        %v2594 = vadd.f32 %v2136, %v2593
        %v2595 = vpop.f32.mrb[0].mxu0
        %2596 = vmatprep.mubr.f32.mxu0 0.0
        %v2597 = vand.u32 %v833, 4294901760
        %v2598 = vsub.f32 %v833, %v2597
        %v2599 = vand.u32 %v2598, 4294901760
        %2600 = vmatmul.mubr.f32.gmra.mrb[0].mxu0 %v2599
        %v2601 = vpop.f32.mrb[0].mxu0
        %v2602 = vadd.f32 %v2143, %v2601
        %v2603 = vpop.f32.mrb[0].mxu0
        %2604 = vmatprep.mubr.f32.mxu0 0.0
        %v2605 = vand.u32 %v836, 4294901760
        %v2606 = vsub.f32 %v836, %v2605
        %v2607 = vand.u32 %v2606, 4294901760
        %2608 = vmatmul.mubr.f32.gmra.mrb[0].mxu0 %v2607
        %v2609 = vpop.f32.mrb[0].mxu0
        %v2610 = vadd.f32 %v2150, %v2609
        %v2611 = vpop.f32.mrb[0].mxu0
        %2612 = vmatprep.mubr.f32.mxu0 0.0
        %v2613 = vand.u32 %v839, 4294901760
        %v2614 = vsub.f32 %v839, %v2613
        %v2615 = vand.u32 %v2614, 4294901760
        %2616 = vmatmul.mubr.f32.gmra.mrb[0].mxu0 %v2615
        %v2617 = vpop.f32.mrb[0].mxu0
        %v2618 = vadd.f32 %v2157, %v2617
        %v2619 = vpop.f32.mrb[0].mxu0
        %2620 = vmatprep.mubr.f32.mxu0 0.0
        %v2621 = vand.u32 %v842, 4294901760
        %v2622 = vsub.f32 %v842, %v2621
        %v2623 = vand.u32 %v2622, 4294901760
        %2624 = vmatmul.mubr.f32.gmra.mrb[0].mxu0 %v2623
        %v2625 = vpop.f32.mrb[0].mxu0
        %v2626 = vadd.f32 %v2164, %v2625
        %v2627 = vpop.f32.mrb[0].mxu0
        %2628 = vmatprep.mubr.f32.mxu0 0.0
        %v2629 = vand.u32 %v845, 4294901760
        %v2630 = vsub.f32 %v845, %v2629
        %v2631 = vand.u32 %v2630, 4294901760
        %2632 = vmatmul.mubr.f32.gmra.mrb[0].mxu0 %v2631
        %v2633 = vpop.f32.mrb[0].mxu0
        %v2634 = vadd.f32 %v2171, %v2633
        %v2635 = vpop.f32.mrb[0].mxu0
        %2636 = vmatprep.mubr.f32.mxu0 0.0
        %v2637 = vand.u32 %v848, 4294901760
        %v2638 = vsub.f32 %v848, %v2637
        %v2639 = vand.u32 %v2638, 4294901760
        %2640 = vmatmul.mubr.f32.gmra.mrb[0].mxu0 %v2639
        %v2641 = vpop.f32.mrb[0].mxu0
        %v2642 = vadd.f32 %v2178, %v2641
        %v2643 = vpop.f32.mrb[0].mxu0
        %2644 = vmatprep.mubr.f32.mxu0 0.0
        %v2645 = vand.u32 %v851, 4294901760
        %v2646 = vsub.f32 %v851, %v2645
        %v2647 = vand.u32 %v2646, 4294901760
        %2648 = vmatmul.mubr.f32.gmra.mrb[0].mxu0 %v2647
        %v2649 = vpop.f32.mrb[0].mxu0
        %v2650 = vadd.f32 %v2185, %v2649
        %v2651 = vpop.f32.mrb[0].mxu0
        %2652 = vmatprep.mubr.f32.mxu0 0.0
        %v2653 = vand.u32 %v854, 4294901760
        %v2654 = vsub.f32 %v854, %v2653
        %v2655 = vand.u32 %v2654, 4294901760
        %2656 = vmatmul.mubr.f32.gmra.mrb[0].mxu0 %v2655
        %v2657 = vpop.f32.mrb[0].mxu0
        %v2658 = vadd.f32 %v2192, %v2657
        %v2659 = vpop.f32.mrb[0].mxu0
        %2660 = vmatprep.mubr.f32.mxu0 0.0
        %v2661 = vand.u32 %v857, 4294901760
        %v2662 = vsub.f32 %v857, %v2661
        %v2663 = vand.u32 %v2662, 4294901760
        %2664 = vmatmul.mubr.f32.gmra.mrb[0].mxu0 %v2663
        %v2665 = vpop.f32.mrb[0].mxu0
        %v2666 = vadd.f32 %v2199, %v2665
        %v2667 = vpop.f32.mrb[0].mxu0
        %2668 = vmatprep.mubr.f32.mxu0 0.0
        %v2669 = vand.u32 %v860, 4294901760
        %v2670 = vsub.f32 %v860, %v2669
        %v2671 = vand.u32 %v2670, 4294901760
        %2672 = vmatmul.mubr.f32.gmra.mrb[0].mxu0 %v2671
        %v2673 = vpop.f32.mrb[0].mxu0
        %v2674 = vadd.f32 %v2206, %v2673
        %v2675 = vpop.f32.mrb[0].mxu0
        %2676 = vmatprep.mubr.f32.mxu0 0.0
        %v2677 = vand.u32 %v863, 4294901760
        %v2678 = vsub.f32 %v863, %v2677
        %v2679 = vand.u32 %v2678, 4294901760
        %2680 = vmatmul.mubr.f32.gmra.mrb[0].mxu0 %v2679
        %v2681 = vpop.f32.mrb[0].mxu0
        %v2682 = vadd.f32 %v2213, %v2681
        %v2683 = vpop.f32.mrb[0].mxu0
        %2684 = vmatprep.mubr.f32.mxu0 0.0
        %v2685 = vand.u32 %v866, 4294901760
        %v2686 = vsub.f32 %v866, %v2685
        %v2687 = vand.u32 %v2686, 4294901760
        %2688 = vmatmul.mubr.f32.gmra.mrb[0].mxu0 %v2687
        %v2689 = vpop.f32.mrb[0].mxu0
        %v2690 = vadd.f32 %v2220, %v2689
        %v2691 = vpop.f32.mrb[0].mxu0
        %2692 = vmatprep.mubr.f32.mxu0 0.0
        %v2693 = vand.u32 %v869, 4294901760
        %v2694 = vsub.f32 %v869, %v2693
        %v2695 = vand.u32 %v2694, 4294901760
        %2696 = vmatmul.mubr.f32.gmra.mrb[0].mxu0 %v2695
        %v2697 = vpop.f32.mrb[0].mxu0
        %v2698 = vadd.f32 %v2227, %v2697
        %v2699 = vpop.f32.mrb[0].mxu0
        %2700 = vmatprep.mubr.f32.mxu0 0.0
        %v2701 = vand.u32 %v872, 4294901760
        %v2702 = vsub.f32 %v872, %v2701
        %v2703 = vand.u32 %v2702, 4294901760
        %2704 = vmatmul.mubr.f32.gmra.mrb[0].mxu0 %v2703
        %v2705 = vpop.f32.mrb[0].mxu0
        %v2706 = vadd.f32 %v2234, %v2705
        %v2707 = vpop.f32.mrb[0].mxu0
        %2708 = vmatprep.mubr.f32.mxu0 0.0
        %v2709 = vand.u32 %v875, 4294901760
        %v2710 = vsub.f32 %v875, %v2709
        %v2711 = vand.u32 %v2710, 4294901760
        %2712 = vmatmul.mubr.f32.gmra.mrb[0].mxu0 %v2711
        %v2713 = vpop.f32.mrb[0].mxu0
        %v2714 = vadd.f32 %v2241, %v2713
        %v2715 = vpop.f32.mrb[0].mxu0
        %2716 = vmatprep.mubr.f32.mxu0 0.0
        %v2717 = vand.u32 %v878, 4294901760
        %v2718 = vsub.f32 %v878, %v2717
        %v2719 = vand.u32 %v2718, 4294901760
        %2720 = vmatmul.mubr.f32.gmra.mrb[0].mxu0 %v2719
        %v2721 = vpop.f32.mrb[0].mxu0
        %v2722 = vadd.f32 %v2248, %v2721
        %v2723 = vpop.f32.mrb[0].mxu0
        %2724 = vmatprep.mubr.f32.mxu0 0.0
        %v2725 = vand.u32 %v881, 4294901760
        %v2726 = vsub.f32 %v881, %v2725
        %v2727 = vand.u32 %v2726, 4294901760
        %2728 = vmatmul.mubr.f32.gmra.mrb[0].mxu0 %v2727
        %v2729 = vpop.f32.mrb[0].mxu0
        %v2730 = vadd.f32 %v2255, %v2729
        %v2731 = vpop.f32.mrb[0].mxu0
        %2732 = vmatprep.mubr.f32.mxu0 0.0
        %v2733 = vand.u32 %v884, 4294901760
        %v2734 = vsub.f32 %v884, %v2733
        %v2735 = vand.u32 %v2734, 4294901760
        %2736 = vmatmul.mubr.f32.gmra.mrb[0].mxu0 %v2735
        %v2737 = vpop.f32.mrb[0].mxu0
        %v2738 = vadd.f32 %v2262, %v2737
        %v2739 = vpop.f32.mrb[0].mxu0
        %2740 = vmatprep.mubr.f32.mxu0 0.0
        %v2741 = vand.u32 %v887, 4294901760
        %v2742 = vsub.f32 %v887, %v2741
        %v2743 = vand.u32 %v2742, 4294901760
        %2744 = vmatmul.mubr.f32.gmra.mrb[0].mxu0 %v2743
        %v2745 = vpop.f32.mrb[0].mxu0
        %v2746 = vadd.f32 %v2269, %v2745
        %v2747 = vpop.f32.mrb[0].mxu0
        %2748 = vmatprep.mubr.f32.mxu0 0.0
        %v2749 = vand.u32 %v890, 4294901760
        %v2750 = vsub.f32 %v890, %v2749
        %v2751 = vand.u32 %v2750, 4294901760
        %2752 = vmatmul.mubr.f32.gmra.mrb[0].mxu0 %v2751
        %v2753 = vpop.f32.mrb[0].mxu0
        %v2754 = vadd.f32 %v2276, %v2753
        %v2755 = vpop.f32.mrb[0].mxu0
        %2756 = vmatprep.mubr.f32.mxu0 0.0
        %v2757 = vand.u32 %v893, 4294901760
        %v2758 = vsub.f32 %v893, %v2757
        %v2759 = vand.u32 %v2758, 4294901760
        %2760 = vmatmul.mubr.f32.gmra.mrb[0].mxu0 %v2759
        %v2761 = vpop.f32.mrb[0].mxu0
        %v2762 = vadd.f32 %v2283, %v2761
        %v2763 = vpop.f32.mrb[0].mxu0
        %2764 = vmatprep.mubr.f32.mxu0 0.0
        %v2765 = vand.u32 %v896, 4294901760
        %v2766 = vsub.f32 %v896, %v2765
        %v2767 = vand.u32 %v2766, 4294901760
        %2768 = vmatmul.mubr.f32.gmra.mrb[0].mxu0 %v2767
        %v2769 = vpop.f32.mrb[0].mxu0
        %v2770 = vadd.f32 %v2290, %v2769
        %v2771 = vpop.f32.mrb[0].mxu0
        %2772 = vmatprep.mubr.f32.mxu0 0.0
        %v2773 = vand.u32 %v899, 4294901760
        %v2774 = vsub.f32 %v899, %v2773
        %v2775 = vand.u32 %v2774, 4294901760
        %2776 = vmatmul.mubr.f32.gmra.mrb[0].mxu0 %v2775
        %v2777 = vpop.f32.mrb[0].mxu0
        %v2778 = vadd.f32 %v2297, %v2777
        %v2779 = vpop.f32.mrb[0].mxu0
        %2780 = vmatprep.mubr.f32.mxu0 0.0
        %v2781 = vand.u32 %v902, 4294901760
        %v2782 = vsub.f32 %v902, %v2781
        %v2783 = vand.u32 %v2782, 4294901760
        %2784 = vmatmul.mubr.f32.gmra.mrb[0].mxu0 %v2783
        %v2785 = vpop.f32.mrb[0].mxu0
        %v2786 = vadd.f32 %v2304, %v2785
        %v2787 = vpop.f32.mrb[0].mxu0
        %2788 = vdwg.mxu0
        %2789 = vmatprep.subr.mxu0 0.0
        %v2790 = vand.u32 %v906, 4294901760
        %v2791 = vsub.f32 %v906, %v2790
        %v2792 = vand.u32 %v2791, 4294901760
        %2793 = vmatpush1.msra.mxu0 %v2792
        %2794 = vmatprep.subr.mxu0 0.0
        %2795 = vmatpush1.msra.mxu0 0.0
        %2796 = vmatprep.subr.mxu0 0.0
        %2797 = vmatpush1.msra.mxu0 0.0
        %2798 = vmatprep.subr.mxu0 0.0
        %2799 = vmatpush1.msra.mxu0 0.0
        %2800 = vmatprep.subr.mxu0 0.0
        %2801 = vmatpush1.msra.mxu0 0.0
        %2802 = vmatprep.subr.mxu0 0.0
        %2803 = vmatpush1.msra.mxu0 0.0
        %2804 = vmatprep.subr.mxu0 0.0
        %2805 = vmatpush1.msra.mxu0 0.0
        %2806 = vmatprep.subr.mxu0 0.0
        %2807 = vmatpush1.msra.mxu0 0.0
        %2808 = vmatprep.subr.mxu0 0.0
        %2809 = vmatpush1.msra.mxu0 0.0
        %2810 = vmatprep.subr.mxu0 0.0
        %2811 = vmatpush1.msra.mxu0 0.0
        %2812 = vmatprep.subr.mxu0 0.0
        %2813 = vmatpush1.msra.mxu0 0.0
        %2814 = vmatprep.subr.mxu0 0.0
        %2815 = vmatpush1.msra.mxu0 0.0
        %2816 = vmatprep.subr.mxu0 0.0
        %2817 = vmatpush1.msra.mxu0 0.0
        %2818 = vmatprep.subr.mxu0 0.0
        %2819 = vmatpush1.msra.mxu0 0.0
        %2820 = vmatprep.subr.mxu0 0.0
        %2821 = vmatpush1.msra.mxu0 0.0
        %2822 = vmatprep.subr.mxu0 0.0
        %2823 = vmatpush1.msra.mxu0 0.0
        %2824 = vmatprep.subr.mxu0 0.0
        %2825 = vmatpush1.msra.mxu0 0.0
        %2826 = vmatprep.subr.mxu0 0.0
        %2827 = vmatpush1.msra.mxu0 0.0
        %2828 = vmatprep.subr.mxu0 0.0
        %2829 = vmatpush1.msra.mxu0 0.0
        %2830 = vmatprep.subr.mxu0 0.0
        %2831 = vmatpush1.msra.mxu0 0.0
        %2832 = vmatprep.subr.mxu0 0.0
        %2833 = vmatpush1.msra.mxu0 0.0
        %2834 = vmatprep.subr.mxu0 0.0
        %2835 = vmatpush1.msra.mxu0 0.0
        %2836 = vmatprep.subr.mxu0 0.0
        %2837 = vmatpush1.msra.mxu0 0.0
        %2838 = vmatprep.subr.mxu0 0.0
        %2839 = vmatpush1.msra.mxu0 0.0
        %2840 = vmatprep.subr.mxu0 0.0
        %2841 = vmatpush1.msra.mxu0 0.0
        %2842 = vmatprep.subr.mxu0 0.0
        %2843 = vmatpush1.msra.mxu0 0.0
        %2844 = vmatprep.subr.mxu0 0.0
        %2845 = vmatpush1.msra.mxu0 0.0
        %2846 = vmatprep.subr.mxu0 0.0
        %2847 = vmatpush1.msra.mxu0 0.0
        %2848 = vmatprep.subr.mxu0 0.0
        %2849 = vmatpush1.msra.mxu0 0.0
        %2850 = vmatprep.subr.mxu0 0.0
        %2851 = vmatpush1.msra.mxu0 0.0
        %2852 = vmatprep.subr.mxu0 0.0
        %2853 = vmatpush1.msra.mxu0 0.0
        %2854 = vmatprep.subr.mxu0 0.0
        %2855 = vmatpush1.msra.mxu0 0.0
        %2856 = vmatprep.mubr.f32.mxu0 0.0
        %v2857 = vand.u32 %v749, 4294901760
        %2858 = vmatmul.mubr.f32.gmra.mrb[0].mxu0 %v2857
        %v2859 = vpop.f32.mrb[0].mxu0
        %v2860 = vadd.f32 %v2378, %v2859
        %v2861 = vpop.f32.mrb[0].mxu0
        %2862 = vmatprep.mubr.f32.mxu0 0.0
        %v2863 = vand.u32 %v752, 4294901760
        %2864 = vmatmul.mubr.f32.gmra.mrb[0].mxu0 %v2863
        %v2865 = vpop.f32.mrb[0].mxu0
        %v2866 = vadd.f32 %v2386, %v2865
        %v2867 = vpop.f32.mrb[0].mxu0
        %2868 = vmatprep.mubr.f32.mxu0 0.0
        %v2869 = vand.u32 %v755, 4294901760
        %2870 = vmatmul.mubr.f32.gmra.mrb[0].mxu0 %v2869
        %v2871 = vpop.f32.mrb[0].mxu0
        %v2872 = vadd.f32 %v2394, %v2871
        %v2873 = vpop.f32.mrb[0].mxu0
        %2874 = vmatprep.mubr.f32.mxu0 0.0
        %v2875 = vand.u32 %v758, 4294901760
        %2876 = vmatmul.mubr.f32.gmra.mrb[0].mxu0 %v2875
        %v2877 = vpop.f32.mrb[0].mxu0
        %v2878 = vadd.f32 %v2402, %v2877
        %v2879 = vpop.f32.mrb[0].mxu0
        %2880 = vmatprep.mubr.f32.mxu0 0.0
        %v2881 = vand.u32 %v761, 4294901760
        %2882 = vmatmul.mubr.f32.gmra.mrb[0].mxu0 %v2881
        %v2883 = vpop.f32.mrb[0].mxu0
        %v2884 = vadd.f32 %v2410, %v2883
        %v2885 = vpop.f32.mrb[0].mxu0
        %2886 = vmatprep.mubr.f32.mxu0 0.0
        %v2887 = vand.u32 %v764, 4294901760
        %2888 = vmatmul.mubr.f32.gmra.mrb[0].mxu0 %v2887
        %v2889 = vpop.f32.mrb[0].mxu0
        %v2890 = vadd.f32 %v2418, %v2889
        %v2891 = vpop.f32.mrb[0].mxu0
        %2892 = vmatprep.mubr.f32.mxu0 0.0
        %v2893 = vand.u32 %v767, 4294901760
        %2894 = vmatmul.mubr.f32.gmra.mrb[0].mxu0 %v2893
        %v2895 = vpop.f32.mrb[0].mxu0
        %v2896 = vadd.f32 %v2426, %v2895
        %v2897 = vpop.f32.mrb[0].mxu0
        %2898 = vmatprep.mubr.f32.mxu0 0.0
        %v2899 = vand.u32 %v770, 4294901760
        %2900 = vmatmul.mubr.f32.gmra.mrb[0].mxu0 %v2899
        %v2901 = vpop.f32.mrb[0].mxu0
        %v2902 = vadd.f32 %v2434, %v2901
        %v2903 = vpop.f32.mrb[0].mxu0
        %2904 = vmatprep.mubr.f32.mxu0 0.0
        %v2905 = vand.u32 %v773, 4294901760
        %2906 = vmatmul.mubr.f32.gmra.mrb[0].mxu0 %v2905
        %v2907 = vpop.f32.mrb[0].mxu0
        %v2908 = vadd.f32 %v2442, %v2907
        %v2909 = vpop.f32.mrb[0].mxu0
        %2910 = vmatprep.mubr.f32.mxu0 0.0
        %v2911 = vand.u32 %v776, 4294901760
        %2912 = vmatmul.mubr.f32.gmra.mrb[0].mxu0 %v2911
        %v2913 = vpop.f32.mrb[0].mxu0
        %v2914 = vadd.f32 %v2450, %v2913
        %v2915 = vpop.f32.mrb[0].mxu0
        %2916 = vmatprep.mubr.f32.mxu0 0.0
        %v2917 = vand.u32 %v779, 4294901760
        %2918 = vmatmul.mubr.f32.gmra.mrb[0].mxu0 %v2917
        %v2919 = vpop.f32.mrb[0].mxu0
        %v2920 = vadd.f32 %v2458, %v2919
        %v2921 = vpop.f32.mrb[0].mxu0
        %2922 = vmatprep.mubr.f32.mxu0 0.0
        %v2923 = vand.u32 %v782, 4294901760
        %2924 = vmatmul.mubr.f32.gmra.mrb[0].mxu0 %v2923
        %v2925 = vpop.f32.mrb[0].mxu0
        %v2926 = vadd.f32 %v2466, %v2925
        %v2927 = vpop.f32.mrb[0].mxu0
        %2928 = vmatprep.mubr.f32.mxu0 0.0
        %v2929 = vand.u32 %v785, 4294901760
        %2930 = vmatmul.mubr.f32.gmra.mrb[0].mxu0 %v2929
        %v2931 = vpop.f32.mrb[0].mxu0
        %v2932 = vadd.f32 %v2474, %v2931
        %v2933 = vpop.f32.mrb[0].mxu0
        %2934 = vmatprep.mubr.f32.mxu0 0.0
        %v2935 = vand.u32 %v788, 4294901760
        %2936 = vmatmul.mubr.f32.gmra.mrb[0].mxu0 %v2935
        %v2937 = vpop.f32.mrb[0].mxu0
        %v2938 = vadd.f32 %v2482, %v2937
        %v2939 = vpop.f32.mrb[0].mxu0
        %2940 = vmatprep.mubr.f32.mxu0 0.0
        %v2941 = vand.u32 %v791, 4294901760
        %2942 = vmatmul.mubr.f32.gmra.mrb[0].mxu0 %v2941
        %v2943 = vpop.f32.mrb[0].mxu0
        %v2944 = vadd.f32 %v2490, %v2943
        %v2945 = vpop.f32.mrb[0].mxu0
        %2946 = vmatprep.mubr.f32.mxu0 0.0
        %v2947 = vand.u32 %v794, 4294901760
        %2948 = vmatmul.mubr.f32.gmra.mrb[0].mxu0 %v2947
        %v2949 = vpop.f32.mrb[0].mxu0
        %v2950 = vadd.f32 %v2498, %v2949
        %v2951 = vpop.f32.mrb[0].mxu0
        %2952 = vmatprep.mubr.f32.mxu0 0.0
        %v2953 = vand.u32 %v797, 4294901760
        %2954 = vmatmul.mubr.f32.gmra.mrb[0].mxu0 %v2953
        %v2955 = vpop.f32.mrb[0].mxu0
        %v2956 = vadd.f32 %v2506, %v2955
        %v2957 = vpop.f32.mrb[0].mxu0
        %2958 = vmatprep.mubr.f32.mxu0 0.0
        %v2959 = vand.u32 %v800, 4294901760
        %2960 = vmatmul.mubr.f32.gmra.mrb[0].mxu0 %v2959
        %v2961 = vpop.f32.mrb[0].mxu0
        %v2962 = vadd.f32 %v2514, %v2961
        %v2963 = vpop.f32.mrb[0].mxu0
        %2964 = vmatprep.mubr.f32.mxu0 0.0
        %v2965 = vand.u32 %v803, 4294901760
        %2966 = vmatmul.mubr.f32.gmra.mrb[0].mxu0 %v2965
        %v2967 = vpop.f32.mrb[0].mxu0
        %v2968 = vadd.f32 %v2522, %v2967
        %v2969 = vpop.f32.mrb[0].mxu0
        %2970 = vmatprep.mubr.f32.mxu0 0.0
        %v2971 = vand.u32 %v806, 4294901760
        %2972 = vmatmul.mubr.f32.gmra.mrb[0].mxu0 %v2971
        %v2973 = vpop.f32.mrb[0].mxu0
        %v2974 = vadd.f32 %v2530, %v2973
        %v2975 = vpop.f32.mrb[0].mxu0
        %2976 = vmatprep.mubr.f32.mxu0 0.0
        %v2977 = vand.u32 %v809, 4294901760
        %2978 = vmatmul.mubr.f32.gmra.mrb[0].mxu0 %v2977
        %v2979 = vpop.f32.mrb[0].mxu0
        %v2980 = vadd.f32 %v2538, %v2979
        %v2981 = vpop.f32.mrb[0].mxu0
        %2982 = vmatprep.mubr.f32.mxu0 0.0
        %v2983 = vand.u32 %v812, 4294901760
        %2984 = vmatmul.mubr.f32.gmra.mrb[0].mxu0 %v2983
        %v2985 = vpop.f32.mrb[0].mxu0
        %v2986 = vadd.f32 %v2546, %v2985
        %v2987 = vpop.f32.mrb[0].mxu0
        %2988 = vmatprep.mubr.f32.mxu0 0.0
        %v2989 = vand.u32 %v815, 4294901760
        %2990 = vmatmul.mubr.f32.gmra.mrb[0].mxu0 %v2989
        %v2991 = vpop.f32.mrb[0].mxu0
        %v2992 = vadd.f32 %v2554, %v2991
        %v2993 = vpop.f32.mrb[0].mxu0
        %2994 = vmatprep.mubr.f32.mxu0 0.0
        %v2995 = vand.u32 %v818, 4294901760
        %2996 = vmatmul.mubr.f32.gmra.mrb[0].mxu0 %v2995
        %v2997 = vpop.f32.mrb[0].mxu0
        %v2998 = vadd.f32 %v2562, %v2997
        %v2999 = vpop.f32.mrb[0].mxu0
        %3000 = vmatprep.mubr.f32.mxu0 0.0
        %v3001 = vand.u32 %v821, 4294901760
        %3002 = vmatmul.mubr.f32.gmra.mrb[0].mxu0 %v3001
        %v3003 = vpop.f32.mrb[0].mxu0
        %v3004 = vadd.f32 %v2570, %v3003
        %v3005 = vpop.f32.mrb[0].mxu0
        %3006 = vmatprep.mubr.f32.mxu0 0.0
        %v3007 = vand.u32 %v824, 4294901760
        %3008 = vmatmul.mubr.f32.gmra.mrb[0].mxu0 %v3007
        %v3009 = vpop.f32.mrb[0].mxu0
        %v3010 = vadd.f32 %v2578, %v3009
        %v3011 = vpop.f32.mrb[0].mxu0
        %3012 = vmatprep.mubr.f32.mxu0 0.0
        %v3013 = vand.u32 %v827, 4294901760
        %3014 = vmatmul.mubr.f32.gmra.mrb[0].mxu0 %v3013
        %v3015 = vpop.f32.mrb[0].mxu0
        %v3016 = vadd.f32 %v2586, %v3015
        %v3017 = vpop.f32.mrb[0].mxu0
        %3018 = vmatprep.mubr.f32.mxu0 0.0
        %v3019 = vand.u32 %v830, 4294901760
        %3020 = vmatmul.mubr.f32.gmra.mrb[0].mxu0 %v3019
        %v3021 = vpop.f32.mrb[0].mxu0
        %v3022 = vadd.f32 %v2594, %v3021
        %v3023 = vpop.f32.mrb[0].mxu0
        %3024 = vmatprep.mubr.f32.mxu0 0.0
        %v3025 = vand.u32 %v833, 4294901760
        %3026 = vmatmul.mubr.f32.gmra.mrb[0].mxu0 %v3025
        %v3027 = vpop.f32.mrb[0].mxu0
        %v3028 = vadd.f32 %v2602, %v3027
        %v3029 = vpop.f32.mrb[0].mxu0
        %3030 = vmatprep.mubr.f32.mxu0 0.0
        %v3031 = vand.u32 %v836, 4294901760
        %3032 = vmatmul.mubr.f32.gmra.mrb[0].mxu0 %v3031
        %v3033 = vpop.f32.mrb[0].mxu0
        %v3034 = vadd.f32 %v2610, %v3033
        %v3035 = vpop.f32.mrb[0].mxu0
        %3036 = vmatprep.mubr.f32.mxu0 0.0
        %v3037 = vand.u32 %v839, 4294901760
        %3038 = vmatmul.mubr.f32.gmra.mrb[0].mxu0 %v3037
        %v3039 = vpop.f32.mrb[0].mxu0
        %v3040 = vadd.f32 %v2618, %v3039
        %v3041 = vpop.f32.mrb[0].mxu0
        %3042 = vmatprep.mubr.f32.mxu0 0.0
        %v3043 = vand.u32 %v842, 4294901760
        %3044 = vmatmul.mubr.f32.gmra.mrb[0].mxu0 %v3043
        %v3045 = vpop.f32.mrb[0].mxu0
        %v3046 = vadd.f32 %v2626, %v3045
        %v3047 = vpop.f32.mrb[0].mxu0
        %3048 = vmatprep.mubr.f32.mxu0 0.0
        %v3049 = vand.u32 %v845, 4294901760
        %3050 = vmatmul.mubr.f32.gmra.mrb[0].mxu0 %v3049
        %v3051 = vpop.f32.mrb[0].mxu0
        %v3052 = vadd.f32 %v2634, %v3051
        %v3053 = vpop.f32.mrb[0].mxu0
        %3054 = vmatprep.mubr.f32.mxu0 0.0
        %v3055 = vand.u32 %v848, 4294901760
        %3056 = vmatmul.mubr.f32.gmra.mrb[0].mxu0 %v3055
        %v3057 = vpop.f32.mrb[0].mxu0
        %v3058 = vadd.f32 %v2642, %v3057
        %v3059 = vpop.f32.mrb[0].mxu0
        %3060 = vmatprep.mubr.f32.mxu0 0.0
        %v3061 = vand.u32 %v851, 4294901760
        %3062 = vmatmul.mubr.f32.gmra.mrb[0].mxu0 %v3061
        %v3063 = vpop.f32.mrb[0].mxu0
        %v3064 = vadd.f32 %v2650, %v3063
        %v3065 = vpop.f32.mrb[0].mxu0
        %3066 = vmatprep.mubr.f32.mxu0 0.0
        %v3067 = vand.u32 %v854, 4294901760
        %3068 = vmatmul.mubr.f32.gmra.mrb[0].mxu0 %v3067
        %v3069 = vpop.f32.mrb[0].mxu0
        %v3070 = vadd.f32 %v2658, %v3069
        %v3071 = vpop.f32.mrb[0].mxu0
        %3072 = vmatprep.mubr.f32.mxu0 0.0
        %v3073 = vand.u32 %v857, 4294901760
        %3074 = vmatmul.mubr.f32.gmra.mrb[0].mxu0 %v3073
        %v3075 = vpop.f32.mrb[0].mxu0
        %v3076 = vadd.f32 %v2666, %v3075
        %v3077 = vpop.f32.mrb[0].mxu0
        %3078 = vmatprep.mubr.f32.mxu0 0.0
        %v3079 = vand.u32 %v860, 4294901760
        %3080 = vmatmul.mubr.f32.gmra.mrb[0].mxu0 %v3079
        %v3081 = vpop.f32.mrb[0].mxu0
        %v3082 = vadd.f32 %v2674, %v3081
        %v3083 = vpop.f32.mrb[0].mxu0
        %3084 = vmatprep.mubr.f32.mxu0 0.0
        %v3085 = vand.u32 %v863, 4294901760
        %3086 = vmatmul.mubr.f32.gmra.mrb[0].mxu0 %v3085
        %v3087 = vpop.f32.mrb[0].mxu0
        %v3088 = vadd.f32 %v2682, %v3087
        %v3089 = vpop.f32.mrb[0].mxu0
        %3090 = vmatprep.mubr.f32.mxu0 0.0
        %v3091 = vand.u32 %v866, 4294901760
        %3092 = vmatmul.mubr.f32.gmra.mrb[0].mxu0 %v3091
        %v3093 = vpop.f32.mrb[0].mxu0
        %v3094 = vadd.f32 %v2690, %v3093
        %v3095 = vpop.f32.mrb[0].mxu0
        %3096 = vmatprep.mubr.f32.mxu0 0.0
        %v3097 = vand.u32 %v869, 4294901760
        %3098 = vmatmul.mubr.f32.gmra.mrb[0].mxu0 %v3097
        %v3099 = vpop.f32.mrb[0].mxu0
        %v3100 = vadd.f32 %v2698, %v3099
        %v3101 = vpop.f32.mrb[0].mxu0
        %3102 = vmatprep.mubr.f32.mxu0 0.0
        %v3103 = vand.u32 %v872, 4294901760
        %3104 = vmatmul.mubr.f32.gmra.mrb[0].mxu0 %v3103
        %v3105 = vpop.f32.mrb[0].mxu0
        %v3106 = vadd.f32 %v2706, %v3105
        %v3107 = vpop.f32.mrb[0].mxu0
        %3108 = vmatprep.mubr.f32.mxu0 0.0
        %v3109 = vand.u32 %v875, 4294901760
        %3110 = vmatmul.mubr.f32.gmra.mrb[0].mxu0 %v3109
        %v3111 = vpop.f32.mrb[0].mxu0
        %v3112 = vadd.f32 %v2714, %v3111
        %v3113 = vpop.f32.mrb[0].mxu0
        %3114 = vmatprep.mubr.f32.mxu0 0.0
        %v3115 = vand.u32 %v878, 4294901760
        %3116 = vmatmul.mubr.f32.gmra.mrb[0].mxu0 %v3115
        %v3117 = vpop.f32.mrb[0].mxu0
        %v3118 = vadd.f32 %v2722, %v3117
        %v3119 = vpop.f32.mrb[0].mxu0
        %3120 = vmatprep.mubr.f32.mxu0 0.0
        %v3121 = vand.u32 %v881, 4294901760
        %3122 = vmatmul.mubr.f32.gmra.mrb[0].mxu0 %v3121
        %v3123 = vpop.f32.mrb[0].mxu0
        %v3124 = vadd.f32 %v2730, %v3123
        %v3125 = vpop.f32.mrb[0].mxu0
        %3126 = vmatprep.mubr.f32.mxu0 0.0
        %v3127 = vand.u32 %v884, 4294901760
        %3128 = vmatmul.mubr.f32.gmra.mrb[0].mxu0 %v3127
        %v3129 = vpop.f32.mrb[0].mxu0
        %v3130 = vadd.f32 %v2738, %v3129
        %v3131 = vpop.f32.mrb[0].mxu0
        %3132 = vmatprep.mubr.f32.mxu0 0.0
        %v3133 = vand.u32 %v887, 4294901760
        %3134 = vmatmul.mubr.f32.gmra.mrb[0].mxu0 %v3133
        %v3135 = vpop.f32.mrb[0].mxu0
        %v3136 = vadd.f32 %v2746, %v3135
        %v3137 = vpop.f32.mrb[0].mxu0
        %3138 = vmatprep.mubr.f32.mxu0 0.0
        %v3139 = vand.u32 %v890, 4294901760
        %3140 = vmatmul.mubr.f32.gmra.mrb[0].mxu0 %v3139
        %v3141 = vpop.f32.mrb[0].mxu0
        %v3142 = vadd.f32 %v2754, %v3141
        %v3143 = vpop.f32.mrb[0].mxu0
        %3144 = vmatprep.mubr.f32.mxu0 0.0
        %v3145 = vand.u32 %v893, 4294901760
        %3146 = vmatmul.mubr.f32.gmra.mrb[0].mxu0 %v3145
        %v3147 = vpop.f32.mrb[0].mxu0
        %v3148 = vadd.f32 %v2762, %v3147
        %v3149 = vpop.f32.mrb[0].mxu0
        %3150 = vmatprep.mubr.f32.mxu0 0.0
        %v3151 = vand.u32 %v896, 4294901760
        %3152 = vmatmul.mubr.f32.gmra.mrb[0].mxu0 %v3151
        %v3153 = vpop.f32.mrb[0].mxu0
        %v3154 = vadd.f32 %v2770, %v3153
        %v3155 = vpop.f32.mrb[0].mxu0
        %3156 = vmatprep.mubr.f32.mxu0 0.0
        %v3157 = vand.u32 %v899, 4294901760
        %3158 = vmatmul.mubr.f32.gmra.mrb[0].mxu0 %v3157
        %v3159 = vpop.f32.mrb[0].mxu0
        %v3160 = vadd.f32 %v2778, %v3159
        %v3161 = vpop.f32.mrb[0].mxu0
        %3162 = vmatprep.mubr.f32.mxu0 0.0
        %v3163 = vand.u32 %v902, 4294901760
        %3164 = vmatmul.mubr.f32.gmra.mrb[0].mxu0 %v3163
        %v3165 = vpop.f32.mrb[0].mxu0
        %v3166 = vadd.f32 %v2786, %v3165
        %v3167 = vpop.f32.mrb[0].mxu0
        %3168 = vdwg.mxu0
        %3169 = vmatprep.subr.mxu0 0.0
        %v3170 = vand.u32 %v906, 4294901760
        %3171 = vmatpush1.msra.mxu0 %v3170
        %3172 = vmatprep.subr.mxu0 0.0
        %3173 = vmatpush1.msra.mxu0 0.0
        %3174 = vmatprep.subr.mxu0 0.0
        %3175 = vmatpush1.msra.mxu0 0.0
        %3176 = vmatprep.subr.mxu0 0.0
        %3177 = vmatpush1.msra.mxu0 0.0
        %3178 = vmatprep.subr.mxu0 0.0
        %3179 = vmatpush1.msra.mxu0 0.0
        %3180 = vmatprep.subr.mxu0 0.0
        %3181 = vmatpush1.msra.mxu0 0.0
        %3182 = vmatprep.subr.mxu0 0.0
        %3183 = vmatpush1.msra.mxu0 0.0
        %3184 = vmatprep.subr.mxu0 0.0
        %3185 = vmatpush1.msra.mxu0 0.0
        %3186 = vmatprep.subr.mxu0 0.0
        %3187 = vmatpush1.msra.mxu0 0.0
        %3188 = vmatprep.subr.mxu0 0.0
        %3189 = vmatpush1.msra.mxu0 0.0
        %3190 = vmatprep.subr.mxu0 0.0
        %3191 = vmatpush1.msra.mxu0 0.0
        %3192 = vmatprep.subr.mxu0 0.0
        %3193 = vmatpush1.msra.mxu0 0.0
        %3194 = vmatprep.subr.mxu0 0.0
        %3195 = vmatpush1.msra.mxu0 0.0
        %3196 = vmatprep.subr.mxu0 0.0
        %3197 = vmatpush1.msra.mxu0 0.0
        %3198 = vmatprep.subr.mxu0 0.0
        %3199 = vmatpush1.msra.mxu0 0.0
        %3200 = vmatprep.subr.mxu0 0.0
        %3201 = vmatpush1.msra.mxu0 0.0
        %3202 = vmatprep.subr.mxu0 0.0
        %3203 = vmatpush1.msra.mxu0 0.0
        %3204 = vmatprep.subr.mxu0 0.0
        %3205 = vmatpush1.msra.mxu0 0.0
        %3206 = vmatprep.subr.mxu0 0.0
        %3207 = vmatpush1.msra.mxu0 0.0
        %3208 = vmatprep.subr.mxu0 0.0
        %3209 = vmatpush1.msra.mxu0 0.0
        %3210 = vmatprep.subr.mxu0 0.0
        %3211 = vmatpush1.msra.mxu0 0.0
        %3212 = vmatprep.subr.mxu0 0.0
        %3213 = vmatpush1.msra.mxu0 0.0
        %3214 = vmatprep.subr.mxu0 0.0
        %3215 = vmatpush1.msra.mxu0 0.0
        %3216 = vmatprep.subr.mxu0 0.0
        %3217 = vmatpush1.msra.mxu0 0.0
        %3218 = vmatprep.subr.mxu0 0.0
        %3219 = vmatpush1.msra.mxu0 0.0
        %3220 = vmatprep.subr.mxu0 0.0
        %3221 = vmatpush1.msra.mxu0 0.0
        %3222 = vmatprep.subr.mxu0 0.0
        %3223 = vmatpush1.msra.mxu0 0.0
        %3224 = vmatprep.subr.mxu0 0.0
        %3225 = vmatpush1.msra.mxu0 0.0
        %3226 = vmatprep.subr.mxu0 0.0
        %3227 = vmatpush1.msra.mxu0 0.0
        %3228 = vmatprep.subr.mxu0 0.0
        %3229 = vmatpush1.msra.mxu0 0.0
        %3230 = vmatprep.subr.mxu0 0.0
        %3231 = vmatpush1.msra.mxu0 0.0
        %3232 = vmatprep.subr.mxu0 0.0
        %3233 = vmatpush1.msra.mxu0 0.0
        %3234 = vmatprep.mubr.f32.mxu0 0.0
        %v3235 = vand.u32 %v749, 4294901760
        %3236 = vmatmul.mubr.f32.gmra.mrb[0].mxu0 %v3235
        %v3237 = vpop.f32.mrb[0].mxu0
        %v3238 = vadd.f32 %v2860, %v3237
        %v3239 = vpop.f32.mrb[0].mxu0
        %3240 = vmatprep.mubr.f32.mxu0 0.0
        %v3241 = vand.u32 %v752, 4294901760
        %3242 = vmatmul.mubr.f32.gmra.mrb[0].mxu0 %v3241
        %v3243 = vpop.f32.mrb[0].mxu0
        %v3244 = vadd.f32 %v2866, %v3243
        %v3245 = vpop.f32.mrb[0].mxu0
        %3246 = vmatprep.mubr.f32.mxu0 0.0
        %v3247 = vand.u32 %v755, 4294901760
        %3248 = vmatmul.mubr.f32.gmra.mrb[0].mxu0 %v3247
        %v3249 = vpop.f32.mrb[0].mxu0
        %v3250 = vadd.f32 %v2872, %v3249
        %v3251 = vpop.f32.mrb[0].mxu0
        %3252 = vmatprep.mubr.f32.mxu0 0.0
        %v3253 = vand.u32 %v758, 4294901760
        %3254 = vmatmul.mubr.f32.gmra.mrb[0].mxu0 %v3253
        %v3255 = vpop.f32.mrb[0].mxu0
        %v3256 = vadd.f32 %v2878, %v3255
        %v3257 = vpop.f32.mrb[0].mxu0
        %3258 = vmatprep.mubr.f32.mxu0 0.0
        %v3259 = vand.u32 %v761, 4294901760
        %3260 = vmatmul.mubr.f32.gmra.mrb[0].mxu0 %v3259
        %v3261 = vpop.f32.mrb[0].mxu0
        %v3262 = vadd.f32 %v2884, %v3261
        %v3263 = vpop.f32.mrb[0].mxu0
        %3264 = vmatprep.mubr.f32.mxu0 0.0
        %v3265 = vand.u32 %v764, 4294901760
        %3266 = vmatmul.mubr.f32.gmra.mrb[0].mxu0 %v3265
        %v3267 = vpop.f32.mrb[0].mxu0
        %v3268 = vadd.f32 %v2890, %v3267
        %v3269 = vpop.f32.mrb[0].mxu0
        %3270 = vmatprep.mubr.f32.mxu0 0.0
        %v3271 = vand.u32 %v767, 4294901760
        %3272 = vmatmul.mubr.f32.gmra.mrb[0].mxu0 %v3271
        %v3273 = vpop.f32.mrb[0].mxu0
        %v3274 = vadd.f32 %v2896, %v3273
        %v3275 = vpop.f32.mrb[0].mxu0
        %3276 = vmatprep.mubr.f32.mxu0 0.0
        %v3277 = vand.u32 %v770, 4294901760
        %3278 = vmatmul.mubr.f32.gmra.mrb[0].mxu0 %v3277
        %v3279 = vpop.f32.mrb[0].mxu0
        %v3280 = vadd.f32 %v2902, %v3279
        %v3281 = vpop.f32.mrb[0].mxu0
        %3282 = vmatprep.mubr.f32.mxu0 0.0
        %v3283 = vand.u32 %v773, 4294901760
        %3284 = vmatmul.mubr.f32.gmra.mrb[0].mxu0 %v3283
        %v3285 = vpop.f32.mrb[0].mxu0
        %v3286 = vadd.f32 %v2908, %v3285
        %v3287 = vpop.f32.mrb[0].mxu0
        %3288 = vmatprep.mubr.f32.mxu0 0.0
        %v3289 = vand.u32 %v776, 4294901760
        %3290 = vmatmul.mubr.f32.gmra.mrb[0].mxu0 %v3289
        %v3291 = vpop.f32.mrb[0].mxu0
        %v3292 = vadd.f32 %v2914, %v3291
        %v3293 = vpop.f32.mrb[0].mxu0
        %3294 = vmatprep.mubr.f32.mxu0 0.0
        %v3295 = vand.u32 %v779, 4294901760
        %3296 = vmatmul.mubr.f32.gmra.mrb[0].mxu0 %v3295
        %v3297 = vpop.f32.mrb[0].mxu0
        %v3298 = vadd.f32 %v2920, %v3297
        %v3299 = vpop.f32.mrb[0].mxu0
        %3300 = vmatprep.mubr.f32.mxu0 0.0
        %v3301 = vand.u32 %v782, 4294901760
        %3302 = vmatmul.mubr.f32.gmra.mrb[0].mxu0 %v3301
        %v3303 = vpop.f32.mrb[0].mxu0
        %v3304 = vadd.f32 %v2926, %v3303
        %v3305 = vpop.f32.mrb[0].mxu0
        %3306 = vmatprep.mubr.f32.mxu0 0.0
        %v3307 = vand.u32 %v785, 4294901760
        %3308 = vmatmul.mubr.f32.gmra.mrb[0].mxu0 %v3307
        %v3309 = vpop.f32.mrb[0].mxu0
        %v3310 = vadd.f32 %v2932, %v3309
        %v3311 = vpop.f32.mrb[0].mxu0
        %3312 = vmatprep.mubr.f32.mxu0 0.0
        %v3313 = vand.u32 %v788, 4294901760
        %3314 = vmatmul.mubr.f32.gmra.mrb[0].mxu0 %v3313
        %v3315 = vpop.f32.mrb[0].mxu0
        %v3316 = vadd.f32 %v2938, %v3315
        %v3317 = vpop.f32.mrb[0].mxu0
        %3318 = vmatprep.mubr.f32.mxu0 0.0
        %v3319 = vand.u32 %v791, 4294901760
        %3320 = vmatmul.mubr.f32.gmra.mrb[0].mxu0 %v3319
        %v3321 = vpop.f32.mrb[0].mxu0
        %v3322 = vadd.f32 %v2944, %v3321
        %v3323 = vpop.f32.mrb[0].mxu0
        %3324 = vmatprep.mubr.f32.mxu0 0.0
        %v3325 = vand.u32 %v794, 4294901760
        %3326 = vmatmul.mubr.f32.gmra.mrb[0].mxu0 %v3325
        %v3327 = vpop.f32.mrb[0].mxu0
        %v3328 = vadd.f32 %v2950, %v3327
        %v3329 = vpop.f32.mrb[0].mxu0
        %3330 = vmatprep.mubr.f32.mxu0 0.0
        %v3331 = vand.u32 %v797, 4294901760
        %3332 = vmatmul.mubr.f32.gmra.mrb[0].mxu0 %v3331
        %v3333 = vpop.f32.mrb[0].mxu0
        %v3334 = vadd.f32 %v2956, %v3333
        %v3335 = vpop.f32.mrb[0].mxu0
        %3336 = vmatprep.mubr.f32.mxu0 0.0
        %v3337 = vand.u32 %v800, 4294901760
        %3338 = vmatmul.mubr.f32.gmra.mrb[0].mxu0 %v3337
        %v3339 = vpop.f32.mrb[0].mxu0
        %v3340 = vadd.f32 %v2962, %v3339
        %v3341 = vpop.f32.mrb[0].mxu0
        %3342 = vmatprep.mubr.f32.mxu0 0.0
        %v3343 = vand.u32 %v803, 4294901760
        %3344 = vmatmul.mubr.f32.gmra.mrb[0].mxu0 %v3343
        %v3345 = vpop.f32.mrb[0].mxu0
        %v3346 = vadd.f32 %v2968, %v3345
        %v3347 = vpop.f32.mrb[0].mxu0
        %3348 = vmatprep.mubr.f32.mxu0 0.0
        %v3349 = vand.u32 %v806, 4294901760
        %3350 = vmatmul.mubr.f32.gmra.mrb[0].mxu0 %v3349
        %v3351 = vpop.f32.mrb[0].mxu0
        %v3352 = vadd.f32 %v2974, %v3351
        %v3353 = vpop.f32.mrb[0].mxu0
        %3354 = vmatprep.mubr.f32.mxu0 0.0
        %v3355 = vand.u32 %v809, 4294901760
        %3356 = vmatmul.mubr.f32.gmra.mrb[0].mxu0 %v3355
        %v3357 = vpop.f32.mrb[0].mxu0
        %v3358 = vadd.f32 %v2980, %v3357
        %v3359 = vpop.f32.mrb[0].mxu0
        %3360 = vmatprep.mubr.f32.mxu0 0.0
        %v3361 = vand.u32 %v812, 4294901760
        %3362 = vmatmul.mubr.f32.gmra.mrb[0].mxu0 %v3361
        %v3363 = vpop.f32.mrb[0].mxu0
        %v3364 = vadd.f32 %v2986, %v3363
        %v3365 = vpop.f32.mrb[0].mxu0
        %3366 = vmatprep.mubr.f32.mxu0 0.0
        %v3367 = vand.u32 %v815, 4294901760
        %3368 = vmatmul.mubr.f32.gmra.mrb[0].mxu0 %v3367
        %v3369 = vpop.f32.mrb[0].mxu0
        %v3370 = vadd.f32 %v2992, %v3369
        %v3371 = vpop.f32.mrb[0].mxu0
        %3372 = vmatprep.mubr.f32.mxu0 0.0
        %v3373 = vand.u32 %v818, 4294901760
        %3374 = vmatmul.mubr.f32.gmra.mrb[0].mxu0 %v3373
        %v3375 = vpop.f32.mrb[0].mxu0
        %v3376 = vadd.f32 %v2998, %v3375
        %v3377 = vpop.f32.mrb[0].mxu0
        %3378 = vmatprep.mubr.f32.mxu0 0.0
        %v3379 = vand.u32 %v821, 4294901760
        %3380 = vmatmul.mubr.f32.gmra.mrb[0].mxu0 %v3379
        %v3381 = vpop.f32.mrb[0].mxu0
        %v3382 = vadd.f32 %v3004, %v3381
        %v3383 = vpop.f32.mrb[0].mxu0
        %3384 = vmatprep.mubr.f32.mxu0 0.0
        %v3385 = vand.u32 %v824, 4294901760
        %3386 = vmatmul.mubr.f32.gmra.mrb[0].mxu0 %v3385
        %v3387 = vpop.f32.mrb[0].mxu0
        %v3388 = vadd.f32 %v3010, %v3387
        %v3389 = vpop.f32.mrb[0].mxu0
        %3390 = vmatprep.mubr.f32.mxu0 0.0
        %v3391 = vand.u32 %v827, 4294901760
        %3392 = vmatmul.mubr.f32.gmra.mrb[0].mxu0 %v3391
        %v3393 = vpop.f32.mrb[0].mxu0
        %v3394 = vadd.f32 %v3016, %v3393
        %v3395 = vpop.f32.mrb[0].mxu0
        %3396 = vmatprep.mubr.f32.mxu0 0.0
        %v3397 = vand.u32 %v830, 4294901760
        %3398 = vmatmul.mubr.f32.gmra.mrb[0].mxu0 %v3397
        %v3399 = vpop.f32.mrb[0].mxu0
        %v3400 = vadd.f32 %v3022, %v3399
        %v3401 = vpop.f32.mrb[0].mxu0
        %3402 = vmatprep.mubr.f32.mxu0 0.0
        %v3403 = vand.u32 %v833, 4294901760
        %3404 = vmatmul.mubr.f32.gmra.mrb[0].mxu0 %v3403
        %v3405 = vpop.f32.mrb[0].mxu0
        %v3406 = vadd.f32 %v3028, %v3405
        %v3407 = vpop.f32.mrb[0].mxu0
        %3408 = vmatprep.mubr.f32.mxu0 0.0
        %v3409 = vand.u32 %v836, 4294901760
        %3410 = vmatmul.mubr.f32.gmra.mrb[0].mxu0 %v3409
        %v3411 = vpop.f32.mrb[0].mxu0
        %v3412 = vadd.f32 %v3034, %v3411
        %v3413 = vpop.f32.mrb[0].mxu0
        %3414 = vmatprep.mubr.f32.mxu0 0.0
        %v3415 = vand.u32 %v839, 4294901760
        %3416 = vmatmul.mubr.f32.gmra.mrb[0].mxu0 %v3415
        %v3417 = vpop.f32.mrb[0].mxu0
        %v3418 = vadd.f32 %v3040, %v3417
        %v3419 = vpop.f32.mrb[0].mxu0
        %3420 = vmatprep.mubr.f32.mxu0 0.0
        %v3421 = vand.u32 %v842, 4294901760
        %3422 = vmatmul.mubr.f32.gmra.mrb[0].mxu0 %v3421
        %v3423 = vpop.f32.mrb[0].mxu0
        %v3424 = vadd.f32 %v3046, %v3423
        %v3425 = vpop.f32.mrb[0].mxu0
        %3426 = vmatprep.mubr.f32.mxu0 0.0
        %v3427 = vand.u32 %v845, 4294901760
        %3428 = vmatmul.mubr.f32.gmra.mrb[0].mxu0 %v3427
        %v3429 = vpop.f32.mrb[0].mxu0
        %v3430 = vadd.f32 %v3052, %v3429
        %v3431 = vpop.f32.mrb[0].mxu0
        %3432 = vmatprep.mubr.f32.mxu0 0.0
        %v3433 = vand.u32 %v848, 4294901760
        %3434 = vmatmul.mubr.f32.gmra.mrb[0].mxu0 %v3433
        %v3435 = vpop.f32.mrb[0].mxu0
        %v3436 = vadd.f32 %v3058, %v3435
        %v3437 = vpop.f32.mrb[0].mxu0
        %3438 = vmatprep.mubr.f32.mxu0 0.0
        %v3439 = vand.u32 %v851, 4294901760
        %3440 = vmatmul.mubr.f32.gmra.mrb[0].mxu0 %v3439
        %v3441 = vpop.f32.mrb[0].mxu0
        %v3442 = vadd.f32 %v3064, %v3441
        %v3443 = vpop.f32.mrb[0].mxu0
        %3444 = vmatprep.mubr.f32.mxu0 0.0
        %v3445 = vand.u32 %v854, 4294901760
        %3446 = vmatmul.mubr.f32.gmra.mrb[0].mxu0 %v3445
        %v3447 = vpop.f32.mrb[0].mxu0
        %v3448 = vadd.f32 %v3070, %v3447
        %v3449 = vpop.f32.mrb[0].mxu0
        %3450 = vmatprep.mubr.f32.mxu0 0.0
        %v3451 = vand.u32 %v857, 4294901760
        %3452 = vmatmul.mubr.f32.gmra.mrb[0].mxu0 %v3451
        %v3453 = vpop.f32.mrb[0].mxu0
        %v3454 = vadd.f32 %v3076, %v3453
        %v3455 = vpop.f32.mrb[0].mxu0
        %3456 = vmatprep.mubr.f32.mxu0 0.0
        %v3457 = vand.u32 %v860, 4294901760
        %3458 = vmatmul.mubr.f32.gmra.mrb[0].mxu0 %v3457
        %v3459 = vpop.f32.mrb[0].mxu0
        %v3460 = vadd.f32 %v3082, %v3459
        %v3461 = vpop.f32.mrb[0].mxu0
        %3462 = vmatprep.mubr.f32.mxu0 0.0
        %v3463 = vand.u32 %v863, 4294901760
        %3464 = vmatmul.mubr.f32.gmra.mrb[0].mxu0 %v3463
        %v3465 = vpop.f32.mrb[0].mxu0
        %v3466 = vadd.f32 %v3088, %v3465
        %v3467 = vpop.f32.mrb[0].mxu0
        %3468 = vmatprep.mubr.f32.mxu0 0.0
        %v3469 = vand.u32 %v866, 4294901760
        %3470 = vmatmul.mubr.f32.gmra.mrb[0].mxu0 %v3469
        %v3471 = vpop.f32.mrb[0].mxu0
        %v3472 = vadd.f32 %v3094, %v3471
        %v3473 = vpop.f32.mrb[0].mxu0
        %3474 = vmatprep.mubr.f32.mxu0 0.0
        %v3475 = vand.u32 %v869, 4294901760
        %3476 = vmatmul.mubr.f32.gmra.mrb[0].mxu0 %v3475
        %v3477 = vpop.f32.mrb[0].mxu0
        %v3478 = vadd.f32 %v3100, %v3477
        %v3479 = vpop.f32.mrb[0].mxu0
        %3480 = vmatprep.mubr.f32.mxu0 0.0
        %v3481 = vand.u32 %v872, 4294901760
        %3482 = vmatmul.mubr.f32.gmra.mrb[0].mxu0 %v3481
        %v3483 = vpop.f32.mrb[0].mxu0
        %v3484 = vadd.f32 %v3106, %v3483
        %v3485 = vpop.f32.mrb[0].mxu0
        %3486 = vmatprep.mubr.f32.mxu0 0.0
        %v3487 = vand.u32 %v875, 4294901760
        %3488 = vmatmul.mubr.f32.gmra.mrb[0].mxu0 %v3487
        %v3489 = vpop.f32.mrb[0].mxu0
        %v3490 = vadd.f32 %v3112, %v3489
        %v3491 = vpop.f32.mrb[0].mxu0
        %3492 = vmatprep.mubr.f32.mxu0 0.0
        %v3493 = vand.u32 %v878, 4294901760
        %3494 = vmatmul.mubr.f32.gmra.mrb[0].mxu0 %v3493
        %v3495 = vpop.f32.mrb[0].mxu0
        %v3496 = vadd.f32 %v3118, %v3495
        %v3497 = vpop.f32.mrb[0].mxu0
        %3498 = vmatprep.mubr.f32.mxu0 0.0
        %v3499 = vand.u32 %v881, 4294901760
        %3500 = vmatmul.mubr.f32.gmra.mrb[0].mxu0 %v3499
        %v3501 = vpop.f32.mrb[0].mxu0
        %v3502 = vadd.f32 %v3124, %v3501
        %v3503 = vpop.f32.mrb[0].mxu0
        %3504 = vmatprep.mubr.f32.mxu0 0.0
        %v3505 = vand.u32 %v884, 4294901760
        %3506 = vmatmul.mubr.f32.gmra.mrb[0].mxu0 %v3505
        %v3507 = vpop.f32.mrb[0].mxu0
        %v3508 = vadd.f32 %v3130, %v3507
        %v3509 = vpop.f32.mrb[0].mxu0
        %3510 = vmatprep.mubr.f32.mxu0 0.0
        %v3511 = vand.u32 %v887, 4294901760
        %3512 = vmatmul.mubr.f32.gmra.mrb[0].mxu0 %v3511
        %v3513 = vpop.f32.mrb[0].mxu0
        %v3514 = vadd.f32 %v3136, %v3513
        %v3515 = vpop.f32.mrb[0].mxu0
        %3516 = vmatprep.mubr.f32.mxu0 0.0
        %v3517 = vand.u32 %v890, 4294901760
        %3518 = vmatmul.mubr.f32.gmra.mrb[0].mxu0 %v3517
        %v3519 = vpop.f32.mrb[0].mxu0
        %v3520 = vadd.f32 %v3142, %v3519
        %v3521 = vpop.f32.mrb[0].mxu0
        %3522 = vmatprep.mubr.f32.mxu0 0.0
        %v3523 = vand.u32 %v893, 4294901760
        %3524 = vmatmul.mubr.f32.gmra.mrb[0].mxu0 %v3523
        %v3525 = vpop.f32.mrb[0].mxu0
        %v3526 = vadd.f32 %v3148, %v3525
        %v3527 = vpop.f32.mrb[0].mxu0
        %3528 = vmatprep.mubr.f32.mxu0 0.0
        %v3529 = vand.u32 %v896, 4294901760
        %3530 = vmatmul.mubr.f32.gmra.mrb[0].mxu0 %v3529
        %v3531 = vpop.f32.mrb[0].mxu0
        %v3532 = vadd.f32 %v3154, %v3531
        %v3533 = vpop.f32.mrb[0].mxu0
        %3534 = vmatprep.mubr.f32.mxu0 0.0
        %v3535 = vand.u32 %v899, 4294901760
        %3536 = vmatmul.mubr.f32.gmra.mrb[0].mxu0 %v3535
        %v3537 = vpop.f32.mrb[0].mxu0
        %v3538 = vadd.f32 %v3160, %v3537
        %v3539 = vpop.f32.mrb[0].mxu0
        %3540 = vmatprep.mubr.f32.mxu0 0.0
        %v3541 = vand.u32 %v902, 4294901760
        %3542 = vmatmul.mubr.f32.gmra.mrb[0].mxu0 %v3541
        %v3543 = vpop.f32.mrb[0].mxu0
        %v3544 = vadd.f32 %v3166, %v3543
        %v3545 = vpop.f32.mrb[0].mxu0
        %3546 = vdwg.mxu0
        %v3547 = vtanh.pop %v3238
        %v3548 = vtanh.pop %v3244
        %v3549 = vtanh.pop %v3250
        %v3550 = vtanh.pop %v3256
        %v3551 = vld [vmem:[%s3] sm:$0xff]
        %v3552 = vld [vmem:[%s3 + $0x8] sm:$0xff]
        %v3553 = vld [vmem:[%s3 + $0x10] sm:$0xff]
        %v3554 = vld [vmem:[%s3 + $0x18] sm:$0xff]
        %v3555 = vld [vmem:[%s3 + $0x20] sm:$0xff]
        %v3556 = vld [vmem:[%s3 + $0x28] sm:$0xff]
        %v3557 = vld [vmem:[%s3 + $0x30] sm:$0xff]
        %v3558 = vld [vmem:[%s3 + $0x38] sm:$0xff]
        %v3559 = vld [vmem:[%s3 + $0x40] sm:$0xff]
        %v3560 = vld [vmem:[%s3 + $0x48] sm:$0xff]
        %v3561 = vld [vmem:[%s3 + $0x50] sm:$0xff]
        %v3562 = vld [vmem:[%s3 + $0x58] sm:$0xff]
        %vm3563 = vcmask 261120
        %v3565 = vsel %vm3563, %v3551, 0
        %v3568 = vsel %vm3563, %v3552, 0
        %v3571 = vsel %vm3563, %v3553, 0
        %v3574 = vsel %vm3563, %v3554, 0
        %v3577 = vsel %vm3563, %v3555, 0
        %v3580 = vsel %vm3563, %v3556, 0
        %v3583 = vsel %vm3563, %v3557, 0
        %v3586 = vsel %vm3563, %v3558, 0
        %v3589 = vsel %vm3563, %v3559, 0
        %v3592 = vsel %vm3563, %v3560, 0
        %v3595 = vsel %vm3563, %v3561, 0
        %v3598 = vsel %vm3563, %v3562, 0
        %3600 = vmatprep.subr.mxu0 0.0
        %v3601 = vand.u32 %v3547, 4294901760
        %3602 = vmatpush1.msra.mxu0 %v3601
        %3603 = vmatprep.subr.mxu0 0.0
        %v3604 = vand.u32 %v3548, 4294901760
        %3605 = vmatpush1.msra.mxu0 %v3604
        %3606 = vmatprep.subr.mxu0 0.0
        %v3607 = vand.u32 %v3549, 4294901760
        %3608 = vmatpush1.msra.mxu0 %v3607
        %3609 = vmatprep.subr.mxu0 0.0
        %v3610 = vand.u32 %v3550, 4294901760
        %3611 = vmatpush1.msra.mxu0 %v3610
        %3612 = vmatprep.subr.mxu0 0.0
        %3613 = vmatpush1.msra.mxu0 0.0
        %3614 = vmatprep.subr.mxu0 0.0
        %3615 = vmatpush1.msra.mxu0 0.0
        %3616 = vmatprep.subr.mxu0 0.0
        %3617 = vmatpush1.msra.mxu0 0.0
        %3618 = vmatprep.subr.mxu0 0.0
        %3619 = vmatpush1.msra.mxu0 0.0
        %3620 = vmatprep.subr.mxu0 0.0
        %3621 = vmatpush1.msra.mxu0 0.0
        %3622 = vmatprep.subr.mxu0 0.0
        %3623 = vmatpush1.msra.mxu0 0.0
        %3624 = vmatprep.subr.mxu0 0.0
        %3625 = vmatpush1.msra.mxu0 0.0
        %3626 = vmatprep.subr.mxu0 0.0
        %3627 = vmatpush1.msra.mxu0 0.0
        %3628 = vmatprep.subr.mxu0 0.0
        %3629 = vmatpush1.msra.mxu0 0.0
        %3630 = vmatprep.subr.mxu0 0.0
        %3631 = vmatpush1.msra.mxu0 0.0
        %3632 = vmatprep.subr.mxu0 0.0
        %3633 = vmatpush1.msra.mxu0 0.0
        %3634 = vmatprep.subr.mxu0 0.0
        %3635 = vmatpush1.msra.mxu0 0.0
        %3636 = vmatprep.subr.mxu0 0.0
        %3637 = vmatpush1.msra.mxu0 0.0
        %3638 = vmatprep.subr.mxu0 0.0
        %3639 = vmatpush1.msra.mxu0 0.0
        %3640 = vmatprep.subr.mxu0 0.0
        %3641 = vmatpush1.msra.mxu0 0.0
        %3642 = vmatprep.subr.mxu0 0.0
        %3643 = vmatpush1.msra.mxu0 0.0
        %3644 = vmatprep.subr.mxu0 0.0
        %3645 = vmatpush1.msra.mxu0 0.0
        %3646 = vmatprep.subr.mxu0 0.0
        %3647 = vmatpush1.msra.mxu0 0.0
        %3648 = vmatprep.subr.mxu0 0.0
        %3649 = vmatpush1.msra.mxu0 0.0
        %3650 = vmatprep.subr.mxu0 0.0
        %3651 = vmatpush1.msra.mxu0 0.0
        %3652 = vmatprep.subr.mxu0 0.0
        %3653 = vmatpush1.msra.mxu0 0.0
        %3654 = vmatprep.subr.mxu0 0.0
        %3655 = vmatpush1.msra.mxu0 0.0
        %3656 = vmatprep.subr.mxu0 0.0
        %3657 = vmatpush1.msra.mxu0 0.0
        %3658 = vmatprep.subr.mxu0 0.0
        %3659 = vmatpush1.msra.mxu0 0.0
        %3660 = vmatprep.subr.mxu0 0.0
        %3661 = vmatpush1.msra.mxu0 0.0
        %3662 = vmatprep.subr.mxu0 0.0
        %3663 = vmatpush1.msra.mxu0 0.0
        %3664 = vmatprep.subr.mxu0 0.0
        %3665 = vmatpush1.msra.mxu0 0.0
        %3666 = vmatprep.subr.mxu0 0.0
        %3667 = vmatpush1.msra.mxu0 0.0
        %3668 = vmatprep.mubr.f32.mxu0 0.0
        %v3669 = vand.u32 %v3565, 4294901760
        %v3670 = vsub.f32 %v3565, %v3669
        %v3671 = vand.u32 %v3670, 4294901760
        %v3672 = vsub.f32 %v3670, %v3671
        %v3673 = vand.u32 %v3672, 4294901760
        %3674 = vmatmul.mubr.f32.gmra.mrb[0].mxu0 %v3673
        %v3675 = vpop.f32.mrb[0].mxu0
        %v3676 = vadd.f32 0.0, %v3675
        %v3677 = vpop.f32.mrb[0].mxu0
        %3678 = vmatprep.mubr.f32.mxu0 0.0
        %v3679 = vand.u32 %v3568, 4294901760
        %v3680 = vsub.f32 %v3568, %v3679
        %v3681 = vand.u32 %v3680, 4294901760
        %v3682 = vsub.f32 %v3680, %v3681
        %v3683 = vand.u32 %v3682, 4294901760
        %3684 = vmatmul.mubr.f32.gmra.mrb[0].mxu0 %v3683
        %v3685 = vpop.f32.mrb[0].mxu0
        %v3686 = vadd.f32 0.0, %v3685
        %v3687 = vpop.f32.mrb[0].mxu0
        %3688 = vmatprep.mubr.f32.mxu0 0.0
        %v3689 = vand.u32 %v3571, 4294901760
        %v3690 = vsub.f32 %v3571, %v3689
        %v3691 = vand.u32 %v3690, 4294901760
        %v3692 = vsub.f32 %v3690, %v3691
        %v3693 = vand.u32 %v3692, 4294901760
        %3694 = vmatmul.mubr.f32.gmra.mrb[0].mxu0 %v3693
        %v3695 = vpop.f32.mrb[0].mxu0
        %v3696 = vadd.f32 0.0, %v3695
        %v3697 = vpop.f32.mrb[0].mxu0
        %3698 = vmatprep.mubr.f32.mxu0 0.0
        %v3699 = vand.u32 %v3574, 4294901760
        %v3700 = vsub.f32 %v3574, %v3699
        %v3701 = vand.u32 %v3700, 4294901760
        %v3702 = vsub.f32 %v3700, %v3701
        %v3703 = vand.u32 %v3702, 4294901760
        %3704 = vmatmul.mubr.f32.gmra.mrb[0].mxu0 %v3703
        %v3705 = vpop.f32.mrb[0].mxu0
        %v3706 = vadd.f32 0.0, %v3705
        %v3707 = vpop.f32.mrb[0].mxu0
        %3708 = vmatprep.mubr.f32.mxu0 0.0
        %v3709 = vand.u32 %v3577, 4294901760
        %v3710 = vsub.f32 %v3577, %v3709
        %v3711 = vand.u32 %v3710, 4294901760
        %v3712 = vsub.f32 %v3710, %v3711
        %v3713 = vand.u32 %v3712, 4294901760
        %3714 = vmatmul.mubr.f32.gmra.mrb[0].mxu0 %v3713
        %v3715 = vpop.f32.mrb[0].mxu0
        %v3716 = vadd.f32 0.0, %v3715
        %v3717 = vpop.f32.mrb[0].mxu0
        %3718 = vmatprep.mubr.f32.mxu0 0.0
        %v3719 = vand.u32 %v3580, 4294901760
        %v3720 = vsub.f32 %v3580, %v3719
        %v3721 = vand.u32 %v3720, 4294901760
        %v3722 = vsub.f32 %v3720, %v3721
        %v3723 = vand.u32 %v3722, 4294901760
        %3724 = vmatmul.mubr.f32.gmra.mrb[0].mxu0 %v3723
        %v3725 = vpop.f32.mrb[0].mxu0
        %v3726 = vadd.f32 0.0, %v3725
        %v3727 = vpop.f32.mrb[0].mxu0
        %3728 = vmatprep.mubr.f32.mxu0 0.0
        %v3729 = vand.u32 %v3583, 4294901760
        %v3730 = vsub.f32 %v3583, %v3729
        %v3731 = vand.u32 %v3730, 4294901760
        %v3732 = vsub.f32 %v3730, %v3731
        %v3733 = vand.u32 %v3732, 4294901760
        %3734 = vmatmul.mubr.f32.gmra.mrb[0].mxu0 %v3733
        %v3735 = vpop.f32.mrb[0].mxu0
        %v3736 = vadd.f32 0.0, %v3735
        %v3737 = vpop.f32.mrb[0].mxu0
        %3738 = vmatprep.mubr.f32.mxu0 0.0
        %v3739 = vand.u32 %v3586, 4294901760
        %v3740 = vsub.f32 %v3586, %v3739
        %v3741 = vand.u32 %v3740, 4294901760
        %v3742 = vsub.f32 %v3740, %v3741
        %v3743 = vand.u32 %v3742, 4294901760
        %3744 = vmatmul.mubr.f32.gmra.mrb[0].mxu0 %v3743
        %v3745 = vpop.f32.mrb[0].mxu0
        %v3746 = vadd.f32 0.0, %v3745
        %v3747 = vpop.f32.mrb[0].mxu0
        %3748 = vmatprep.mubr.f32.mxu0 0.0
        %v3749 = vand.u32 %v3589, 4294901760
        %v3750 = vsub.f32 %v3589, %v3749
        %v3751 = vand.u32 %v3750, 4294901760
        %v3752 = vsub.f32 %v3750, %v3751
        %v3753 = vand.u32 %v3752, 4294901760
        %3754 = vmatmul.mubr.f32.gmra.mrb[0].mxu0 %v3753
        %v3755 = vpop.f32.mrb[0].mxu0
        %v3756 = vadd.f32 0.0, %v3755
        %v3757 = vpop.f32.mrb[0].mxu0
        %3758 = vmatprep.mubr.f32.mxu0 0.0
        %v3759 = vand.u32 %v3592, 4294901760
        %v3760 = vsub.f32 %v3592, %v3759
        %v3761 = vand.u32 %v3760, 4294901760
        %v3762 = vsub.f32 %v3760, %v3761
        %v3763 = vand.u32 %v3762, 4294901760
        %3764 = vmatmul.mubr.f32.gmra.mrb[0].mxu0 %v3763
        %v3765 = vpop.f32.mrb[0].mxu0
        %v3766 = vadd.f32 0.0, %v3765
        %v3767 = vpop.f32.mrb[0].mxu0
        %3768 = vmatprep.mubr.f32.mxu0 0.0
        %v3769 = vand.u32 %v3595, 4294901760
        %v3770 = vsub.f32 %v3595, %v3769
        %v3771 = vand.u32 %v3770, 4294901760
        %v3772 = vsub.f32 %v3770, %v3771
        %v3773 = vand.u32 %v3772, 4294901760
        %3774 = vmatmul.mubr.f32.gmra.mrb[0].mxu0 %v3773
        %v3775 = vpop.f32.mrb[0].mxu0
        %v3776 = vadd.f32 0.0, %v3775
        %v3777 = vpop.f32.mrb[0].mxu0
        %3778 = vmatprep.mubr.f32.mxu0 0.0
        %v3779 = vand.u32 %v3598, 4294901760
        %v3780 = vsub.f32 %v3598, %v3779
        %v3781 = vand.u32 %v3780, 4294901760
        %v3782 = vsub.f32 %v3780, %v3781
        %v3783 = vand.u32 %v3782, 4294901760
        %3784 = vmatmul.mubr.f32.gmra.mrb[0].mxu0 %v3783
        %v3785 = vpop.f32.mrb[0].mxu0
        %v3786 = vadd.f32 0.0, %v3785
        %v3787 = vpop.f32.mrb[0].mxu0
        %3788 = vdwg.mxu0
        %3789 = vmatprep.subr.mxu0 0.0
        %v3790 = vand.u32 %v3547, 4294901760
        %v3791 = vsub.f32 %v3547, %v3790
        %v3792 = vand.u32 %v3791, 4294901760
        %v3793 = vsub.f32 %v3791, %v3792
        %v3794 = vand.u32 %v3793, 4294901760
        %3795 = vmatpush1.msra.mxu0 %v3794
        %3796 = vmatprep.subr.mxu0 0.0
        %v3797 = vand.u32 %v3548, 4294901760
        %v3798 = vsub.f32 %v3548, %v3797
        %v3799 = vand.u32 %v3798, 4294901760
        %v3800 = vsub.f32 %v3798, %v3799
        %v3801 = vand.u32 %v3800, 4294901760
        %3802 = vmatpush1.msra.mxu0 %v3801
        %3803 = vmatprep.subr.mxu0 0.0
        %v3804 = vand.u32 %v3549, 4294901760
        %v3805 = vsub.f32 %v3549, %v3804
        %v3806 = vand.u32 %v3805, 4294901760
        %v3807 = vsub.f32 %v3805, %v3806
        %v3808 = vand.u32 %v3807, 4294901760
        %3809 = vmatpush1.msra.mxu0 %v3808
        %3810 = vmatprep.subr.mxu0 0.0
        %v3811 = vand.u32 %v3550, 4294901760
        %v3812 = vsub.f32 %v3550, %v3811
        %v3813 = vand.u32 %v3812, 4294901760
        %v3814 = vsub.f32 %v3812, %v3813
        %v3815 = vand.u32 %v3814, 4294901760
        %3816 = vmatpush1.msra.mxu0 %v3815
        %3817 = vmatprep.subr.mxu0 0.0
        %3818 = vmatpush1.msra.mxu0 0.0
        %3819 = vmatprep.subr.mxu0 0.0
        %3820 = vmatpush1.msra.mxu0 0.0
        %3821 = vmatprep.subr.mxu0 0.0
        %3822 = vmatpush1.msra.mxu0 0.0
        %3823 = vmatprep.subr.mxu0 0.0
        %3824 = vmatpush1.msra.mxu0 0.0
        %3825 = vmatprep.subr.mxu0 0.0
        %3826 = vmatpush1.msra.mxu0 0.0
        %3827 = vmatprep.subr.mxu0 0.0
        %3828 = vmatpush1.msra.mxu0 0.0
        %3829 = vmatprep.subr.mxu0 0.0
        %3830 = vmatpush1.msra.mxu0 0.0
        %3831 = vmatprep.subr.mxu0 0.0
        %3832 = vmatpush1.msra.mxu0 0.0
        %3833 = vmatprep.subr.mxu0 0.0
        %3834 = vmatpush1.msra.mxu0 0.0
        %3835 = vmatprep.subr.mxu0 0.0
        %3836 = vmatpush1.msra.mxu0 0.0
        %3837 = vmatprep.subr.mxu0 0.0
        %3838 = vmatpush1.msra.mxu0 0.0
        %3839 = vmatprep.subr.mxu0 0.0
        %3840 = vmatpush1.msra.mxu0 0.0
        %3841 = vmatprep.subr.mxu0 0.0
        %3842 = vmatpush1.msra.mxu0 0.0
        %3843 = vmatprep.subr.mxu0 0.0
        %3844 = vmatpush1.msra.mxu0 0.0
        %3845 = vmatprep.subr.mxu0 0.0
        %3846 = vmatpush1.msra.mxu0 0.0
        %3847 = vmatprep.subr.mxu0 0.0
        %3848 = vmatpush1.msra.mxu0 0.0
        %3849 = vmatprep.subr.mxu0 0.0
        %3850 = vmatpush1.msra.mxu0 0.0
        %3851 = vmatprep.subr.mxu0 0.0
        %3852 = vmatpush1.msra.mxu0 0.0
        %3853 = vmatprep.subr.mxu0 0.0
        %3854 = vmatpush1.msra.mxu0 0.0
        %3855 = vmatprep.subr.mxu0 0.0
        %3856 = vmatpush1.msra.mxu0 0.0
        %3857 = vmatprep.subr.mxu0 0.0
        %3858 = vmatpush1.msra.mxu0 0.0
        %3859 = vmatprep.subr.mxu0 0.0
        %3860 = vmatpush1.msra.mxu0 0.0
        %3861 = vmatprep.subr.mxu0 0.0
        %3862 = vmatpush1.msra.mxu0 0.0
        %3863 = vmatprep.subr.mxu0 0.0
        %3864 = vmatpush1.msra.mxu0 0.0
        %3865 = vmatprep.subr.mxu0 0.0
        %3866 = vmatpush1.msra.mxu0 0.0
        %3867 = vmatprep.subr.mxu0 0.0
        %3868 = vmatpush1.msra.mxu0 0.0
        %3869 = vmatprep.subr.mxu0 0.0
        %3870 = vmatpush1.msra.mxu0 0.0
        %3871 = vmatprep.subr.mxu0 0.0
        %3872 = vmatpush1.msra.mxu0 0.0
        %3873 = vmatprep.mubr.f32.mxu0 0.0
        %v3874 = vand.u32 %v3565, 4294901760
        %3875 = vmatmul.mubr.f32.gmra.mrb[0].mxu0 %v3874
        %v3876 = vpop.f32.mrb[0].mxu0
        %v3877 = vadd.f32 %v3676, %v3876
        %v3878 = vpop.f32.mrb[0].mxu0
        %3879 = vmatprep.mubr.f32.mxu0 0.0
        %v3880 = vand.u32 %v3568, 4294901760
        %3881 = vmatmul.mubr.f32.gmra.mrb[0].mxu0 %v3880
        %v3882 = vpop.f32.mrb[0].mxu0
        %v3883 = vadd.f32 %v3686, %v3882
        %v3884 = vpop.f32.mrb[0].mxu0
        %3885 = vmatprep.mubr.f32.mxu0 0.0
        %v3886 = vand.u32 %v3571, 4294901760
        %3887 = vmatmul.mubr.f32.gmra.mrb[0].mxu0 %v3886
        %v3888 = vpop.f32.mrb[0].mxu0
        %v3889 = vadd.f32 %v3696, %v3888
        %v3890 = vpop.f32.mrb[0].mxu0
        %3891 = vmatprep.mubr.f32.mxu0 0.0
        %v3892 = vand.u32 %v3574, 4294901760
        %3893 = vmatmul.mubr.f32.gmra.mrb[0].mxu0 %v3892
        %v3894 = vpop.f32.mrb[0].mxu0
        %v3895 = vadd.f32 %v3706, %v3894
        %v3896 = vpop.f32.mrb[0].mxu0
        %3897 = vmatprep.mubr.f32.mxu0 0.0
        %v3898 = vand.u32 %v3577, 4294901760
        %3899 = vmatmul.mubr.f32.gmra.mrb[0].mxu0 %v3898
        %v3900 = vpop.f32.mrb[0].mxu0
        %v3901 = vadd.f32 %v3716, %v3900
        %v3902 = vpop.f32.mrb[0].mxu0
        %3903 = vmatprep.mubr.f32.mxu0 0.0
        %v3904 = vand.u32 %v3580, 4294901760
        %3905 = vmatmul.mubr.f32.gmra.mrb[0].mxu0 %v3904
        %v3906 = vpop.f32.mrb[0].mxu0
        %v3907 = vadd.f32 %v3726, %v3906
        %v3908 = vpop.f32.mrb[0].mxu0
        %3909 = vmatprep.mubr.f32.mxu0 0.0
        %v3910 = vand.u32 %v3583, 4294901760
        %3911 = vmatmul.mubr.f32.gmra.mrb[0].mxu0 %v3910
        %v3912 = vpop.f32.mrb[0].mxu0
        %v3913 = vadd.f32 %v3736, %v3912
        %v3914 = vpop.f32.mrb[0].mxu0
        %3915 = vmatprep.mubr.f32.mxu0 0.0
        %v3916 = vand.u32 %v3586, 4294901760
        %3917 = vmatmul.mubr.f32.gmra.mrb[0].mxu0 %v3916
        %v3918 = vpop.f32.mrb[0].mxu0
        %v3919 = vadd.f32 %v3746, %v3918
        %v3920 = vpop.f32.mrb[0].mxu0
        %3921 = vmatprep.mubr.f32.mxu0 0.0
        %v3922 = vand.u32 %v3589, 4294901760
        %3923 = vmatmul.mubr.f32.gmra.mrb[0].mxu0 %v3922
        %v3924 = vpop.f32.mrb[0].mxu0
        %v3925 = vadd.f32 %v3756, %v3924
        %v3926 = vpop.f32.mrb[0].mxu0
        %3927 = vmatprep.mubr.f32.mxu0 0.0
        %v3928 = vand.u32 %v3592, 4294901760
        %3929 = vmatmul.mubr.f32.gmra.mrb[0].mxu0 %v3928
        %v3930 = vpop.f32.mrb[0].mxu0
        %v3931 = vadd.f32 %v3766, %v3930
        %v3932 = vpop.f32.mrb[0].mxu0
        %3933 = vmatprep.mubr.f32.mxu0 0.0
        %v3934 = vand.u32 %v3595, 4294901760
        %3935 = vmatmul.mubr.f32.gmra.mrb[0].mxu0 %v3934
        %v3936 = vpop.f32.mrb[0].mxu0
        %v3937 = vadd.f32 %v3776, %v3936
        %v3938 = vpop.f32.mrb[0].mxu0
        %3939 = vmatprep.mubr.f32.mxu0 0.0
        %v3940 = vand.u32 %v3598, 4294901760
        %3941 = vmatmul.mubr.f32.gmra.mrb[0].mxu0 %v3940
        %v3942 = vpop.f32.mrb[0].mxu0
        %v3943 = vadd.f32 %v3786, %v3942
        %v3944 = vpop.f32.mrb[0].mxu0
        %3945 = vdwg.mxu0
        %3946 = vmatprep.subr.mxu0 0.0
        %v3947 = vand.u32 %v3547, 4294901760
        %v3948 = vsub.f32 %v3547, %v3947
        %3949 = vmatpush1.msra.mxu0 %v3948
        %3950 = vmatprep.subr.mxu0 0.0
        %v3951 = vand.u32 %v3548, 4294901760
        %v3952 = vsub.f32 %v3548, %v3951
        %3953 = vmatpush1.msra.mxu0 %v3952
        %3954 = vmatprep.subr.mxu0 0.0
        %v3955 = vand.u32 %v3549, 4294901760
        %v3956 = vsub.f32 %v3549, %v3955
        %3957 = vmatpush1.msra.mxu0 %v3956
        %3958 = vmatprep.subr.mxu0 0.0
        %v3959 = vand.u32 %v3550, 4294901760
        %v3960 = vsub.f32 %v3550, %v3959
        %3961 = vmatpush1.msra.mxu0 %v3960
        %3962 = vmatprep.subr.mxu0 0.0
        %3963 = vmatpush1.msra.mxu0 0.0
        %3964 = vmatprep.subr.mxu0 0.0
        %3965 = vmatpush1.msra.mxu0 0.0
        %3966 = vmatprep.subr.mxu0 0.0
        %3967 = vmatpush1.msra.mxu0 0.0
        %3968 = vmatprep.subr.mxu0 0.0
        %3969 = vmatpush1.msra.mxu0 0.0
        %3970 = vmatprep.subr.mxu0 0.0
        %3971 = vmatpush1.msra.mxu0 0.0
        %3972 = vmatprep.subr.mxu0 0.0
        %3973 = vmatpush1.msra.mxu0 0.0
        %3974 = vmatprep.subr.mxu0 0.0
        %3975 = vmatpush1.msra.mxu0 0.0
        %3976 = vmatprep.subr.mxu0 0.0
        %3977 = vmatpush1.msra.mxu0 0.0
        %3978 = vmatprep.subr.mxu0 0.0
        %3979 = vmatpush1.msra.mxu0 0.0
        %3980 = vmatprep.subr.mxu0 0.0
        %3981 = vmatpush1.msra.mxu0 0.0
        %3982 = vmatprep.subr.mxu0 0.0
        %3983 = vmatpush1.msra.mxu0 0.0
        %3984 = vmatprep.subr.mxu0 0.0
        %3985 = vmatpush1.msra.mxu0 0.0
        %3986 = vmatprep.subr.mxu0 0.0
        %3987 = vmatpush1.msra.mxu0 0.0
        %3988 = vmatprep.subr.mxu0 0.0
        %3989 = vmatpush1.msra.mxu0 0.0
        %3990 = vmatprep.subr.mxu0 0.0
        %3991 = vmatpush1.msra.mxu0 0.0
        %3992 = vmatprep.subr.mxu0 0.0
        %3993 = vmatpush1.msra.mxu0 0.0
        %3994 = vmatprep.subr.mxu0 0.0
        %3995 = vmatpush1.msra.mxu0 0.0
        %3996 = vmatprep.subr.mxu0 0.0
        %3997 = vmatpush1.msra.mxu0 0.0
        %3998 = vmatprep.subr.mxu0 0.0
        %3999 = vmatpush1.msra.mxu0 0.0
        %4000 = vmatprep.subr.mxu0 0.0
        %4001 = vmatpush1.msra.mxu0 0.0
        %4002 = vmatprep.subr.mxu0 0.0
        %4003 = vmatpush1.msra.mxu0 0.0
        %4004 = vmatprep.subr.mxu0 0.0
        %4005 = vmatpush1.msra.mxu0 0.0
        %4006 = vmatprep.subr.mxu0 0.0
        %4007 = vmatpush1.msra.mxu0 0.0
        %4008 = vmatprep.subr.mxu0 0.0
        %4009 = vmatpush1.msra.mxu0 0.0
        %4010 = vmatprep.subr.mxu0 0.0
        %4011 = vmatpush1.msra.mxu0 0.0
        %4012 = vmatprep.subr.mxu0 0.0
        %4013 = vmatpush1.msra.mxu0 0.0
        %4014 = vmatprep.subr.mxu0 0.0
        %4015 = vmatpush1.msra.mxu0 0.0
        %4016 = vmatprep.subr.mxu0 0.0
        %4017 = vmatpush1.msra.mxu0 0.0
        %4018 = vmatprep.mubr.f32.mxu0 0.0
        %v4019 = vand.u32 %v3565, 4294901760
        %v4020 = vsub.f32 %v3565, %v4019
        %4021 = vmatmul.mubr.f32.gmra.mrb[0].mxu0 %v4020
        %v4022 = vpop.f32.mrb[0].mxu0
        %v4023 = vadd.f32 %v3877, %v4022
        %v4024 = vpop.f32.mrb[0].mxu0
        %4025 = vmatprep.mubr.f32.mxu0 0.0
        %v4026 = vand.u32 %v3568, 4294901760
        %v4027 = vsub.f32 %v3568, %v4026
        %4028 = vmatmul.mubr.f32.gmra.mrb[0].mxu0 %v4027
        %v4029 = vpop.f32.mrb[0].mxu0
        %v4030 = vadd.f32 %v3883, %v4029
        %v4031 = vpop.f32.mrb[0].mxu0
        %4032 = vmatprep.mubr.f32.mxu0 0.0
        %v4033 = vand.u32 %v3571, 4294901760
        %v4034 = vsub.f32 %v3571, %v4033
        %4035 = vmatmul.mubr.f32.gmra.mrb[0].mxu0 %v4034
        %v4036 = vpop.f32.mrb[0].mxu0
        %v4037 = vadd.f32 %v3889, %v4036
        %v4038 = vpop.f32.mrb[0].mxu0
        %4039 = vmatprep.mubr.f32.mxu0 0.0
        %v4040 = vand.u32 %v3574, 4294901760
        %v4041 = vsub.f32 %v3574, %v4040
        %4042 = vmatmul.mubr.f32.gmra.mrb[0].mxu0 %v4041
        %v4043 = vpop.f32.mrb[0].mxu0
        %v4044 = vadd.f32 %v3895, %v4043
        %v4045 = vpop.f32.mrb[0].mxu0
        %4046 = vmatprep.mubr.f32.mxu0 0.0
        %v4047 = vand.u32 %v3577, 4294901760
        %v4048 = vsub.f32 %v3577, %v4047
        %4049 = vmatmul.mubr.f32.gmra.mrb[0].mxu0 %v4048
        %v4050 = vpop.f32.mrb[0].mxu0
        %v4051 = vadd.f32 %v3901, %v4050
        %v4052 = vpop.f32.mrb[0].mxu0
        %4053 = vmatprep.mubr.f32.mxu0 0.0
        %v4054 = vand.u32 %v3580, 4294901760
        %v4055 = vsub.f32 %v3580, %v4054
        %4056 = vmatmul.mubr.f32.gmra.mrb[0].mxu0 %v4055
        %v4057 = vpop.f32.mrb[0].mxu0
        %v4058 = vadd.f32 %v3907, %v4057
        %v4059 = vpop.f32.mrb[0].mxu0
        %4060 = vmatprep.mubr.f32.mxu0 0.0
        %v4061 = vand.u32 %v3583, 4294901760
        %v4062 = vsub.f32 %v3583, %v4061
        %4063 = vmatmul.mubr.f32.gmra.mrb[0].mxu0 %v4062
        %v4064 = vpop.f32.mrb[0].mxu0
        %v4065 = vadd.f32 %v3913, %v4064
        %v4066 = vpop.f32.mrb[0].mxu0
        %4067 = vmatprep.mubr.f32.mxu0 0.0
        %v4068 = vand.u32 %v3586, 4294901760
        %v4069 = vsub.f32 %v3586, %v4068
        %4070 = vmatmul.mubr.f32.gmra.mrb[0].mxu0 %v4069
        %v4071 = vpop.f32.mrb[0].mxu0
        %v4072 = vadd.f32 %v3919, %v4071
        %v4073 = vpop.f32.mrb[0].mxu0
        %4074 = vmatprep.mubr.f32.mxu0 0.0
        %v4075 = vand.u32 %v3589, 4294901760
        %v4076 = vsub.f32 %v3589, %v4075
        %4077 = vmatmul.mubr.f32.gmra.mrb[0].mxu0 %v4076
        %v4078 = vpop.f32.mrb[0].mxu0
        %v4079 = vadd.f32 %v3925, %v4078
        %v4080 = vpop.f32.mrb[0].mxu0
        %4081 = vmatprep.mubr.f32.mxu0 0.0
        %v4082 = vand.u32 %v3592, 4294901760
        %v4083 = vsub.f32 %v3592, %v4082
        %4084 = vmatmul.mubr.f32.gmra.mrb[0].mxu0 %v4083
        %v4085 = vpop.f32.mrb[0].mxu0
        %v4086 = vadd.f32 %v3931, %v4085
        %v4087 = vpop.f32.mrb[0].mxu0
        %4088 = vmatprep.mubr.f32.mxu0 0.0
        %v4089 = vand.u32 %v3595, 4294901760
        %v4090 = vsub.f32 %v3595, %v4089
        %4091 = vmatmul.mubr.f32.gmra.mrb[0].mxu0 %v4090
        %v4092 = vpop.f32.mrb[0].mxu0
        %v4093 = vadd.f32 %v3937, %v4092
        %v4094 = vpop.f32.mrb[0].mxu0
        %4095 = vmatprep.mubr.f32.mxu0 0.0
        %v4096 = vand.u32 %v3598, 4294901760
        %v4097 = vsub.f32 %v3598, %v4096
        %4098 = vmatmul.mubr.f32.gmra.mrb[0].mxu0 %v4097
        %v4099 = vpop.f32.mrb[0].mxu0
        %v4100 = vadd.f32 %v3943, %v4099
        %v4101 = vpop.f32.mrb[0].mxu0
        %4102 = vdwg.mxu0
        %4103 = vmatprep.subr.mxu0 0.0
        %v4104 = vand.u32 %v3547, 4294901760
        %4105 = vmatpush1.msra.mxu0 %v4104
        %4106 = vmatprep.subr.mxu0 0.0
        %v4107 = vand.u32 %v3548, 4294901760
        %4108 = vmatpush1.msra.mxu0 %v4107
        %4109 = vmatprep.subr.mxu0 0.0
        %v4110 = vand.u32 %v3549, 4294901760
        %4111 = vmatpush1.msra.mxu0 %v4110
        %4112 = vmatprep.subr.mxu0 0.0
        %v4113 = vand.u32 %v3550, 4294901760
        %4114 = vmatpush1.msra.mxu0 %v4113
        %4115 = vmatprep.subr.mxu0 0.0
        %4116 = vmatpush1.msra.mxu0 0.0
        %4117 = vmatprep.subr.mxu0 0.0
        %4118 = vmatpush1.msra.mxu0 0.0
        %4119 = vmatprep.subr.mxu0 0.0
        %4120 = vmatpush1.msra.mxu0 0.0
        %4121 = vmatprep.subr.mxu0 0.0
        %4122 = vmatpush1.msra.mxu0 0.0
        %4123 = vmatprep.subr.mxu0 0.0
        %4124 = vmatpush1.msra.mxu0 0.0
        %4125 = vmatprep.subr.mxu0 0.0
        %4126 = vmatpush1.msra.mxu0 0.0
        %4127 = vmatprep.subr.mxu0 0.0
        %4128 = vmatpush1.msra.mxu0 0.0
        %4129 = vmatprep.subr.mxu0 0.0
        %4130 = vmatpush1.msra.mxu0 0.0
        %4131 = vmatprep.subr.mxu0 0.0
        %4132 = vmatpush1.msra.mxu0 0.0
        %4133 = vmatprep.subr.mxu0 0.0
        %4134 = vmatpush1.msra.mxu0 0.0
        %4135 = vmatprep.subr.mxu0 0.0
        %4136 = vmatpush1.msra.mxu0 0.0
        %4137 = vmatprep.subr.mxu0 0.0
        %4138 = vmatpush1.msra.mxu0 0.0
        %4139 = vmatprep.subr.mxu0 0.0
        %4140 = vmatpush1.msra.mxu0 0.0
        %4141 = vmatprep.subr.mxu0 0.0
        %4142 = vmatpush1.msra.mxu0 0.0
        %4143 = vmatprep.subr.mxu0 0.0
        %4144 = vmatpush1.msra.mxu0 0.0
        %4145 = vmatprep.subr.mxu0 0.0
        %4146 = vmatpush1.msra.mxu0 0.0
        %4147 = vmatprep.subr.mxu0 0.0
        %4148 = vmatpush1.msra.mxu0 0.0
        %4149 = vmatprep.subr.mxu0 0.0
        %4150 = vmatpush1.msra.mxu0 0.0
        %4151 = vmatprep.subr.mxu0 0.0
        %4152 = vmatpush1.msra.mxu0 0.0
        %4153 = vmatprep.subr.mxu0 0.0
        %4154 = vmatpush1.msra.mxu0 0.0
        %4155 = vmatprep.subr.mxu0 0.0
        %4156 = vmatpush1.msra.mxu0 0.0
        %4157 = vmatprep.subr.mxu0 0.0
        %4158 = vmatpush1.msra.mxu0 0.0
        %4159 = vmatprep.subr.mxu0 0.0
        %4160 = vmatpush1.msra.mxu0 0.0
        %4161 = vmatprep.subr.mxu0 0.0
        %4162 = vmatpush1.msra.mxu0 0.0
        %4163 = vmatprep.subr.mxu0 0.0
        %4164 = vmatpush1.msra.mxu0 0.0
        %4165 = vmatprep.subr.mxu0 0.0
        %4166 = vmatpush1.msra.mxu0 0.0
        %4167 = vmatprep.subr.mxu0 0.0
        %4168 = vmatpush1.msra.mxu0 0.0
        %4169 = vmatprep.subr.mxu0 0.0
        %4170 = vmatpush1.msra.mxu0 0.0
        %4171 = vmatprep.mubr.f32.mxu0 0.0
        %v4172 = vand.u32 %v3565, 4294901760
        %v4173 = vsub.f32 %v3565, %v4172
        %v4174 = vand.u32 %v4173, 4294901760
        %4175 = vmatmul.mubr.f32.gmra.mrb[0].mxu0 %v4174
        %v4176 = vpop.f32.mrb[0].mxu0
        %v4177 = vadd.f32 %v4023, %v4176
        %v4178 = vpop.f32.mrb[0].mxu0
        %4179 = vmatprep.mubr.f32.mxu0 0.0
        %v4180 = vand.u32 %v3568, 4294901760
        %v4181 = vsub.f32 %v3568, %v4180
        %v4182 = vand.u32 %v4181, 4294901760
        %4183 = vmatmul.mubr.f32.gmra.mrb[0].mxu0 %v4182
        %v4184 = vpop.f32.mrb[0].mxu0
        %v4185 = vadd.f32 %v4030, %v4184
        %v4186 = vpop.f32.mrb[0].mxu0
        %4187 = vmatprep.mubr.f32.mxu0 0.0
        %v4188 = vand.u32 %v3571, 4294901760
        %v4189 = vsub.f32 %v3571, %v4188
        %v4190 = vand.u32 %v4189, 4294901760
        %4191 = vmatmul.mubr.f32.gmra.mrb[0].mxu0 %v4190
        %v4192 = vpop.f32.mrb[0].mxu0
        %v4193 = vadd.f32 %v4037, %v4192
        %v4194 = vpop.f32.mrb[0].mxu0
        %4195 = vmatprep.mubr.f32.mxu0 0.0
        %v4196 = vand.u32 %v3574, 4294901760
        %v4197 = vsub.f32 %v3574, %v4196
        %v4198 = vand.u32 %v4197, 4294901760
        %4199 = vmatmul.mubr.f32.gmra.mrb[0].mxu0 %v4198
        %v4200 = vpop.f32.mrb[0].mxu0
        %v4201 = vadd.f32 %v4044, %v4200
        %v4202 = vpop.f32.mrb[0].mxu0
        %4203 = vmatprep.mubr.f32.mxu0 0.0
        %v4204 = vand.u32 %v3577, 4294901760
        %v4205 = vsub.f32 %v3577, %v4204
        %v4206 = vand.u32 %v4205, 4294901760
        %4207 = vmatmul.mubr.f32.gmra.mrb[0].mxu0 %v4206
        %v4208 = vpop.f32.mrb[0].mxu0
        %v4209 = vadd.f32 %v4051, %v4208
        %v4210 = vpop.f32.mrb[0].mxu0
        %4211 = vmatprep.mubr.f32.mxu0 0.0
        %v4212 = vand.u32 %v3580, 4294901760
        %v4213 = vsub.f32 %v3580, %v4212
        %v4214 = vand.u32 %v4213, 4294901760
        %4215 = vmatmul.mubr.f32.gmra.mrb[0].mxu0 %v4214
        %v4216 = vpop.f32.mrb[0].mxu0
        %v4217 = vadd.f32 %v4058, %v4216
        %v4218 = vpop.f32.mrb[0].mxu0
        %4219 = vmatprep.mubr.f32.mxu0 0.0
        %v4220 = vand.u32 %v3583, 4294901760
        %v4221 = vsub.f32 %v3583, %v4220
        %v4222 = vand.u32 %v4221, 4294901760
        %4223 = vmatmul.mubr.f32.gmra.mrb[0].mxu0 %v4222
        %v4224 = vpop.f32.mrb[0].mxu0
        %v4225 = vadd.f32 %v4065, %v4224
        %v4226 = vpop.f32.mrb[0].mxu0
        %4227 = vmatprep.mubr.f32.mxu0 0.0
        %v4228 = vand.u32 %v3586, 4294901760
        %v4229 = vsub.f32 %v3586, %v4228
        %v4230 = vand.u32 %v4229, 4294901760
        %4231 = vmatmul.mubr.f32.gmra.mrb[0].mxu0 %v4230
        %v4232 = vpop.f32.mrb[0].mxu0
        %v4233 = vadd.f32 %v4072, %v4232
        %v4234 = vpop.f32.mrb[0].mxu0
        %4235 = vmatprep.mubr.f32.mxu0 0.0
        %v4236 = vand.u32 %v3589, 4294901760
        %v4237 = vsub.f32 %v3589, %v4236
        %v4238 = vand.u32 %v4237, 4294901760
        %4239 = vmatmul.mubr.f32.gmra.mrb[0].mxu0 %v4238
        %v4240 = vpop.f32.mrb[0].mxu0
        %v4241 = vadd.f32 %v4079, %v4240
        %v4242 = vpop.f32.mrb[0].mxu0
        %4243 = vmatprep.mubr.f32.mxu0 0.0
        %v4244 = vand.u32 %v3592, 4294901760
        %v4245 = vsub.f32 %v3592, %v4244
        %v4246 = vand.u32 %v4245, 4294901760
        %4247 = vmatmul.mubr.f32.gmra.mrb[0].mxu0 %v4246
        %v4248 = vpop.f32.mrb[0].mxu0
        %v4249 = vadd.f32 %v4086, %v4248
        %v4250 = vpop.f32.mrb[0].mxu0
        %4251 = vmatprep.mubr.f32.mxu0 0.0
        %v4252 = vand.u32 %v3595, 4294901760
        %v4253 = vsub.f32 %v3595, %v4252
        %v4254 = vand.u32 %v4253, 4294901760
        %4255 = vmatmul.mubr.f32.gmra.mrb[0].mxu0 %v4254
        %v4256 = vpop.f32.mrb[0].mxu0
        %v4257 = vadd.f32 %v4093, %v4256
        %v4258 = vpop.f32.mrb[0].mxu0
        %4259 = vmatprep.mubr.f32.mxu0 0.0
        %v4260 = vand.u32 %v3598, 4294901760
        %v4261 = vsub.f32 %v3598, %v4260
        %v4262 = vand.u32 %v4261, 4294901760
        %4263 = vmatmul.mubr.f32.gmra.mrb[0].mxu0 %v4262
        %v4264 = vpop.f32.mrb[0].mxu0
        %v4265 = vadd.f32 %v4100, %v4264
        %v4266 = vpop.f32.mrb[0].mxu0
        %4267 = vdwg.mxu0
        %4268 = vmatprep.subr.mxu0 0.0
        %v4269 = vand.u32 %v3547, 4294901760
        %v4270 = vsub.f32 %v3547, %v4269
        %v4271 = vand.u32 %v4270, 4294901760
        %4272 = vmatpush1.msra.mxu0 %v4271
        %4273 = vmatprep.subr.mxu0 0.0
        %v4274 = vand.u32 %v3548, 4294901760
        %v4275 = vsub.f32 %v3548, %v4274
        %v4276 = vand.u32 %v4275, 4294901760
        %4277 = vmatpush1.msra.mxu0 %v4276
        %4278 = vmatprep.subr.mxu0 0.0
        %v4279 = vand.u32 %v3549, 4294901760
        %v4280 = vsub.f32 %v3549, %v4279
        %v4281 = vand.u32 %v4280, 4294901760
        %4282 = vmatpush1.msra.mxu0 %v4281
        %4283 = vmatprep.subr.mxu0 0.0
        %v4284 = vand.u32 %v3550, 4294901760
        %v4285 = vsub.f32 %v3550, %v4284
        %v4286 = vand.u32 %v4285, 4294901760
        %4287 = vmatpush1.msra.mxu0 %v4286
        %4288 = vmatprep.subr.mxu0 0.0
        %4289 = vmatpush1.msra.mxu0 0.0
        %4290 = vmatprep.subr.mxu0 0.0
        %4291 = vmatpush1.msra.mxu0 0.0
        %4292 = vmatprep.subr.mxu0 0.0
        %4293 = vmatpush1.msra.mxu0 0.0
        %4294 = vmatprep.subr.mxu0 0.0
        %4295 = vmatpush1.msra.mxu0 0.0
        %4296 = vmatprep.subr.mxu0 0.0
        %4297 = vmatpush1.msra.mxu0 0.0
        %4298 = vmatprep.subr.mxu0 0.0
        %4299 = vmatpush1.msra.mxu0 0.0
        %4300 = vmatprep.subr.mxu0 0.0
        %4301 = vmatpush1.msra.mxu0 0.0
        %4302 = vmatprep.subr.mxu0 0.0
        %4303 = vmatpush1.msra.mxu0 0.0
        %4304 = vmatprep.subr.mxu0 0.0
        %4305 = vmatpush1.msra.mxu0 0.0
        %4306 = vmatprep.subr.mxu0 0.0
        %4307 = vmatpush1.msra.mxu0 0.0
        %4308 = vmatprep.subr.mxu0 0.0
        %4309 = vmatpush1.msra.mxu0 0.0
        %4310 = vmatprep.subr.mxu0 0.0
        %4311 = vmatpush1.msra.mxu0 0.0
        %4312 = vmatprep.subr.mxu0 0.0
        %4313 = vmatpush1.msra.mxu0 0.0
        %4314 = vmatprep.subr.mxu0 0.0
        %4315 = vmatpush1.msra.mxu0 0.0
        %4316 = vmatprep.subr.mxu0 0.0
        %4317 = vmatpush1.msra.mxu0 0.0
        %4318 = vmatprep.subr.mxu0 0.0
        %4319 = vmatpush1.msra.mxu0 0.0
        %4320 = vmatprep.subr.mxu0 0.0
        %4321 = vmatpush1.msra.mxu0 0.0
        %4322 = vmatprep.subr.mxu0 0.0
        %4323 = vmatpush1.msra.mxu0 0.0
        %4324 = vmatprep.subr.mxu0 0.0
        %4325 = vmatpush1.msra.mxu0 0.0
        %4326 = vmatprep.subr.mxu0 0.0
        %4327 = vmatpush1.msra.mxu0 0.0
        %4328 = vmatprep.subr.mxu0 0.0
        %4329 = vmatpush1.msra.mxu0 0.0
        %4330 = vmatprep.subr.mxu0 0.0
        %4331 = vmatpush1.msra.mxu0 0.0
        %4332 = vmatprep.subr.mxu0 0.0
        %4333 = vmatpush1.msra.mxu0 0.0
        %4334 = vmatprep.subr.mxu0 0.0
        %4335 = vmatpush1.msra.mxu0 0.0
        %4336 = vmatprep.subr.mxu0 0.0
        %4337 = vmatpush1.msra.mxu0 0.0
        %4338 = vmatprep.subr.mxu0 0.0
        %4339 = vmatpush1.msra.mxu0 0.0
        %4340 = vmatprep.subr.mxu0 0.0
        %4341 = vmatpush1.msra.mxu0 0.0
        %4342 = vmatprep.subr.mxu0 0.0
        %4343 = vmatpush1.msra.mxu0 0.0
        %4344 = vmatprep.mubr.f32.mxu0 0.0
        %v4345 = vand.u32 %v3565, 4294901760
        %4346 = vmatmul.mubr.f32.gmra.mrb[0].mxu0 %v4345
        %v4347 = vpop.f32.mrb[0].mxu0
        %v4348 = vadd.f32 %v4177, %v4347
        %v4349 = vpop.f32.mrb[0].mxu0
        %4350 = vmatprep.mubr.f32.mxu0 0.0
        %v4351 = vand.u32 %v3568, 4294901760
        %4352 = vmatmul.mubr.f32.gmra.mrb[0].mxu0 %v4351
        %v4353 = vpop.f32.mrb[0].mxu0
        %v4354 = vadd.f32 %v4185, %v4353
        %v4355 = vpop.f32.mrb[0].mxu0
        %4356 = vmatprep.mubr.f32.mxu0 0.0
        %v4357 = vand.u32 %v3571, 4294901760
        %4358 = vmatmul.mubr.f32.gmra.mrb[0].mxu0 %v4357
        %v4359 = vpop.f32.mrb[0].mxu0
        %v4360 = vadd.f32 %v4193, %v4359
        %v4361 = vpop.f32.mrb[0].mxu0
        %4362 = vmatprep.mubr.f32.mxu0 0.0
        %v4363 = vand.u32 %v3574, 4294901760
        %4364 = vmatmul.mubr.f32.gmra.mrb[0].mxu0 %v4363
        %v4365 = vpop.f32.mrb[0].mxu0
        %v4366 = vadd.f32 %v4201, %v4365
        %v4367 = vpop.f32.mrb[0].mxu0
        %4368 = vmatprep.mubr.f32.mxu0 0.0
        %v4369 = vand.u32 %v3577, 4294901760
        %4370 = vmatmul.mubr.f32.gmra.mrb[0].mxu0 %v4369
        %v4371 = vpop.f32.mrb[0].mxu0
        %v4372 = vadd.f32 %v4209, %v4371
        %v4373 = vpop.f32.mrb[0].mxu0
        %4374 = vmatprep.mubr.f32.mxu0 0.0
        %v4375 = vand.u32 %v3580, 4294901760
        %4376 = vmatmul.mubr.f32.gmra.mrb[0].mxu0 %v4375
        %v4377 = vpop.f32.mrb[0].mxu0
        %v4378 = vadd.f32 %v4217, %v4377
        %v4379 = vpop.f32.mrb[0].mxu0
        %4380 = vmatprep.mubr.f32.mxu0 0.0
        %v4381 = vand.u32 %v3583, 4294901760
        %4382 = vmatmul.mubr.f32.gmra.mrb[0].mxu0 %v4381
        %v4383 = vpop.f32.mrb[0].mxu0
        %v4384 = vadd.f32 %v4225, %v4383
        %v4385 = vpop.f32.mrb[0].mxu0
        %4386 = vmatprep.mubr.f32.mxu0 0.0
        %v4387 = vand.u32 %v3586, 4294901760
        %4388 = vmatmul.mubr.f32.gmra.mrb[0].mxu0 %v4387
        %v4389 = vpop.f32.mrb[0].mxu0
        %v4390 = vadd.f32 %v4233, %v4389
        %v4391 = vpop.f32.mrb[0].mxu0
        %4392 = vmatprep.mubr.f32.mxu0 0.0
        %v4393 = vand.u32 %v3589, 4294901760
        %4394 = vmatmul.mubr.f32.gmra.mrb[0].mxu0 %v4393
        %v4395 = vpop.f32.mrb[0].mxu0
        %v4396 = vadd.f32 %v4241, %v4395
        %v4397 = vpop.f32.mrb[0].mxu0
        %4398 = vmatprep.mubr.f32.mxu0 0.0
        %v4399 = vand.u32 %v3592, 4294901760
        %4400 = vmatmul.mubr.f32.gmra.mrb[0].mxu0 %v4399
        %v4401 = vpop.f32.mrb[0].mxu0
        %v4402 = vadd.f32 %v4249, %v4401
        %v4403 = vpop.f32.mrb[0].mxu0
        %4404 = vmatprep.mubr.f32.mxu0 0.0
        %v4405 = vand.u32 %v3595, 4294901760
        %4406 = vmatmul.mubr.f32.gmra.mrb[0].mxu0 %v4405
        %v4407 = vpop.f32.mrb[0].mxu0
        %v4408 = vadd.f32 %v4257, %v4407
        %v4409 = vpop.f32.mrb[0].mxu0
        %4410 = vmatprep.mubr.f32.mxu0 0.0
        %v4411 = vand.u32 %v3598, 4294901760
        %4412 = vmatmul.mubr.f32.gmra.mrb[0].mxu0 %v4411
        %v4413 = vpop.f32.mrb[0].mxu0
        %v4414 = vadd.f32 %v4265, %v4413
        %v4415 = vpop.f32.mrb[0].mxu0
        %4416 = vdwg.mxu0
        %4417 = vmatprep.subr.mxu0 0.0
        %v4418 = vand.u32 %v3547, 4294901760
        %4419 = vmatpush1.msra.mxu0 %v4418
        %4420 = vmatprep.subr.mxu0 0.0
        %v4421 = vand.u32 %v3548, 4294901760
        %4422 = vmatpush1.msra.mxu0 %v4421
        %4423 = vmatprep.subr.mxu0 0.0
        %v4424 = vand.u32 %v3549, 4294901760
        %4425 = vmatpush1.msra.mxu0 %v4424
        %4426 = vmatprep.subr.mxu0 0.0
        %v4427 = vand.u32 %v3550, 4294901760
        %4428 = vmatpush1.msra.mxu0 %v4427
        %4429 = vmatprep.subr.mxu0 0.0
        %4430 = vmatpush1.msra.mxu0 0.0
        %4431 = vmatprep.subr.mxu0 0.0
        %4432 = vmatpush1.msra.mxu0 0.0
        %4433 = vmatprep.subr.mxu0 0.0
        %4434 = vmatpush1.msra.mxu0 0.0
        %4435 = vmatprep.subr.mxu0 0.0
        %4436 = vmatpush1.msra.mxu0 0.0
        %4437 = vmatprep.subr.mxu0 0.0
        %4438 = vmatpush1.msra.mxu0 0.0
        %4439 = vmatprep.subr.mxu0 0.0
        %4440 = vmatpush1.msra.mxu0 0.0
        %4441 = vmatprep.subr.mxu0 0.0
        %4442 = vmatpush1.msra.mxu0 0.0
        %4443 = vmatprep.subr.mxu0 0.0
        %4444 = vmatpush1.msra.mxu0 0.0
        %4445 = vmatprep.subr.mxu0 0.0
        %4446 = vmatpush1.msra.mxu0 0.0
        %4447 = vmatprep.subr.mxu0 0.0
        %4448 = vmatpush1.msra.mxu0 0.0
        %4449 = vmatprep.subr.mxu0 0.0
        %4450 = vmatpush1.msra.mxu0 0.0
        %4451 = vmatprep.subr.mxu0 0.0
        %4452 = vmatpush1.msra.mxu0 0.0
        %4453 = vmatprep.subr.mxu0 0.0
        %4454 = vmatpush1.msra.mxu0 0.0
        %4455 = vmatprep.subr.mxu0 0.0
        %4456 = vmatpush1.msra.mxu0 0.0
        %4457 = vmatprep.subr.mxu0 0.0
        %4458 = vmatpush1.msra.mxu0 0.0
        %4459 = vmatprep.subr.mxu0 0.0
        %4460 = vmatpush1.msra.mxu0 0.0
        %4461 = vmatprep.subr.mxu0 0.0
        %4462 = vmatpush1.msra.mxu0 0.0
        %4463 = vmatprep.subr.mxu0 0.0
        %4464 = vmatpush1.msra.mxu0 0.0
        %4465 = vmatprep.subr.mxu0 0.0
        %4466 = vmatpush1.msra.mxu0 0.0
        %4467 = vmatprep.subr.mxu0 0.0
        %4468 = vmatpush1.msra.mxu0 0.0
        %4469 = vmatprep.subr.mxu0 0.0
        %4470 = vmatpush1.msra.mxu0 0.0
        %4471 = vmatprep.subr.mxu0 0.0
        %4472 = vmatpush1.msra.mxu0 0.0
        %4473 = vmatprep.subr.mxu0 0.0
        %4474 = vmatpush1.msra.mxu0 0.0
        %4475 = vmatprep.subr.mxu0 0.0
        %4476 = vmatpush1.msra.mxu0 0.0
        %4477 = vmatprep.subr.mxu0 0.0
        %4478 = vmatpush1.msra.mxu0 0.0
        %4479 = vmatprep.subr.mxu0 0.0
        %4480 = vmatpush1.msra.mxu0 0.0
        %4481 = vmatprep.subr.mxu0 0.0
        %4482 = vmatpush1.msra.mxu0 0.0
        %4483 = vmatprep.subr.mxu0 0.0
        %4484 = vmatpush1.msra.mxu0 0.0
        %4485 = vmatprep.mubr.f32.mxu0 0.0
        %v4486 = vand.u32 %v3565, 4294901760
        %4487 = vmatmul.mubr.f32.gmra.mrb[0].mxu0 %v4486
        %v4488 = vpop.f32.mrb[0].mxu0
        %v4489 = vadd.f32 %v4348, %v4488
        %v4490 = vpop.f32.mrb[0].mxu0
        %4491 = vmatprep.mubr.f32.mxu0 0.0
        %v4492 = vand.u32 %v3568, 4294901760
        %4493 = vmatmul.mubr.f32.gmra.mrb[0].mxu0 %v4492
        %v4494 = vpop.f32.mrb[0].mxu0
        %v4495 = vadd.f32 %v4354, %v4494
        %v4496 = vpop.f32.mrb[0].mxu0
        %4497 = vmatprep.mubr.f32.mxu0 0.0
        %v4498 = vand.u32 %v3571, 4294901760
        %4499 = vmatmul.mubr.f32.gmra.mrb[0].mxu0 %v4498
        %v4500 = vpop.f32.mrb[0].mxu0
        %v4501 = vadd.f32 %v4360, %v4500
        %v4502 = vpop.f32.mrb[0].mxu0
        %4503 = vmatprep.mubr.f32.mxu0 0.0
        %v4504 = vand.u32 %v3574, 4294901760
        %4505 = vmatmul.mubr.f32.gmra.mrb[0].mxu0 %v4504
        %v4506 = vpop.f32.mrb[0].mxu0
        %v4507 = vadd.f32 %v4366, %v4506
        %v4508 = vpop.f32.mrb[0].mxu0
        %4509 = vmatprep.mubr.f32.mxu0 0.0
        %v4510 = vand.u32 %v3577, 4294901760
        %4511 = vmatmul.mubr.f32.gmra.mrb[0].mxu0 %v4510
        %v4512 = vpop.f32.mrb[0].mxu0
        %v4513 = vadd.f32 %v4372, %v4512
        %v4514 = vpop.f32.mrb[0].mxu0
        %4515 = vmatprep.mubr.f32.mxu0 0.0
        %v4516 = vand.u32 %v3580, 4294901760
        %4517 = vmatmul.mubr.f32.gmra.mrb[0].mxu0 %v4516
        %v4518 = vpop.f32.mrb[0].mxu0
        %v4519 = vadd.f32 %v4378, %v4518
        %v4520 = vpop.f32.mrb[0].mxu0
        %4521 = vmatprep.mubr.f32.mxu0 0.0
        %v4522 = vand.u32 %v3583, 4294901760
        %4523 = vmatmul.mubr.f32.gmra.mrb[0].mxu0 %v4522
        %v4524 = vpop.f32.mrb[0].mxu0
        %v4525 = vadd.f32 %v4384, %v4524
        %v4526 = vpop.f32.mrb[0].mxu0
        %4527 = vmatprep.mubr.f32.mxu0 0.0
        %v4528 = vand.u32 %v3586, 4294901760
        %4529 = vmatmul.mubr.f32.gmra.mrb[0].mxu0 %v4528
        %v4530 = vpop.f32.mrb[0].mxu0
        %v4531 = vadd.f32 %v4390, %v4530
        %v4532 = vpop.f32.mrb[0].mxu0
        %4533 = vmatprep.mubr.f32.mxu0 0.0
        %v4534 = vand.u32 %v3589, 4294901760
        %4535 = vmatmul.mubr.f32.gmra.mrb[0].mxu0 %v4534
        %v4536 = vpop.f32.mrb[0].mxu0
        %v4537 = vadd.f32 %v4396, %v4536
        %v4538 = vpop.f32.mrb[0].mxu0
        %4539 = vmatprep.mubr.f32.mxu0 0.0
        %v4540 = vand.u32 %v3592, 4294901760
        %4541 = vmatmul.mubr.f32.gmra.mrb[0].mxu0 %v4540
        %v4542 = vpop.f32.mrb[0].mxu0
        %v4543 = vadd.f32 %v4402, %v4542
        %v4544 = vpop.f32.mrb[0].mxu0
        %4545 = vmatprep.mubr.f32.mxu0 0.0
        %v4546 = vand.u32 %v3595, 4294901760
        %4547 = vmatmul.mubr.f32.gmra.mrb[0].mxu0 %v4546
        %v4548 = vpop.f32.mrb[0].mxu0
        %v4549 = vadd.f32 %v4408, %v4548
        %v4550 = vpop.f32.mrb[0].mxu0
        %4551 = vmatprep.mubr.f32.mxu0 0.0
        %v4552 = vand.u32 %v3598, 4294901760
        %4553 = vmatmul.mubr.f32.gmra.mrb[0].mxu0 %v4552
        %v4554 = vpop.f32.mrb[0].mxu0
        %v4555 = vadd.f32 %v4414, %v4554
        %v4556 = vpop.f32.mrb[0].mxu0
        %4557 = vdwg.mxu0
        %v4558 = vadd.f32 %v3262, %v4489
        %v4559 = vadd.f32 %v3268, %v4495
        %v4560 = vadd.f32 %v3274, %v4501
        %v4561 = vadd.f32 %v3280, %v4507
        %v4562 = vadd.f32 %v3286, %v4513
        %v4563 = vadd.f32 %v3292, %v4519
        %v4564 = vadd.f32 %v3298, %v4525
        %v4565 = vadd.f32 %v3304, %v4531
        %v4566 = vadd.f32 %v3310, %v4537
        %v4567 = vadd.f32 %v3316, %v4543
        %v4568 = vadd.f32 %v3322, %v4549
        %v4569 = vadd.f32 %v3328, %v4555
        %v4570 = vtanh.pop %v4558
        %v4571 = vtanh.pop %v4559
        %v4572 = vtanh.pop %v4560
        %v4573 = vtanh.pop %v4561
        %v4574 = vtanh.pop %v4562
        %v4575 = vtanh.pop %v4563
        %v4576 = vtanh.pop %v4564
        %v4577 = vtanh.pop %v4565
        %v4578 = vtanh.pop %v4566
        %v4579 = vtanh.pop %v4567
        %v4580 = vtanh.pop %v4568
        %v4581 = vtanh.pop %v4569
        %v4582 = vmul.f32 %v3547, %v4578
        %v4583 = vmul.f32 %v3548, %v4579
        %v4584 = vmul.f32 %v3549, %v4580
        %v4585 = vmul.f32 %v3550, %v4581
        %v4586 = vld [vmem:[%s4] sm:$0xff]
        %v4587 = vld [vmem:[%s4 + $0x8] sm:$0xff]
        %v4588 = vld [vmem:[%s4 + $0x10] sm:$0xff]
        %v4589 = vld [vmem:[%s4 + $0x18] sm:$0xff]
        %v4591 = vsel %vm3563, %v4586, 0
        %v4594 = vsel %vm3563, %v4587, 0
        %v4597 = vsel %vm3563, %v4588, 0
        %v4600 = vsel %vm3563, %v4589, 0
        %4602 = vmatprep.subr.mxu0 0.0
        %v4603 = vand.u32 %v4582, 4294901760
        %4604 = vmatpush1.msra.mxu0 %v4603
        %4605 = vmatprep.subr.mxu0 0.0
        %v4606 = vand.u32 %v4583, 4294901760
        %4607 = vmatpush1.msra.mxu0 %v4606
        %4608 = vmatprep.subr.mxu0 0.0
        %v4609 = vand.u32 %v4584, 4294901760
        %4610 = vmatpush1.msra.mxu0 %v4609
        %4611 = vmatprep.subr.mxu0 0.0
        %v4612 = vand.u32 %v4585, 4294901760
        %4613 = vmatpush1.msra.mxu0 %v4612
        %4614 = vmatprep.subr.mxu0 0.0
        %4615 = vmatpush1.msra.mxu0 0.0
        %4616 = vmatprep.subr.mxu0 0.0
        %4617 = vmatpush1.msra.mxu0 0.0
        %4618 = vmatprep.subr.mxu0 0.0
        %4619 = vmatpush1.msra.mxu0 0.0
        %4620 = vmatprep.subr.mxu0 0.0
        %4621 = vmatpush1.msra.mxu0 0.0
        %4622 = vmatprep.subr.mxu0 0.0
        %4623 = vmatpush1.msra.mxu0 0.0
        %4624 = vmatprep.subr.mxu0 0.0
        %4625 = vmatpush1.msra.mxu0 0.0
        %4626 = vmatprep.subr.mxu0 0.0
        %4627 = vmatpush1.msra.mxu0 0.0
        %4628 = vmatprep.subr.mxu0 0.0
        %4629 = vmatpush1.msra.mxu0 0.0
        %4630 = vmatprep.subr.mxu0 0.0
        %4631 = vmatpush1.msra.mxu0 0.0
        %4632 = vmatprep.subr.mxu0 0.0
        %4633 = vmatpush1.msra.mxu0 0.0
        %4634 = vmatprep.subr.mxu0 0.0
        %4635 = vmatpush1.msra.mxu0 0.0
        %4636 = vmatprep.subr.mxu0 0.0
        %4637 = vmatpush1.msra.mxu0 0.0
        %4638 = vmatprep.subr.mxu0 0.0
        %4639 = vmatpush1.msra.mxu0 0.0
        %4640 = vmatprep.subr.mxu0 0.0
        %4641 = vmatpush1.msra.mxu0 0.0
        %4642 = vmatprep.subr.mxu0 0.0
        %4643 = vmatpush1.msra.mxu0 0.0
        %4644 = vmatprep.subr.mxu0 0.0
        %4645 = vmatpush1.msra.mxu0 0.0
        %4646 = vmatprep.subr.mxu0 0.0
        %4647 = vmatpush1.msra.mxu0 0.0
        %4648 = vmatprep.subr.mxu0 0.0
        %4649 = vmatpush1.msra.mxu0 0.0
        %4650 = vmatprep.subr.mxu0 0.0
        %4651 = vmatpush1.msra.mxu0 0.0
        %4652 = vmatprep.subr.mxu0 0.0
        %4653 = vmatpush1.msra.mxu0 0.0
        %4654 = vmatprep.subr.mxu0 0.0
        %4655 = vmatpush1.msra.mxu0 0.0
        %4656 = vmatprep.subr.mxu0 0.0
        %4657 = vmatpush1.msra.mxu0 0.0
        %4658 = vmatprep.subr.mxu0 0.0
        %4659 = vmatpush1.msra.mxu0 0.0
        %4660 = vmatprep.subr.mxu0 0.0
        %4661 = vmatpush1.msra.mxu0 0.0
        %4662 = vmatprep.subr.mxu0 0.0
        %4663 = vmatpush1.msra.mxu0 0.0
        %4664 = vmatprep.subr.mxu0 0.0
        %4665 = vmatpush1.msra.mxu0 0.0
        %4666 = vmatprep.subr.mxu0 0.0
        %4667 = vmatpush1.msra.mxu0 0.0
        %4668 = vmatprep.subr.mxu0 0.0
        %4669 = vmatpush1.msra.mxu0 0.0
        %4670 = vmatprep.mubr.f32.mxu0 0.0
        %v4671 = vand.u32 %v4591, 4294901760
        %v4672 = vsub.f32 %v4591, %v4671
        %v4673 = vand.u32 %v4672, 4294901760
        %v4674 = vsub.f32 %v4672, %v4673
        %v4675 = vand.u32 %v4674, 4294901760
        %4676 = vmatmul.mubr.f32.gmra.mrb[0].mxu0 %v4675
        %v4677 = vpop.f32.mrb[0].mxu0
        %v4678 = vadd.f32 0.0, %v4677
        %v4679 = vpop.f32.mrb[0].mxu0
        %4680 = vmatprep.mubr.f32.mxu0 0.0
        %v4681 = vand.u32 %v4594, 4294901760
        %v4682 = vsub.f32 %v4594, %v4681
        %v4683 = vand.u32 %v4682, 4294901760
        %v4684 = vsub.f32 %v4682, %v4683
        %v4685 = vand.u32 %v4684, 4294901760
        %4686 = vmatmul.mubr.f32.gmra.mrb[0].mxu0 %v4685
        %v4687 = vpop.f32.mrb[0].mxu0
        %v4688 = vadd.f32 0.0, %v4687
        %v4689 = vpop.f32.mrb[0].mxu0
        %4690 = vmatprep.mubr.f32.mxu0 0.0
        %v4691 = vand.u32 %v4597, 4294901760
        %v4692 = vsub.f32 %v4597, %v4691
        %v4693 = vand.u32 %v4692, 4294901760
        %v4694 = vsub.f32 %v4692, %v4693
        %v4695 = vand.u32 %v4694, 4294901760
        %4696 = vmatmul.mubr.f32.gmra.mrb[0].mxu0 %v4695
        %v4697 = vpop.f32.mrb[0].mxu0
        %v4698 = vadd.f32 0.0, %v4697
        %v4699 = vpop.f32.mrb[0].mxu0
        %4700 = vmatprep.mubr.f32.mxu0 0.0
        %v4701 = vand.u32 %v4600, 4294901760
        %v4702 = vsub.f32 %v4600, %v4701
        %v4703 = vand.u32 %v4702, 4294901760
        %v4704 = vsub.f32 %v4702, %v4703
        %v4705 = vand.u32 %v4704, 4294901760
        %4706 = vmatmul.mubr.f32.gmra.mrb[0].mxu0 %v4705
        %v4707 = vpop.f32.mrb[0].mxu0
        %v4708 = vadd.f32 0.0, %v4707
        %v4709 = vpop.f32.mrb[0].mxu0
        %4710 = vdwg.mxu0
        %4711 = vmatprep.subr.mxu0 0.0
        %v4712 = vand.u32 %v4582, 4294901760
        %v4713 = vsub.f32 %v4582, %v4712
        %v4714 = vand.u32 %v4713, 4294901760
        %v4715 = vsub.f32 %v4713, %v4714
        %v4716 = vand.u32 %v4715, 4294901760
        %4717 = vmatpush1.msra.mxu0 %v4716
        %4718 = vmatprep.subr.mxu0 0.0
        %v4719 = vand.u32 %v4583, 4294901760
        %v4720 = vsub.f32 %v4583, %v4719
        %v4721 = vand.u32 %v4720, 4294901760
        %v4722 = vsub.f32 %v4720, %v4721
        %v4723 = vand.u32 %v4722, 4294901760
        %4724 = vmatpush1.msra.mxu0 %v4723
        %4725 = vmatprep.subr.mxu0 0.0
        %v4726 = vand.u32 %v4584, 4294901760
        %v4727 = vsub.f32 %v4584, %v4726
        %v4728 = vand.u32 %v4727, 4294901760
        %v4729 = vsub.f32 %v4727, %v4728
        %v4730 = vand.u32 %v4729, 4294901760
        %4731 = vmatpush1.msra.mxu0 %v4730
        %4732 = vmatprep.subr.mxu0 0.0
        %v4733 = vand.u32 %v4585, 4294901760
        %v4734 = vsub.f32 %v4585, %v4733
        %v4735 = vand.u32 %v4734, 4294901760
        %v4736 = vsub.f32 %v4734, %v4735
        %v4737 = vand.u32 %v4736, 4294901760
        %4738 = vmatpush1.msra.mxu0 %v4737
        %4739 = vmatprep.subr.mxu0 0.0
        %4740 = vmatpush1.msra.mxu0 0.0
        %4741 = vmatprep.subr.mxu0 0.0
        %4742 = vmatpush1.msra.mxu0 0.0
        %4743 = vmatprep.subr.mxu0 0.0
        %4744 = vmatpush1.msra.mxu0 0.0
        %4745 = vmatprep.subr.mxu0 0.0
        %4746 = vmatpush1.msra.mxu0 0.0
        %4747 = vmatprep.subr.mxu0 0.0
        %4748 = vmatpush1.msra.mxu0 0.0
        %4749 = vmatprep.subr.mxu0 0.0
        %4750 = vmatpush1.msra.mxu0 0.0
        %4751 = vmatprep.subr.mxu0 0.0
        %4752 = vmatpush1.msra.mxu0 0.0
        %4753 = vmatprep.subr.mxu0 0.0
        %4754 = vmatpush1.msra.mxu0 0.0
        %4755 = vmatprep.subr.mxu0 0.0
        %4756 = vmatpush1.msra.mxu0 0.0
        %4757 = vmatprep.subr.mxu0 0.0
        %4758 = vmatpush1.msra.mxu0 0.0
        %4759 = vmatprep.subr.mxu0 0.0
        %4760 = vmatpush1.msra.mxu0 0.0
        %4761 = vmatprep.subr.mxu0 0.0
        %4762 = vmatpush1.msra.mxu0 0.0
        %4763 = vmatprep.subr.mxu0 0.0
        %4764 = vmatpush1.msra.mxu0 0.0
        %4765 = vmatprep.subr.mxu0 0.0
        %4766 = vmatpush1.msra.mxu0 0.0
        %4767 = vmatprep.subr.mxu0 0.0
        %4768 = vmatpush1.msra.mxu0 0.0
        %4769 = vmatprep.subr.mxu0 0.0
        %4770 = vmatpush1.msra.mxu0 0.0
        %4771 = vmatprep.subr.mxu0 0.0
        %4772 = vmatpush1.msra.mxu0 0.0
        %4773 = vmatprep.subr.mxu0 0.0
        %4774 = vmatpush1.msra.mxu0 0.0
        %4775 = vmatprep.subr.mxu0 0.0
        %4776 = vmatpush1.msra.mxu0 0.0
        %4777 = vmatprep.subr.mxu0 0.0
        %4778 = vmatpush1.msra.mxu0 0.0
        %4779 = vmatprep.subr.mxu0 0.0
        %4780 = vmatpush1.msra.mxu0 0.0
        %4781 = vmatprep.subr.mxu0 0.0
        %4782 = vmatpush1.msra.mxu0 0.0
        %4783 = vmatprep.subr.mxu0 0.0
        %4784 = vmatpush1.msra.mxu0 0.0
        %4785 = vmatprep.subr.mxu0 0.0
        %4786 = vmatpush1.msra.mxu0 0.0
        %4787 = vmatprep.subr.mxu0 0.0
        %4788 = vmatpush1.msra.mxu0 0.0
        %4789 = vmatprep.subr.mxu0 0.0
        %4790 = vmatpush1.msra.mxu0 0.0
        %4791 = vmatprep.subr.mxu0 0.0
        %4792 = vmatpush1.msra.mxu0 0.0
        %4793 = vmatprep.subr.mxu0 0.0
        %4794 = vmatpush1.msra.mxu0 0.0
        %4795 = vmatprep.mubr.f32.mxu0 0.0
        %v4796 = vand.u32 %v4591, 4294901760
        %4797 = vmatmul.mubr.f32.gmra.mrb[0].mxu0 %v4796
        %v4798 = vpop.f32.mrb[0].mxu0
        %v4799 = vadd.f32 %v4678, %v4798
        %v4800 = vpop.f32.mrb[0].mxu0
        %4801 = vmatprep.mubr.f32.mxu0 0.0
        %v4802 = vand.u32 %v4594, 4294901760
        %4803 = vmatmul.mubr.f32.gmra.mrb[0].mxu0 %v4802
        %v4804 = vpop.f32.mrb[0].mxu0
        %v4805 = vadd.f32 %v4688, %v4804
        %v4806 = vpop.f32.mrb[0].mxu0
        %4807 = vmatprep.mubr.f32.mxu0 0.0
        %v4808 = vand.u32 %v4597, 4294901760
        %4809 = vmatmul.mubr.f32.gmra.mrb[0].mxu0 %v4808
        %v4810 = vpop.f32.mrb[0].mxu0
        %v4811 = vadd.f32 %v4698, %v4810
        %v4812 = vpop.f32.mrb[0].mxu0
        %4813 = vmatprep.mubr.f32.mxu0 0.0
        %v4814 = vand.u32 %v4600, 4294901760
        %4815 = vmatmul.mubr.f32.gmra.mrb[0].mxu0 %v4814
        %v4816 = vpop.f32.mrb[0].mxu0
        %v4817 = vadd.f32 %v4708, %v4816
        %v4818 = vpop.f32.mrb[0].mxu0
        %4819 = vdwg.mxu0
        %4820 = vmatprep.subr.mxu0 0.0
        %v4821 = vand.u32 %v4582, 4294901760
        %v4822 = vsub.f32 %v4582, %v4821
        %4823 = vmatpush1.msra.mxu0 %v4822
        %4824 = vmatprep.subr.mxu0 0.0
        %v4825 = vand.u32 %v4583, 4294901760
        %v4826 = vsub.f32 %v4583, %v4825
        %4827 = vmatpush1.msra.mxu0 %v4826
        %4828 = vmatprep.subr.mxu0 0.0
        %v4829 = vand.u32 %v4584, 4294901760
        %v4830 = vsub.f32 %v4584, %v4829
        %4831 = vmatpush1.msra.mxu0 %v4830
        %4832 = vmatprep.subr.mxu0 0.0
        %v4833 = vand.u32 %v4585, 4294901760
        %v4834 = vsub.f32 %v4585, %v4833
        %4835 = vmatpush1.msra.mxu0 %v4834
        %4836 = vmatprep.subr.mxu0 0.0
        %4837 = vmatpush1.msra.mxu0 0.0
        %4838 = vmatprep.subr.mxu0 0.0
        %4839 = vmatpush1.msra.mxu0 0.0
        %4840 = vmatprep.subr.mxu0 0.0
        %4841 = vmatpush1.msra.mxu0 0.0
        %4842 = vmatprep.subr.mxu0 0.0
        %4843 = vmatpush1.msra.mxu0 0.0
        %4844 = vmatprep.subr.mxu0 0.0
        %4845 = vmatpush1.msra.mxu0 0.0
        %4846 = vmatprep.subr.mxu0 0.0
        %4847 = vmatpush1.msra.mxu0 0.0
        %4848 = vmatprep.subr.mxu0 0.0
        %4849 = vmatpush1.msra.mxu0 0.0
        %4850 = vmatprep.subr.mxu0 0.0
        %4851 = vmatpush1.msra.mxu0 0.0
        %4852 = vmatprep.subr.mxu0 0.0
        %4853 = vmatpush1.msra.mxu0 0.0
        %4854 = vmatprep.subr.mxu0 0.0
        %4855 = vmatpush1.msra.mxu0 0.0
        %4856 = vmatprep.subr.mxu0 0.0
        %4857 = vmatpush1.msra.mxu0 0.0
        %4858 = vmatprep.subr.mxu0 0.0
        %4859 = vmatpush1.msra.mxu0 0.0
        %4860 = vmatprep.subr.mxu0 0.0
        %4861 = vmatpush1.msra.mxu0 0.0
        %4862 = vmatprep.subr.mxu0 0.0
        %4863 = vmatpush1.msra.mxu0 0.0
        %4864 = vmatprep.subr.mxu0 0.0
        %4865 = vmatpush1.msra.mxu0 0.0
        %4866 = vmatprep.subr.mxu0 0.0
        %4867 = vmatpush1.msra.mxu0 0.0
        %4868 = vmatprep.subr.mxu0 0.0
        %4869 = vmatpush1.msra.mxu0 0.0
        %4870 = vmatprep.subr.mxu0 0.0
        %4871 = vmatpush1.msra.mxu0 0.0
        %4872 = vmatprep.subr.mxu0 0.0
        %4873 = vmatpush1.msra.mxu0 0.0
        %4874 = vmatprep.subr.mxu0 0.0
        %4875 = vmatpush1.msra.mxu0 0.0
        %4876 = vmatprep.subr.mxu0 0.0
        %4877 = vmatpush1.msra.mxu0 0.0
        %4878 = vmatprep.subr.mxu0 0.0
        %4879 = vmatpush1.msra.mxu0 0.0
        %4880 = vmatprep.subr.mxu0 0.0
        %4881 = vmatpush1.msra.mxu0 0.0
        %4882 = vmatprep.subr.mxu0 0.0
        %4883 = vmatpush1.msra.mxu0 0.0
        %4884 = vmatprep.subr.mxu0 0.0
        %4885 = vmatpush1.msra.mxu0 0.0
        %4886 = vmatprep.subr.mxu0 0.0
        %4887 = vmatpush1.msra.mxu0 0.0
        %4888 = vmatprep.subr.mxu0 0.0
        %4889 = vmatpush1.msra.mxu0 0.0
        %4890 = vmatprep.subr.mxu0 0.0
        %4891 = vmatpush1.msra.mxu0 0.0
        %4892 = vmatprep.mubr.f32.mxu0 0.0
        %v4893 = vand.u32 %v4591, 4294901760
        %v4894 = vsub.f32 %v4591, %v4893
        %4895 = vmatmul.mubr.f32.gmra.mrb[0].mxu0 %v4894
        %v4896 = vpop.f32.mrb[0].mxu0
        %v4897 = vadd.f32 %v4799, %v4896
        %v4898 = vpop.f32.mrb[0].mxu0
        %4899 = vmatprep.mubr.f32.mxu0 0.0
        %v4900 = vand.u32 %v4594, 4294901760
        %v4901 = vsub.f32 %v4594, %v4900
        %4902 = vmatmul.mubr.f32.gmra.mrb[0].mxu0 %v4901
        %v4903 = vpop.f32.mrb[0].mxu0
        %v4904 = vadd.f32 %v4805, %v4903
        %v4905 = vpop.f32.mrb[0].mxu0
        %4906 = vmatprep.mubr.f32.mxu0 0.0
        %v4907 = vand.u32 %v4597, 4294901760
        %v4908 = vsub.f32 %v4597, %v4907
        %4909 = vmatmul.mubr.f32.gmra.mrb[0].mxu0 %v4908
        %v4910 = vpop.f32.mrb[0].mxu0
        %v4911 = vadd.f32 %v4811, %v4910
        %v4912 = vpop.f32.mrb[0].mxu0
        %4913 = vmatprep.mubr.f32.mxu0 0.0
        %v4914 = vand.u32 %v4600, 4294901760
        %v4915 = vsub.f32 %v4600, %v4914
        %4916 = vmatmul.mubr.f32.gmra.mrb[0].mxu0 %v4915
        %v4917 = vpop.f32.mrb[0].mxu0
        %v4918 = vadd.f32 %v4817, %v4917
        %v4919 = vpop.f32.mrb[0].mxu0
        %4920 = vdwg.mxu0
        %4921 = vmatprep.subr.mxu0 0.0
        %v4922 = vand.u32 %v4582, 4294901760
        %4923 = vmatpush1.msra.mxu0 %v4922
        %4924 = vmatprep.subr.mxu0 0.0
        %v4925 = vand.u32 %v4583, 4294901760
        %4926 = vmatpush1.msra.mxu0 %v4925
        %4927 = vmatprep.subr.mxu0 0.0
        %v4928 = vand.u32 %v4584, 4294901760
        %4929 = vmatpush1.msra.mxu0 %v4928
        %4930 = vmatprep.subr.mxu0 0.0
        %v4931 = vand.u32 %v4585, 4294901760
        %4932 = vmatpush1.msra.mxu0 %v4931
        %4933 = vmatprep.subr.mxu0 0.0
        %4934 = vmatpush1.msra.mxu0 0.0
        %4935 = vmatprep.subr.mxu0 0.0
        %4936 = vmatpush1.msra.mxu0 0.0
        %4937 = vmatprep.subr.mxu0 0.0
        %4938 = vmatpush1.msra.mxu0 0.0
        %4939 = vmatprep.subr.mxu0 0.0
        %4940 = vmatpush1.msra.mxu0 0.0
        %4941 = vmatprep.subr.mxu0 0.0
        %4942 = vmatpush1.msra.mxu0 0.0
        %4943 = vmatprep.subr.mxu0 0.0
        %4944 = vmatpush1.msra.mxu0 0.0
        %4945 = vmatprep.subr.mxu0 0.0
        %4946 = vmatpush1.msra.mxu0 0.0
        %4947 = vmatprep.subr.mxu0 0.0
        %4948 = vmatpush1.msra.mxu0 0.0
        %4949 = vmatprep.subr.mxu0 0.0
        %4950 = vmatpush1.msra.mxu0 0.0
        %4951 = vmatprep.subr.mxu0 0.0
        %4952 = vmatpush1.msra.mxu0 0.0
        %4953 = vmatprep.subr.mxu0 0.0
        %4954 = vmatpush1.msra.mxu0 0.0
        %4955 = vmatprep.subr.mxu0 0.0
        %4956 = vmatpush1.msra.mxu0 0.0
        %4957 = vmatprep.subr.mxu0 0.0
        %4958 = vmatpush1.msra.mxu0 0.0
        %4959 = vmatprep.subr.mxu0 0.0
        %4960 = vmatpush1.msra.mxu0 0.0
        %4961 = vmatprep.subr.mxu0 0.0
        %4962 = vmatpush1.msra.mxu0 0.0
        %4963 = vmatprep.subr.mxu0 0.0
        %4964 = vmatpush1.msra.mxu0 0.0
        %4965 = vmatprep.subr.mxu0 0.0
        %4966 = vmatpush1.msra.mxu0 0.0
        %4967 = vmatprep.subr.mxu0 0.0
        %4968 = vmatpush1.msra.mxu0 0.0
        %4969 = vmatprep.subr.mxu0 0.0
        %4970 = vmatpush1.msra.mxu0 0.0
        %4971 = vmatprep.subr.mxu0 0.0
        %4972 = vmatpush1.msra.mxu0 0.0
        %4973 = vmatprep.subr.mxu0 0.0
        %4974 = vmatpush1.msra.mxu0 0.0
        %4975 = vmatprep.subr.mxu0 0.0
        %4976 = vmatpush1.msra.mxu0 0.0
        %4977 = vmatprep.subr.mxu0 0.0
        %4978 = vmatpush1.msra.mxu0 0.0
        %4979 = vmatprep.subr.mxu0 0.0
        %4980 = vmatpush1.msra.mxu0 0.0
        %4981 = vmatprep.subr.mxu0 0.0
        %4982 = vmatpush1.msra.mxu0 0.0
        %4983 = vmatprep.subr.mxu0 0.0
        %4984 = vmatpush1.msra.mxu0 0.0
        %4985 = vmatprep.subr.mxu0 0.0
        %4986 = vmatpush1.msra.mxu0 0.0
        %4987 = vmatprep.subr.mxu0 0.0
        %4988 = vmatpush1.msra.mxu0 0.0
        %4989 = vmatprep.mubr.f32.mxu0 0.0
        %v4990 = vand.u32 %v4591, 4294901760
        %v4991 = vsub.f32 %v4591, %v4990
        %v4992 = vand.u32 %v4991, 4294901760
        %4993 = vmatmul.mubr.f32.gmra.mrb[0].mxu0 %v4992
        %v4994 = vpop.f32.mrb[0].mxu0
        %v4995 = vadd.f32 %v4897, %v4994
        %v4996 = vpop.f32.mrb[0].mxu0
        %4997 = vmatprep.mubr.f32.mxu0 0.0
        %v4998 = vand.u32 %v4594, 4294901760
        %v4999 = vsub.f32 %v4594, %v4998
        %v5000 = vand.u32 %v4999, 4294901760
        %5001 = vmatmul.mubr.f32.gmra.mrb[0].mxu0 %v5000
        %v5002 = vpop.f32.mrb[0].mxu0
        %v5003 = vadd.f32 %v4904, %v5002
        %v5004 = vpop.f32.mrb[0].mxu0
        %5005 = vmatprep.mubr.f32.mxu0 0.0
        %v5006 = vand.u32 %v4597, 4294901760
        %v5007 = vsub.f32 %v4597, %v5006
        %v5008 = vand.u32 %v5007, 4294901760
        %5009 = vmatmul.mubr.f32.gmra.mrb[0].mxu0 %v5008
        %v5010 = vpop.f32.mrb[0].mxu0
        %v5011 = vadd.f32 %v4911, %v5010
        %v5012 = vpop.f32.mrb[0].mxu0
        %5013 = vmatprep.mubr.f32.mxu0 0.0
        %v5014 = vand.u32 %v4600, 4294901760
        %v5015 = vsub.f32 %v4600, %v5014
        %v5016 = vand.u32 %v5015, 4294901760
        %5017 = vmatmul.mubr.f32.gmra.mrb[0].mxu0 %v5016
        %v5018 = vpop.f32.mrb[0].mxu0
        %v5019 = vadd.f32 %v4918, %v5018
        %v5020 = vpop.f32.mrb[0].mxu0
        %5021 = vdwg.mxu0
        %5022 = vmatprep.subr.mxu0 0.0
        %v5023 = vand.u32 %v4582, 4294901760
        %v5024 = vsub.f32 %v4582, %v5023
        %v5025 = vand.u32 %v5024, 4294901760
        %5026 = vmatpush1.msra.mxu0 %v5025
        %5027 = vmatprep.subr.mxu0 0.0
        %v5028 = vand.u32 %v4583, 4294901760
        %v5029 = vsub.f32 %v4583, %v5028
        %v5030 = vand.u32 %v5029, 4294901760
        %5031 = vmatpush1.msra.mxu0 %v5030
        %5032 = vmatprep.subr.mxu0 0.0
        %v5033 = vand.u32 %v4584, 4294901760
        %v5034 = vsub.f32 %v4584, %v5033
        %v5035 = vand.u32 %v5034, 4294901760
        %5036 = vmatpush1.msra.mxu0 %v5035
        %5037 = vmatprep.subr.mxu0 0.0
        %v5038 = vand.u32 %v4585, 4294901760
        %v5039 = vsub.f32 %v4585, %v5038
        %v5040 = vand.u32 %v5039, 4294901760
        %5041 = vmatpush1.msra.mxu0 %v5040
        %5042 = vmatprep.subr.mxu0 0.0
        %5043 = vmatpush1.msra.mxu0 0.0
        %5044 = vmatprep.subr.mxu0 0.0
        %5045 = vmatpush1.msra.mxu0 0.0
        %5046 = vmatprep.subr.mxu0 0.0
        %5047 = vmatpush1.msra.mxu0 0.0
        %5048 = vmatprep.subr.mxu0 0.0
        %5049 = vmatpush1.msra.mxu0 0.0
        %5050 = vmatprep.subr.mxu0 0.0
        %5051 = vmatpush1.msra.mxu0 0.0
        %5052 = vmatprep.subr.mxu0 0.0
        %5053 = vmatpush1.msra.mxu0 0.0
        %5054 = vmatprep.subr.mxu0 0.0
        %5055 = vmatpush1.msra.mxu0 0.0
        %5056 = vmatprep.subr.mxu0 0.0
        %5057 = vmatpush1.msra.mxu0 0.0
        %5058 = vmatprep.subr.mxu0 0.0
        %5059 = vmatpush1.msra.mxu0 0.0
        %5060 = vmatprep.subr.mxu0 0.0
        %5061 = vmatpush1.msra.mxu0 0.0
        %5062 = vmatprep.subr.mxu0 0.0
        %5063 = vmatpush1.msra.mxu0 0.0
        %5064 = vmatprep.subr.mxu0 0.0
        %5065 = vmatpush1.msra.mxu0 0.0
        %5066 = vmatprep.subr.mxu0 0.0
        %5067 = vmatpush1.msra.mxu0 0.0
        %5068 = vmatprep.subr.mxu0 0.0
        %5069 = vmatpush1.msra.mxu0 0.0
        %5070 = vmatprep.subr.mxu0 0.0
        %5071 = vmatpush1.msra.mxu0 0.0
        %5072 = vmatprep.subr.mxu0 0.0
        %5073 = vmatpush1.msra.mxu0 0.0
        %5074 = vmatprep.subr.mxu0 0.0
        %5075 = vmatpush1.msra.mxu0 0.0
        %5076 = vmatprep.subr.mxu0 0.0
        %5077 = vmatpush1.msra.mxu0 0.0
        %5078 = vmatprep.subr.mxu0 0.0
        %5079 = vmatpush1.msra.mxu0 0.0
        %5080 = vmatprep.subr.mxu0 0.0
        %5081 = vmatpush1.msra.mxu0 0.0
        %5082 = vmatprep.subr.mxu0 0.0
        %5083 = vmatpush1.msra.mxu0 0.0
        %5084 = vmatprep.subr.mxu0 0.0
        %5085 = vmatpush1.msra.mxu0 0.0
        %5086 = vmatprep.subr.mxu0 0.0
        %5087 = vmatpush1.msra.mxu0 0.0
        %5088 = vmatprep.subr.mxu0 0.0
        %5089 = vmatpush1.msra.mxu0 0.0
        %5090 = vmatprep.subr.mxu0 0.0
        %5091 = vmatpush1.msra.mxu0 0.0
        %5092 = vmatprep.subr.mxu0 0.0
        %5093 = vmatpush1.msra.mxu0 0.0
        %5094 = vmatprep.subr.mxu0 0.0
        %5095 = vmatpush1.msra.mxu0 0.0
        %5096 = vmatprep.subr.mxu0 0.0
        %5097 = vmatpush1.msra.mxu0 0.0
        %5098 = vmatprep.mubr.f32.mxu0 0.0
        %v5099 = vand.u32 %v4591, 4294901760
        %5100 = vmatmul.mubr.f32.gmra.mrb[0].mxu0 %v5099
        %v5101 = vpop.f32.mrb[0].mxu0
        %v5102 = vadd.f32 %v4995, %v5101
        %v5103 = vpop.f32.mrb[0].mxu0
        %5104 = vmatprep.mubr.f32.mxu0 0.0
        %v5105 = vand.u32 %v4594, 4294901760
        %5106 = vmatmul.mubr.f32.gmra.mrb[0].mxu0 %v5105
        %v5107 = vpop.f32.mrb[0].mxu0
        %v5108 = vadd.f32 %v5003, %v5107
        %v5109 = vpop.f32.mrb[0].mxu0
        %5110 = vmatprep.mubr.f32.mxu0 0.0
        %v5111 = vand.u32 %v4597, 4294901760
        %5112 = vmatmul.mubr.f32.gmra.mrb[0].mxu0 %v5111
        %v5113 = vpop.f32.mrb[0].mxu0
        %v5114 = vadd.f32 %v5011, %v5113
        %v5115 = vpop.f32.mrb[0].mxu0
        %5116 = vmatprep.mubr.f32.mxu0 0.0
        %v5117 = vand.u32 %v4600, 4294901760
        %5118 = vmatmul.mubr.f32.gmra.mrb[0].mxu0 %v5117
        %v5119 = vpop.f32.mrb[0].mxu0
        %v5120 = vadd.f32 %v5019, %v5119
        %v5121 = vpop.f32.mrb[0].mxu0
        %5122 = vdwg.mxu0
        %5123 = vmatprep.subr.mxu0 0.0
        %v5124 = vand.u32 %v4582, 4294901760
        %5125 = vmatpush1.msra.mxu0 %v5124
        %5126 = vmatprep.subr.mxu0 0.0
        %v5127 = vand.u32 %v4583, 4294901760
        %5128 = vmatpush1.msra.mxu0 %v5127
        %5129 = vmatprep.subr.mxu0 0.0
        %v5130 = vand.u32 %v4584, 4294901760
        %5131 = vmatpush1.msra.mxu0 %v5130
        %5132 = vmatprep.subr.mxu0 0.0
        %v5133 = vand.u32 %v4585, 4294901760
        %5134 = vmatpush1.msra.mxu0 %v5133
        %5135 = vmatprep.subr.mxu0 0.0
        %5136 = vmatpush1.msra.mxu0 0.0
        %5137 = vmatprep.subr.mxu0 0.0
        %5138 = vmatpush1.msra.mxu0 0.0
        %5139 = vmatprep.subr.mxu0 0.0
        %5140 = vmatpush1.msra.mxu0 0.0
        %5141 = vmatprep.subr.mxu0 0.0
        %5142 = vmatpush1.msra.mxu0 0.0
        %5143 = vmatprep.subr.mxu0 0.0
        %5144 = vmatpush1.msra.mxu0 0.0
        %5145 = vmatprep.subr.mxu0 0.0
        %5146 = vmatpush1.msra.mxu0 0.0
        %5147 = vmatprep.subr.mxu0 0.0
        %5148 = vmatpush1.msra.mxu0 0.0
        %5149 = vmatprep.subr.mxu0 0.0
        %5150 = vmatpush1.msra.mxu0 0.0
        %5151 = vmatprep.subr.mxu0 0.0
        %5152 = vmatpush1.msra.mxu0 0.0
        %5153 = vmatprep.subr.mxu0 0.0
        %5154 = vmatpush1.msra.mxu0 0.0
        %5155 = vmatprep.subr.mxu0 0.0
        %5156 = vmatpush1.msra.mxu0 0.0
        %5157 = vmatprep.subr.mxu0 0.0
        %5158 = vmatpush1.msra.mxu0 0.0
        %5159 = vmatprep.subr.mxu0 0.0
        %5160 = vmatpush1.msra.mxu0 0.0
        %5161 = vmatprep.subr.mxu0 0.0
        %5162 = vmatpush1.msra.mxu0 0.0
        %5163 = vmatprep.subr.mxu0 0.0
        %5164 = vmatpush1.msra.mxu0 0.0
        %5165 = vmatprep.subr.mxu0 0.0
        %5166 = vmatpush1.msra.mxu0 0.0
        %5167 = vmatprep.subr.mxu0 0.0
        %5168 = vmatpush1.msra.mxu0 0.0
        %5169 = vmatprep.subr.mxu0 0.0
        %5170 = vmatpush1.msra.mxu0 0.0
        %5171 = vmatprep.subr.mxu0 0.0
        %5172 = vmatpush1.msra.mxu0 0.0
        %5173 = vmatprep.subr.mxu0 0.0
        %5174 = vmatpush1.msra.mxu0 0.0
        %5175 = vmatprep.subr.mxu0 0.0
        %5176 = vmatpush1.msra.mxu0 0.0
        %5177 = vmatprep.subr.mxu0 0.0
        %5178 = vmatpush1.msra.mxu0 0.0
        %5179 = vmatprep.subr.mxu0 0.0
        %5180 = vmatpush1.msra.mxu0 0.0
        %5181 = vmatprep.subr.mxu0 0.0
        %5182 = vmatpush1.msra.mxu0 0.0
        %5183 = vmatprep.subr.mxu0 0.0
        %5184 = vmatpush1.msra.mxu0 0.0
        %5185 = vmatprep.subr.mxu0 0.0
        %5186 = vmatpush1.msra.mxu0 0.0
        %5187 = vmatprep.subr.mxu0 0.0
        %5188 = vmatpush1.msra.mxu0 0.0
        %5189 = vmatprep.subr.mxu0 0.0
        %5190 = vmatpush1.msra.mxu0 0.0
        %5191 = vmatprep.mubr.f32.mxu0 0.0
        %v5192 = vand.u32 %v4591, 4294901760
        %5193 = vmatmul.mubr.f32.gmra.mrb[0].mxu0 %v5192
        %v5194 = vpop.f32.mrb[0].mxu0
        %v5195 = vadd.f32 %v5102, %v5194
        %v5196 = vpop.f32.mrb[0].mxu0
        %5197 = vmatprep.mubr.f32.mxu0 0.0
        %v5198 = vand.u32 %v4594, 4294901760
        %5199 = vmatmul.mubr.f32.gmra.mrb[0].mxu0 %v5198
        %v5200 = vpop.f32.mrb[0].mxu0
        %v5201 = vadd.f32 %v5108, %v5200
        %v5202 = vpop.f32.mrb[0].mxu0
        %5203 = vmatprep.mubr.f32.mxu0 0.0
        %v5204 = vand.u32 %v4597, 4294901760
        %5205 = vmatmul.mubr.f32.gmra.mrb[0].mxu0 %v5204
        %v5206 = vpop.f32.mrb[0].mxu0
        %v5207 = vadd.f32 %v5114, %v5206
        %v5208 = vpop.f32.mrb[0].mxu0
        %5209 = vmatprep.mubr.f32.mxu0 0.0
        %v5210 = vand.u32 %v4600, 4294901760
        %5211 = vmatmul.mubr.f32.gmra.mrb[0].mxu0 %v5210
        %v5212 = vpop.f32.mrb[0].mxu0
        %v5213 = vadd.f32 %v5120, %v5212
        %v5214 = vpop.f32.mrb[0].mxu0
        %5215 = vdwg.mxu0
        %v5216 = vadd.f32 %v3334, %v5195
        %v5217 = vadd.f32 %v3340, %v5201
        %v5218 = vadd.f32 %v3346, %v5207
        %v5219 = vadd.f32 %v3352, %v5213
        %v5220 = vtanh.pop %v5216
        %v5221 = vtanh.pop %v5217
        %v5222 = vtanh.pop %v5218
        %v5223 = vtanh.pop %v5219
        %v5224 = vsub.f32 1.0, %v4574
        %v5225 = vsub.f32 1.0, %v4575
        %v5226 = vsub.f32 1.0, %v4576
        %v5227 = vsub.f32 1.0, %v4577
        %v5228 = vmul.f32 %v5224, %v5220
        %v5229 = vmul.f32 %v5225, %v5221
        %v5230 = vmul.f32 %v5226, %v5222
        %v5231 = vmul.f32 %v5227, %v5223
        %v5232 = vmul.f32 %v4570, %v3547
        %v5233 = vmul.f32 %v4571, %v3548
        %v5234 = vmul.f32 %v4572, %v3549
        %v5235 = vmul.f32 %v4573, %v3550
        %v5236 = vadd.f32 %v5228, %v5232
        %v5237 = vadd.f32 %v5229, %v5233
        %v5238 = vadd.f32 %v5230, %v5234
        %v5239 = vadd.f32 %v5231, %v5235
        %v5240 = vld [vmem:[%s5] sm:$0xff]
        %v5241 = vld [vmem:[%s5 + $0x8] sm:$0xff]
        %v5242 = vld [vmem:[%s5 + $0x10] sm:$0xff]
        %v5243 = vld [vmem:[%s5 + $0x18] sm:$0xff]
        %v5244 = vld [vmem:[%s5 + $0x20] sm:$0xff]
        %v5245 = vld [vmem:[%s5 + $0x28] sm:$0xff]
        %v5246 = vld [vmem:[%s5 + $0x30] sm:$0xff]
        %v5247 = vld [vmem:[%s5 + $0x38] sm:$0xff]
        %v5248 = vld [vmem:[%s5 + $0x40] sm:$0xff]
        %v5249 = vld [vmem:[%s5 + $0x48] sm:$0xff]
        %v5250 = vld [vmem:[%s5 + $0x50] sm:$0xff]
        %v5251 = vld [vmem:[%s5 + $0x58] sm:$0xff]
        %v5253 = vsel %vm3563, %v5240, 0
        %v5256 = vsel %vm3563, %v5241, 0
        %v5259 = vsel %vm3563, %v5242, 0
        %v5262 = vsel %vm3563, %v5243, 0
        %v5265 = vsel %vm3563, %v5244, 0
        %v5268 = vsel %vm3563, %v5245, 0
        %v5271 = vsel %vm3563, %v5246, 0
        %v5274 = vsel %vm3563, %v5247, 0
        %v5277 = vsel %vm3563, %v5248, 0
        %v5280 = vsel %vm3563, %v5249, 0
        %v5283 = vsel %vm3563, %v5250, 0
        %v5286 = vsel %vm3563, %v5251, 0
        %5288 = vmatprep.subr.mxu0 0.0
        %v5289 = vand.u32 %v5236, 4294901760
        %5290 = vmatpush1.msra.mxu0 %v5289
        %5291 = vmatprep.subr.mxu0 0.0
        %v5292 = vand.u32 %v5237, 4294901760
        %5293 = vmatpush1.msra.mxu0 %v5292
        %5294 = vmatprep.subr.mxu0 0.0
        %v5295 = vand.u32 %v5238, 4294901760
        %5296 = vmatpush1.msra.mxu0 %v5295
        %5297 = vmatprep.subr.mxu0 0.0
        %v5298 = vand.u32 %v5239, 4294901760
        %5299 = vmatpush1.msra.mxu0 %v5298
        %5300 = vmatprep.subr.mxu0 0.0
        %5301 = vmatpush1.msra.mxu0 0.0
        %5302 = vmatprep.subr.mxu0 0.0
        %5303 = vmatpush1.msra.mxu0 0.0
        %5304 = vmatprep.subr.mxu0 0.0
        %5305 = vmatpush1.msra.mxu0 0.0
        %5306 = vmatprep.subr.mxu0 0.0
        %5307 = vmatpush1.msra.mxu0 0.0
        %5308 = vmatprep.subr.mxu0 0.0
        %5309 = vmatpush1.msra.mxu0 0.0
        %5310 = vmatprep.subr.mxu0 0.0
        %5311 = vmatpush1.msra.mxu0 0.0
        %5312 = vmatprep.subr.mxu0 0.0
        %5313 = vmatpush1.msra.mxu0 0.0
        %5314 = vmatprep.subr.mxu0 0.0
        %5315 = vmatpush1.msra.mxu0 0.0
        %5316 = vmatprep.subr.mxu0 0.0
        %5317 = vmatpush1.msra.mxu0 0.0
        %5318 = vmatprep.subr.mxu0 0.0
        %5319 = vmatpush1.msra.mxu0 0.0
        %5320 = vmatprep.subr.mxu0 0.0
        %5321 = vmatpush1.msra.mxu0 0.0
        %5322 = vmatprep.subr.mxu0 0.0
        %5323 = vmatpush1.msra.mxu0 0.0
        %5324 = vmatprep.subr.mxu0 0.0
        %5325 = vmatpush1.msra.mxu0 0.0
        %5326 = vmatprep.subr.mxu0 0.0
        %5327 = vmatpush1.msra.mxu0 0.0
        %5328 = vmatprep.subr.mxu0 0.0
        %5329 = vmatpush1.msra.mxu0 0.0
        %5330 = vmatprep.subr.mxu0 0.0
        %5331 = vmatpush1.msra.mxu0 0.0
        %5332 = vmatprep.subr.mxu0 0.0
        %5333 = vmatpush1.msra.mxu0 0.0
        %5334 = vmatprep.subr.mxu0 0.0
        %5335 = vmatpush1.msra.mxu0 0.0
        %5336 = vmatprep.subr.mxu0 0.0
        %5337 = vmatpush1.msra.mxu0 0.0
        %5338 = vmatprep.subr.mxu0 0.0
        %5339 = vmatpush1.msra.mxu0 0.0
        %5340 = vmatprep.subr.mxu0 0.0
        %5341 = vmatpush1.msra.mxu0 0.0
        %5342 = vmatprep.subr.mxu0 0.0
        %5343 = vmatpush1.msra.mxu0 0.0
        %5344 = vmatprep.subr.mxu0 0.0
        %5345 = vmatpush1.msra.mxu0 0.0
        %5346 = vmatprep.subr.mxu0 0.0
        %5347 = vmatpush1.msra.mxu0 0.0
        %5348 = vmatprep.subr.mxu0 0.0
        %5349 = vmatpush1.msra.mxu0 0.0
        %5350 = vmatprep.subr.mxu0 0.0
        %5351 = vmatpush1.msra.mxu0 0.0
        %5352 = vmatprep.subr.mxu0 0.0
        %5353 = vmatpush1.msra.mxu0 0.0
        %5354 = vmatprep.subr.mxu0 0.0
        %5355 = vmatpush1.msra.mxu0 0.0
        %5356 = vmatprep.mubr.f32.mxu0 0.0
        %v5357 = vand.u32 %v5253, 4294901760
        %v5358 = vsub.f32 %v5253, %v5357
        %v5359 = vand.u32 %v5358, 4294901760
        %v5360 = vsub.f32 %v5358, %v5359
        %v5361 = vand.u32 %v5360, 4294901760
        %5362 = vmatmul.mubr.f32.gmra.mrb[0].mxu0 %v5361
        %v5363 = vpop.f32.mrb[0].mxu0
        %v5364 = vadd.f32 0.0, %v5363
        %v5365 = vpop.f32.mrb[0].mxu0
        %5366 = vmatprep.mubr.f32.mxu0 0.0
        %v5367 = vand.u32 %v5256, 4294901760
        %v5368 = vsub.f32 %v5256, %v5367
        %v5369 = vand.u32 %v5368, 4294901760
        %v5370 = vsub.f32 %v5368, %v5369
        %v5371 = vand.u32 %v5370, 4294901760
        %5372 = vmatmul.mubr.f32.gmra.mrb[0].mxu0 %v5371
        %v5373 = vpop.f32.mrb[0].mxu0
        %v5374 = vadd.f32 0.0, %v5373
        %v5375 = vpop.f32.mrb[0].mxu0
        %5376 = vmatprep.mubr.f32.mxu0 0.0
        %v5377 = vand.u32 %v5259, 4294901760
        %v5378 = vsub.f32 %v5259, %v5377
        %v5379 = vand.u32 %v5378, 4294901760
        %v5380 = vsub.f32 %v5378, %v5379
        %v5381 = vand.u32 %v5380, 4294901760
        %5382 = vmatmul.mubr.f32.gmra.mrb[0].mxu0 %v5381
        %v5383 = vpop.f32.mrb[0].mxu0
        %v5384 = vadd.f32 0.0, %v5383
        %v5385 = vpop.f32.mrb[0].mxu0
        %5386 = vmatprep.mubr.f32.mxu0 0.0
        %v5387 = vand.u32 %v5262, 4294901760
        %v5388 = vsub.f32 %v5262, %v5387
        %v5389 = vand.u32 %v5388, 4294901760
        %v5390 = vsub.f32 %v5388, %v5389
        %v5391 = vand.u32 %v5390, 4294901760
        %5392 = vmatmul.mubr.f32.gmra.mrb[0].mxu0 %v5391
        %v5393 = vpop.f32.mrb[0].mxu0
        %v5394 = vadd.f32 0.0, %v5393
        %v5395 = vpop.f32.mrb[0].mxu0
        %5396 = vmatprep.mubr.f32.mxu0 0.0
        %v5397 = vand.u32 %v5265, 4294901760
        %v5398 = vsub.f32 %v5265, %v5397
        %v5399 = vand.u32 %v5398, 4294901760
        %v5400 = vsub.f32 %v5398, %v5399
        %v5401 = vand.u32 %v5400, 4294901760
        %5402 = vmatmul.mubr.f32.gmra.mrb[0].mxu0 %v5401
        %v5403 = vpop.f32.mrb[0].mxu0
        %v5404 = vadd.f32 0.0, %v5403
        %v5405 = vpop.f32.mrb[0].mxu0
        %5406 = vmatprep.mubr.f32.mxu0 0.0
        %v5407 = vand.u32 %v5268, 4294901760
        %v5408 = vsub.f32 %v5268, %v5407
        %v5409 = vand.u32 %v5408, 4294901760
        %v5410 = vsub.f32 %v5408, %v5409
        %v5411 = vand.u32 %v5410, 4294901760
        %5412 = vmatmul.mubr.f32.gmra.mrb[0].mxu0 %v5411
        %v5413 = vpop.f32.mrb[0].mxu0
        %v5414 = vadd.f32 0.0, %v5413
        %v5415 = vpop.f32.mrb[0].mxu0
        %5416 = vmatprep.mubr.f32.mxu0 0.0
        %v5417 = vand.u32 %v5271, 4294901760
        %v5418 = vsub.f32 %v5271, %v5417
        %v5419 = vand.u32 %v5418, 4294901760
        %v5420 = vsub.f32 %v5418, %v5419
        %v5421 = vand.u32 %v5420, 4294901760
        %5422 = vmatmul.mubr.f32.gmra.mrb[0].mxu0 %v5421
        %v5423 = vpop.f32.mrb[0].mxu0
        %v5424 = vadd.f32 0.0, %v5423
        %v5425 = vpop.f32.mrb[0].mxu0
        %5426 = vmatprep.mubr.f32.mxu0 0.0
        %v5427 = vand.u32 %v5274, 4294901760
        %v5428 = vsub.f32 %v5274, %v5427
        %v5429 = vand.u32 %v5428, 4294901760
        %v5430 = vsub.f32 %v5428, %v5429
        %v5431 = vand.u32 %v5430, 4294901760
        %5432 = vmatmul.mubr.f32.gmra.mrb[0].mxu0 %v5431
        %v5433 = vpop.f32.mrb[0].mxu0
        %v5434 = vadd.f32 0.0, %v5433
        %v5435 = vpop.f32.mrb[0].mxu0
        %5436 = vmatprep.mubr.f32.mxu0 0.0
        %v5437 = vand.u32 %v5277, 4294901760
        %v5438 = vsub.f32 %v5277, %v5437
        %v5439 = vand.u32 %v5438, 4294901760
        %v5440 = vsub.f32 %v5438, %v5439
        %v5441 = vand.u32 %v5440, 4294901760
        %5442 = vmatmul.mubr.f32.gmra.mrb[0].mxu0 %v5441
        %v5443 = vpop.f32.mrb[0].mxu0
        %v5444 = vadd.f32 0.0, %v5443
        %v5445 = vpop.f32.mrb[0].mxu0
        %5446 = vmatprep.mubr.f32.mxu0 0.0
        %v5447 = vand.u32 %v5280, 4294901760
        %v5448 = vsub.f32 %v5280, %v5447
        %v5449 = vand.u32 %v5448, 4294901760
        %v5450 = vsub.f32 %v5448, %v5449
        %v5451 = vand.u32 %v5450, 4294901760
        %5452 = vmatmul.mubr.f32.gmra.mrb[0].mxu0 %v5451
        %v5453 = vpop.f32.mrb[0].mxu0
        %v5454 = vadd.f32 0.0, %v5453
        %v5455 = vpop.f32.mrb[0].mxu0
        %5456 = vmatprep.mubr.f32.mxu0 0.0
        %v5457 = vand.u32 %v5283, 4294901760
        %v5458 = vsub.f32 %v5283, %v5457
        %v5459 = vand.u32 %v5458, 4294901760
        %v5460 = vsub.f32 %v5458, %v5459
        %v5461 = vand.u32 %v5460, 4294901760
        %5462 = vmatmul.mubr.f32.gmra.mrb[0].mxu0 %v5461
        %v5463 = vpop.f32.mrb[0].mxu0
        %v5464 = vadd.f32 0.0, %v5463
        %v5465 = vpop.f32.mrb[0].mxu0
        %5466 = vmatprep.mubr.f32.mxu0 0.0
        %v5467 = vand.u32 %v5286, 4294901760
        %v5468 = vsub.f32 %v5286, %v5467
        %v5469 = vand.u32 %v5468, 4294901760
        %v5470 = vsub.f32 %v5468, %v5469
        %v5471 = vand.u32 %v5470, 4294901760
        %5472 = vmatmul.mubr.f32.gmra.mrb[0].mxu0 %v5471
        %v5473 = vpop.f32.mrb[0].mxu0
        %v5474 = vadd.f32 0.0, %v5473
        %v5475 = vpop.f32.mrb[0].mxu0
        %5476 = vdwg.mxu0
        %5477 = vmatprep.subr.mxu0 0.0
        %v5478 = vand.u32 %v5236, 4294901760
        %v5479 = vsub.f32 %v5236, %v5478
        %v5480 = vand.u32 %v5479, 4294901760
        %v5481 = vsub.f32 %v5479, %v5480
        %v5482 = vand.u32 %v5481, 4294901760
        %5483 = vmatpush1.msra.mxu0 %v5482
        %5484 = vmatprep.subr.mxu0 0.0
        %v5485 = vand.u32 %v5237, 4294901760
        %v5486 = vsub.f32 %v5237, %v5485
        %v5487 = vand.u32 %v5486, 4294901760
        %v5488 = vsub.f32 %v5486, %v5487
        %v5489 = vand.u32 %v5488, 4294901760
        %5490 = vmatpush1.msra.mxu0 %v5489
        %5491 = vmatprep.subr.mxu0 0.0
        %v5492 = vand.u32 %v5238, 4294901760
        %v5493 = vsub.f32 %v5238, %v5492
        %v5494 = vand.u32 %v5493, 4294901760
        %v5495 = vsub.f32 %v5493, %v5494
        %v5496 = vand.u32 %v5495, 4294901760
        %5497 = vmatpush1.msra.mxu0 %v5496
        %5498 = vmatprep.subr.mxu0 0.0
        %v5499 = vand.u32 %v5239, 4294901760
        %v5500 = vsub.f32 %v5239, %v5499
        %v5501 = vand.u32 %v5500, 4294901760
        %v5502 = vsub.f32 %v5500, %v5501
        %v5503 = vand.u32 %v5502, 4294901760
        %5504 = vmatpush1.msra.mxu0 %v5503
        %5505 = vmatprep.subr.mxu0 0.0
        %5506 = vmatpush1.msra.mxu0 0.0
        %5507 = vmatprep.subr.mxu0 0.0
        %5508 = vmatpush1.msra.mxu0 0.0
        %5509 = vmatprep.subr.mxu0 0.0
        %5510 = vmatpush1.msra.mxu0 0.0
        %5511 = vmatprep.subr.mxu0 0.0
        %5512 = vmatpush1.msra.mxu0 0.0
        %5513 = vmatprep.subr.mxu0 0.0
        %5514 = vmatpush1.msra.mxu0 0.0
        %5515 = vmatprep.subr.mxu0 0.0
        %5516 = vmatpush1.msra.mxu0 0.0
        %5517 = vmatprep.subr.mxu0 0.0
        %5518 = vmatpush1.msra.mxu0 0.0
        %5519 = vmatprep.subr.mxu0 0.0
        %5520 = vmatpush1.msra.mxu0 0.0
        %5521 = vmatprep.subr.mxu0 0.0
        %5522 = vmatpush1.msra.mxu0 0.0
        %5523 = vmatprep.subr.mxu0 0.0
        %5524 = vmatpush1.msra.mxu0 0.0
        %5525 = vmatprep.subr.mxu0 0.0
        %5526 = vmatpush1.msra.mxu0 0.0
        %5527 = vmatprep.subr.mxu0 0.0
        %5528 = vmatpush1.msra.mxu0 0.0
        %5529 = vmatprep.subr.mxu0 0.0
        %5530 = vmatpush1.msra.mxu0 0.0
        %5531 = vmatprep.subr.mxu0 0.0
        %5532 = vmatpush1.msra.mxu0 0.0
        %5533 = vmatprep.subr.mxu0 0.0
        %5534 = vmatpush1.msra.mxu0 0.0
        %5535 = vmatprep.subr.mxu0 0.0
        %5536 = vmatpush1.msra.mxu0 0.0
        %5537 = vmatprep.subr.mxu0 0.0
        %5538 = vmatpush1.msra.mxu0 0.0
        %5539 = vmatprep.subr.mxu0 0.0
        %5540 = vmatpush1.msra.mxu0 0.0
        %5541 = vmatprep.subr.mxu0 0.0
        %5542 = vmatpush1.msra.mxu0 0.0
        %5543 = vmatprep.subr.mxu0 0.0
        %5544 = vmatpush1.msra.mxu0 0.0
        %5545 = vmatprep.subr.mxu0 0.0
        %5546 = vmatpush1.msra.mxu0 0.0
        %5547 = vmatprep.subr.mxu0 0.0
        %5548 = vmatpush1.msra.mxu0 0.0
        %5549 = vmatprep.subr.mxu0 0.0
        %5550 = vmatpush1.msra.mxu0 0.0
        %5551 = vmatprep.subr.mxu0 0.0
        %5552 = vmatpush1.msra.mxu0 0.0
        %5553 = vmatprep.subr.mxu0 0.0
        %5554 = vmatpush1.msra.mxu0 0.0
        %5555 = vmatprep.subr.mxu0 0.0
        %5556 = vmatpush1.msra.mxu0 0.0
        %5557 = vmatprep.subr.mxu0 0.0
        %5558 = vmatpush1.msra.mxu0 0.0
        %5559 = vmatprep.subr.mxu0 0.0
        %5560 = vmatpush1.msra.mxu0 0.0
        %5561 = vmatprep.mubr.f32.mxu0 0.0
        %v5562 = vand.u32 %v5253, 4294901760
        %5563 = vmatmul.mubr.f32.gmra.mrb[0].mxu0 %v5562
        %v5564 = vpop.f32.mrb[0].mxu0
        %v5565 = vadd.f32 %v5364, %v5564
        %v5566 = vpop.f32.mrb[0].mxu0
        %5567 = vmatprep.mubr.f32.mxu0 0.0
        %v5568 = vand.u32 %v5256, 4294901760
        %5569 = vmatmul.mubr.f32.gmra.mrb[0].mxu0 %v5568
        %v5570 = vpop.f32.mrb[0].mxu0
        %v5571 = vadd.f32 %v5374, %v5570
        %v5572 = vpop.f32.mrb[0].mxu0
        %5573 = vmatprep.mubr.f32.mxu0 0.0
        %v5574 = vand.u32 %v5259, 4294901760
        %5575 = vmatmul.mubr.f32.gmra.mrb[0].mxu0 %v5574
        %v5576 = vpop.f32.mrb[0].mxu0
        %v5577 = vadd.f32 %v5384, %v5576
        %v5578 = vpop.f32.mrb[0].mxu0
        %5579 = vmatprep.mubr.f32.mxu0 0.0
        %v5580 = vand.u32 %v5262, 4294901760
        %5581 = vmatmul.mubr.f32.gmra.mrb[0].mxu0 %v5580
        %v5582 = vpop.f32.mrb[0].mxu0
        %v5583 = vadd.f32 %v5394, %v5582
        %v5584 = vpop.f32.mrb[0].mxu0
        %5585 = vmatprep.mubr.f32.mxu0 0.0
        %v5586 = vand.u32 %v5265, 4294901760
        %5587 = vmatmul.mubr.f32.gmra.mrb[0].mxu0 %v5586
        %v5588 = vpop.f32.mrb[0].mxu0
        %v5589 = vadd.f32 %v5404, %v5588
        %v5590 = vpop.f32.mrb[0].mxu0
        %5591 = vmatprep.mubr.f32.mxu0 0.0
        %v5592 = vand.u32 %v5268, 4294901760
        %5593 = vmatmul.mubr.f32.gmra.mrb[0].mxu0 %v5592
        %v5594 = vpop.f32.mrb[0].mxu0
        %v5595 = vadd.f32 %v5414, %v5594
        %v5596 = vpop.f32.mrb[0].mxu0
        %5597 = vmatprep.mubr.f32.mxu0 0.0
        %v5598 = vand.u32 %v5271, 4294901760
        %5599 = vmatmul.mubr.f32.gmra.mrb[0].mxu0 %v5598
        %v5600 = vpop.f32.mrb[0].mxu0
        %v5601 = vadd.f32 %v5424, %v5600
        %v5602 = vpop.f32.mrb[0].mxu0
        %5603 = vmatprep.mubr.f32.mxu0 0.0
        %v5604 = vand.u32 %v5274, 4294901760
        %5605 = vmatmul.mubr.f32.gmra.mrb[0].mxu0 %v5604
        %v5606 = vpop.f32.mrb[0].mxu0
        %v5607 = vadd.f32 %v5434, %v5606
        %v5608 = vpop.f32.mrb[0].mxu0
        %5609 = vmatprep.mubr.f32.mxu0 0.0
        %v5610 = vand.u32 %v5277, 4294901760
        %5611 = vmatmul.mubr.f32.gmra.mrb[0].mxu0 %v5610
        %v5612 = vpop.f32.mrb[0].mxu0
        %v5613 = vadd.f32 %v5444, %v5612
        %v5614 = vpop.f32.mrb[0].mxu0
        %5615 = vmatprep.mubr.f32.mxu0 0.0
        %v5616 = vand.u32 %v5280, 4294901760
        %5617 = vmatmul.mubr.f32.gmra.mrb[0].mxu0 %v5616
        %v5618 = vpop.f32.mrb[0].mxu0
        %v5619 = vadd.f32 %v5454, %v5618
        %v5620 = vpop.f32.mrb[0].mxu0
        %5621 = vmatprep.mubr.f32.mxu0 0.0
        %v5622 = vand.u32 %v5283, 4294901760
        %5623 = vmatmul.mubr.f32.gmra.mrb[0].mxu0 %v5622
        %v5624 = vpop.f32.mrb[0].mxu0
        %v5625 = vadd.f32 %v5464, %v5624
        %v5626 = vpop.f32.mrb[0].mxu0
        %5627 = vmatprep.mubr.f32.mxu0 0.0
        %v5628 = vand.u32 %v5286, 4294901760
        %5629 = vmatmul.mubr.f32.gmra.mrb[0].mxu0 %v5628
        %v5630 = vpop.f32.mrb[0].mxu0
        %v5631 = vadd.f32 %v5474, %v5630
        %v5632 = vpop.f32.mrb[0].mxu0
        %5633 = vdwg.mxu0
        %5634 = vmatprep.subr.mxu0 0.0
        %v5635 = vand.u32 %v5236, 4294901760
        %v5636 = vsub.f32 %v5236, %v5635
        %5637 = vmatpush1.msra.mxu0 %v5636
        %5638 = vmatprep.subr.mxu0 0.0
        %v5639 = vand.u32 %v5237, 4294901760
        %v5640 = vsub.f32 %v5237, %v5639
        %5641 = vmatpush1.msra.mxu0 %v5640
        %5642 = vmatprep.subr.mxu0 0.0
        %v5643 = vand.u32 %v5238, 4294901760
        %v5644 = vsub.f32 %v5238, %v5643
        %5645 = vmatpush1.msra.mxu0 %v5644
        %5646 = vmatprep.subr.mxu0 0.0
        %v5647 = vand.u32 %v5239, 4294901760
        %v5648 = vsub.f32 %v5239, %v5647
        %5649 = vmatpush1.msra.mxu0 %v5648
        %5650 = vmatprep.subr.mxu0 0.0
        %5651 = vmatpush1.msra.mxu0 0.0
        %5652 = vmatprep.subr.mxu0 0.0
        %5653 = vmatpush1.msra.mxu0 0.0
        %5654 = vmatprep.subr.mxu0 0.0
        %5655 = vmatpush1.msra.mxu0 0.0
        %5656 = vmatprep.subr.mxu0 0.0
        %5657 = vmatpush1.msra.mxu0 0.0
        %5658 = vmatprep.subr.mxu0 0.0
        %5659 = vmatpush1.msra.mxu0 0.0
        %5660 = vmatprep.subr.mxu0 0.0
        %5661 = vmatpush1.msra.mxu0 0.0
        %5662 = vmatprep.subr.mxu0 0.0
        %5663 = vmatpush1.msra.mxu0 0.0
        %5664 = vmatprep.subr.mxu0 0.0
        %5665 = vmatpush1.msra.mxu0 0.0
        %5666 = vmatprep.subr.mxu0 0.0
        %5667 = vmatpush1.msra.mxu0 0.0
        %5668 = vmatprep.subr.mxu0 0.0
        %5669 = vmatpush1.msra.mxu0 0.0
        %5670 = vmatprep.subr.mxu0 0.0
        %5671 = vmatpush1.msra.mxu0 0.0
        %5672 = vmatprep.subr.mxu0 0.0
        %5673 = vmatpush1.msra.mxu0 0.0
        %5674 = vmatprep.subr.mxu0 0.0
        %5675 = vmatpush1.msra.mxu0 0.0
        %5676 = vmatprep.subr.mxu0 0.0
        %5677 = vmatpush1.msra.mxu0 0.0
        %5678 = vmatprep.subr.mxu0 0.0
        %5679 = vmatpush1.msra.mxu0 0.0
        %5680 = vmatprep.subr.mxu0 0.0
        %5681 = vmatpush1.msra.mxu0 0.0
        %5682 = vmatprep.subr.mxu0 0.0
        %5683 = vmatpush1.msra.mxu0 0.0
        %5684 = vmatprep.subr.mxu0 0.0
        %5685 = vmatpush1.msra.mxu0 0.0
        %5686 = vmatprep.subr.mxu0 0.0
        %5687 = vmatpush1.msra.mxu0 0.0
        %5688 = vmatprep.subr.mxu0 0.0
        %5689 = vmatpush1.msra.mxu0 0.0
        %5690 = vmatprep.subr.mxu0 0.0
        %5691 = vmatpush1.msra.mxu0 0.0
        %5692 = vmatprep.subr.mxu0 0.0
        %5693 = vmatpush1.msra.mxu0 0.0
        %5694 = vmatprep.subr.mxu0 0.0
        %5695 = vmatpush1.msra.mxu0 0.0
        %5696 = vmatprep.subr.mxu0 0.0
        %5697 = vmatpush1.msra.mxu0 0.0
        %5698 = vmatprep.subr.mxu0 0.0
        %5699 = vmatpush1.msra.mxu0 0.0
        %5700 = vmatprep.subr.mxu0 0.0
        %5701 = vmatpush1.msra.mxu0 0.0
        %5702 = vmatprep.subr.mxu0 0.0
        %5703 = vmatpush1.msra.mxu0 0.0
        %5704 = vmatprep.subr.mxu0 0.0
        %5705 = vmatpush1.msra.mxu0 0.0
        %5706 = vmatprep.mubr.f32.mxu0 0.0
        %v5707 = vand.u32 %v5253, 4294901760
        %v5708 = vsub.f32 %v5253, %v5707
        %5709 = vmatmul.mubr.f32.gmra.mrb[0].mxu0 %v5708
        %v5710 = vpop.f32.mrb[0].mxu0
        %v5711 = vadd.f32 %v5565, %v5710
        %v5712 = vpop.f32.mrb[0].mxu0
        %5713 = vmatprep.mubr.f32.mxu0 0.0
        %v5714 = vand.u32 %v5256, 4294901760
        %v5715 = vsub.f32 %v5256, %v5714
        %5716 = vmatmul.mubr.f32.gmra.mrb[0].mxu0 %v5715
        %v5717 = vpop.f32.mrb[0].mxu0
        %v5718 = vadd.f32 %v5571, %v5717
        %v5719 = vpop.f32.mrb[0].mxu0
        %5720 = vmatprep.mubr.f32.mxu0 0.0
        %v5721 = vand.u32 %v5259, 4294901760
        %v5722 = vsub.f32 %v5259, %v5721
        %5723 = vmatmul.mubr.f32.gmra.mrb[0].mxu0 %v5722
        %v5724 = vpop.f32.mrb[0].mxu0
        %v5725 = vadd.f32 %v5577, %v5724
        %v5726 = vpop.f32.mrb[0].mxu0
        %5727 = vmatprep.mubr.f32.mxu0 0.0
        %v5728 = vand.u32 %v5262, 4294901760
        %v5729 = vsub.f32 %v5262, %v5728
        %5730 = vmatmul.mubr.f32.gmra.mrb[0].mxu0 %v5729
        %v5731 = vpop.f32.mrb[0].mxu0
        %v5732 = vadd.f32 %v5583, %v5731
        %v5733 = vpop.f32.mrb[0].mxu0
        %5734 = vmatprep.mubr.f32.mxu0 0.0
        %v5735 = vand.u32 %v5265, 4294901760
        %v5736 = vsub.f32 %v5265, %v5735
        %5737 = vmatmul.mubr.f32.gmra.mrb[0].mxu0 %v5736
        %v5738 = vpop.f32.mrb[0].mxu0
        %v5739 = vadd.f32 %v5589, %v5738
        %v5740 = vpop.f32.mrb[0].mxu0
        %5741 = vmatprep.mubr.f32.mxu0 0.0
        %v5742 = vand.u32 %v5268, 4294901760
        %v5743 = vsub.f32 %v5268, %v5742
        %5744 = vmatmul.mubr.f32.gmra.mrb[0].mxu0 %v5743
        %v5745 = vpop.f32.mrb[0].mxu0
        %v5746 = vadd.f32 %v5595, %v5745
        %v5747 = vpop.f32.mrb[0].mxu0
        %5748 = vmatprep.mubr.f32.mxu0 0.0
        %v5749 = vand.u32 %v5271, 4294901760
        %v5750 = vsub.f32 %v5271, %v5749
        %5751 = vmatmul.mubr.f32.gmra.mrb[0].mxu0 %v5750
        %v5752 = vpop.f32.mrb[0].mxu0
        %v5753 = vadd.f32 %v5601, %v5752
        %v5754 = vpop.f32.mrb[0].mxu0
        %5755 = vmatprep.mubr.f32.mxu0 0.0
        %v5756 = vand.u32 %v5274, 4294901760
        %v5757 = vsub.f32 %v5274, %v5756
        %5758 = vmatmul.mubr.f32.gmra.mrb[0].mxu0 %v5757
        %v5759 = vpop.f32.mrb[0].mxu0
        %v5760 = vadd.f32 %v5607, %v5759
        %v5761 = vpop.f32.mrb[0].mxu0
        %5762 = vmatprep.mubr.f32.mxu0 0.0
        %v5763 = vand.u32 %v5277, 4294901760
        %v5764 = vsub.f32 %v5277, %v5763
        %5765 = vmatmul.mubr.f32.gmra.mrb[0].mxu0 %v5764
        %v5766 = vpop.f32.mrb[0].mxu0
        %v5767 = vadd.f32 %v5613, %v5766
        %v5768 = vpop.f32.mrb[0].mxu0
        %5769 = vmatprep.mubr.f32.mxu0 0.0
        %v5770 = vand.u32 %v5280, 4294901760
        %v5771 = vsub.f32 %v5280, %v5770
        %5772 = vmatmul.mubr.f32.gmra.mrb[0].mxu0 %v5771
        %v5773 = vpop.f32.mrb[0].mxu0
        %v5774 = vadd.f32 %v5619, %v5773
        %v5775 = vpop.f32.mrb[0].mxu0
        %5776 = vmatprep.mubr.f32.mxu0 0.0
        %v5777 = vand.u32 %v5283, 4294901760
        %v5778 = vsub.f32 %v5283, %v5777
        %5779 = vmatmul.mubr.f32.gmra.mrb[0].mxu0 %v5778
        %v5780 = vpop.f32.mrb[0].mxu0
        %v5781 = vadd.f32 %v5625, %v5780
        %v5782 = vpop.f32.mrb[0].mxu0
        %5783 = vmatprep.mubr.f32.mxu0 0.0
        %v5784 = vand.u32 %v5286, 4294901760
        %v5785 = vsub.f32 %v5286, %v5784
        %5786 = vmatmul.mubr.f32.gmra.mrb[0].mxu0 %v5785
        %v5787 = vpop.f32.mrb[0].mxu0
        %v5788 = vadd.f32 %v5631, %v5787
        %v5789 = vpop.f32.mrb[0].mxu0
        %5790 = vdwg.mxu0
        %5791 = vmatprep.subr.mxu0 0.0
        %v5792 = vand.u32 %v5236, 4294901760
        %5793 = vmatpush1.msra.mxu0 %v5792
        %5794 = vmatprep.subr.mxu0 0.0
        %v5795 = vand.u32 %v5237, 4294901760
        %5796 = vmatpush1.msra.mxu0 %v5795
        %5797 = vmatprep.subr.mxu0 0.0
        %v5798 = vand.u32 %v5238, 4294901760
        %5799 = vmatpush1.msra.mxu0 %v5798
        %5800 = vmatprep.subr.mxu0 0.0
        %v5801 = vand.u32 %v5239, 4294901760
        %5802 = vmatpush1.msra.mxu0 %v5801
        %5803 = vmatprep.subr.mxu0 0.0
        %5804 = vmatpush1.msra.mxu0 0.0
        %5805 = vmatprep.subr.mxu0 0.0
        %5806 = vmatpush1.msra.mxu0 0.0
        %5807 = vmatprep.subr.mxu0 0.0
        %5808 = vmatpush1.msra.mxu0 0.0
        %5809 = vmatprep.subr.mxu0 0.0
        %5810 = vmatpush1.msra.mxu0 0.0
        %5811 = vmatprep.subr.mxu0 0.0
        %5812 = vmatpush1.msra.mxu0 0.0
        %5813 = vmatprep.subr.mxu0 0.0
        %5814 = vmatpush1.msra.mxu0 0.0
        %5815 = vmatprep.subr.mxu0 0.0
        %5816 = vmatpush1.msra.mxu0 0.0
        %5817 = vmatprep.subr.mxu0 0.0
        %5818 = vmatpush1.msra.mxu0 0.0
        %5819 = vmatprep.subr.mxu0 0.0
        %5820 = vmatpush1.msra.mxu0 0.0
        %5821 = vmatprep.subr.mxu0 0.0
        %5822 = vmatpush1.msra.mxu0 0.0
        %5823 = vmatprep.subr.mxu0 0.0
        %5824 = vmatpush1.msra.mxu0 0.0
        %5825 = vmatprep.subr.mxu0 0.0
        %5826 = vmatpush1.msra.mxu0 0.0
        %5827 = vmatprep.subr.mxu0 0.0
        %5828 = vmatpush1.msra.mxu0 0.0
        %5829 = vmatprep.subr.mxu0 0.0
        %5830 = vmatpush1.msra.mxu0 0.0
        %5831 = vmatprep.subr.mxu0 0.0
        %5832 = vmatpush1.msra.mxu0 0.0
        %5833 = vmatprep.subr.mxu0 0.0
        %5834 = vmatpush1.msra.mxu0 0.0
        %5835 = vmatprep.subr.mxu0 0.0
        %5836 = vmatpush1.msra.mxu0 0.0
        %5837 = vmatprep.subr.mxu0 0.0
        %5838 = vmatpush1.msra.mxu0 0.0
        %5839 = vmatprep.subr.mxu0 0.0
        %5840 = vmatpush1.msra.mxu0 0.0
        %5841 = vmatprep.subr.mxu0 0.0
        %5842 = vmatpush1.msra.mxu0 0.0
        %5843 = vmatprep.subr.mxu0 0.0
        %5844 = vmatpush1.msra.mxu0 0.0
        %5845 = vmatprep.subr.mxu0 0.0
        %5846 = vmatpush1.msra.mxu0 0.0
        %5847 = vmatprep.subr.mxu0 0.0
        %5848 = vmatpush1.msra.mxu0 0.0
        %5849 = vmatprep.subr.mxu0 0.0
        %5850 = vmatpush1.msra.mxu0 0.0
        %5851 = vmatprep.subr.mxu0 0.0
        %5852 = vmatpush1.msra.mxu0 0.0
        %5853 = vmatprep.subr.mxu0 0.0
        %5854 = vmatpush1.msra.mxu0 0.0
        %5855 = vmatprep.subr.mxu0 0.0
        %5856 = vmatpush1.msra.mxu0 0.0
        %5857 = vmatprep.subr.mxu0 0.0
        %5858 = vmatpush1.msra.mxu0 0.0
        %5859 = vmatprep.mubr.f32.mxu0 0.0
        %v5860 = vand.u32 %v5253, 4294901760
        %v5861 = vsub.f32 %v5253, %v5860
        %v5862 = vand.u32 %v5861, 4294901760
        %5863 = vmatmul.mubr.f32.gmra.mrb[0].mxu0 %v5862
        %v5864 = vpop.f32.mrb[0].mxu0
        %v5865 = vadd.f32 %v5711, %v5864
        %v5866 = vpop.f32.mrb[0].mxu0
        %5867 = vmatprep.mubr.f32.mxu0 0.0
        %v5868 = vand.u32 %v5256, 4294901760
        %v5869 = vsub.f32 %v5256, %v5868
        %v5870 = vand.u32 %v5869, 4294901760
        %5871 = vmatmul.mubr.f32.gmra.mrb[0].mxu0 %v5870
        %v5872 = vpop.f32.mrb[0].mxu0
        %v5873 = vadd.f32 %v5718, %v5872
        %v5874 = vpop.f32.mrb[0].mxu0
        %5875 = vmatprep.mubr.f32.mxu0 0.0
        %v5876 = vand.u32 %v5259, 4294901760
        %v5877 = vsub.f32 %v5259, %v5876
        %v5878 = vand.u32 %v5877, 4294901760
        %5879 = vmatmul.mubr.f32.gmra.mrb[0].mxu0 %v5878
        %v5880 = vpop.f32.mrb[0].mxu0
        %v5881 = vadd.f32 %v5725, %v5880
        %v5882 = vpop.f32.mrb[0].mxu0
        %5883 = vmatprep.mubr.f32.mxu0 0.0
        %v5884 = vand.u32 %v5262, 4294901760
        %v5885 = vsub.f32 %v5262, %v5884
        %v5886 = vand.u32 %v5885, 4294901760
        %5887 = vmatmul.mubr.f32.gmra.mrb[0].mxu0 %v5886
        %v5888 = vpop.f32.mrb[0].mxu0
        %v5889 = vadd.f32 %v5732, %v5888
        %v5890 = vpop.f32.mrb[0].mxu0
        %5891 = vmatprep.mubr.f32.mxu0 0.0
        %v5892 = vand.u32 %v5265, 4294901760
        %v5893 = vsub.f32 %v5265, %v5892
        %v5894 = vand.u32 %v5893, 4294901760
        %5895 = vmatmul.mubr.f32.gmra.mrb[0].mxu0 %v5894
        %v5896 = vpop.f32.mrb[0].mxu0
        %v5897 = vadd.f32 %v5739, %v5896
        %v5898 = vpop.f32.mrb[0].mxu0
        %5899 = vmatprep.mubr.f32.mxu0 0.0
        %v5900 = vand.u32 %v5268, 4294901760
        %v5901 = vsub.f32 %v5268, %v5900
        %v5902 = vand.u32 %v5901, 4294901760
        %5903 = vmatmul.mubr.f32.gmra.mrb[0].mxu0 %v5902
        %v5904 = vpop.f32.mrb[0].mxu0
        %v5905 = vadd.f32 %v5746, %v5904
        %v5906 = vpop.f32.mrb[0].mxu0
        %5907 = vmatprep.mubr.f32.mxu0 0.0
        %v5908 = vand.u32 %v5271, 4294901760
        %v5909 = vsub.f32 %v5271, %v5908
        %v5910 = vand.u32 %v5909, 4294901760
        %5911 = vmatmul.mubr.f32.gmra.mrb[0].mxu0 %v5910
        %v5912 = vpop.f32.mrb[0].mxu0
        %v5913 = vadd.f32 %v5753, %v5912
        %v5914 = vpop.f32.mrb[0].mxu0
        %5915 = vmatprep.mubr.f32.mxu0 0.0
        %v5916 = vand.u32 %v5274, 4294901760
        %v5917 = vsub.f32 %v5274, %v5916
        %v5918 = vand.u32 %v5917, 4294901760
        %5919 = vmatmul.mubr.f32.gmra.mrb[0].mxu0 %v5918
        %v5920 = vpop.f32.mrb[0].mxu0
        %v5921 = vadd.f32 %v5760, %v5920
        %v5922 = vpop.f32.mrb[0].mxu0
        %5923 = vmatprep.mubr.f32.mxu0 0.0
        %v5924 = vand.u32 %v5277, 4294901760
        %v5925 = vsub.f32 %v5277, %v5924
        %v5926 = vand.u32 %v5925, 4294901760
        %5927 = vmatmul.mubr.f32.gmra.mrb[0].mxu0 %v5926
        %v5928 = vpop.f32.mrb[0].mxu0
        %v5929 = vadd.f32 %v5767, %v5928
        %v5930 = vpop.f32.mrb[0].mxu0
        %5931 = vmatprep.mubr.f32.mxu0 0.0
        %v5932 = vand.u32 %v5280, 4294901760
        %v5933 = vsub.f32 %v5280, %v5932
        %v5934 = vand.u32 %v5933, 4294901760
        %5935 = vmatmul.mubr.f32.gmra.mrb[0].mxu0 %v5934
        %v5936 = vpop.f32.mrb[0].mxu0
        %v5937 = vadd.f32 %v5774, %v5936
        %v5938 = vpop.f32.mrb[0].mxu0
        %5939 = vmatprep.mubr.f32.mxu0 0.0
        %v5940 = vand.u32 %v5283, 4294901760
        %v5941 = vsub.f32 %v5283, %v5940
        %v5942 = vand.u32 %v5941, 4294901760
        %5943 = vmatmul.mubr.f32.gmra.mrb[0].mxu0 %v5942
        %v5944 = vpop.f32.mrb[0].mxu0
        %v5945 = vadd.f32 %v5781, %v5944
        %v5946 = vpop.f32.mrb[0].mxu0
        %5947 = vmatprep.mubr.f32.mxu0 0.0
        %v5948 = vand.u32 %v5286, 4294901760
        %v5949 = vsub.f32 %v5286, %v5948
        %v5950 = vand.u32 %v5949, 4294901760
        %5951 = vmatmul.mubr.f32.gmra.mrb[0].mxu0 %v5950
        %v5952 = vpop.f32.mrb[0].mxu0
        %v5953 = vadd.f32 %v5788, %v5952
        %v5954 = vpop.f32.mrb[0].mxu0
        %5955 = vdwg.mxu0
        %5956 = vmatprep.subr.mxu0 0.0
        %v5957 = vand.u32 %v5236, 4294901760
        %v5958 = vsub.f32 %v5236, %v5957
        %v5959 = vand.u32 %v5958, 4294901760
        %5960 = vmatpush1.msra.mxu0 %v5959
        %5961 = vmatprep.subr.mxu0 0.0
        %v5962 = vand.u32 %v5237, 4294901760
        %v5963 = vsub.f32 %v5237, %v5962
        %v5964 = vand.u32 %v5963, 4294901760
        %5965 = vmatpush1.msra.mxu0 %v5964
        %5966 = vmatprep.subr.mxu0 0.0
        %v5967 = vand.u32 %v5238, 4294901760
        %v5968 = vsub.f32 %v5238, %v5967
        %v5969 = vand.u32 %v5968, 4294901760
        %5970 = vmatpush1.msra.mxu0 %v5969
        %5971 = vmatprep.subr.mxu0 0.0
        %v5972 = vand.u32 %v5239, 4294901760
        %v5973 = vsub.f32 %v5239, %v5972
        %v5974 = vand.u32 %v5973, 4294901760
        %5975 = vmatpush1.msra.mxu0 %v5974
        %5976 = vmatprep.subr.mxu0 0.0
        %5977 = vmatpush1.msra.mxu0 0.0
        %5978 = vmatprep.subr.mxu0 0.0
        %5979 = vmatpush1.msra.mxu0 0.0
        %5980 = vmatprep.subr.mxu0 0.0
        %5981 = vmatpush1.msra.mxu0 0.0
        %5982 = vmatprep.subr.mxu0 0.0
        %5983 = vmatpush1.msra.mxu0 0.0
        %5984 = vmatprep.subr.mxu0 0.0
        %5985 = vmatpush1.msra.mxu0 0.0
        %5986 = vmatprep.subr.mxu0 0.0
        %5987 = vmatpush1.msra.mxu0 0.0
        %5988 = vmatprep.subr.mxu0 0.0
        %5989 = vmatpush1.msra.mxu0 0.0
        %5990 = vmatprep.subr.mxu0 0.0
        %5991 = vmatpush1.msra.mxu0 0.0
        %5992 = vmatprep.subr.mxu0 0.0
        %5993 = vmatpush1.msra.mxu0 0.0
        %5994 = vmatprep.subr.mxu0 0.0
        %5995 = vmatpush1.msra.mxu0 0.0
        %5996 = vmatprep.subr.mxu0 0.0
        %5997 = vmatpush1.msra.mxu0 0.0
        %5998 = vmatprep.subr.mxu0 0.0
        %5999 = vmatpush1.msra.mxu0 0.0
        %6000 = vmatprep.subr.mxu0 0.0
        %6001 = vmatpush1.msra.mxu0 0.0
        %6002 = vmatprep.subr.mxu0 0.0
        %6003 = vmatpush1.msra.mxu0 0.0
        %6004 = vmatprep.subr.mxu0 0.0
        %6005 = vmatpush1.msra.mxu0 0.0
        %6006 = vmatprep.subr.mxu0 0.0
        %6007 = vmatpush1.msra.mxu0 0.0
        %6008 = vmatprep.subr.mxu0 0.0
        %6009 = vmatpush1.msra.mxu0 0.0
        %6010 = vmatprep.subr.mxu0 0.0
        %6011 = vmatpush1.msra.mxu0 0.0
        %6012 = vmatprep.subr.mxu0 0.0
        %6013 = vmatpush1.msra.mxu0 0.0
        %6014 = vmatprep.subr.mxu0 0.0
        %6015 = vmatpush1.msra.mxu0 0.0
        %6016 = vmatprep.subr.mxu0 0.0
        %6017 = vmatpush1.msra.mxu0 0.0
        %6018 = vmatprep.subr.mxu0 0.0
        %6019 = vmatpush1.msra.mxu0 0.0
        %6020 = vmatprep.subr.mxu0 0.0
        %6021 = vmatpush1.msra.mxu0 0.0
        %6022 = vmatprep.subr.mxu0 0.0
        %6023 = vmatpush1.msra.mxu0 0.0
        %6024 = vmatprep.subr.mxu0 0.0
        %6025 = vmatpush1.msra.mxu0 0.0
        %6026 = vmatprep.subr.mxu0 0.0
        %6027 = vmatpush1.msra.mxu0 0.0
        %6028 = vmatprep.subr.mxu0 0.0
        %6029 = vmatpush1.msra.mxu0 0.0
        %6030 = vmatprep.subr.mxu0 0.0
        %6031 = vmatpush1.msra.mxu0 0.0
        %6032 = vmatprep.mubr.f32.mxu0 0.0
        %v6033 = vand.u32 %v5253, 4294901760
        %6034 = vmatmul.mubr.f32.gmra.mrb[0].mxu0 %v6033
        %v6035 = vpop.f32.mrb[0].mxu0
        %v6036 = vadd.f32 %v5865, %v6035
        %v6037 = vpop.f32.mrb[0].mxu0
        %6038 = vmatprep.mubr.f32.mxu0 0.0
        %v6039 = vand.u32 %v5256, 4294901760
        %6040 = vmatmul.mubr.f32.gmra.mrb[0].mxu0 %v6039
        %v6041 = vpop.f32.mrb[0].mxu0
        %v6042 = vadd.f32 %v5873, %v6041
        %v6043 = vpop.f32.mrb[0].mxu0
        %6044 = vmatprep.mubr.f32.mxu0 0.0
        %v6045 = vand.u32 %v5259, 4294901760
        %6046 = vmatmul.mubr.f32.gmra.mrb[0].mxu0 %v6045
        %v6047 = vpop.f32.mrb[0].mxu0
        %v6048 = vadd.f32 %v5881, %v6047
        %v6049 = vpop.f32.mrb[0].mxu0
        %6050 = vmatprep.mubr.f32.mxu0 0.0
        %v6051 = vand.u32 %v5262, 4294901760
        %6052 = vmatmul.mubr.f32.gmra.mrb[0].mxu0 %v6051
        %v6053 = vpop.f32.mrb[0].mxu0
        %v6054 = vadd.f32 %v5889, %v6053
        %v6055 = vpop.f32.mrb[0].mxu0
        %6056 = vmatprep.mubr.f32.mxu0 0.0
        %v6057 = vand.u32 %v5265, 4294901760
        %6058 = vmatmul.mubr.f32.gmra.mrb[0].mxu0 %v6057
        %v6059 = vpop.f32.mrb[0].mxu0
        %v6060 = vadd.f32 %v5897, %v6059
        %v6061 = vpop.f32.mrb[0].mxu0
        %6062 = vmatprep.mubr.f32.mxu0 0.0
        %v6063 = vand.u32 %v5268, 4294901760
        %6064 = vmatmul.mubr.f32.gmra.mrb[0].mxu0 %v6063
        %v6065 = vpop.f32.mrb[0].mxu0
        %v6066 = vadd.f32 %v5905, %v6065
        %v6067 = vpop.f32.mrb[0].mxu0
        %6068 = vmatprep.mubr.f32.mxu0 0.0
        %v6069 = vand.u32 %v5271, 4294901760
        %6070 = vmatmul.mubr.f32.gmra.mrb[0].mxu0 %v6069
        %v6071 = vpop.f32.mrb[0].mxu0
        %v6072 = vadd.f32 %v5913, %v6071
        %v6073 = vpop.f32.mrb[0].mxu0
        %6074 = vmatprep.mubr.f32.mxu0 0.0
        %v6075 = vand.u32 %v5274, 4294901760
        %6076 = vmatmul.mubr.f32.gmra.mrb[0].mxu0 %v6075
        %v6077 = vpop.f32.mrb[0].mxu0
        %v6078 = vadd.f32 %v5921, %v6077
        %v6079 = vpop.f32.mrb[0].mxu0
        %6080 = vmatprep.mubr.f32.mxu0 0.0
        %v6081 = vand.u32 %v5277, 4294901760
        %6082 = vmatmul.mubr.f32.gmra.mrb[0].mxu0 %v6081
        %v6083 = vpop.f32.mrb[0].mxu0
        %v6084 = vadd.f32 %v5929, %v6083
        %v6085 = vpop.f32.mrb[0].mxu0
        %6086 = vmatprep.mubr.f32.mxu0 0.0
        %v6087 = vand.u32 %v5280, 4294901760
        %6088 = vmatmul.mubr.f32.gmra.mrb[0].mxu0 %v6087
        %v6089 = vpop.f32.mrb[0].mxu0
        %v6090 = vadd.f32 %v5937, %v6089
        %v6091 = vpop.f32.mrb[0].mxu0
        %6092 = vmatprep.mubr.f32.mxu0 0.0
        %v6093 = vand.u32 %v5283, 4294901760
        %6094 = vmatmul.mubr.f32.gmra.mrb[0].mxu0 %v6093
        %v6095 = vpop.f32.mrb[0].mxu0
        %v6096 = vadd.f32 %v5945, %v6095
        %v6097 = vpop.f32.mrb[0].mxu0
        %6098 = vmatprep.mubr.f32.mxu0 0.0
        %v6099 = vand.u32 %v5286, 4294901760
        %6100 = vmatmul.mubr.f32.gmra.mrb[0].mxu0 %v6099
        %v6101 = vpop.f32.mrb[0].mxu0
        %v6102 = vadd.f32 %v5953, %v6101
        %v6103 = vpop.f32.mrb[0].mxu0
        %6104 = vdwg.mxu0
        %6105 = vmatprep.subr.mxu0 0.0
        %v6106 = vand.u32 %v5236, 4294901760
        %6107 = vmatpush1.msra.mxu0 %v6106
        %6108 = vmatprep.subr.mxu0 0.0
        %v6109 = vand.u32 %v5237, 4294901760
        %6110 = vmatpush1.msra.mxu0 %v6109
        %6111 = vmatprep.subr.mxu0 0.0
        %v6112 = vand.u32 %v5238, 4294901760
        %6113 = vmatpush1.msra.mxu0 %v6112
        %6114 = vmatprep.subr.mxu0 0.0
        %v6115 = vand.u32 %v5239, 4294901760
        %6116 = vmatpush1.msra.mxu0 %v6115
        %6117 = vmatprep.subr.mxu0 0.0
        %6118 = vmatpush1.msra.mxu0 0.0
        %6119 = vmatprep.subr.mxu0 0.0
        %6120 = vmatpush1.msra.mxu0 0.0
        %6121 = vmatprep.subr.mxu0 0.0
        %6122 = vmatpush1.msra.mxu0 0.0
        %6123 = vmatprep.subr.mxu0 0.0
        %6124 = vmatpush1.msra.mxu0 0.0
        %6125 = vmatprep.subr.mxu0 0.0
        %6126 = vmatpush1.msra.mxu0 0.0
        %6127 = vmatprep.subr.mxu0 0.0
        %6128 = vmatpush1.msra.mxu0 0.0
        %6129 = vmatprep.subr.mxu0 0.0
        %6130 = vmatpush1.msra.mxu0 0.0
        %6131 = vmatprep.subr.mxu0 0.0
        %6132 = vmatpush1.msra.mxu0 0.0
        %6133 = vmatprep.subr.mxu0 0.0
        %6134 = vmatpush1.msra.mxu0 0.0
        %6135 = vmatprep.subr.mxu0 0.0
        %6136 = vmatpush1.msra.mxu0 0.0
        %6137 = vmatprep.subr.mxu0 0.0
        %6138 = vmatpush1.msra.mxu0 0.0
        %6139 = vmatprep.subr.mxu0 0.0
        %6140 = vmatpush1.msra.mxu0 0.0
        %6141 = vmatprep.subr.mxu0 0.0
        %6142 = vmatpush1.msra.mxu0 0.0
        %6143 = vmatprep.subr.mxu0 0.0
        %6144 = vmatpush1.msra.mxu0 0.0
        %6145 = vmatprep.subr.mxu0 0.0
        %6146 = vmatpush1.msra.mxu0 0.0
        %6147 = vmatprep.subr.mxu0 0.0
        %6148 = vmatpush1.msra.mxu0 0.0
        %6149 = vmatprep.subr.mxu0 0.0
        %6150 = vmatpush1.msra.mxu0 0.0
        %6151 = vmatprep.subr.mxu0 0.0
        %6152 = vmatpush1.msra.mxu0 0.0
        %6153 = vmatprep.subr.mxu0 0.0
        %6154 = vmatpush1.msra.mxu0 0.0
        %6155 = vmatprep.subr.mxu0 0.0
        %6156 = vmatpush1.msra.mxu0 0.0
        %6157 = vmatprep.subr.mxu0 0.0
        %6158 = vmatpush1.msra.mxu0 0.0
        %6159 = vmatprep.subr.mxu0 0.0
        %6160 = vmatpush1.msra.mxu0 0.0
        %6161 = vmatprep.subr.mxu0 0.0
        %6162 = vmatpush1.msra.mxu0 0.0
        %6163 = vmatprep.subr.mxu0 0.0
        %6164 = vmatpush1.msra.mxu0 0.0
        %6165 = vmatprep.subr.mxu0 0.0
        %6166 = vmatpush1.msra.mxu0 0.0
        %6167 = vmatprep.subr.mxu0 0.0
        %6168 = vmatpush1.msra.mxu0 0.0
        %6169 = vmatprep.subr.mxu0 0.0
        %6170 = vmatpush1.msra.mxu0 0.0
        %6171 = vmatprep.subr.mxu0 0.0
        %6172 = vmatpush1.msra.mxu0 0.0
        %6173 = vmatprep.mubr.f32.mxu0 0.0
        %v6174 = vand.u32 %v5253, 4294901760
        %6175 = vmatmul.mubr.f32.gmra.mrb[0].mxu0 %v6174
        %v6176 = vpop.f32.mrb[0].mxu0
        %v6177 = vadd.f32 %v6036, %v6176
        %v6178 = vpop.f32.mrb[0].mxu0
        %6179 = vmatprep.mubr.f32.mxu0 0.0
        %v6180 = vand.u32 %v5256, 4294901760
        %6181 = vmatmul.mubr.f32.gmra.mrb[0].mxu0 %v6180
        %v6182 = vpop.f32.mrb[0].mxu0
        %v6183 = vadd.f32 %v6042, %v6182
        %v6184 = vpop.f32.mrb[0].mxu0
        %6185 = vmatprep.mubr.f32.mxu0 0.0
        %v6186 = vand.u32 %v5259, 4294901760
        %6187 = vmatmul.mubr.f32.gmra.mrb[0].mxu0 %v6186
        %v6188 = vpop.f32.mrb[0].mxu0
        %v6189 = vadd.f32 %v6048, %v6188
        %v6190 = vpop.f32.mrb[0].mxu0
        %6191 = vmatprep.mubr.f32.mxu0 0.0
        %v6192 = vand.u32 %v5262, 4294901760
        %6193 = vmatmul.mubr.f32.gmra.mrb[0].mxu0 %v6192
        %v6194 = vpop.f32.mrb[0].mxu0
        %v6195 = vadd.f32 %v6054, %v6194
        %v6196 = vpop.f32.mrb[0].mxu0
        %6197 = vmatprep.mubr.f32.mxu0 0.0
        %v6198 = vand.u32 %v5265, 4294901760
        %6199 = vmatmul.mubr.f32.gmra.mrb[0].mxu0 %v6198
        %v6200 = vpop.f32.mrb[0].mxu0
        %v6201 = vadd.f32 %v6060, %v6200
        %v6202 = vpop.f32.mrb[0].mxu0
        %6203 = vmatprep.mubr.f32.mxu0 0.0
        %v6204 = vand.u32 %v5268, 4294901760
        %6205 = vmatmul.mubr.f32.gmra.mrb[0].mxu0 %v6204
        %v6206 = vpop.f32.mrb[0].mxu0
        %v6207 = vadd.f32 %v6066, %v6206
        %v6208 = vpop.f32.mrb[0].mxu0
        %6209 = vmatprep.mubr.f32.mxu0 0.0
        %v6210 = vand.u32 %v5271, 4294901760
        %6211 = vmatmul.mubr.f32.gmra.mrb[0].mxu0 %v6210
        %v6212 = vpop.f32.mrb[0].mxu0
        %v6213 = vadd.f32 %v6072, %v6212
        %v6214 = vpop.f32.mrb[0].mxu0
        %6215 = vmatprep.mubr.f32.mxu0 0.0
        %v6216 = vand.u32 %v5274, 4294901760
        %6217 = vmatmul.mubr.f32.gmra.mrb[0].mxu0 %v6216
        %v6218 = vpop.f32.mrb[0].mxu0
        %v6219 = vadd.f32 %v6078, %v6218
        %v6220 = vpop.f32.mrb[0].mxu0
        %6221 = vmatprep.mubr.f32.mxu0 0.0
        %v6222 = vand.u32 %v5277, 4294901760
        %6223 = vmatmul.mubr.f32.gmra.mrb[0].mxu0 %v6222
        %v6224 = vpop.f32.mrb[0].mxu0
        %v6225 = vadd.f32 %v6084, %v6224
        %v6226 = vpop.f32.mrb[0].mxu0
        %6227 = vmatprep.mubr.f32.mxu0 0.0
        %v6228 = vand.u32 %v5280, 4294901760
        %6229 = vmatmul.mubr.f32.gmra.mrb[0].mxu0 %v6228
        %v6230 = vpop.f32.mrb[0].mxu0
        %v6231 = vadd.f32 %v6090, %v6230
        %v6232 = vpop.f32.mrb[0].mxu0
        %6233 = vmatprep.mubr.f32.mxu0 0.0
        %v6234 = vand.u32 %v5283, 4294901760
        %6235 = vmatmul.mubr.f32.gmra.mrb[0].mxu0 %v6234
        %v6236 = vpop.f32.mrb[0].mxu0
        %v6237 = vadd.f32 %v6096, %v6236
        %v6238 = vpop.f32.mrb[0].mxu0
        %6239 = vmatprep.mubr.f32.mxu0 0.0
        %v6240 = vand.u32 %v5286, 4294901760
        %6241 = vmatmul.mubr.f32.gmra.mrb[0].mxu0 %v6240
        %v6242 = vpop.f32.mrb[0].mxu0
        %v6243 = vadd.f32 %v6102, %v6242
        %v6244 = vpop.f32.mrb[0].mxu0
        %6245 = vdwg.mxu0
        %v6246 = vadd.f32 %v3358, %v6177
        %v6247 = vadd.f32 %v3364, %v6183
        %v6248 = vadd.f32 %v3370, %v6189
        %v6249 = vadd.f32 %v3376, %v6195
        %v6250 = vadd.f32 %v3382, %v6201
        %v6251 = vadd.f32 %v3388, %v6207
        %v6252 = vadd.f32 %v3394, %v6213
        %v6253 = vadd.f32 %v3400, %v6219
        %v6254 = vadd.f32 %v3406, %v6225
        %v6255 = vadd.f32 %v3412, %v6231
        %v6256 = vadd.f32 %v3418, %v6237
        %v6257 = vadd.f32 %v3424, %v6243
        %v6258 = vtanh.pop %v6246
        %v6259 = vtanh.pop %v6247
        %v6260 = vtanh.pop %v6248
        %v6261 = vtanh.pop %v6249
        %v6262 = vtanh.pop %v6250
        %v6263 = vtanh.pop %v6251
        %v6264 = vtanh.pop %v6252
        %v6265 = vtanh.pop %v6253
        %v6266 = vtanh.pop %v6254
        %v6267 = vtanh.pop %v6255
        %v6268 = vtanh.pop %v6256
        %v6269 = vtanh.pop %v6257
        %v6270 = vmul.f32 %v5236, %v6266
        %v6271 = vmul.f32 %v5237, %v6267
        %v6272 = vmul.f32 %v5238, %v6268
        %v6273 = vmul.f32 %v5239, %v6269
        %v6274 = vld [vmem:[%s6] sm:$0xff]
        %v6275 = vld [vmem:[%s6 + $0x8] sm:$0xff]
        %v6276 = vld [vmem:[%s6 + $0x10] sm:$0xff]
        %v6277 = vld [vmem:[%s6 + $0x18] sm:$0xff]
        %v6279 = vsel %vm3563, %v6274, 0
        %v6282 = vsel %vm3563, %v6275, 0
        %v6285 = vsel %vm3563, %v6276, 0
        %v6288 = vsel %vm3563, %v6277, 0
        %6290 = vmatprep.subr.mxu0 0.0
        %v6291 = vand.u32 %v6270, 4294901760
        %6292 = vmatpush1.msra.mxu0 %v6291
        %6293 = vmatprep.subr.mxu0 0.0
        %v6294 = vand.u32 %v6271, 4294901760
        %6295 = vmatpush1.msra.mxu0 %v6294
        %6296 = vmatprep.subr.mxu0 0.0
        %v6297 = vand.u32 %v6272, 4294901760
        %6298 = vmatpush1.msra.mxu0 %v6297
        %6299 = vmatprep.subr.mxu0 0.0
        %v6300 = vand.u32 %v6273, 4294901760
        %6301 = vmatpush1.msra.mxu0 %v6300
        %6302 = vmatprep.subr.mxu0 0.0
        %6303 = vmatpush1.msra.mxu0 0.0
        %6304 = vmatprep.subr.mxu0 0.0
        %6305 = vmatpush1.msra.mxu0 0.0
        %6306 = vmatprep.subr.mxu0 0.0
        %6307 = vmatpush1.msra.mxu0 0.0
        %6308 = vmatprep.subr.mxu0 0.0
        %6309 = vmatpush1.msra.mxu0 0.0
        %6310 = vmatprep.subr.mxu0 0.0
        %6311 = vmatpush1.msra.mxu0 0.0
        %6312 = vmatprep.subr.mxu0 0.0
        %6313 = vmatpush1.msra.mxu0 0.0
        %6314 = vmatprep.subr.mxu0 0.0
        %6315 = vmatpush1.msra.mxu0 0.0
        %6316 = vmatprep.subr.mxu0 0.0
        %6317 = vmatpush1.msra.mxu0 0.0
        %6318 = vmatprep.subr.mxu0 0.0
        %6319 = vmatpush1.msra.mxu0 0.0
        %6320 = vmatprep.subr.mxu0 0.0
        %6321 = vmatpush1.msra.mxu0 0.0
        %6322 = vmatprep.subr.mxu0 0.0
        %6323 = vmatpush1.msra.mxu0 0.0
        %6324 = vmatprep.subr.mxu0 0.0
        %6325 = vmatpush1.msra.mxu0 0.0
        %6326 = vmatprep.subr.mxu0 0.0
        %6327 = vmatpush1.msra.mxu0 0.0
        %6328 = vmatprep.subr.mxu0 0.0
        %6329 = vmatpush1.msra.mxu0 0.0
        %6330 = vmatprep.subr.mxu0 0.0
        %6331 = vmatpush1.msra.mxu0 0.0
        %6332 = vmatprep.subr.mxu0 0.0
        %6333 = vmatpush1.msra.mxu0 0.0
        %6334 = vmatprep.subr.mxu0 0.0
        %6335 = vmatpush1.msra.mxu0 0.0
        %6336 = vmatprep.subr.mxu0 0.0
        %6337 = vmatpush1.msra.mxu0 0.0
        %6338 = vmatprep.subr.mxu0 0.0
        %6339 = vmatpush1.msra.mxu0 0.0
        %6340 = vmatprep.subr.mxu0 0.0
        %6341 = vmatpush1.msra.mxu0 0.0
        %6342 = vmatprep.subr.mxu0 0.0
        %6343 = vmatpush1.msra.mxu0 0.0
        %6344 = vmatprep.subr.mxu0 0.0
        %6345 = vmatpush1.msra.mxu0 0.0
        %6346 = vmatprep.subr.mxu0 0.0
        %6347 = vmatpush1.msra.mxu0 0.0
        %6348 = vmatprep.subr.mxu0 0.0
        %6349 = vmatpush1.msra.mxu0 0.0
        %6350 = vmatprep.subr.mxu0 0.0
        %6351 = vmatpush1.msra.mxu0 0.0
        %6352 = vmatprep.subr.mxu0 0.0
        %6353 = vmatpush1.msra.mxu0 0.0
        %6354 = vmatprep.subr.mxu0 0.0
        %6355 = vmatpush1.msra.mxu0 0.0
        %6356 = vmatprep.subr.mxu0 0.0
        %6357 = vmatpush1.msra.mxu0 0.0
        %6358 = vmatprep.mubr.f32.mxu0 0.0
        %v6359 = vand.u32 %v6279, 4294901760
        %v6360 = vsub.f32 %v6279, %v6359
        %v6361 = vand.u32 %v6360, 4294901760
        %v6362 = vsub.f32 %v6360, %v6361
        %v6363 = vand.u32 %v6362, 4294901760
        %6364 = vmatmul.mubr.f32.gmra.mrb[0].mxu0 %v6363
        %v6365 = vpop.f32.mrb[0].mxu0
        %v6366 = vadd.f32 0.0, %v6365
        %v6367 = vpop.f32.mrb[0].mxu0
        %6368 = vmatprep.mubr.f32.mxu0 0.0
        %v6369 = vand.u32 %v6282, 4294901760
        %v6370 = vsub.f32 %v6282, %v6369
        %v6371 = vand.u32 %v6370, 4294901760
        %v6372 = vsub.f32 %v6370, %v6371
        %v6373 = vand.u32 %v6372, 4294901760
        %6374 = vmatmul.mubr.f32.gmra.mrb[0].mxu0 %v6373
        %v6375 = vpop.f32.mrb[0].mxu0
        %v6376 = vadd.f32 0.0, %v6375
        %v6377 = vpop.f32.mrb[0].mxu0
        %6378 = vmatprep.mubr.f32.mxu0 0.0
        %v6379 = vand.u32 %v6285, 4294901760
        %v6380 = vsub.f32 %v6285, %v6379
        %v6381 = vand.u32 %v6380, 4294901760
        %v6382 = vsub.f32 %v6380, %v6381
        %v6383 = vand.u32 %v6382, 4294901760
        %6384 = vmatmul.mubr.f32.gmra.mrb[0].mxu0 %v6383
        %v6385 = vpop.f32.mrb[0].mxu0
        %v6386 = vadd.f32 0.0, %v6385
        %v6387 = vpop.f32.mrb[0].mxu0
        %6388 = vmatprep.mubr.f32.mxu0 0.0
        %v6389 = vand.u32 %v6288, 4294901760
        %v6390 = vsub.f32 %v6288, %v6389
        %v6391 = vand.u32 %v6390, 4294901760
        %v6392 = vsub.f32 %v6390, %v6391
        %v6393 = vand.u32 %v6392, 4294901760
        %6394 = vmatmul.mubr.f32.gmra.mrb[0].mxu0 %v6393
        %v6395 = vpop.f32.mrb[0].mxu0
        %v6396 = vadd.f32 0.0, %v6395
        %v6397 = vpop.f32.mrb[0].mxu0
        %6398 = vdwg.mxu0
        %6399 = vmatprep.subr.mxu0 0.0
        %v6400 = vand.u32 %v6270, 4294901760
        %v6401 = vsub.f32 %v6270, %v6400
        %v6402 = vand.u32 %v6401, 4294901760
        %v6403 = vsub.f32 %v6401, %v6402
        %v6404 = vand.u32 %v6403, 4294901760
        %6405 = vmatpush1.msra.mxu0 %v6404
        %6406 = vmatprep.subr.mxu0 0.0
        %v6407 = vand.u32 %v6271, 4294901760
        %v6408 = vsub.f32 %v6271, %v6407
        %v6409 = vand.u32 %v6408, 4294901760
        %v6410 = vsub.f32 %v6408, %v6409
        %v6411 = vand.u32 %v6410, 4294901760
        %6412 = vmatpush1.msra.mxu0 %v6411
        %6413 = vmatprep.subr.mxu0 0.0
        %v6414 = vand.u32 %v6272, 4294901760
        %v6415 = vsub.f32 %v6272, %v6414
        %v6416 = vand.u32 %v6415, 4294901760
        %v6417 = vsub.f32 %v6415, %v6416
        %v6418 = vand.u32 %v6417, 4294901760
        %6419 = vmatpush1.msra.mxu0 %v6418
        %6420 = vmatprep.subr.mxu0 0.0
        %v6421 = vand.u32 %v6273, 4294901760
        %v6422 = vsub.f32 %v6273, %v6421
        %v6423 = vand.u32 %v6422, 4294901760
        %v6424 = vsub.f32 %v6422, %v6423
        %v6425 = vand.u32 %v6424, 4294901760
        %6426 = vmatpush1.msra.mxu0 %v6425
        %6427 = vmatprep.subr.mxu0 0.0
        %6428 = vmatpush1.msra.mxu0 0.0
        %6429 = vmatprep.subr.mxu0 0.0
        %6430 = vmatpush1.msra.mxu0 0.0
        %6431 = vmatprep.subr.mxu0 0.0
        %6432 = vmatpush1.msra.mxu0 0.0
        %6433 = vmatprep.subr.mxu0 0.0
        %6434 = vmatpush1.msra.mxu0 0.0
        %6435 = vmatprep.subr.mxu0 0.0
        %6436 = vmatpush1.msra.mxu0 0.0
        %6437 = vmatprep.subr.mxu0 0.0
        %6438 = vmatpush1.msra.mxu0 0.0
        %6439 = vmatprep.subr.mxu0 0.0
        %6440 = vmatpush1.msra.mxu0 0.0
        %6441 = vmatprep.subr.mxu0 0.0
        %6442 = vmatpush1.msra.mxu0 0.0
        %6443 = vmatprep.subr.mxu0 0.0
        %6444 = vmatpush1.msra.mxu0 0.0
        %6445 = vmatprep.subr.mxu0 0.0
        %6446 = vmatpush1.msra.mxu0 0.0
        %6447 = vmatprep.subr.mxu0 0.0
        %6448 = vmatpush1.msra.mxu0 0.0
        %6449 = vmatprep.subr.mxu0 0.0
        %6450 = vmatpush1.msra.mxu0 0.0
        %6451 = vmatprep.subr.mxu0 0.0
        %6452 = vmatpush1.msra.mxu0 0.0
        %6453 = vmatprep.subr.mxu0 0.0
        %6454 = vmatpush1.msra.mxu0 0.0
        %6455 = vmatprep.subr.mxu0 0.0
        %6456 = vmatpush1.msra.mxu0 0.0
        %6457 = vmatprep.subr.mxu0 0.0
        %6458 = vmatpush1.msra.mxu0 0.0
        %6459 = vmatprep.subr.mxu0 0.0
        %6460 = vmatpush1.msra.mxu0 0.0
        %6461 = vmatprep.subr.mxu0 0.0
        %6462 = vmatpush1.msra.mxu0 0.0
        %6463 = vmatprep.subr.mxu0 0.0
        %6464 = vmatpush1.msra.mxu0 0.0
        %6465 = vmatprep.subr.mxu0 0.0
        %6466 = vmatpush1.msra.mxu0 0.0
        %6467 = vmatprep.subr.mxu0 0.0
        %6468 = vmatpush1.msra.mxu0 0.0
        %6469 = vmatprep.subr.mxu0 0.0
        %6470 = vmatpush1.msra.mxu0 0.0
        %6471 = vmatprep.subr.mxu0 0.0
        %6472 = vmatpush1.msra.mxu0 0.0
        %6473 = vmatprep.subr.mxu0 0.0
        %6474 = vmatpush1.msra.mxu0 0.0
        %6475 = vmatprep.subr.mxu0 0.0
        %6476 = vmatpush1.msra.mxu0 0.0
        %6477 = vmatprep.subr.mxu0 0.0
        %6478 = vmatpush1.msra.mxu0 0.0
        %6479 = vmatprep.subr.mxu0 0.0
        %6480 = vmatpush1.msra.mxu0 0.0
        %6481 = vmatprep.subr.mxu0 0.0
        %6482 = vmatpush1.msra.mxu0 0.0
        %6483 = vmatprep.mubr.f32.mxu0 0.0
        %v6484 = vand.u32 %v6279, 4294901760
        %6485 = vmatmul.mubr.f32.gmra.mrb[0].mxu0 %v6484
        %v6486 = vpop.f32.mrb[0].mxu0
        %v6487 = vadd.f32 %v6366, %v6486
        %v6488 = vpop.f32.mrb[0].mxu0
        %6489 = vmatprep.mubr.f32.mxu0 0.0
        %v6490 = vand.u32 %v6282, 4294901760
        %6491 = vmatmul.mubr.f32.gmra.mrb[0].mxu0 %v6490
        %v6492 = vpop.f32.mrb[0].mxu0
        %v6493 = vadd.f32 %v6376, %v6492
        %v6494 = vpop.f32.mrb[0].mxu0
        %6495 = vmatprep.mubr.f32.mxu0 0.0
        %v6496 = vand.u32 %v6285, 4294901760
        %6497 = vmatmul.mubr.f32.gmra.mrb[0].mxu0 %v6496
        %v6498 = vpop.f32.mrb[0].mxu0
        %v6499 = vadd.f32 %v6386, %v6498
        %v6500 = vpop.f32.mrb[0].mxu0
        %6501 = vmatprep.mubr.f32.mxu0 0.0
        %v6502 = vand.u32 %v6288, 4294901760
        %6503 = vmatmul.mubr.f32.gmra.mrb[0].mxu0 %v6502
        %v6504 = vpop.f32.mrb[0].mxu0
        %v6505 = vadd.f32 %v6396, %v6504
        %v6506 = vpop.f32.mrb[0].mxu0
        %6507 = vdwg.mxu0
        %6508 = vmatprep.subr.mxu0 0.0
        %v6509 = vand.u32 %v6270, 4294901760
        %v6510 = vsub.f32 %v6270, %v6509
        %6511 = vmatpush1.msra.mxu0 %v6510
        %6512 = vmatprep.subr.mxu0 0.0
        %v6513 = vand.u32 %v6271, 4294901760
        %v6514 = vsub.f32 %v6271, %v6513
        %6515 = vmatpush1.msra.mxu0 %v6514
        %6516 = vmatprep.subr.mxu0 0.0
        %v6517 = vand.u32 %v6272, 4294901760
        %v6518 = vsub.f32 %v6272, %v6517
        %6519 = vmatpush1.msra.mxu0 %v6518
        %6520 = vmatprep.subr.mxu0 0.0
        %v6521 = vand.u32 %v6273, 4294901760
        %v6522 = vsub.f32 %v6273, %v6521
        %6523 = vmatpush1.msra.mxu0 %v6522
        %6524 = vmatprep.subr.mxu0 0.0
        %6525 = vmatpush1.msra.mxu0 0.0
        %6526 = vmatprep.subr.mxu0 0.0
        %6527 = vmatpush1.msra.mxu0 0.0
        %6528 = vmatprep.subr.mxu0 0.0
        %6529 = vmatpush1.msra.mxu0 0.0
        %6530 = vmatprep.subr.mxu0 0.0
        %6531 = vmatpush1.msra.mxu0 0.0
        %6532 = vmatprep.subr.mxu0 0.0
        %6533 = vmatpush1.msra.mxu0 0.0
        %6534 = vmatprep.subr.mxu0 0.0
        %6535 = vmatpush1.msra.mxu0 0.0
        %6536 = vmatprep.subr.mxu0 0.0
        %6537 = vmatpush1.msra.mxu0 0.0
        %6538 = vmatprep.subr.mxu0 0.0
        %6539 = vmatpush1.msra.mxu0 0.0
        %6540 = vmatprep.subr.mxu0 0.0
        %6541 = vmatpush1.msra.mxu0 0.0
        %6542 = vmatprep.subr.mxu0 0.0
        %6543 = vmatpush1.msra.mxu0 0.0
        %6544 = vmatprep.subr.mxu0 0.0
        %6545 = vmatpush1.msra.mxu0 0.0
        %6546 = vmatprep.subr.mxu0 0.0
        %6547 = vmatpush1.msra.mxu0 0.0
        %6548 = vmatprep.subr.mxu0 0.0
        %6549 = vmatpush1.msra.mxu0 0.0
        %6550 = vmatprep.subr.mxu0 0.0
        %6551 = vmatpush1.msra.mxu0 0.0
        %6552 = vmatprep.subr.mxu0 0.0
        %6553 = vmatpush1.msra.mxu0 0.0
        %6554 = vmatprep.subr.mxu0 0.0
        %6555 = vmatpush1.msra.mxu0 0.0
        %6556 = vmatprep.subr.mxu0 0.0
        %6557 = vmatpush1.msra.mxu0 0.0
        %6558 = vmatprep.subr.mxu0 0.0
        %6559 = vmatpush1.msra.mxu0 0.0
        %6560 = vmatprep.subr.mxu0 0.0
        %6561 = vmatpush1.msra.mxu0 0.0
        %6562 = vmatprep.subr.mxu0 0.0
        %6563 = vmatpush1.msra.mxu0 0.0
        %6564 = vmatprep.subr.mxu0 0.0
        %6565 = vmatpush1.msra.mxu0 0.0
        %6566 = vmatprep.subr.mxu0 0.0
        %6567 = vmatpush1.msra.mxu0 0.0
        %6568 = vmatprep.subr.mxu0 0.0
        %6569 = vmatpush1.msra.mxu0 0.0
        %6570 = vmatprep.subr.mxu0 0.0
        %6571 = vmatpush1.msra.mxu0 0.0
        %6572 = vmatprep.subr.mxu0 0.0
        %6573 = vmatpush1.msra.mxu0 0.0
        %6574 = vmatprep.subr.mxu0 0.0
        %6575 = vmatpush1.msra.mxu0 0.0
        %6576 = vmatprep.subr.mxu0 0.0
        %6577 = vmatpush1.msra.mxu0 0.0
        %6578 = vmatprep.subr.mxu0 0.0
        %6579 = vmatpush1.msra.mxu0 0.0
        %6580 = vmatprep.mubr.f32.mxu0 0.0
        %v6581 = vand.u32 %v6279, 4294901760
        %v6582 = vsub.f32 %v6279, %v6581
        %6583 = vmatmul.mubr.f32.gmra.mrb[0].mxu0 %v6582
        %v6584 = vpop.f32.mrb[0].mxu0
        %v6585 = vadd.f32 %v6487, %v6584
        %v6586 = vpop.f32.mrb[0].mxu0
        %6587 = vmatprep.mubr.f32.mxu0 0.0
        %v6588 = vand.u32 %v6282, 4294901760
        %v6589 = vsub.f32 %v6282, %v6588
        %6590 = vmatmul.mubr.f32.gmra.mrb[0].mxu0 %v6589
        %v6591 = vpop.f32.mrb[0].mxu0
        %v6592 = vadd.f32 %v6493, %v6591
        %v6593 = vpop.f32.mrb[0].mxu0
        %6594 = vmatprep.mubr.f32.mxu0 0.0
        %v6595 = vand.u32 %v6285, 4294901760
        %v6596 = vsub.f32 %v6285, %v6595
        %6597 = vmatmul.mubr.f32.gmra.mrb[0].mxu0 %v6596
        %v6598 = vpop.f32.mrb[0].mxu0
        %v6599 = vadd.f32 %v6499, %v6598
        %v6600 = vpop.f32.mrb[0].mxu0
        %6601 = vmatprep.mubr.f32.mxu0 0.0
        %v6602 = vand.u32 %v6288, 4294901760
        %v6603 = vsub.f32 %v6288, %v6602
        %6604 = vmatmul.mubr.f32.gmra.mrb[0].mxu0 %v6603
        %v6605 = vpop.f32.mrb[0].mxu0
        %v6606 = vadd.f32 %v6505, %v6605
        %v6607 = vpop.f32.mrb[0].mxu0
        %6608 = vdwg.mxu0
        %6609 = vmatprep.subr.mxu0 0.0
        %v6610 = vand.u32 %v6270, 4294901760
        %6611 = vmatpush1.msra.mxu0 %v6610
        %6612 = vmatprep.subr.mxu0 0.0
        %v6613 = vand.u32 %v6271, 4294901760
        %6614 = vmatpush1.msra.mxu0 %v6613
        %6615 = vmatprep.subr.mxu0 0.0
        %v6616 = vand.u32 %v6272, 4294901760
        %6617 = vmatpush1.msra.mxu0 %v6616
        %6618 = vmatprep.subr.mxu0 0.0
        %v6619 = vand.u32 %v6273, 4294901760
        %6620 = vmatpush1.msra.mxu0 %v6619
        %6621 = vmatprep.subr.mxu0 0.0
        %6622 = vmatpush1.msra.mxu0 0.0
        %6623 = vmatprep.subr.mxu0 0.0
        %6624 = vmatpush1.msra.mxu0 0.0
        %6625 = vmatprep.subr.mxu0 0.0
        %6626 = vmatpush1.msra.mxu0 0.0
        %6627 = vmatprep.subr.mxu0 0.0
        %6628 = vmatpush1.msra.mxu0 0.0
        %6629 = vmatprep.subr.mxu0 0.0
        %6630 = vmatpush1.msra.mxu0 0.0
        %6631 = vmatprep.subr.mxu0 0.0
        %6632 = vmatpush1.msra.mxu0 0.0
        %6633 = vmatprep.subr.mxu0 0.0
        %6634 = vmatpush1.msra.mxu0 0.0
        %6635 = vmatprep.subr.mxu0 0.0
        %6636 = vmatpush1.msra.mxu0 0.0
        %6637 = vmatprep.subr.mxu0 0.0
        %6638 = vmatpush1.msra.mxu0 0.0
        %6639 = vmatprep.subr.mxu0 0.0
        %6640 = vmatpush1.msra.mxu0 0.0
        %6641 = vmatprep.subr.mxu0 0.0
        %6642 = vmatpush1.msra.mxu0 0.0
        %6643 = vmatprep.subr.mxu0 0.0
        %6644 = vmatpush1.msra.mxu0 0.0
        %6645 = vmatprep.subr.mxu0 0.0
        %6646 = vmatpush1.msra.mxu0 0.0
        %6647 = vmatprep.subr.mxu0 0.0
        %6648 = vmatpush1.msra.mxu0 0.0
        %6649 = vmatprep.subr.mxu0 0.0
        %6650 = vmatpush1.msra.mxu0 0.0
        %6651 = vmatprep.subr.mxu0 0.0
        %6652 = vmatpush1.msra.mxu0 0.0
        %6653 = vmatprep.subr.mxu0 0.0
        %6654 = vmatpush1.msra.mxu0 0.0
        %6655 = vmatprep.subr.mxu0 0.0
        %6656 = vmatpush1.msra.mxu0 0.0
        %6657 = vmatprep.subr.mxu0 0.0
        %6658 = vmatpush1.msra.mxu0 0.0
        %6659 = vmatprep.subr.mxu0 0.0
        %6660 = vmatpush1.msra.mxu0 0.0
        %6661 = vmatprep.subr.mxu0 0.0
        %6662 = vmatpush1.msra.mxu0 0.0
        %6663 = vmatprep.subr.mxu0 0.0
        %6664 = vmatpush1.msra.mxu0 0.0
        %6665 = vmatprep.subr.mxu0 0.0
        %6666 = vmatpush1.msra.mxu0 0.0
        %6667 = vmatprep.subr.mxu0 0.0
        %6668 = vmatpush1.msra.mxu0 0.0
        %6669 = vmatprep.subr.mxu0 0.0
        %6670 = vmatpush1.msra.mxu0 0.0
        %6671 = vmatprep.subr.mxu0 0.0
        %6672 = vmatpush1.msra.mxu0 0.0
        %6673 = vmatprep.subr.mxu0 0.0
        %6674 = vmatpush1.msra.mxu0 0.0
        %6675 = vmatprep.subr.mxu0 0.0
        %6676 = vmatpush1.msra.mxu0 0.0
        %6677 = vmatprep.mubr.f32.mxu0 0.0
        %v6678 = vand.u32 %v6279, 4294901760
        %v6679 = vsub.f32 %v6279, %v6678
        %v6680 = vand.u32 %v6679, 4294901760
        %6681 = vmatmul.mubr.f32.gmra.mrb[0].mxu0 %v6680
        %v6682 = vpop.f32.mrb[0].mxu0
        %v6683 = vadd.f32 %v6585, %v6682
        %v6684 = vpop.f32.mrb[0].mxu0
        %6685 = vmatprep.mubr.f32.mxu0 0.0
        %v6686 = vand.u32 %v6282, 4294901760
        %v6687 = vsub.f32 %v6282, %v6686
        %v6688 = vand.u32 %v6687, 4294901760
        %6689 = vmatmul.mubr.f32.gmra.mrb[0].mxu0 %v6688
        %v6690 = vpop.f32.mrb[0].mxu0
        %v6691 = vadd.f32 %v6592, %v6690
        %v6692 = vpop.f32.mrb[0].mxu0
        %6693 = vmatprep.mubr.f32.mxu0 0.0
        %v6694 = vand.u32 %v6285, 4294901760
        %v6695 = vsub.f32 %v6285, %v6694
        %v6696 = vand.u32 %v6695, 4294901760
        %6697 = vmatmul.mubr.f32.gmra.mrb[0].mxu0 %v6696
        %v6698 = vpop.f32.mrb[0].mxu0
        %v6699 = vadd.f32 %v6599, %v6698
        %v6700 = vpop.f32.mrb[0].mxu0
        %6701 = vmatprep.mubr.f32.mxu0 0.0
        %v6702 = vand.u32 %v6288, 4294901760
        %v6703 = vsub.f32 %v6288, %v6702
        %v6704 = vand.u32 %v6703, 4294901760
        %6705 = vmatmul.mubr.f32.gmra.mrb[0].mxu0 %v6704
        %v6706 = vpop.f32.mrb[0].mxu0
        %v6707 = vadd.f32 %v6606, %v6706
        %v6708 = vpop.f32.mrb[0].mxu0
        %6709 = vdwg.mxu0
        %6710 = vmatprep.subr.mxu0 0.0
        %v6711 = vand.u32 %v6270, 4294901760
        %v6712 = vsub.f32 %v6270, %v6711
        %v6713 = vand.u32 %v6712, 4294901760
        %6714 = vmatpush1.msra.mxu0 %v6713
        %6715 = vmatprep.subr.mxu0 0.0
        %v6716 = vand.u32 %v6271, 4294901760
        %v6717 = vsub.f32 %v6271, %v6716
        %v6718 = vand.u32 %v6717, 4294901760
        %6719 = vmatpush1.msra.mxu0 %v6718
        %6720 = vmatprep.subr.mxu0 0.0
        %v6721 = vand.u32 %v6272, 4294901760
        %v6722 = vsub.f32 %v6272, %v6721
        %v6723 = vand.u32 %v6722, 4294901760
        %6724 = vmatpush1.msra.mxu0 %v6723
        %6725 = vmatprep.subr.mxu0 0.0
        %v6726 = vand.u32 %v6273, 4294901760
        %v6727 = vsub.f32 %v6273, %v6726
        %v6728 = vand.u32 %v6727, 4294901760
        %6729 = vmatpush1.msra.mxu0 %v6728
        %6730 = vmatprep.subr.mxu0 0.0
        %6731 = vmatpush1.msra.mxu0 0.0
        %6732 = vmatprep.subr.mxu0 0.0
        %6733 = vmatpush1.msra.mxu0 0.0
        %6734 = vmatprep.subr.mxu0 0.0
        %6735 = vmatpush1.msra.mxu0 0.0
        %6736 = vmatprep.subr.mxu0 0.0
        %6737 = vmatpush1.msra.mxu0 0.0
        %6738 = vmatprep.subr.mxu0 0.0
        %6739 = vmatpush1.msra.mxu0 0.0
        %6740 = vmatprep.subr.mxu0 0.0
        %6741 = vmatpush1.msra.mxu0 0.0
        %6742 = vmatprep.subr.mxu0 0.0
        %6743 = vmatpush1.msra.mxu0 0.0
        %6744 = vmatprep.subr.mxu0 0.0
        %6745 = vmatpush1.msra.mxu0 0.0
        %6746 = vmatprep.subr.mxu0 0.0
        %6747 = vmatpush1.msra.mxu0 0.0
        %6748 = vmatprep.subr.mxu0 0.0
        %6749 = vmatpush1.msra.mxu0 0.0
        %6750 = vmatprep.subr.mxu0 0.0
        %6751 = vmatpush1.msra.mxu0 0.0
        %6752 = vmatprep.subr.mxu0 0.0
        %6753 = vmatpush1.msra.mxu0 0.0
        %6754 = vmatprep.subr.mxu0 0.0
        %6755 = vmatpush1.msra.mxu0 0.0
        %6756 = vmatprep.subr.mxu0 0.0
        %6757 = vmatpush1.msra.mxu0 0.0
        %6758 = vmatprep.subr.mxu0 0.0
        %6759 = vmatpush1.msra.mxu0 0.0
        %6760 = vmatprep.subr.mxu0 0.0
        %6761 = vmatpush1.msra.mxu0 0.0
        %6762 = vmatprep.subr.mxu0 0.0
        %6763 = vmatpush1.msra.mxu0 0.0
        %6764 = vmatprep.subr.mxu0 0.0
        %6765 = vmatpush1.msra.mxu0 0.0
        %6766 = vmatprep.subr.mxu0 0.0
        %6767 = vmatpush1.msra.mxu0 0.0
        %6768 = vmatprep.subr.mxu0 0.0
        %6769 = vmatpush1.msra.mxu0 0.0
        %6770 = vmatprep.subr.mxu0 0.0
        %6771 = vmatpush1.msra.mxu0 0.0
        %6772 = vmatprep.subr.mxu0 0.0
        %6773 = vmatpush1.msra.mxu0 0.0
        %6774 = vmatprep.subr.mxu0 0.0
        %6775 = vmatpush1.msra.mxu0 0.0
        %6776 = vmatprep.subr.mxu0 0.0
        %6777 = vmatpush1.msra.mxu0 0.0
        %6778 = vmatprep.subr.mxu0 0.0
        %6779 = vmatpush1.msra.mxu0 0.0
        %6780 = vmatprep.subr.mxu0 0.0
        %6781 = vmatpush1.msra.mxu0 0.0
        %6782 = vmatprep.subr.mxu0 0.0
        %6783 = vmatpush1.msra.mxu0 0.0
        %6784 = vmatprep.subr.mxu0 0.0
        %6785 = vmatpush1.msra.mxu0 0.0
        %6786 = vmatprep.mubr.f32.mxu0 0.0
        %v6787 = vand.u32 %v6279, 4294901760
        %6788 = vmatmul.mubr.f32.gmra.mrb[0].mxu0 %v6787
        %v6789 = vpop.f32.mrb[0].mxu0
        %v6790 = vadd.f32 %v6683, %v6789
        %v6791 = vpop.f32.mrb[0].mxu0
        %6792 = vmatprep.mubr.f32.mxu0 0.0
        %v6793 = vand.u32 %v6282, 4294901760
        %6794 = vmatmul.mubr.f32.gmra.mrb[0].mxu0 %v6793
        %v6795 = vpop.f32.mrb[0].mxu0
        %v6796 = vadd.f32 %v6691, %v6795
        %v6797 = vpop.f32.mrb[0].mxu0
        %6798 = vmatprep.mubr.f32.mxu0 0.0
        %v6799 = vand.u32 %v6285, 4294901760
        %6800 = vmatmul.mubr.f32.gmra.mrb[0].mxu0 %v6799
        %v6801 = vpop.f32.mrb[0].mxu0
        %v6802 = vadd.f32 %v6699, %v6801
        %v6803 = vpop.f32.mrb[0].mxu0
        %6804 = vmatprep.mubr.f32.mxu0 0.0
        %v6805 = vand.u32 %v6288, 4294901760
        %6806 = vmatmul.mubr.f32.gmra.mrb[0].mxu0 %v6805
        %v6807 = vpop.f32.mrb[0].mxu0
        %v6808 = vadd.f32 %v6707, %v6807
        %v6809 = vpop.f32.mrb[0].mxu0
        %6810 = vdwg.mxu0
        %6811 = vmatprep.subr.mxu0 0.0
        %v6812 = vand.u32 %v6270, 4294901760
        %6813 = vmatpush1.msra.mxu0 %v6812
        %6814 = vmatprep.subr.mxu0 0.0
        %v6815 = vand.u32 %v6271, 4294901760
        %6816 = vmatpush1.msra.mxu0 %v6815
        %6817 = vmatprep.subr.mxu0 0.0
        %v6818 = vand.u32 %v6272, 4294901760
        %6819 = vmatpush1.msra.mxu0 %v6818
        %6820 = vmatprep.subr.mxu0 0.0
        %v6821 = vand.u32 %v6273, 4294901760
        %6822 = vmatpush1.msra.mxu0 %v6821
        %6823 = vmatprep.subr.mxu0 0.0
        %6824 = vmatpush1.msra.mxu0 0.0
        %6825 = vmatprep.subr.mxu0 0.0
        %6826 = vmatpush1.msra.mxu0 0.0
        %6827 = vmatprep.subr.mxu0 0.0
        %6828 = vmatpush1.msra.mxu0 0.0
        %6829 = vmatprep.subr.mxu0 0.0
        %6830 = vmatpush1.msra.mxu0 0.0
        %6831 = vmatprep.subr.mxu0 0.0
        %6832 = vmatpush1.msra.mxu0 0.0
        %6833 = vmatprep.subr.mxu0 0.0
        %6834 = vmatpush1.msra.mxu0 0.0
        %6835 = vmatprep.subr.mxu0 0.0
        %6836 = vmatpush1.msra.mxu0 0.0
        %6837 = vmatprep.subr.mxu0 0.0
        %6838 = vmatpush1.msra.mxu0 0.0
        %6839 = vmatprep.subr.mxu0 0.0
        %6840 = vmatpush1.msra.mxu0 0.0
        %6841 = vmatprep.subr.mxu0 0.0
        %6842 = vmatpush1.msra.mxu0 0.0
        %6843 = vmatprep.subr.mxu0 0.0
        %6844 = vmatpush1.msra.mxu0 0.0
        %6845 = vmatprep.subr.mxu0 0.0
        %6846 = vmatpush1.msra.mxu0 0.0
        %6847 = vmatprep.subr.mxu0 0.0
        %6848 = vmatpush1.msra.mxu0 0.0
        %6849 = vmatprep.subr.mxu0 0.0
        %6850 = vmatpush1.msra.mxu0 0.0
        %6851 = vmatprep.subr.mxu0 0.0
        %6852 = vmatpush1.msra.mxu0 0.0
        %6853 = vmatprep.subr.mxu0 0.0
        %6854 = vmatpush1.msra.mxu0 0.0
        %6855 = vmatprep.subr.mxu0 0.0
        %6856 = vmatpush1.msra.mxu0 0.0
        %6857 = vmatprep.subr.mxu0 0.0
        %6858 = vmatpush1.msra.mxu0 0.0
        %6859 = vmatprep.subr.mxu0 0.0
        %6860 = vmatpush1.msra.mxu0 0.0
        %6861 = vmatprep.subr.mxu0 0.0
        %6862 = vmatpush1.msra.mxu0 0.0
        %6863 = vmatprep.subr.mxu0 0.0
        %6864 = vmatpush1.msra.mxu0 0.0
        %6865 = vmatprep.subr.mxu0 0.0
        %6866 = vmatpush1.msra.mxu0 0.0
        %6867 = vmatprep.subr.mxu0 0.0
        %6868 = vmatpush1.msra.mxu0 0.0
        %6869 = vmatprep.subr.mxu0 0.0
        %6870 = vmatpush1.msra.mxu0 0.0
        %6871 = vmatprep.subr.mxu0 0.0
        %6872 = vmatpush1.msra.mxu0 0.0
        %6873 = vmatprep.subr.mxu0 0.0
        %6874 = vmatpush1.msra.mxu0 0.0
        %6875 = vmatprep.subr.mxu0 0.0
        %6876 = vmatpush1.msra.mxu0 0.0
        %6877 = vmatprep.subr.mxu0 0.0
        %6878 = vmatpush1.msra.mxu0 0.0
        %6879 = vmatprep.mubr.f32.mxu0 0.0
        %v6880 = vand.u32 %v6279, 4294901760
        %6881 = vmatmul.mubr.f32.gmra.mrb[0].mxu0 %v6880
        %v6882 = vpop.f32.mrb[0].mxu0
        %v6883 = vadd.f32 %v6790, %v6882
        %v6884 = vpop.f32.mrb[0].mxu0
        %6885 = vmatprep.mubr.f32.mxu0 0.0
        %v6886 = vand.u32 %v6282, 4294901760
        %6887 = vmatmul.mubr.f32.gmra.mrb[0].mxu0 %v6886
        %v6888 = vpop.f32.mrb[0].mxu0
        %v6889 = vadd.f32 %v6796, %v6888
        %v6890 = vpop.f32.mrb[0].mxu0
        %6891 = vmatprep.mubr.f32.mxu0 0.0
        %v6892 = vand.u32 %v6285, 4294901760
        %6893 = vmatmul.mubr.f32.gmra.mrb[0].mxu0 %v6892
        %v6894 = vpop.f32.mrb[0].mxu0
        %v6895 = vadd.f32 %v6802, %v6894
        %v6896 = vpop.f32.mrb[0].mxu0
        %6897 = vmatprep.mubr.f32.mxu0 0.0
        %v6898 = vand.u32 %v6288, 4294901760
        %6899 = vmatmul.mubr.f32.gmra.mrb[0].mxu0 %v6898
        %v6900 = vpop.f32.mrb[0].mxu0
        %v6901 = vadd.f32 %v6808, %v6900
        %v6902 = vpop.f32.mrb[0].mxu0
        %6903 = vdwg.mxu0
        %v6904 = vadd.f32 %v3430, %v6883
        %v6905 = vadd.f32 %v3436, %v6889
        %v6906 = vadd.f32 %v3442, %v6895
        %v6907 = vadd.f32 %v3448, %v6901
        %v6908 = vtanh.pop %v6904
        %v6909 = vtanh.pop %v6905
        %v6910 = vtanh.pop %v6906
        %v6911 = vtanh.pop %v6907
        %v6912 = vsub.f32 1.0, %v6262
        %v6913 = vsub.f32 1.0, %v6263
        %v6914 = vsub.f32 1.0, %v6264
        %v6915 = vsub.f32 1.0, %v6265
        %v6916 = vmul.f32 %v6912, %v6908
        %v6917 = vmul.f32 %v6913, %v6909
        %v6918 = vmul.f32 %v6914, %v6910
        %v6919 = vmul.f32 %v6915, %v6911
        %v6920 = vmul.f32 %v6258, %v5236
        %v6921 = vmul.f32 %v6259, %v5237
        %v6922 = vmul.f32 %v6260, %v5238
        %v6923 = vmul.f32 %v6261, %v5239
        %v6924 = vadd.f32 %v6916, %v6920
        %v6925 = vadd.f32 %v6917, %v6921
        %v6926 = vadd.f32 %v6918, %v6922
        %v6927 = vadd.f32 %v6919, %v6923
        %v6928 = vld [vmem:[%s7] sm:$0xff]
        %v6929 = vld [vmem:[%s7 + $0x8] sm:$0xff]
        %v6930 = vld [vmem:[%s7 + $0x10] sm:$0xff]
        %v6931 = vld [vmem:[%s7 + $0x18] sm:$0xff]
        %v6932 = vld [vmem:[%s7 + $0x20] sm:$0xff]
        %v6933 = vld [vmem:[%s7 + $0x28] sm:$0xff]
        %v6934 = vld [vmem:[%s7 + $0x30] sm:$0xff]
        %v6935 = vld [vmem:[%s7 + $0x38] sm:$0xff]
        %v6936 = vld [vmem:[%s7 + $0x40] sm:$0xff]
        %v6937 = vld [vmem:[%s7 + $0x48] sm:$0xff]
        %v6938 = vld [vmem:[%s7 + $0x50] sm:$0xff]
        %v6939 = vld [vmem:[%s7 + $0x58] sm:$0xff]
        %v6941 = vsel %vm3563, %v6928, 0
        %v6944 = vsel %vm3563, %v6929, 0
        %v6947 = vsel %vm3563, %v6930, 0
        %v6950 = vsel %vm3563, %v6931, 0
        %v6953 = vsel %vm3563, %v6932, 0
        %v6956 = vsel %vm3563, %v6933, 0
        %v6959 = vsel %vm3563, %v6934, 0
        %v6962 = vsel %vm3563, %v6935, 0
        %v6965 = vsel %vm3563, %v6936, 0
        %v6968 = vsel %vm3563, %v6937, 0
        %v6971 = vsel %vm3563, %v6938, 0
        %v6974 = vsel %vm3563, %v6939, 0
        %6976 = vmatprep.subr.mxu0 0.0
        %v6977 = vand.u32 %v6924, 4294901760
        %6978 = vmatpush1.msra.mxu0 %v6977
        %6979 = vmatprep.subr.mxu0 0.0
        %v6980 = vand.u32 %v6925, 4294901760
        %6981 = vmatpush1.msra.mxu0 %v6980
        %6982 = vmatprep.subr.mxu0 0.0
        %v6983 = vand.u32 %v6926, 4294901760
        %6984 = vmatpush1.msra.mxu0 %v6983
        %6985 = vmatprep.subr.mxu0 0.0
        %v6986 = vand.u32 %v6927, 4294901760
        %6987 = vmatpush1.msra.mxu0 %v6986
        %6988 = vmatprep.subr.mxu0 0.0
        %6989 = vmatpush1.msra.mxu0 0.0
        %6990 = vmatprep.subr.mxu0 0.0
        %6991 = vmatpush1.msra.mxu0 0.0
        %6992 = vmatprep.subr.mxu0 0.0
        %6993 = vmatpush1.msra.mxu0 0.0
        %6994 = vmatprep.subr.mxu0 0.0
        %6995 = vmatpush1.msra.mxu0 0.0
        %6996 = vmatprep.subr.mxu0 0.0
        %6997 = vmatpush1.msra.mxu0 0.0
        %6998 = vmatprep.subr.mxu0 0.0
        %6999 = vmatpush1.msra.mxu0 0.0
        %7000 = vmatprep.subr.mxu0 0.0
        %7001 = vmatpush1.msra.mxu0 0.0
        %7002 = vmatprep.subr.mxu0 0.0
        %7003 = vmatpush1.msra.mxu0 0.0
        %7004 = vmatprep.subr.mxu0 0.0
        %7005 = vmatpush1.msra.mxu0 0.0
        %7006 = vmatprep.subr.mxu0 0.0
        %7007 = vmatpush1.msra.mxu0 0.0
        %7008 = vmatprep.subr.mxu0 0.0
        %7009 = vmatpush1.msra.mxu0 0.0
        %7010 = vmatprep.subr.mxu0 0.0
        %7011 = vmatpush1.msra.mxu0 0.0
        %7012 = vmatprep.subr.mxu0 0.0
        %7013 = vmatpush1.msra.mxu0 0.0
        %7014 = vmatprep.subr.mxu0 0.0
        %7015 = vmatpush1.msra.mxu0 0.0
        %7016 = vmatprep.subr.mxu0 0.0
        %7017 = vmatpush1.msra.mxu0 0.0
        %7018 = vmatprep.subr.mxu0 0.0
        %7019 = vmatpush1.msra.mxu0 0.0
        %7020 = vmatprep.subr.mxu0 0.0
        %7021 = vmatpush1.msra.mxu0 0.0
        %7022 = vmatprep.subr.mxu0 0.0
        %7023 = vmatpush1.msra.mxu0 0.0
        %7024 = vmatprep.subr.mxu0 0.0
        %7025 = vmatpush1.msra.mxu0 0.0
        %7026 = vmatprep.subr.mxu0 0.0
        %7027 = vmatpush1.msra.mxu0 0.0
        %7028 = vmatprep.subr.mxu0 0.0
        %7029 = vmatpush1.msra.mxu0 0.0
        %7030 = vmatprep.subr.mxu0 0.0
        %7031 = vmatpush1.msra.mxu0 0.0
        %7032 = vmatprep.subr.mxu0 0.0
        %7033 = vmatpush1.msra.mxu0 0.0
        %7034 = vmatprep.subr.mxu0 0.0
        %7035 = vmatpush1.msra.mxu0 0.0
        %7036 = vmatprep.subr.mxu0 0.0
        %7037 = vmatpush1.msra.mxu0 0.0
        %7038 = vmatprep.subr.mxu0 0.0
        %7039 = vmatpush1.msra.mxu0 0.0
        %7040 = vmatprep.subr.mxu0 0.0
        %7041 = vmatpush1.msra.mxu0 0.0
        %7042 = vmatprep.subr.mxu0 0.0
        %7043 = vmatpush1.msra.mxu0 0.0
        %7044 = vmatprep.mubr.f32.mxu0 0.0
        %v7045 = vand.u32 %v6941, 4294901760
        %v7046 = vsub.f32 %v6941, %v7045
        %v7047 = vand.u32 %v7046, 4294901760
        %v7048 = vsub.f32 %v7046, %v7047
        %v7049 = vand.u32 %v7048, 4294901760
        %7050 = vmatmul.mubr.f32.gmra.mrb[0].mxu0 %v7049
        %v7051 = vpop.f32.mrb[0].mxu0
        %v7052 = vadd.f32 0.0, %v7051
        %v7053 = vpop.f32.mrb[0].mxu0
        %7054 = vmatprep.mubr.f32.mxu0 0.0
        %v7055 = vand.u32 %v6944, 4294901760
        %v7056 = vsub.f32 %v6944, %v7055
        %v7057 = vand.u32 %v7056, 4294901760
        %v7058 = vsub.f32 %v7056, %v7057
        %v7059 = vand.u32 %v7058, 4294901760
        %7060 = vmatmul.mubr.f32.gmra.mrb[0].mxu0 %v7059
        %v7061 = vpop.f32.mrb[0].mxu0
        %v7062 = vadd.f32 0.0, %v7061
        %v7063 = vpop.f32.mrb[0].mxu0
        %7064 = vmatprep.mubr.f32.mxu0 0.0
        %v7065 = vand.u32 %v6947, 4294901760
        %v7066 = vsub.f32 %v6947, %v7065
        %v7067 = vand.u32 %v7066, 4294901760
        %v7068 = vsub.f32 %v7066, %v7067
        %v7069 = vand.u32 %v7068, 4294901760
        %7070 = vmatmul.mubr.f32.gmra.mrb[0].mxu0 %v7069
        %v7071 = vpop.f32.mrb[0].mxu0
        %v7072 = vadd.f32 0.0, %v7071
        %v7073 = vpop.f32.mrb[0].mxu0
        %7074 = vmatprep.mubr.f32.mxu0 0.0
        %v7075 = vand.u32 %v6950, 4294901760
        %v7076 = vsub.f32 %v6950, %v7075
        %v7077 = vand.u32 %v7076, 4294901760
        %v7078 = vsub.f32 %v7076, %v7077
        %v7079 = vand.u32 %v7078, 4294901760
        %7080 = vmatmul.mubr.f32.gmra.mrb[0].mxu0 %v7079
        %v7081 = vpop.f32.mrb[0].mxu0
        %v7082 = vadd.f32 0.0, %v7081
        %v7083 = vpop.f32.mrb[0].mxu0
        %7084 = vmatprep.mubr.f32.mxu0 0.0
        %v7085 = vand.u32 %v6953, 4294901760
        %v7086 = vsub.f32 %v6953, %v7085
        %v7087 = vand.u32 %v7086, 4294901760
        %v7088 = vsub.f32 %v7086, %v7087
        %v7089 = vand.u32 %v7088, 4294901760
        %7090 = vmatmul.mubr.f32.gmra.mrb[0].mxu0 %v7089
        %v7091 = vpop.f32.mrb[0].mxu0
        %v7092 = vadd.f32 0.0, %v7091
        %v7093 = vpop.f32.mrb[0].mxu0
        %7094 = vmatprep.mubr.f32.mxu0 0.0
        %v7095 = vand.u32 %v6956, 4294901760
        %v7096 = vsub.f32 %v6956, %v7095
        %v7097 = vand.u32 %v7096, 4294901760
        %v7098 = vsub.f32 %v7096, %v7097
        %v7099 = vand.u32 %v7098, 4294901760
        %7100 = vmatmul.mubr.f32.gmra.mrb[0].mxu0 %v7099
        %v7101 = vpop.f32.mrb[0].mxu0
        %v7102 = vadd.f32 0.0, %v7101
        %v7103 = vpop.f32.mrb[0].mxu0
        %7104 = vmatprep.mubr.f32.mxu0 0.0
        %v7105 = vand.u32 %v6959, 4294901760
        %v7106 = vsub.f32 %v6959, %v7105
        %v7107 = vand.u32 %v7106, 4294901760
        %v7108 = vsub.f32 %v7106, %v7107
        %v7109 = vand.u32 %v7108, 4294901760
        %7110 = vmatmul.mubr.f32.gmra.mrb[0].mxu0 %v7109
        %v7111 = vpop.f32.mrb[0].mxu0
        %v7112 = vadd.f32 0.0, %v7111
        %v7113 = vpop.f32.mrb[0].mxu0
        %7114 = vmatprep.mubr.f32.mxu0 0.0
        %v7115 = vand.u32 %v6962, 4294901760
        %v7116 = vsub.f32 %v6962, %v7115
        %v7117 = vand.u32 %v7116, 4294901760
        %v7118 = vsub.f32 %v7116, %v7117
        %v7119 = vand.u32 %v7118, 4294901760
        %7120 = vmatmul.mubr.f32.gmra.mrb[0].mxu0 %v7119
        %v7121 = vpop.f32.mrb[0].mxu0
        %v7122 = vadd.f32 0.0, %v7121
        %v7123 = vpop.f32.mrb[0].mxu0
        %7124 = vmatprep.mubr.f32.mxu0 0.0
        %v7125 = vand.u32 %v6965, 4294901760
        %v7126 = vsub.f32 %v6965, %v7125
        %v7127 = vand.u32 %v7126, 4294901760
        %v7128 = vsub.f32 %v7126, %v7127
        %v7129 = vand.u32 %v7128, 4294901760
        %7130 = vmatmul.mubr.f32.gmra.mrb[0].mxu0 %v7129
        %v7131 = vpop.f32.mrb[0].mxu0
        %v7132 = vadd.f32 0.0, %v7131
        %v7133 = vpop.f32.mrb[0].mxu0
        %7134 = vmatprep.mubr.f32.mxu0 0.0
        %v7135 = vand.u32 %v6968, 4294901760
        %v7136 = vsub.f32 %v6968, %v7135
        %v7137 = vand.u32 %v7136, 4294901760
        %v7138 = vsub.f32 %v7136, %v7137
        %v7139 = vand.u32 %v7138, 4294901760
        %7140 = vmatmul.mubr.f32.gmra.mrb[0].mxu0 %v7139
        %v7141 = vpop.f32.mrb[0].mxu0
        %v7142 = vadd.f32 0.0, %v7141
        %v7143 = vpop.f32.mrb[0].mxu0
        %7144 = vmatprep.mubr.f32.mxu0 0.0
        %v7145 = vand.u32 %v6971, 4294901760
        %v7146 = vsub.f32 %v6971, %v7145
        %v7147 = vand.u32 %v7146, 4294901760
        %v7148 = vsub.f32 %v7146, %v7147
        %v7149 = vand.u32 %v7148, 4294901760
        %7150 = vmatmul.mubr.f32.gmra.mrb[0].mxu0 %v7149
        %v7151 = vpop.f32.mrb[0].mxu0
        %v7152 = vadd.f32 0.0, %v7151
        %v7153 = vpop.f32.mrb[0].mxu0
        %7154 = vmatprep.mubr.f32.mxu0 0.0
        %v7155 = vand.u32 %v6974, 4294901760
        %v7156 = vsub.f32 %v6974, %v7155
        %v7157 = vand.u32 %v7156, 4294901760
        %v7158 = vsub.f32 %v7156, %v7157
        %v7159 = vand.u32 %v7158, 4294901760
        %7160 = vmatmul.mubr.f32.gmra.mrb[0].mxu0 %v7159
        %v7161 = vpop.f32.mrb[0].mxu0
        %v7162 = vadd.f32 0.0, %v7161
        %v7163 = vpop.f32.mrb[0].mxu0
        %7164 = vdwg.mxu0
        %7165 = vmatprep.subr.mxu0 0.0
        %v7166 = vand.u32 %v6924, 4294901760
        %v7167 = vsub.f32 %v6924, %v7166
        %v7168 = vand.u32 %v7167, 4294901760
        %v7169 = vsub.f32 %v7167, %v7168
        %v7170 = vand.u32 %v7169, 4294901760
        %7171 = vmatpush1.msra.mxu0 %v7170
        %7172 = vmatprep.subr.mxu0 0.0
        %v7173 = vand.u32 %v6925, 4294901760
        %v7174 = vsub.f32 %v6925, %v7173
        %v7175 = vand.u32 %v7174, 4294901760
        %v7176 = vsub.f32 %v7174, %v7175
        %v7177 = vand.u32 %v7176, 4294901760
        %7178 = vmatpush1.msra.mxu0 %v7177
        %7179 = vmatprep.subr.mxu0 0.0
        %v7180 = vand.u32 %v6926, 4294901760
        %v7181 = vsub.f32 %v6926, %v7180
        %v7182 = vand.u32 %v7181, 4294901760
        %v7183 = vsub.f32 %v7181, %v7182
        %v7184 = vand.u32 %v7183, 4294901760
        %7185 = vmatpush1.msra.mxu0 %v7184
        %7186 = vmatprep.subr.mxu0 0.0
        %v7187 = vand.u32 %v6927, 4294901760
        %v7188 = vsub.f32 %v6927, %v7187
        %v7189 = vand.u32 %v7188, 4294901760
        %v7190 = vsub.f32 %v7188, %v7189
        %v7191 = vand.u32 %v7190, 4294901760
        %7192 = vmatpush1.msra.mxu0 %v7191
        %7193 = vmatprep.subr.mxu0 0.0
        %7194 = vmatpush1.msra.mxu0 0.0
        %7195 = vmatprep.subr.mxu0 0.0
        %7196 = vmatpush1.msra.mxu0 0.0
        %7197 = vmatprep.subr.mxu0 0.0
        %7198 = vmatpush1.msra.mxu0 0.0
        %7199 = vmatprep.subr.mxu0 0.0
        %7200 = vmatpush1.msra.mxu0 0.0
        %7201 = vmatprep.subr.mxu0 0.0
        %7202 = vmatpush1.msra.mxu0 0.0
        %7203 = vmatprep.subr.mxu0 0.0
        %7204 = vmatpush1.msra.mxu0 0.0
        %7205 = vmatprep.subr.mxu0 0.0
        %7206 = vmatpush1.msra.mxu0 0.0
        %7207 = vmatprep.subr.mxu0 0.0
        %7208 = vmatpush1.msra.mxu0 0.0
        %7209 = vmatprep.subr.mxu0 0.0
        %7210 = vmatpush1.msra.mxu0 0.0
        %7211 = vmatprep.subr.mxu0 0.0
        %7212 = vmatpush1.msra.mxu0 0.0
        %7213 = vmatprep.subr.mxu0 0.0
        %7214 = vmatpush1.msra.mxu0 0.0
        %7215 = vmatprep.subr.mxu0 0.0
        %7216 = vmatpush1.msra.mxu0 0.0
        %7217 = vmatprep.subr.mxu0 0.0
        %7218 = vmatpush1.msra.mxu0 0.0
        %7219 = vmatprep.subr.mxu0 0.0
        %7220 = vmatpush1.msra.mxu0 0.0
        %7221 = vmatprep.subr.mxu0 0.0
        %7222 = vmatpush1.msra.mxu0 0.0
        %7223 = vmatprep.subr.mxu0 0.0
        %7224 = vmatpush1.msra.mxu0 0.0
        %7225 = vmatprep.subr.mxu0 0.0
        %7226 = vmatpush1.msra.mxu0 0.0
        %7227 = vmatprep.subr.mxu0 0.0
        %7228 = vmatpush1.msra.mxu0 0.0
        %7229 = vmatprep.subr.mxu0 0.0
        %7230 = vmatpush1.msra.mxu0 0.0
        %7231 = vmatprep.subr.mxu0 0.0
        %7232 = vmatpush1.msra.mxu0 0.0
        %7233 = vmatprep.subr.mxu0 0.0
        %7234 = vmatpush1.msra.mxu0 0.0
        %7235 = vmatprep.subr.mxu0 0.0
        %7236 = vmatpush1.msra.mxu0 0.0
        %7237 = vmatprep.subr.mxu0 0.0
        %7238 = vmatpush1.msra.mxu0 0.0
        %7239 = vmatprep.subr.mxu0 0.0
        %7240 = vmatpush1.msra.mxu0 0.0
        %7241 = vmatprep.subr.mxu0 0.0
        %7242 = vmatpush1.msra.mxu0 0.0
        %7243 = vmatprep.subr.mxu0 0.0
        %7244 = vmatpush1.msra.mxu0 0.0
        %7245 = vmatprep.subr.mxu0 0.0
        %7246 = vmatpush1.msra.mxu0 0.0
        %7247 = vmatprep.subr.mxu0 0.0
        %7248 = vmatpush1.msra.mxu0 0.0
        %7249 = vmatprep.mubr.f32.mxu0 0.0
        %v7250 = vand.u32 %v6941, 4294901760
        %7251 = vmatmul.mubr.f32.gmra.mrb[0].mxu0 %v7250
        %v7252 = vpop.f32.mrb[0].mxu0
        %v7253 = vadd.f32 %v7052, %v7252
        %v7254 = vpop.f32.mrb[0].mxu0
        %7255 = vmatprep.mubr.f32.mxu0 0.0
        %v7256 = vand.u32 %v6944, 4294901760
        %7257 = vmatmul.mubr.f32.gmra.mrb[0].mxu0 %v7256
        %v7258 = vpop.f32.mrb[0].mxu0
        %v7259 = vadd.f32 %v7062, %v7258
        %v7260 = vpop.f32.mrb[0].mxu0
        %7261 = vmatprep.mubr.f32.mxu0 0.0
        %v7262 = vand.u32 %v6947, 4294901760
        %7263 = vmatmul.mubr.f32.gmra.mrb[0].mxu0 %v7262
        %v7264 = vpop.f32.mrb[0].mxu0
        %v7265 = vadd.f32 %v7072, %v7264
        %v7266 = vpop.f32.mrb[0].mxu0
        %7267 = vmatprep.mubr.f32.mxu0 0.0
        %v7268 = vand.u32 %v6950, 4294901760
        %7269 = vmatmul.mubr.f32.gmra.mrb[0].mxu0 %v7268
        %v7270 = vpop.f32.mrb[0].mxu0
        %v7271 = vadd.f32 %v7082, %v7270
        %v7272 = vpop.f32.mrb[0].mxu0
        %7273 = vmatprep.mubr.f32.mxu0 0.0
        %v7274 = vand.u32 %v6953, 4294901760
        %7275 = vmatmul.mubr.f32.gmra.mrb[0].mxu0 %v7274
        %v7276 = vpop.f32.mrb[0].mxu0
        %v7277 = vadd.f32 %v7092, %v7276
        %v7278 = vpop.f32.mrb[0].mxu0
        %7279 = vmatprep.mubr.f32.mxu0 0.0
        %v7280 = vand.u32 %v6956, 4294901760
        %7281 = vmatmul.mubr.f32.gmra.mrb[0].mxu0 %v7280
        %v7282 = vpop.f32.mrb[0].mxu0
        %v7283 = vadd.f32 %v7102, %v7282
        %v7284 = vpop.f32.mrb[0].mxu0
        %7285 = vmatprep.mubr.f32.mxu0 0.0
        %v7286 = vand.u32 %v6959, 4294901760
        %7287 = vmatmul.mubr.f32.gmra.mrb[0].mxu0 %v7286
        %v7288 = vpop.f32.mrb[0].mxu0
        %v7289 = vadd.f32 %v7112, %v7288
        %v7290 = vpop.f32.mrb[0].mxu0
        %7291 = vmatprep.mubr.f32.mxu0 0.0
        %v7292 = vand.u32 %v6962, 4294901760
        %7293 = vmatmul.mubr.f32.gmra.mrb[0].mxu0 %v7292
        %v7294 = vpop.f32.mrb[0].mxu0
        %v7295 = vadd.f32 %v7122, %v7294
        %v7296 = vpop.f32.mrb[0].mxu0
        %7297 = vmatprep.mubr.f32.mxu0 0.0
        %v7298 = vand.u32 %v6965, 4294901760
        %7299 = vmatmul.mubr.f32.gmra.mrb[0].mxu0 %v7298
        %v7300 = vpop.f32.mrb[0].mxu0
        %v7301 = vadd.f32 %v7132, %v7300
        %v7302 = vpop.f32.mrb[0].mxu0
        %7303 = vmatprep.mubr.f32.mxu0 0.0
        %v7304 = vand.u32 %v6968, 4294901760
        %7305 = vmatmul.mubr.f32.gmra.mrb[0].mxu0 %v7304
        %v7306 = vpop.f32.mrb[0].mxu0
        %v7307 = vadd.f32 %v7142, %v7306
        %v7308 = vpop.f32.mrb[0].mxu0
        %7309 = vmatprep.mubr.f32.mxu0 0.0
        %v7310 = vand.u32 %v6971, 4294901760
        %7311 = vmatmul.mubr.f32.gmra.mrb[0].mxu0 %v7310
        %v7312 = vpop.f32.mrb[0].mxu0
        %v7313 = vadd.f32 %v7152, %v7312
        %v7314 = vpop.f32.mrb[0].mxu0
        %7315 = vmatprep.mubr.f32.mxu0 0.0
        %v7316 = vand.u32 %v6974, 4294901760
        %7317 = vmatmul.mubr.f32.gmra.mrb[0].mxu0 %v7316
        %v7318 = vpop.f32.mrb[0].mxu0
        %v7319 = vadd.f32 %v7162, %v7318
        %v7320 = vpop.f32.mrb[0].mxu0
        %7321 = vdwg.mxu0
        %7322 = vmatprep.subr.mxu0 0.0
        %v7323 = vand.u32 %v6924, 4294901760
        %v7324 = vsub.f32 %v6924, %v7323
        %7325 = vmatpush1.msra.mxu0 %v7324
        %7326 = vmatprep.subr.mxu0 0.0
        %v7327 = vand.u32 %v6925, 4294901760
        %v7328 = vsub.f32 %v6925, %v7327
        %7329 = vmatpush1.msra.mxu0 %v7328
        %7330 = vmatprep.subr.mxu0 0.0
        %v7331 = vand.u32 %v6926, 4294901760
        %v7332 = vsub.f32 %v6926, %v7331
        %7333 = vmatpush1.msra.mxu0 %v7332
        %7334 = vmatprep.subr.mxu0 0.0
        %v7335 = vand.u32 %v6927, 4294901760
        %v7336 = vsub.f32 %v6927, %v7335
        %7337 = vmatpush1.msra.mxu0 %v7336
        %7338 = vmatprep.subr.mxu0 0.0
        %7339 = vmatpush1.msra.mxu0 0.0
        %7340 = vmatprep.subr.mxu0 0.0
        %7341 = vmatpush1.msra.mxu0 0.0
        %7342 = vmatprep.subr.mxu0 0.0
        %7343 = vmatpush1.msra.mxu0 0.0
        %7344 = vmatprep.subr.mxu0 0.0
        %7345 = vmatpush1.msra.mxu0 0.0
        %7346 = vmatprep.subr.mxu0 0.0
        %7347 = vmatpush1.msra.mxu0 0.0
        %7348 = vmatprep.subr.mxu0 0.0
        %7349 = vmatpush1.msra.mxu0 0.0
        %7350 = vmatprep.subr.mxu0 0.0
        %7351 = vmatpush1.msra.mxu0 0.0
        %7352 = vmatprep.subr.mxu0 0.0
        %7353 = vmatpush1.msra.mxu0 0.0
        %7354 = vmatprep.subr.mxu0 0.0
        %7355 = vmatpush1.msra.mxu0 0.0
        %7356 = vmatprep.subr.mxu0 0.0
        %7357 = vmatpush1.msra.mxu0 0.0
        %7358 = vmatprep.subr.mxu0 0.0
        %7359 = vmatpush1.msra.mxu0 0.0
        %7360 = vmatprep.subr.mxu0 0.0
        %7361 = vmatpush1.msra.mxu0 0.0
        %7362 = vmatprep.subr.mxu0 0.0
        %7363 = vmatpush1.msra.mxu0 0.0
        %7364 = vmatprep.subr.mxu0 0.0
        %7365 = vmatpush1.msra.mxu0 0.0
        %7366 = vmatprep.subr.mxu0 0.0
        %7367 = vmatpush1.msra.mxu0 0.0
        %7368 = vmatprep.subr.mxu0 0.0
        %7369 = vmatpush1.msra.mxu0 0.0
        %7370 = vmatprep.subr.mxu0 0.0
        %7371 = vmatpush1.msra.mxu0 0.0
        %7372 = vmatprep.subr.mxu0 0.0
        %7373 = vmatpush1.msra.mxu0 0.0
        %7374 = vmatprep.subr.mxu0 0.0
        %7375 = vmatpush1.msra.mxu0 0.0
        %7376 = vmatprep.subr.mxu0 0.0
        %7377 = vmatpush1.msra.mxu0 0.0
        %7378 = vmatprep.subr.mxu0 0.0
        %7379 = vmatpush1.msra.mxu0 0.0
        %7380 = vmatprep.subr.mxu0 0.0
        %7381 = vmatpush1.msra.mxu0 0.0
        %7382 = vmatprep.subr.mxu0 0.0
        %7383 = vmatpush1.msra.mxu0 0.0
        %7384 = vmatprep.subr.mxu0 0.0
        %7385 = vmatpush1.msra.mxu0 0.0
        %7386 = vmatprep.subr.mxu0 0.0
        %7387 = vmatpush1.msra.mxu0 0.0
        %7388 = vmatprep.subr.mxu0 0.0
        %7389 = vmatpush1.msra.mxu0 0.0
        %7390 = vmatprep.subr.mxu0 0.0
        %7391 = vmatpush1.msra.mxu0 0.0
        %7392 = vmatprep.subr.mxu0 0.0
        %7393 = vmatpush1.msra.mxu0 0.0
        %7394 = vmatprep.mubr.f32.mxu0 0.0
        %v7395 = vand.u32 %v6941, 4294901760
        %v7396 = vsub.f32 %v6941, %v7395
        %7397 = vmatmul.mubr.f32.gmra.mrb[0].mxu0 %v7396
        %v7398 = vpop.f32.mrb[0].mxu0
        %v7399 = vadd.f32 %v7253, %v7398
        %v7400 = vpop.f32.mrb[0].mxu0
        %7401 = vmatprep.mubr.f32.mxu0 0.0
        %v7402 = vand.u32 %v6944, 4294901760
        %v7403 = vsub.f32 %v6944, %v7402
        %7404 = vmatmul.mubr.f32.gmra.mrb[0].mxu0 %v7403
        %v7405 = vpop.f32.mrb[0].mxu0
        %v7406 = vadd.f32 %v7259, %v7405
        %v7407 = vpop.f32.mrb[0].mxu0
        %7408 = vmatprep.mubr.f32.mxu0 0.0
        %v7409 = vand.u32 %v6947, 4294901760
        %v7410 = vsub.f32 %v6947, %v7409
        %7411 = vmatmul.mubr.f32.gmra.mrb[0].mxu0 %v7410
        %v7412 = vpop.f32.mrb[0].mxu0
        %v7413 = vadd.f32 %v7265, %v7412
        %v7414 = vpop.f32.mrb[0].mxu0
        %7415 = vmatprep.mubr.f32.mxu0 0.0
        %v7416 = vand.u32 %v6950, 4294901760
        %v7417 = vsub.f32 %v6950, %v7416
        %7418 = vmatmul.mubr.f32.gmra.mrb[0].mxu0 %v7417
        %v7419 = vpop.f32.mrb[0].mxu0
        %v7420 = vadd.f32 %v7271, %v7419
        %v7421 = vpop.f32.mrb[0].mxu0
        %7422 = vmatprep.mubr.f32.mxu0 0.0
        %v7423 = vand.u32 %v6953, 4294901760
        %v7424 = vsub.f32 %v6953, %v7423
        %7425 = vmatmul.mubr.f32.gmra.mrb[0].mxu0 %v7424
        %v7426 = vpop.f32.mrb[0].mxu0
        %v7427 = vadd.f32 %v7277, %v7426
        %v7428 = vpop.f32.mrb[0].mxu0
        %7429 = vmatprep.mubr.f32.mxu0 0.0
        %v7430 = vand.u32 %v6956, 4294901760
        %v7431 = vsub.f32 %v6956, %v7430
        %7432 = vmatmul.mubr.f32.gmra.mrb[0].mxu0 %v7431
        %v7433 = vpop.f32.mrb[0].mxu0
        %v7434 = vadd.f32 %v7283, %v7433
        %v7435 = vpop.f32.mrb[0].mxu0
        %7436 = vmatprep.mubr.f32.mxu0 0.0
        %v7437 = vand.u32 %v6959, 4294901760
        %v7438 = vsub.f32 %v6959, %v7437
        %7439 = vmatmul.mubr.f32.gmra.mrb[0].mxu0 %v7438
        %v7440 = vpop.f32.mrb[0].mxu0
        %v7441 = vadd.f32 %v7289, %v7440
        %v7442 = vpop.f32.mrb[0].mxu0
        %7443 = vmatprep.mubr.f32.mxu0 0.0
        %v7444 = vand.u32 %v6962, 4294901760
        %v7445 = vsub.f32 %v6962, %v7444
        %7446 = vmatmul.mubr.f32.gmra.mrb[0].mxu0 %v7445
        %v7447 = vpop.f32.mrb[0].mxu0
        %v7448 = vadd.f32 %v7295, %v7447
        %v7449 = vpop.f32.mrb[0].mxu0
        %7450 = vmatprep.mubr.f32.mxu0 0.0
        %v7451 = vand.u32 %v6965, 4294901760
        %v7452 = vsub.f32 %v6965, %v7451
        %7453 = vmatmul.mubr.f32.gmra.mrb[0].mxu0 %v7452
        %v7454 = vpop.f32.mrb[0].mxu0
        %v7455 = vadd.f32 %v7301, %v7454
        %v7456 = vpop.f32.mrb[0].mxu0
        %7457 = vmatprep.mubr.f32.mxu0 0.0
        %v7458 = vand.u32 %v6968, 4294901760
        %v7459 = vsub.f32 %v6968, %v7458
        %7460 = vmatmul.mubr.f32.gmra.mrb[0].mxu0 %v7459
        %v7461 = vpop.f32.mrb[0].mxu0
        %v7462 = vadd.f32 %v7307, %v7461
        %v7463 = vpop.f32.mrb[0].mxu0
        %7464 = vmatprep.mubr.f32.mxu0 0.0
        %v7465 = vand.u32 %v6971, 4294901760
        %v7466 = vsub.f32 %v6971, %v7465
        %7467 = vmatmul.mubr.f32.gmra.mrb[0].mxu0 %v7466
        %v7468 = vpop.f32.mrb[0].mxu0
        %v7469 = vadd.f32 %v7313, %v7468
        %v7470 = vpop.f32.mrb[0].mxu0
        %7471 = vmatprep.mubr.f32.mxu0 0.0
        %v7472 = vand.u32 %v6974, 4294901760
        %v7473 = vsub.f32 %v6974, %v7472
        %7474 = vmatmul.mubr.f32.gmra.mrb[0].mxu0 %v7473
        %v7475 = vpop.f32.mrb[0].mxu0
        %v7476 = vadd.f32 %v7319, %v7475
        %v7477 = vpop.f32.mrb[0].mxu0
        %7478 = vdwg.mxu0
        %7479 = vmatprep.subr.mxu0 0.0
        %v7480 = vand.u32 %v6924, 4294901760
        %7481 = vmatpush1.msra.mxu0 %v7480
        %7482 = vmatprep.subr.mxu0 0.0
        %v7483 = vand.u32 %v6925, 4294901760
        %7484 = vmatpush1.msra.mxu0 %v7483
        %7485 = vmatprep.subr.mxu0 0.0
        %v7486 = vand.u32 %v6926, 4294901760
        %7487 = vmatpush1.msra.mxu0 %v7486
        %7488 = vmatprep.subr.mxu0 0.0
        %v7489 = vand.u32 %v6927, 4294901760
        %7490 = vmatpush1.msra.mxu0 %v7489
        %7491 = vmatprep.subr.mxu0 0.0
        %7492 = vmatpush1.msra.mxu0 0.0
        %7493 = vmatprep.subr.mxu0 0.0
        %7494 = vmatpush1.msra.mxu0 0.0
        %7495 = vmatprep.subr.mxu0 0.0
        %7496 = vmatpush1.msra.mxu0 0.0
        %7497 = vmatprep.subr.mxu0 0.0
        %7498 = vmatpush1.msra.mxu0 0.0
        %7499 = vmatprep.subr.mxu0 0.0
        %7500 = vmatpush1.msra.mxu0 0.0
        %7501 = vmatprep.subr.mxu0 0.0
        %7502 = vmatpush1.msra.mxu0 0.0
        %7503 = vmatprep.subr.mxu0 0.0
        %7504 = vmatpush1.msra.mxu0 0.0
        %7505 = vmatprep.subr.mxu0 0.0
        %7506 = vmatpush1.msra.mxu0 0.0
        %7507 = vmatprep.subr.mxu0 0.0
        %7508 = vmatpush1.msra.mxu0 0.0
        %7509 = vmatprep.subr.mxu0 0.0
        %7510 = vmatpush1.msra.mxu0 0.0
        %7511 = vmatprep.subr.mxu0 0.0
        %7512 = vmatpush1.msra.mxu0 0.0
        %7513 = vmatprep.subr.mxu0 0.0
        %7514 = vmatpush1.msra.mxu0 0.0
        %7515 = vmatprep.subr.mxu0 0.0
        %7516 = vmatpush1.msra.mxu0 0.0
        %7517 = vmatprep.subr.mxu0 0.0
        %7518 = vmatpush1.msra.mxu0 0.0
        %7519 = vmatprep.subr.mxu0 0.0
        %7520 = vmatpush1.msra.mxu0 0.0
        %7521 = vmatprep.subr.mxu0 0.0
        %7522 = vmatpush1.msra.mxu0 0.0
        %7523 = vmatprep.subr.mxu0 0.0
        %7524 = vmatpush1.msra.mxu0 0.0
        %7525 = vmatprep.subr.mxu0 0.0
        %7526 = vmatpush1.msra.mxu0 0.0
        %7527 = vmatprep.subr.mxu0 0.0
        %7528 = vmatpush1.msra.mxu0 0.0
        %7529 = vmatprep.subr.mxu0 0.0
        %7530 = vmatpush1.msra.mxu0 0.0
        %7531 = vmatprep.subr.mxu0 0.0
        %7532 = vmatpush1.msra.mxu0 0.0
        %7533 = vmatprep.subr.mxu0 0.0
        %7534 = vmatpush1.msra.mxu0 0.0
        %7535 = vmatprep.subr.mxu0 0.0
        %7536 = vmatpush1.msra.mxu0 0.0
        %7537 = vmatprep.subr.mxu0 0.0
        %7538 = vmatpush1.msra.mxu0 0.0
        %7539 = vmatprep.subr.mxu0 0.0
        %7540 = vmatpush1.msra.mxu0 0.0
        %7541 = vmatprep.subr.mxu0 0.0
        %7542 = vmatpush1.msra.mxu0 0.0
        %7543 = vmatprep.subr.mxu0 0.0
        %7544 = vmatpush1.msra.mxu0 0.0
        %7545 = vmatprep.subr.mxu0 0.0
        %7546 = vmatpush1.msra.mxu0 0.0
        %7547 = vmatprep.mubr.f32.mxu0 0.0
        %v7548 = vand.u32 %v6941, 4294901760
        %v7549 = vsub.f32 %v6941, %v7548
        %v7550 = vand.u32 %v7549, 4294901760
        %7551 = vmatmul.mubr.f32.gmra.mrb[0].mxu0 %v7550
        %v7552 = vpop.f32.mrb[0].mxu0
        %v7553 = vadd.f32 %v7399, %v7552
        %v7554 = vpop.f32.mrb[0].mxu0
        %7555 = vmatprep.mubr.f32.mxu0 0.0
        %v7556 = vand.u32 %v6944, 4294901760
        %v7557 = vsub.f32 %v6944, %v7556
        %v7558 = vand.u32 %v7557, 4294901760
        %7559 = vmatmul.mubr.f32.gmra.mrb[0].mxu0 %v7558
        %v7560 = vpop.f32.mrb[0].mxu0
        %v7561 = vadd.f32 %v7406, %v7560
        %v7562 = vpop.f32.mrb[0].mxu0
        %7563 = vmatprep.mubr.f32.mxu0 0.0
        %v7564 = vand.u32 %v6947, 4294901760
        %v7565 = vsub.f32 %v6947, %v7564
        %v7566 = vand.u32 %v7565, 4294901760
        %7567 = vmatmul.mubr.f32.gmra.mrb[0].mxu0 %v7566
        %v7568 = vpop.f32.mrb[0].mxu0
        %v7569 = vadd.f32 %v7413, %v7568
        %v7570 = vpop.f32.mrb[0].mxu0
        %7571 = vmatprep.mubr.f32.mxu0 0.0
        %v7572 = vand.u32 %v6950, 4294901760
        %v7573 = vsub.f32 %v6950, %v7572
        %v7574 = vand.u32 %v7573, 4294901760
        %7575 = vmatmul.mubr.f32.gmra.mrb[0].mxu0 %v7574
        %v7576 = vpop.f32.mrb[0].mxu0
        %v7577 = vadd.f32 %v7420, %v7576
        %v7578 = vpop.f32.mrb[0].mxu0
        %7579 = vmatprep.mubr.f32.mxu0 0.0
        %v7580 = vand.u32 %v6953, 4294901760
        %v7581 = vsub.f32 %v6953, %v7580
        %v7582 = vand.u32 %v7581, 4294901760
        %7583 = vmatmul.mubr.f32.gmra.mrb[0].mxu0 %v7582
        %v7584 = vpop.f32.mrb[0].mxu0
        %v7585 = vadd.f32 %v7427, %v7584
        %v7586 = vpop.f32.mrb[0].mxu0
        %7587 = vmatprep.mubr.f32.mxu0 0.0
        %v7588 = vand.u32 %v6956, 4294901760
        %v7589 = vsub.f32 %v6956, %v7588
        %v7590 = vand.u32 %v7589, 4294901760
        %7591 = vmatmul.mubr.f32.gmra.mrb[0].mxu0 %v7590
        %v7592 = vpop.f32.mrb[0].mxu0
        %v7593 = vadd.f32 %v7434, %v7592
        %v7594 = vpop.f32.mrb[0].mxu0
        %7595 = vmatprep.mubr.f32.mxu0 0.0
        %v7596 = vand.u32 %v6959, 4294901760
        %v7597 = vsub.f32 %v6959, %v7596
        %v7598 = vand.u32 %v7597, 4294901760
        %7599 = vmatmul.mubr.f32.gmra.mrb[0].mxu0 %v7598
        %v7600 = vpop.f32.mrb[0].mxu0
        %v7601 = vadd.f32 %v7441, %v7600
        %v7602 = vpop.f32.mrb[0].mxu0
        %7603 = vmatprep.mubr.f32.mxu0 0.0
        %v7604 = vand.u32 %v6962, 4294901760
        %v7605 = vsub.f32 %v6962, %v7604
        %v7606 = vand.u32 %v7605, 4294901760
        %7607 = vmatmul.mubr.f32.gmra.mrb[0].mxu0 %v7606
        %v7608 = vpop.f32.mrb[0].mxu0
        %v7609 = vadd.f32 %v7448, %v7608
        %v7610 = vpop.f32.mrb[0].mxu0
        %7611 = vmatprep.mubr.f32.mxu0 0.0
        %v7612 = vand.u32 %v6965, 4294901760
        %v7613 = vsub.f32 %v6965, %v7612
        %v7614 = vand.u32 %v7613, 4294901760
        %7615 = vmatmul.mubr.f32.gmra.mrb[0].mxu0 %v7614
        %v7616 = vpop.f32.mrb[0].mxu0
        %v7617 = vadd.f32 %v7455, %v7616
        %v7618 = vpop.f32.mrb[0].mxu0
        %7619 = vmatprep.mubr.f32.mxu0 0.0
        %v7620 = vand.u32 %v6968, 4294901760
        %v7621 = vsub.f32 %v6968, %v7620
        %v7622 = vand.u32 %v7621, 4294901760
        %7623 = vmatmul.mubr.f32.gmra.mrb[0].mxu0 %v7622
        %v7624 = vpop.f32.mrb[0].mxu0
        %v7625 = vadd.f32 %v7462, %v7624
        %v7626 = vpop.f32.mrb[0].mxu0
        %7627 = vmatprep.mubr.f32.mxu0 0.0
        %v7628 = vand.u32 %v6971, 4294901760
        %v7629 = vsub.f32 %v6971, %v7628
        %v7630 = vand.u32 %v7629, 4294901760
        %7631 = vmatmul.mubr.f32.gmra.mrb[0].mxu0 %v7630
        %v7632 = vpop.f32.mrb[0].mxu0
        %v7633 = vadd.f32 %v7469, %v7632
        %v7634 = vpop.f32.mrb[0].mxu0
        %7635 = vmatprep.mubr.f32.mxu0 0.0
        %v7636 = vand.u32 %v6974, 4294901760
        %v7637 = vsub.f32 %v6974, %v7636
        %v7638 = vand.u32 %v7637, 4294901760
        %7639 = vmatmul.mubr.f32.gmra.mrb[0].mxu0 %v7638
        %v7640 = vpop.f32.mrb[0].mxu0
        %v7641 = vadd.f32 %v7476, %v7640
        %v7642 = vpop.f32.mrb[0].mxu0
        %7643 = vdwg.mxu0
        %7644 = vmatprep.subr.mxu0 0.0
        %v7645 = vand.u32 %v6924, 4294901760
        %v7646 = vsub.f32 %v6924, %v7645
        %v7647 = vand.u32 %v7646, 4294901760
        %7648 = vmatpush1.msra.mxu0 %v7647
        %7649 = vmatprep.subr.mxu0 0.0
        %v7650 = vand.u32 %v6925, 4294901760
        %v7651 = vsub.f32 %v6925, %v7650
        %v7652 = vand.u32 %v7651, 4294901760
        %7653 = vmatpush1.msra.mxu0 %v7652
        %7654 = vmatprep.subr.mxu0 0.0
        %v7655 = vand.u32 %v6926, 4294901760
        %v7656 = vsub.f32 %v6926, %v7655
        %v7657 = vand.u32 %v7656, 4294901760
        %7658 = vmatpush1.msra.mxu0 %v7657
        %7659 = vmatprep.subr.mxu0 0.0
        %v7660 = vand.u32 %v6927, 4294901760
        %v7661 = vsub.f32 %v6927, %v7660
        %v7662 = vand.u32 %v7661, 4294901760
        %7663 = vmatpush1.msra.mxu0 %v7662
        %7664 = vmatprep.subr.mxu0 0.0
        %7665 = vmatpush1.msra.mxu0 0.0
        %7666 = vmatprep.subr.mxu0 0.0
        %7667 = vmatpush1.msra.mxu0 0.0
        %7668 = vmatprep.subr.mxu0 0.0
        %7669 = vmatpush1.msra.mxu0 0.0
        %7670 = vmatprep.subr.mxu0 0.0
        %7671 = vmatpush1.msra.mxu0 0.0
        %7672 = vmatprep.subr.mxu0 0.0
        %7673 = vmatpush1.msra.mxu0 0.0
        %7674 = vmatprep.subr.mxu0 0.0
        %7675 = vmatpush1.msra.mxu0 0.0
        %7676 = vmatprep.subr.mxu0 0.0
        %7677 = vmatpush1.msra.mxu0 0.0
        %7678 = vmatprep.subr.mxu0 0.0
        %7679 = vmatpush1.msra.mxu0 0.0
        %7680 = vmatprep.subr.mxu0 0.0
        %7681 = vmatpush1.msra.mxu0 0.0
        %7682 = vmatprep.subr.mxu0 0.0
        %7683 = vmatpush1.msra.mxu0 0.0
        %7684 = vmatprep.subr.mxu0 0.0
        %7685 = vmatpush1.msra.mxu0 0.0
        %7686 = vmatprep.subr.mxu0 0.0
        %7687 = vmatpush1.msra.mxu0 0.0
        %7688 = vmatprep.subr.mxu0 0.0
        %7689 = vmatpush1.msra.mxu0 0.0
        %7690 = vmatprep.subr.mxu0 0.0
        %7691 = vmatpush1.msra.mxu0 0.0
        %7692 = vmatprep.subr.mxu0 0.0
        %7693 = vmatpush1.msra.mxu0 0.0
        %7694 = vmatprep.subr.mxu0 0.0
        %7695 = vmatpush1.msra.mxu0 0.0
        %7696 = vmatprep.subr.mxu0 0.0
        %7697 = vmatpush1.msra.mxu0 0.0
        %7698 = vmatprep.subr.mxu0 0.0
        %7699 = vmatpush1.msra.mxu0 0.0
        %7700 = vmatprep.subr.mxu0 0.0
        %7701 = vmatpush1.msra.mxu0 0.0
        %7702 = vmatprep.subr.mxu0 0.0
        %7703 = vmatpush1.msra.mxu0 0.0
        %7704 = vmatprep.subr.mxu0 0.0
        %7705 = vmatpush1.msra.mxu0 0.0
        %7706 = vmatprep.subr.mxu0 0.0
        %7707 = vmatpush1.msra.mxu0 0.0
        %7708 = vmatprep.subr.mxu0 0.0
        %7709 = vmatpush1.msra.mxu0 0.0
        %7710 = vmatprep.subr.mxu0 0.0
        %7711 = vmatpush1.msra.mxu0 0.0
        %7712 = vmatprep.subr.mxu0 0.0
        %7713 = vmatpush1.msra.mxu0 0.0
        %7714 = vmatprep.subr.mxu0 0.0
        %7715 = vmatpush1.msra.mxu0 0.0
        %7716 = vmatprep.subr.mxu0 0.0
        %7717 = vmatpush1.msra.mxu0 0.0
        %7718 = vmatprep.subr.mxu0 0.0
        %7719 = vmatpush1.msra.mxu0 0.0
        %7720 = vmatprep.mubr.f32.mxu0 0.0
        %v7721 = vand.u32 %v6941, 4294901760
        %7722 = vmatmul.mubr.f32.gmra.mrb[0].mxu0 %v7721
        %v7723 = vpop.f32.mrb[0].mxu0
        %v7724 = vadd.f32 %v7553, %v7723
        %v7725 = vpop.f32.mrb[0].mxu0
        %7726 = vmatprep.mubr.f32.mxu0 0.0
        %v7727 = vand.u32 %v6944, 4294901760
        %7728 = vmatmul.mubr.f32.gmra.mrb[0].mxu0 %v7727
        %v7729 = vpop.f32.mrb[0].mxu0
        %v7730 = vadd.f32 %v7561, %v7729
        %v7731 = vpop.f32.mrb[0].mxu0
        %7732 = vmatprep.mubr.f32.mxu0 0.0
        %v7733 = vand.u32 %v6947, 4294901760
        %7734 = vmatmul.mubr.f32.gmra.mrb[0].mxu0 %v7733
        %v7735 = vpop.f32.mrb[0].mxu0
        %v7736 = vadd.f32 %v7569, %v7735
        %v7737 = vpop.f32.mrb[0].mxu0
        %7738 = vmatprep.mubr.f32.mxu0 0.0
        %v7739 = vand.u32 %v6950, 4294901760
        %7740 = vmatmul.mubr.f32.gmra.mrb[0].mxu0 %v7739
        %v7741 = vpop.f32.mrb[0].mxu0
        %v7742 = vadd.f32 %v7577, %v7741
        %v7743 = vpop.f32.mrb[0].mxu0
        %7744 = vmatprep.mubr.f32.mxu0 0.0
        %v7745 = vand.u32 %v6953, 4294901760
        %7746 = vmatmul.mubr.f32.gmra.mrb[0].mxu0 %v7745
        %v7747 = vpop.f32.mrb[0].mxu0
        %v7748 = vadd.f32 %v7585, %v7747
        %v7749 = vpop.f32.mrb[0].mxu0
        %7750 = vmatprep.mubr.f32.mxu0 0.0
        %v7751 = vand.u32 %v6956, 4294901760
        %7752 = vmatmul.mubr.f32.gmra.mrb[0].mxu0 %v7751
        %v7753 = vpop.f32.mrb[0].mxu0
        %v7754 = vadd.f32 %v7593, %v7753
        %v7755 = vpop.f32.mrb[0].mxu0
        %7756 = vmatprep.mubr.f32.mxu0 0.0
        %v7757 = vand.u32 %v6959, 4294901760
        %7758 = vmatmul.mubr.f32.gmra.mrb[0].mxu0 %v7757
        %v7759 = vpop.f32.mrb[0].mxu0
        %v7760 = vadd.f32 %v7601, %v7759
        %v7761 = vpop.f32.mrb[0].mxu0
        %7762 = vmatprep.mubr.f32.mxu0 0.0
        %v7763 = vand.u32 %v6962, 4294901760
        %7764 = vmatmul.mubr.f32.gmra.mrb[0].mxu0 %v7763
        %v7765 = vpop.f32.mrb[0].mxu0
        %v7766 = vadd.f32 %v7609, %v7765
        %v7767 = vpop.f32.mrb[0].mxu0
        %7768 = vmatprep.mubr.f32.mxu0 0.0
        %v7769 = vand.u32 %v6965, 4294901760
        %7770 = vmatmul.mubr.f32.gmra.mrb[0].mxu0 %v7769
        %v7771 = vpop.f32.mrb[0].mxu0
        %v7772 = vadd.f32 %v7617, %v7771
        %v7773 = vpop.f32.mrb[0].mxu0
        %7774 = vmatprep.mubr.f32.mxu0 0.0
        %v7775 = vand.u32 %v6968, 4294901760
        %7776 = vmatmul.mubr.f32.gmra.mrb[0].mxu0 %v7775
        %v7777 = vpop.f32.mrb[0].mxu0
        %v7778 = vadd.f32 %v7625, %v7777
        %v7779 = vpop.f32.mrb[0].mxu0
        %7780 = vmatprep.mubr.f32.mxu0 0.0
        %v7781 = vand.u32 %v6971, 4294901760
        %7782 = vmatmul.mubr.f32.gmra.mrb[0].mxu0 %v7781
        %v7783 = vpop.f32.mrb[0].mxu0
        %v7784 = vadd.f32 %v7633, %v7783
        %v7785 = vpop.f32.mrb[0].mxu0
        %7786 = vmatprep.mubr.f32.mxu0 0.0
        %v7787 = vand.u32 %v6974, 4294901760
        %7788 = vmatmul.mubr.f32.gmra.mrb[0].mxu0 %v7787
        %v7789 = vpop.f32.mrb[0].mxu0
        %v7790 = vadd.f32 %v7641, %v7789
        %v7791 = vpop.f32.mrb[0].mxu0
        %7792 = vdwg.mxu0
        %7793 = vmatprep.subr.mxu0 0.0
        %v7794 = vand.u32 %v6924, 4294901760
        %7795 = vmatpush1.msra.mxu0 %v7794
        %7796 = vmatprep.subr.mxu0 0.0
        %v7797 = vand.u32 %v6925, 4294901760
        %7798 = vmatpush1.msra.mxu0 %v7797
        %7799 = vmatprep.subr.mxu0 0.0
        %v7800 = vand.u32 %v6926, 4294901760
        %7801 = vmatpush1.msra.mxu0 %v7800
        %7802 = vmatprep.subr.mxu0 0.0
        %v7803 = vand.u32 %v6927, 4294901760
        %7804 = vmatpush1.msra.mxu0 %v7803
        %7805 = vmatprep.subr.mxu0 0.0
        %7806 = vmatpush1.msra.mxu0 0.0
        %7807 = vmatprep.subr.mxu0 0.0
        %7808 = vmatpush1.msra.mxu0 0.0
        %7809 = vmatprep.subr.mxu0 0.0
        %7810 = vmatpush1.msra.mxu0 0.0
        %7811 = vmatprep.subr.mxu0 0.0
        %7812 = vmatpush1.msra.mxu0 0.0
        %7813 = vmatprep.subr.mxu0 0.0
        %7814 = vmatpush1.msra.mxu0 0.0
        %7815 = vmatprep.subr.mxu0 0.0
        %7816 = vmatpush1.msra.mxu0 0.0
        %7817 = vmatprep.subr.mxu0 0.0
        %7818 = vmatpush1.msra.mxu0 0.0
        %7819 = vmatprep.subr.mxu0 0.0
        %7820 = vmatpush1.msra.mxu0 0.0
        %7821 = vmatprep.subr.mxu0 0.0
        %7822 = vmatpush1.msra.mxu0 0.0
        %7823 = vmatprep.subr.mxu0 0.0
        %7824 = vmatpush1.msra.mxu0 0.0
        %7825 = vmatprep.subr.mxu0 0.0
        %7826 = vmatpush1.msra.mxu0 0.0
        %7827 = vmatprep.subr.mxu0 0.0
        %7828 = vmatpush1.msra.mxu0 0.0
        %7829 = vmatprep.subr.mxu0 0.0
        %7830 = vmatpush1.msra.mxu0 0.0
        %7831 = vmatprep.subr.mxu0 0.0
        %7832 = vmatpush1.msra.mxu0 0.0
        %7833 = vmatprep.subr.mxu0 0.0
        %7834 = vmatpush1.msra.mxu0 0.0
        %7835 = vmatprep.subr.mxu0 0.0
        %7836 = vmatpush1.msra.mxu0 0.0
        %7837 = vmatprep.subr.mxu0 0.0
        %7838 = vmatpush1.msra.mxu0 0.0
        %7839 = vmatprep.subr.mxu0 0.0
        %7840 = vmatpush1.msra.mxu0 0.0
        %7841 = vmatprep.subr.mxu0 0.0
        %7842 = vmatpush1.msra.mxu0 0.0
        %7843 = vmatprep.subr.mxu0 0.0
        %7844 = vmatpush1.msra.mxu0 0.0
        %7845 = vmatprep.subr.mxu0 0.0
        %7846 = vmatpush1.msra.mxu0 0.0
        %7847 = vmatprep.subr.mxu0 0.0
        %7848 = vmatpush1.msra.mxu0 0.0
        %7849 = vmatprep.subr.mxu0 0.0
        %7850 = vmatpush1.msra.mxu0 0.0
        %7851 = vmatprep.subr.mxu0 0.0
        %7852 = vmatpush1.msra.mxu0 0.0
        %7853 = vmatprep.subr.mxu0 0.0
        %7854 = vmatpush1.msra.mxu0 0.0
        %7855 = vmatprep.subr.mxu0 0.0
        %7856 = vmatpush1.msra.mxu0 0.0
        %7857 = vmatprep.subr.mxu0 0.0
        %7858 = vmatpush1.msra.mxu0 0.0
        %7859 = vmatprep.subr.mxu0 0.0
        %7860 = vmatpush1.msra.mxu0 0.0
        %7861 = vmatprep.mubr.f32.mxu0 0.0
        %v7862 = vand.u32 %v6941, 4294901760
        %7863 = vmatmul.mubr.f32.gmra.mrb[0].mxu0 %v7862
        %v7864 = vpop.f32.mrb[0].mxu0
        %v7865 = vadd.f32 %v7724, %v7864
        %v7866 = vpop.f32.mrb[0].mxu0
        %7867 = vmatprep.mubr.f32.mxu0 0.0
        %v7868 = vand.u32 %v6944, 4294901760
        %7869 = vmatmul.mubr.f32.gmra.mrb[0].mxu0 %v7868
        %v7870 = vpop.f32.mrb[0].mxu0
        %v7871 = vadd.f32 %v7730, %v7870
        %v7872 = vpop.f32.mrb[0].mxu0
        %7873 = vmatprep.mubr.f32.mxu0 0.0
        %v7874 = vand.u32 %v6947, 4294901760
        %7875 = vmatmul.mubr.f32.gmra.mrb[0].mxu0 %v7874
        %v7876 = vpop.f32.mrb[0].mxu0
        %v7877 = vadd.f32 %v7736, %v7876
        %v7878 = vpop.f32.mrb[0].mxu0
        %7879 = vmatprep.mubr.f32.mxu0 0.0
        %v7880 = vand.u32 %v6950, 4294901760
        %7881 = vmatmul.mubr.f32.gmra.mrb[0].mxu0 %v7880
        %v7882 = vpop.f32.mrb[0].mxu0
        %v7883 = vadd.f32 %v7742, %v7882
        %v7884 = vpop.f32.mrb[0].mxu0
        %7885 = vmatprep.mubr.f32.mxu0 0.0
        %v7886 = vand.u32 %v6953, 4294901760
        %7887 = vmatmul.mubr.f32.gmra.mrb[0].mxu0 %v7886
        %v7888 = vpop.f32.mrb[0].mxu0
        %v7889 = vadd.f32 %v7748, %v7888
        %v7890 = vpop.f32.mrb[0].mxu0
        %7891 = vmatprep.mubr.f32.mxu0 0.0
        %v7892 = vand.u32 %v6956, 4294901760
        %7893 = vmatmul.mubr.f32.gmra.mrb[0].mxu0 %v7892
        %v7894 = vpop.f32.mrb[0].mxu0
        %v7895 = vadd.f32 %v7754, %v7894
        %v7896 = vpop.f32.mrb[0].mxu0
        %7897 = vmatprep.mubr.f32.mxu0 0.0
        %v7898 = vand.u32 %v6959, 4294901760
        %7899 = vmatmul.mubr.f32.gmra.mrb[0].mxu0 %v7898
        %v7900 = vpop.f32.mrb[0].mxu0
        %v7901 = vadd.f32 %v7760, %v7900
        %v7902 = vpop.f32.mrb[0].mxu0
        %7903 = vmatprep.mubr.f32.mxu0 0.0
        %v7904 = vand.u32 %v6962, 4294901760
        %7905 = vmatmul.mubr.f32.gmra.mrb[0].mxu0 %v7904
        %v7906 = vpop.f32.mrb[0].mxu0
        %v7907 = vadd.f32 %v7766, %v7906
        %v7908 = vpop.f32.mrb[0].mxu0
        %7909 = vmatprep.mubr.f32.mxu0 0.0
        %v7910 = vand.u32 %v6965, 4294901760
        %7911 = vmatmul.mubr.f32.gmra.mrb[0].mxu0 %v7910
        %v7912 = vpop.f32.mrb[0].mxu0
        %v7913 = vadd.f32 %v7772, %v7912
        %v7914 = vpop.f32.mrb[0].mxu0
        %7915 = vmatprep.mubr.f32.mxu0 0.0
        %v7916 = vand.u32 %v6968, 4294901760
        %7917 = vmatmul.mubr.f32.gmra.mrb[0].mxu0 %v7916
        %v7918 = vpop.f32.mrb[0].mxu0
        %v7919 = vadd.f32 %v7778, %v7918
        %v7920 = vpop.f32.mrb[0].mxu0
        %7921 = vmatprep.mubr.f32.mxu0 0.0
        %v7922 = vand.u32 %v6971, 4294901760
        %7923 = vmatmul.mubr.f32.gmra.mrb[0].mxu0 %v7922
        %v7924 = vpop.f32.mrb[0].mxu0
        %v7925 = vadd.f32 %v7784, %v7924
        %v7926 = vpop.f32.mrb[0].mxu0
        %7927 = vmatprep.mubr.f32.mxu0 0.0
        %v7928 = vand.u32 %v6974, 4294901760
        %7929 = vmatmul.mubr.f32.gmra.mrb[0].mxu0 %v7928
        %v7930 = vpop.f32.mrb[0].mxu0
        %v7931 = vadd.f32 %v7790, %v7930
        %v7932 = vpop.f32.mrb[0].mxu0
        %7933 = vdwg.mxu0
        %v7934 = vadd.f32 %v3454, %v7865
        %v7935 = vadd.f32 %v3460, %v7871
        %v7936 = vadd.f32 %v3466, %v7877
        %v7937 = vadd.f32 %v3472, %v7883
        %v7938 = vadd.f32 %v3478, %v7889
        %v7939 = vadd.f32 %v3484, %v7895
        %v7940 = vadd.f32 %v3490, %v7901
        %v7941 = vadd.f32 %v3496, %v7907
        %v7942 = vadd.f32 %v3502, %v7913
        %v7943 = vadd.f32 %v3508, %v7919
        %v7944 = vadd.f32 %v3514, %v7925
        %v7945 = vadd.f32 %v3520, %v7931
        %v7946 = vtanh.pop %v7934
        %v7947 = vtanh.pop %v7935
        %v7948 = vtanh.pop %v7936
        %v7949 = vtanh.pop %v7937
        %v7950 = vtanh.pop %v7938
        %v7951 = vtanh.pop %v7939
        %v7952 = vtanh.pop %v7940
        %v7953 = vtanh.pop %v7941
        %v7954 = vtanh.pop %v7942
        %v7955 = vtanh.pop %v7943
        %v7956 = vtanh.pop %v7944
        %v7957 = vtanh.pop %v7945
        %v7958 = vmul.f32 %v6924, %v7954
        %v7959 = vmul.f32 %v6925, %v7955
        %v7960 = vmul.f32 %v6926, %v7956
        %v7961 = vmul.f32 %v6927, %v7957
        %v7962 = vld [vmem:[%s8] sm:$0xff]
        %v7963 = vld [vmem:[%s8 + $0x8] sm:$0xff]
        %v7964 = vld [vmem:[%s8 + $0x10] sm:$0xff]
        %v7965 = vld [vmem:[%s8 + $0x18] sm:$0xff]
        %v7967 = vsel %vm3563, %v7962, 0
        %v7970 = vsel %vm3563, %v7963, 0
        %v7973 = vsel %vm3563, %v7964, 0
        %v7976 = vsel %vm3563, %v7965, 0
        %7978 = vmatprep.subr.mxu0 0.0
        %v7979 = vand.u32 %v7958, 4294901760
        %7980 = vmatpush1.msra.mxu0 %v7979
        %7981 = vmatprep.subr.mxu0 0.0
        %v7982 = vand.u32 %v7959, 4294901760
        %7983 = vmatpush1.msra.mxu0 %v7982
        %7984 = vmatprep.subr.mxu0 0.0
        %v7985 = vand.u32 %v7960, 4294901760
        %7986 = vmatpush1.msra.mxu0 %v7985
        %7987 = vmatprep.subr.mxu0 0.0
        %v7988 = vand.u32 %v7961, 4294901760
        %7989 = vmatpush1.msra.mxu0 %v7988
        %7990 = vmatprep.subr.mxu0 0.0
        %7991 = vmatpush1.msra.mxu0 0.0
        %7992 = vmatprep.subr.mxu0 0.0
        %7993 = vmatpush1.msra.mxu0 0.0
        %7994 = vmatprep.subr.mxu0 0.0
        %7995 = vmatpush1.msra.mxu0 0.0
        %7996 = vmatprep.subr.mxu0 0.0
        %7997 = vmatpush1.msra.mxu0 0.0
        %7998 = vmatprep.subr.mxu0 0.0
        %7999 = vmatpush1.msra.mxu0 0.0
        %8000 = vmatprep.subr.mxu0 0.0
        %8001 = vmatpush1.msra.mxu0 0.0
        %8002 = vmatprep.subr.mxu0 0.0
        %8003 = vmatpush1.msra.mxu0 0.0
        %8004 = vmatprep.subr.mxu0 0.0
        %8005 = vmatpush1.msra.mxu0 0.0
        %8006 = vmatprep.subr.mxu0 0.0
        %8007 = vmatpush1.msra.mxu0 0.0
        %8008 = vmatprep.subr.mxu0 0.0
        %8009 = vmatpush1.msra.mxu0 0.0
        %8010 = vmatprep.subr.mxu0 0.0
        %8011 = vmatpush1.msra.mxu0 0.0
        %8012 = vmatprep.subr.mxu0 0.0
        %8013 = vmatpush1.msra.mxu0 0.0
        %8014 = vmatprep.subr.mxu0 0.0
        %8015 = vmatpush1.msra.mxu0 0.0
        %8016 = vmatprep.subr.mxu0 0.0
        %8017 = vmatpush1.msra.mxu0 0.0
        %8018 = vmatprep.subr.mxu0 0.0
        %8019 = vmatpush1.msra.mxu0 0.0
        %8020 = vmatprep.subr.mxu0 0.0
        %8021 = vmatpush1.msra.mxu0 0.0
        %8022 = vmatprep.subr.mxu0 0.0
        %8023 = vmatpush1.msra.mxu0 0.0
        %8024 = vmatprep.subr.mxu0 0.0
        %8025 = vmatpush1.msra.mxu0 0.0
        %8026 = vmatprep.subr.mxu0 0.0
        %8027 = vmatpush1.msra.mxu0 0.0
        %8028 = vmatprep.subr.mxu0 0.0
        %8029 = vmatpush1.msra.mxu0 0.0
        %8030 = vmatprep.subr.mxu0 0.0
        %8031 = vmatpush1.msra.mxu0 0.0
        %8032 = vmatprep.subr.mxu0 0.0
        %8033 = vmatpush1.msra.mxu0 0.0
        %8034 = vmatprep.subr.mxu0 0.0
        %8035 = vmatpush1.msra.mxu0 0.0
        %8036 = vmatprep.subr.mxu0 0.0
        %8037 = vmatpush1.msra.mxu0 0.0
        %8038 = vmatprep.subr.mxu0 0.0
        %8039 = vmatpush1.msra.mxu0 0.0
        %8040 = vmatprep.subr.mxu0 0.0
        %8041 = vmatpush1.msra.mxu0 0.0
        %8042 = vmatprep.subr.mxu0 0.0
        %8043 = vmatpush1.msra.mxu0 0.0
        %8044 = vmatprep.subr.mxu0 0.0
        %8045 = vmatpush1.msra.mxu0 0.0
        %8046 = vmatprep.mubr.f32.mxu0 0.0
        %v8047 = vand.u32 %v7967, 4294901760
        %v8048 = vsub.f32 %v7967, %v8047
        %v8049 = vand.u32 %v8048, 4294901760
        %v8050 = vsub.f32 %v8048, %v8049
        %v8051 = vand.u32 %v8050, 4294901760
        %8052 = vmatmul.mubr.f32.gmra.mrb[0].mxu0 %v8051
        %v8053 = vpop.f32.mrb[0].mxu0
        %v8054 = vadd.f32 0.0, %v8053
        %v8055 = vpop.f32.mrb[0].mxu0
        %8056 = vmatprep.mubr.f32.mxu0 0.0
        %v8057 = vand.u32 %v7970, 4294901760
        %v8058 = vsub.f32 %v7970, %v8057
        %v8059 = vand.u32 %v8058, 4294901760
        %v8060 = vsub.f32 %v8058, %v8059
        %v8061 = vand.u32 %v8060, 4294901760
        %8062 = vmatmul.mubr.f32.gmra.mrb[0].mxu0 %v8061
        %v8063 = vpop.f32.mrb[0].mxu0
        %v8064 = vadd.f32 0.0, %v8063
        %v8065 = vpop.f32.mrb[0].mxu0
        %8066 = vmatprep.mubr.f32.mxu0 0.0
        %v8067 = vand.u32 %v7973, 4294901760
        %v8068 = vsub.f32 %v7973, %v8067
        %v8069 = vand.u32 %v8068, 4294901760
        %v8070 = vsub.f32 %v8068, %v8069
        %v8071 = vand.u32 %v8070, 4294901760
        %8072 = vmatmul.mubr.f32.gmra.mrb[0].mxu0 %v8071
        %v8073 = vpop.f32.mrb[0].mxu0
        %v8074 = vadd.f32 0.0, %v8073
        %v8075 = vpop.f32.mrb[0].mxu0
        %8076 = vmatprep.mubr.f32.mxu0 0.0
        %v8077 = vand.u32 %v7976, 4294901760
        %v8078 = vsub.f32 %v7976, %v8077
        %v8079 = vand.u32 %v8078, 4294901760
        %v8080 = vsub.f32 %v8078, %v8079
        %v8081 = vand.u32 %v8080, 4294901760
        %8082 = vmatmul.mubr.f32.gmra.mrb[0].mxu0 %v8081
        %v8083 = vpop.f32.mrb[0].mxu0
        %v8084 = vadd.f32 0.0, %v8083
        %v8085 = vpop.f32.mrb[0].mxu0
        %8086 = vdwg.mxu0
        %8087 = vmatprep.subr.mxu0 0.0
        %v8088 = vand.u32 %v7958, 4294901760
        %v8089 = vsub.f32 %v7958, %v8088
        %v8090 = vand.u32 %v8089, 4294901760
        %v8091 = vsub.f32 %v8089, %v8090
        %v8092 = vand.u32 %v8091, 4294901760
        %8093 = vmatpush1.msra.mxu0 %v8092
        %8094 = vmatprep.subr.mxu0 0.0
        %v8095 = vand.u32 %v7959, 4294901760
        %v8096 = vsub.f32 %v7959, %v8095
        %v8097 = vand.u32 %v8096, 4294901760
        %v8098 = vsub.f32 %v8096, %v8097
        %v8099 = vand.u32 %v8098, 4294901760
        %8100 = vmatpush1.msra.mxu0 %v8099
        %8101 = vmatprep.subr.mxu0 0.0
        %v8102 = vand.u32 %v7960, 4294901760
        %v8103 = vsub.f32 %v7960, %v8102
        %v8104 = vand.u32 %v8103, 4294901760
        %v8105 = vsub.f32 %v8103, %v8104
        %v8106 = vand.u32 %v8105, 4294901760
        %8107 = vmatpush1.msra.mxu0 %v8106
        %8108 = vmatprep.subr.mxu0 0.0
        %v8109 = vand.u32 %v7961, 4294901760
        %v8110 = vsub.f32 %v7961, %v8109
        %v8111 = vand.u32 %v8110, 4294901760
        %v8112 = vsub.f32 %v8110, %v8111
        %v8113 = vand.u32 %v8112, 4294901760
        %8114 = vmatpush1.msra.mxu0 %v8113
        %8115 = vmatprep.subr.mxu0 0.0
        %8116 = vmatpush1.msra.mxu0 0.0
        %8117 = vmatprep.subr.mxu0 0.0
        %8118 = vmatpush1.msra.mxu0 0.0
        %8119 = vmatprep.subr.mxu0 0.0
        %8120 = vmatpush1.msra.mxu0 0.0
        %8121 = vmatprep.subr.mxu0 0.0
        %8122 = vmatpush1.msra.mxu0 0.0
        %8123 = vmatprep.subr.mxu0 0.0
        %8124 = vmatpush1.msra.mxu0 0.0
        %8125 = vmatprep.subr.mxu0 0.0
        %8126 = vmatpush1.msra.mxu0 0.0
        %8127 = vmatprep.subr.mxu0 0.0
        %8128 = vmatpush1.msra.mxu0 0.0
        %8129 = vmatprep.subr.mxu0 0.0
        %8130 = vmatpush1.msra.mxu0 0.0
        %8131 = vmatprep.subr.mxu0 0.0
        %8132 = vmatpush1.msra.mxu0 0.0
        %8133 = vmatprep.subr.mxu0 0.0
        %8134 = vmatpush1.msra.mxu0 0.0
        %8135 = vmatprep.subr.mxu0 0.0
        %8136 = vmatpush1.msra.mxu0 0.0
        %8137 = vmatprep.subr.mxu0 0.0
        %8138 = vmatpush1.msra.mxu0 0.0
        %8139 = vmatprep.subr.mxu0 0.0
        %8140 = vmatpush1.msra.mxu0 0.0
        %8141 = vmatprep.subr.mxu0 0.0
        %8142 = vmatpush1.msra.mxu0 0.0
        %8143 = vmatprep.subr.mxu0 0.0
        %8144 = vmatpush1.msra.mxu0 0.0
        %8145 = vmatprep.subr.mxu0 0.0
        %8146 = vmatpush1.msra.mxu0 0.0
        %8147 = vmatprep.subr.mxu0 0.0
        %8148 = vmatpush1.msra.mxu0 0.0
        %8149 = vmatprep.subr.mxu0 0.0
        %8150 = vmatpush1.msra.mxu0 0.0
        %8151 = vmatprep.subr.mxu0 0.0
        %8152 = vmatpush1.msra.mxu0 0.0
        %8153 = vmatprep.subr.mxu0 0.0
        %8154 = vmatpush1.msra.mxu0 0.0
        %8155 = vmatprep.subr.mxu0 0.0
        %8156 = vmatpush1.msra.mxu0 0.0
        %8157 = vmatprep.subr.mxu0 0.0
        %8158 = vmatpush1.msra.mxu0 0.0
        %8159 = vmatprep.subr.mxu0 0.0
        %8160 = vmatpush1.msra.mxu0 0.0
        %8161 = vmatprep.subr.mxu0 0.0
        %8162 = vmatpush1.msra.mxu0 0.0
        %8163 = vmatprep.subr.mxu0 0.0
        %8164 = vmatpush1.msra.mxu0 0.0
        %8165 = vmatprep.subr.mxu0 0.0
        %8166 = vmatpush1.msra.mxu0 0.0
        %8167 = vmatprep.subr.mxu0 0.0
        %8168 = vmatpush1.msra.mxu0 0.0
        %8169 = vmatprep.subr.mxu0 0.0
        %8170 = vmatpush1.msra.mxu0 0.0
        %8171 = vmatprep.mubr.f32.mxu0 0.0
        %v8172 = vand.u32 %v7967, 4294901760
        %8173 = vmatmul.mubr.f32.gmra.mrb[0].mxu0 %v8172
        %v8174 = vpop.f32.mrb[0].mxu0
        %v8175 = vadd.f32 %v8054, %v8174
        %v8176 = vpop.f32.mrb[0].mxu0
        %8177 = vmatprep.mubr.f32.mxu0 0.0
        %v8178 = vand.u32 %v7970, 4294901760
        %8179 = vmatmul.mubr.f32.gmra.mrb[0].mxu0 %v8178
        %v8180 = vpop.f32.mrb[0].mxu0
        %v8181 = vadd.f32 %v8064, %v8180
        %v8182 = vpop.f32.mrb[0].mxu0
        %8183 = vmatprep.mubr.f32.mxu0 0.0
        %v8184 = vand.u32 %v7973, 4294901760
        %8185 = vmatmul.mubr.f32.gmra.mrb[0].mxu0 %v8184
        %v8186 = vpop.f32.mrb[0].mxu0
        %v8187 = vadd.f32 %v8074, %v8186
        %v8188 = vpop.f32.mrb[0].mxu0
        %8189 = vmatprep.mubr.f32.mxu0 0.0
        %v8190 = vand.u32 %v7976, 4294901760
        %8191 = vmatmul.mubr.f32.gmra.mrb[0].mxu0 %v8190
        %v8192 = vpop.f32.mrb[0].mxu0
        %v8193 = vadd.f32 %v8084, %v8192
        %v8194 = vpop.f32.mrb[0].mxu0
        %8195 = vdwg.mxu0
        %8196 = vmatprep.subr.mxu0 0.0
        %v8197 = vand.u32 %v7958, 4294901760
        %v8198 = vsub.f32 %v7958, %v8197
        %8199 = vmatpush1.msra.mxu0 %v8198
        %8200 = vmatprep.subr.mxu0 0.0
        %v8201 = vand.u32 %v7959, 4294901760
        %v8202 = vsub.f32 %v7959, %v8201
        %8203 = vmatpush1.msra.mxu0 %v8202
        %8204 = vmatprep.subr.mxu0 0.0
        %v8205 = vand.u32 %v7960, 4294901760
        %v8206 = vsub.f32 %v7960, %v8205
        %8207 = vmatpush1.msra.mxu0 %v8206
        %8208 = vmatprep.subr.mxu0 0.0
        %v8209 = vand.u32 %v7961, 4294901760
        %v8210 = vsub.f32 %v7961, %v8209
        %8211 = vmatpush1.msra.mxu0 %v8210
        %8212 = vmatprep.subr.mxu0 0.0
        %8213 = vmatpush1.msra.mxu0 0.0
        %8214 = vmatprep.subr.mxu0 0.0
        %8215 = vmatpush1.msra.mxu0 0.0
        %8216 = vmatprep.subr.mxu0 0.0
        %8217 = vmatpush1.msra.mxu0 0.0
        %8218 = vmatprep.subr.mxu0 0.0
        %8219 = vmatpush1.msra.mxu0 0.0
        %8220 = vmatprep.subr.mxu0 0.0
        %8221 = vmatpush1.msra.mxu0 0.0
        %8222 = vmatprep.subr.mxu0 0.0
        %8223 = vmatpush1.msra.mxu0 0.0
        %8224 = vmatprep.subr.mxu0 0.0
        %8225 = vmatpush1.msra.mxu0 0.0
        %8226 = vmatprep.subr.mxu0 0.0
        %8227 = vmatpush1.msra.mxu0 0.0
        %8228 = vmatprep.subr.mxu0 0.0
        %8229 = vmatpush1.msra.mxu0 0.0
        %8230 = vmatprep.subr.mxu0 0.0
        %8231 = vmatpush1.msra.mxu0 0.0
        %8232 = vmatprep.subr.mxu0 0.0
        %8233 = vmatpush1.msra.mxu0 0.0
        %8234 = vmatprep.subr.mxu0 0.0
        %8235 = vmatpush1.msra.mxu0 0.0
        %8236 = vmatprep.subr.mxu0 0.0
        %8237 = vmatpush1.msra.mxu0 0.0
        %8238 = vmatprep.subr.mxu0 0.0
        %8239 = vmatpush1.msra.mxu0 0.0
        %8240 = vmatprep.subr.mxu0 0.0
        %8241 = vmatpush1.msra.mxu0 0.0
        %8242 = vmatprep.subr.mxu0 0.0
        %8243 = vmatpush1.msra.mxu0 0.0
        %8244 = vmatprep.subr.mxu0 0.0
        %8245 = vmatpush1.msra.mxu0 0.0
        %8246 = vmatprep.subr.mxu0 0.0
        %8247 = vmatpush1.msra.mxu0 0.0
        %8248 = vmatprep.subr.mxu0 0.0
        %8249 = vmatpush1.msra.mxu0 0.0
        %8250 = vmatprep.subr.mxu0 0.0
        %8251 = vmatpush1.msra.mxu0 0.0
        %8252 = vmatprep.subr.mxu0 0.0
        %8253 = vmatpush1.msra.mxu0 0.0
        %8254 = vmatprep.subr.mxu0 0.0
        %8255 = vmatpush1.msra.mxu0 0.0
        %8256 = vmatprep.subr.mxu0 0.0
        %8257 = vmatpush1.msra.mxu0 0.0
        %8258 = vmatprep.subr.mxu0 0.0
        %8259 = vmatpush1.msra.mxu0 0.0
        %8260 = vmatprep.subr.mxu0 0.0
        %8261 = vmatpush1.msra.mxu0 0.0
        %8262 = vmatprep.subr.mxu0 0.0
        %8263 = vmatpush1.msra.mxu0 0.0
        %8264 = vmatprep.subr.mxu0 0.0
        %8265 = vmatpush1.msra.mxu0 0.0
        %8266 = vmatprep.subr.mxu0 0.0
        %8267 = vmatpush1.msra.mxu0 0.0
        %8268 = vmatprep.mubr.f32.mxu0 0.0
        %v8269 = vand.u32 %v7967, 4294901760
        %v8270 = vsub.f32 %v7967, %v8269
        %8271 = vmatmul.mubr.f32.gmra.mrb[0].mxu0 %v8270
        %v8272 = vpop.f32.mrb[0].mxu0
        %v8273 = vadd.f32 %v8175, %v8272
        %v8274 = vpop.f32.mrb[0].mxu0
        %8275 = vmatprep.mubr.f32.mxu0 0.0
        %v8276 = vand.u32 %v7970, 4294901760
        %v8277 = vsub.f32 %v7970, %v8276
        %8278 = vmatmul.mubr.f32.gmra.mrb[0].mxu0 %v8277
        %v8279 = vpop.f32.mrb[0].mxu0
        %v8280 = vadd.f32 %v8181, %v8279
        %v8281 = vpop.f32.mrb[0].mxu0
        %8282 = vmatprep.mubr.f32.mxu0 0.0
        %v8283 = vand.u32 %v7973, 4294901760
        %v8284 = vsub.f32 %v7973, %v8283
        %8285 = vmatmul.mubr.f32.gmra.mrb[0].mxu0 %v8284
        %v8286 = vpop.f32.mrb[0].mxu0
        %v8287 = vadd.f32 %v8187, %v8286
        %v8288 = vpop.f32.mrb[0].mxu0
        %8289 = vmatprep.mubr.f32.mxu0 0.0
        %v8290 = vand.u32 %v7976, 4294901760
        %v8291 = vsub.f32 %v7976, %v8290
        %8292 = vmatmul.mubr.f32.gmra.mrb[0].mxu0 %v8291
        %v8293 = vpop.f32.mrb[0].mxu0
        %v8294 = vadd.f32 %v8193, %v8293
        %v8295 = vpop.f32.mrb[0].mxu0
        %8296 = vdwg.mxu0
        %8297 = vmatprep.subr.mxu0 0.0
        %v8298 = vand.u32 %v7958, 4294901760
        %8299 = vmatpush1.msra.mxu0 %v8298
        %8300 = vmatprep.subr.mxu0 0.0
        %v8301 = vand.u32 %v7959, 4294901760
        %8302 = vmatpush1.msra.mxu0 %v8301
        %8303 = vmatprep.subr.mxu0 0.0
        %v8304 = vand.u32 %v7960, 4294901760
        %8305 = vmatpush1.msra.mxu0 %v8304
        %8306 = vmatprep.subr.mxu0 0.0
        %v8307 = vand.u32 %v7961, 4294901760
        %8308 = vmatpush1.msra.mxu0 %v8307
        %8309 = vmatprep.subr.mxu0 0.0
        %8310 = vmatpush1.msra.mxu0 0.0
        %8311 = vmatprep.subr.mxu0 0.0
        %8312 = vmatpush1.msra.mxu0 0.0
        %8313 = vmatprep.subr.mxu0 0.0
        %8314 = vmatpush1.msra.mxu0 0.0
        %8315 = vmatprep.subr.mxu0 0.0
        %8316 = vmatpush1.msra.mxu0 0.0
        %8317 = vmatprep.subr.mxu0 0.0
        %8318 = vmatpush1.msra.mxu0 0.0
        %8319 = vmatprep.subr.mxu0 0.0
        %8320 = vmatpush1.msra.mxu0 0.0
        %8321 = vmatprep.subr.mxu0 0.0
        %8322 = vmatpush1.msra.mxu0 0.0
        %8323 = vmatprep.subr.mxu0 0.0
        %8324 = vmatpush1.msra.mxu0 0.0
        %8325 = vmatprep.subr.mxu0 0.0
        %8326 = vmatpush1.msra.mxu0 0.0
        %8327 = vmatprep.subr.mxu0 0.0
        %8328 = vmatpush1.msra.mxu0 0.0
        %8329 = vmatprep.subr.mxu0 0.0
        %8330 = vmatpush1.msra.mxu0 0.0
        %8331 = vmatprep.subr.mxu0 0.0
        %8332 = vmatpush1.msra.mxu0 0.0
        %8333 = vmatprep.subr.mxu0 0.0
        %8334 = vmatpush1.msra.mxu0 0.0
        %8335 = vmatprep.subr.mxu0 0.0
        %8336 = vmatpush1.msra.mxu0 0.0
        %8337 = vmatprep.subr.mxu0 0.0
        %8338 = vmatpush1.msra.mxu0 0.0
        %8339 = vmatprep.subr.mxu0 0.0
        %8340 = vmatpush1.msra.mxu0 0.0
        %8341 = vmatprep.subr.mxu0 0.0
        %8342 = vmatpush1.msra.mxu0 0.0
        %8343 = vmatprep.subr.mxu0 0.0
        %8344 = vmatpush1.msra.mxu0 0.0
        %8345 = vmatprep.subr.mxu0 0.0
        %8346 = vmatpush1.msra.mxu0 0.0
        %8347 = vmatprep.subr.mxu0 0.0
        %8348 = vmatpush1.msra.mxu0 0.0
        %8349 = vmatprep.subr.mxu0 0.0
        %8350 = vmatpush1.msra.mxu0 0.0
        %8351 = vmatprep.subr.mxu0 0.0
        %8352 = vmatpush1.msra.mxu0 0.0
        %8353 = vmatprep.subr.mxu0 0.0
        %8354 = vmatpush1.msra.mxu0 0.0
        %8355 = vmatprep.subr.mxu0 0.0
        %8356 = vmatpush1.msra.mxu0 0.0
        %8357 = vmatprep.subr.mxu0 0.0
        %8358 = vmatpush1.msra.mxu0 0.0
        %8359 = vmatprep.subr.mxu0 0.0
        %8360 = vmatpush1.msra.mxu0 0.0
        %8361 = vmatprep.subr.mxu0 0.0
        %8362 = vmatpush1.msra.mxu0 0.0
        %8363 = vmatprep.subr.mxu0 0.0
        %8364 = vmatpush1.msra.mxu0 0.0
        %8365 = vmatprep.mubr.f32.mxu0 0.0
        %v8366 = vand.u32 %v7967, 4294901760
        %v8367 = vsub.f32 %v7967, %v8366
        %v8368 = vand.u32 %v8367, 4294901760
        %8369 = vmatmul.mubr.f32.gmra.mrb[0].mxu0 %v8368
        %v8370 = vpop.f32.mrb[0].mxu0
        %v8371 = vadd.f32 %v8273, %v8370
        %v8372 = vpop.f32.mrb[0].mxu0
        %8373 = vmatprep.mubr.f32.mxu0 0.0
        %v8374 = vand.u32 %v7970, 4294901760
        %v8375 = vsub.f32 %v7970, %v8374
        %v8376 = vand.u32 %v8375, 4294901760
        %8377 = vmatmul.mubr.f32.gmra.mrb[0].mxu0 %v8376
        %v8378 = vpop.f32.mrb[0].mxu0
        %v8379 = vadd.f32 %v8280, %v8378
        %v8380 = vpop.f32.mrb[0].mxu0
        %8381 = vmatprep.mubr.f32.mxu0 0.0
        %v8382 = vand.u32 %v7973, 4294901760
        %v8383 = vsub.f32 %v7973, %v8382
        %v8384 = vand.u32 %v8383, 4294901760
        %8385 = vmatmul.mubr.f32.gmra.mrb[0].mxu0 %v8384
        %v8386 = vpop.f32.mrb[0].mxu0
        %v8387 = vadd.f32 %v8287, %v8386
        %v8388 = vpop.f32.mrb[0].mxu0
        %8389 = vmatprep.mubr.f32.mxu0 0.0
        %v8390 = vand.u32 %v7976, 4294901760
        %v8391 = vsub.f32 %v7976, %v8390
        %v8392 = vand.u32 %v8391, 4294901760
        %8393 = vmatmul.mubr.f32.gmra.mrb[0].mxu0 %v8392
        %v8394 = vpop.f32.mrb[0].mxu0
        %v8395 = vadd.f32 %v8294, %v8394
        %v8396 = vpop.f32.mrb[0].mxu0
        %8397 = vdwg.mxu0
        %8398 = vmatprep.subr.mxu0 0.0
        %v8399 = vand.u32 %v7958, 4294901760
        %v8400 = vsub.f32 %v7958, %v8399
        %v8401 = vand.u32 %v8400, 4294901760
        %8402 = vmatpush1.msra.mxu0 %v8401
        %8403 = vmatprep.subr.mxu0 0.0
        %v8404 = vand.u32 %v7959, 4294901760
        %v8405 = vsub.f32 %v7959, %v8404
        %v8406 = vand.u32 %v8405, 4294901760
        %8407 = vmatpush1.msra.mxu0 %v8406
        %8408 = vmatprep.subr.mxu0 0.0
        %v8409 = vand.u32 %v7960, 4294901760
        %v8410 = vsub.f32 %v7960, %v8409
        %v8411 = vand.u32 %v8410, 4294901760
        %8412 = vmatpush1.msra.mxu0 %v8411
        %8413 = vmatprep.subr.mxu0 0.0
        %v8414 = vand.u32 %v7961, 4294901760
        %v8415 = vsub.f32 %v7961, %v8414
        %v8416 = vand.u32 %v8415, 4294901760
        %8417 = vmatpush1.msra.mxu0 %v8416
        %8418 = vmatprep.subr.mxu0 0.0
        %8419 = vmatpush1.msra.mxu0 0.0
        %8420 = vmatprep.subr.mxu0 0.0
        %8421 = vmatpush1.msra.mxu0 0.0
        %8422 = vmatprep.subr.mxu0 0.0
        %8423 = vmatpush1.msra.mxu0 0.0
        %8424 = vmatprep.subr.mxu0 0.0
        %8425 = vmatpush1.msra.mxu0 0.0
        %8426 = vmatprep.subr.mxu0 0.0
        %8427 = vmatpush1.msra.mxu0 0.0
        %8428 = vmatprep.subr.mxu0 0.0
        %8429 = vmatpush1.msra.mxu0 0.0
        %8430 = vmatprep.subr.mxu0 0.0
        %8431 = vmatpush1.msra.mxu0 0.0
        %8432 = vmatprep.subr.mxu0 0.0
        %8433 = vmatpush1.msra.mxu0 0.0
        %8434 = vmatprep.subr.mxu0 0.0
        %8435 = vmatpush1.msra.mxu0 0.0
        %8436 = vmatprep.subr.mxu0 0.0
        %8437 = vmatpush1.msra.mxu0 0.0
        %8438 = vmatprep.subr.mxu0 0.0
        %8439 = vmatpush1.msra.mxu0 0.0
        %8440 = vmatprep.subr.mxu0 0.0
        %8441 = vmatpush1.msra.mxu0 0.0
        %8442 = vmatprep.subr.mxu0 0.0
        %8443 = vmatpush1.msra.mxu0 0.0
        %8444 = vmatprep.subr.mxu0 0.0
        %8445 = vmatpush1.msra.mxu0 0.0
        %8446 = vmatprep.subr.mxu0 0.0
        %8447 = vmatpush1.msra.mxu0 0.0
        %8448 = vmatprep.subr.mxu0 0.0
        %8449 = vmatpush1.msra.mxu0 0.0
        %8450 = vmatprep.subr.mxu0 0.0
        %8451 = vmatpush1.msra.mxu0 0.0
        %8452 = vmatprep.subr.mxu0 0.0
        %8453 = vmatpush1.msra.mxu0 0.0
        %8454 = vmatprep.subr.mxu0 0.0
        %8455 = vmatpush1.msra.mxu0 0.0
        %8456 = vmatprep.subr.mxu0 0.0
        %8457 = vmatpush1.msra.mxu0 0.0
        %8458 = vmatprep.subr.mxu0 0.0
        %8459 = vmatpush1.msra.mxu0 0.0
        %8460 = vmatprep.subr.mxu0 0.0
        %8461 = vmatpush1.msra.mxu0 0.0
        %8462 = vmatprep.subr.mxu0 0.0
        %8463 = vmatpush1.msra.mxu0 0.0
        %8464 = vmatprep.subr.mxu0 0.0
        %8465 = vmatpush1.msra.mxu0 0.0
        %8466 = vmatprep.subr.mxu0 0.0
        %8467 = vmatpush1.msra.mxu0 0.0
        %8468 = vmatprep.subr.mxu0 0.0
        %8469 = vmatpush1.msra.mxu0 0.0
        %8470 = vmatprep.subr.mxu0 0.0
        %8471 = vmatpush1.msra.mxu0 0.0
        %8472 = vmatprep.subr.mxu0 0.0
        %8473 = vmatpush1.msra.mxu0 0.0
        %8474 = vmatprep.mubr.f32.mxu0 0.0
        %v8475 = vand.u32 %v7967, 4294901760
        %8476 = vmatmul.mubr.f32.gmra.mrb[0].mxu0 %v8475
        %v8477 = vpop.f32.mrb[0].mxu0
        %v8478 = vadd.f32 %v8371, %v8477
        %v8479 = vpop.f32.mrb[0].mxu0
        %8480 = vmatprep.mubr.f32.mxu0 0.0
        %v8481 = vand.u32 %v7970, 4294901760
        %8482 = vmatmul.mubr.f32.gmra.mrb[0].mxu0 %v8481
        %v8483 = vpop.f32.mrb[0].mxu0
        %v8484 = vadd.f32 %v8379, %v8483
        %v8485 = vpop.f32.mrb[0].mxu0
        %8486 = vmatprep.mubr.f32.mxu0 0.0
        %v8487 = vand.u32 %v7973, 4294901760
        %8488 = vmatmul.mubr.f32.gmra.mrb[0].mxu0 %v8487
        %v8489 = vpop.f32.mrb[0].mxu0
        %v8490 = vadd.f32 %v8387, %v8489
        %v8491 = vpop.f32.mrb[0].mxu0
        %8492 = vmatprep.mubr.f32.mxu0 0.0
        %v8493 = vand.u32 %v7976, 4294901760
        %8494 = vmatmul.mubr.f32.gmra.mrb[0].mxu0 %v8493
        %v8495 = vpop.f32.mrb[0].mxu0
        %v8496 = vadd.f32 %v8395, %v8495
        %v8497 = vpop.f32.mrb[0].mxu0
        %8498 = vdwg.mxu0
        %8499 = vmatprep.subr.mxu0 0.0
        %v8500 = vand.u32 %v7958, 4294901760
        %8501 = vmatpush1.msra.mxu0 %v8500
        %8502 = vmatprep.subr.mxu0 0.0
        %v8503 = vand.u32 %v7959, 4294901760
        %8504 = vmatpush1.msra.mxu0 %v8503
        %8505 = vmatprep.subr.mxu0 0.0
        %v8506 = vand.u32 %v7960, 4294901760
        %8507 = vmatpush1.msra.mxu0 %v8506
        %8508 = vmatprep.subr.mxu0 0.0
        %v8509 = vand.u32 %v7961, 4294901760
        %8510 = vmatpush1.msra.mxu0 %v8509
        %8511 = vmatprep.subr.mxu0 0.0
        %8512 = vmatpush1.msra.mxu0 0.0
        %8513 = vmatprep.subr.mxu0 0.0
        %8514 = vmatpush1.msra.mxu0 0.0
        %8515 = vmatprep.subr.mxu0 0.0
        %8516 = vmatpush1.msra.mxu0 0.0
        %8517 = vmatprep.subr.mxu0 0.0
        %8518 = vmatpush1.msra.mxu0 0.0
        %8519 = vmatprep.subr.mxu0 0.0
        %8520 = vmatpush1.msra.mxu0 0.0
        %8521 = vmatprep.subr.mxu0 0.0
        %8522 = vmatpush1.msra.mxu0 0.0
        %8523 = vmatprep.subr.mxu0 0.0
        %8524 = vmatpush1.msra.mxu0 0.0
        %8525 = vmatprep.subr.mxu0 0.0
        %8526 = vmatpush1.msra.mxu0 0.0
        %8527 = vmatprep.subr.mxu0 0.0
        %8528 = vmatpush1.msra.mxu0 0.0
        %8529 = vmatprep.subr.mxu0 0.0
        %8530 = vmatpush1.msra.mxu0 0.0
        %8531 = vmatprep.subr.mxu0 0.0
        %8532 = vmatpush1.msra.mxu0 0.0
        %8533 = vmatprep.subr.mxu0 0.0
        %8534 = vmatpush1.msra.mxu0 0.0
        %8535 = vmatprep.subr.mxu0 0.0
        %8536 = vmatpush1.msra.mxu0 0.0
        %8537 = vmatprep.subr.mxu0 0.0
        %8538 = vmatpush1.msra.mxu0 0.0
        %8539 = vmatprep.subr.mxu0 0.0
        %8540 = vmatpush1.msra.mxu0 0.0
        %8541 = vmatprep.subr.mxu0 0.0
        %8542 = vmatpush1.msra.mxu0 0.0
        %8543 = vmatprep.subr.mxu0 0.0
        %8544 = vmatpush1.msra.mxu0 0.0
        %8545 = vmatprep.subr.mxu0 0.0
        %8546 = vmatpush1.msra.mxu0 0.0
        %8547 = vmatprep.subr.mxu0 0.0
        %8548 = vmatpush1.msra.mxu0 0.0
        %8549 = vmatprep.subr.mxu0 0.0
        %8550 = vmatpush1.msra.mxu0 0.0
        %8551 = vmatprep.subr.mxu0 0.0
        %8552 = vmatpush1.msra.mxu0 0.0
        %8553 = vmatprep.subr.mxu0 0.0
        %8554 = vmatpush1.msra.mxu0 0.0
        %8555 = vmatprep.subr.mxu0 0.0
        %8556 = vmatpush1.msra.mxu0 0.0
        %8557 = vmatprep.subr.mxu0 0.0
        %8558 = vmatpush1.msra.mxu0 0.0
        %8559 = vmatprep.subr.mxu0 0.0
        %8560 = vmatpush1.msra.mxu0 0.0
        %8561 = vmatprep.subr.mxu0 0.0
        %8562 = vmatpush1.msra.mxu0 0.0
        %8563 = vmatprep.subr.mxu0 0.0
        %8564 = vmatpush1.msra.mxu0 0.0
        %8565 = vmatprep.subr.mxu0 0.0
        %8566 = vmatpush1.msra.mxu0 0.0
        %8567 = vmatprep.mubr.f32.mxu0 0.0
        %v8568 = vand.u32 %v7967, 4294901760
        %8569 = vmatmul.mubr.f32.gmra.mrb[0].mxu0 %v8568
        %v8570 = vpop.f32.mrb[0].mxu0
        %v8571 = vadd.f32 %v8478, %v8570
        %v8572 = vpop.f32.mrb[0].mxu0
        %8573 = vmatprep.mubr.f32.mxu0 0.0
        %v8574 = vand.u32 %v7970, 4294901760
        %8575 = vmatmul.mubr.f32.gmra.mrb[0].mxu0 %v8574
        %v8576 = vpop.f32.mrb[0].mxu0
        %v8577 = vadd.f32 %v8484, %v8576
        %v8578 = vpop.f32.mrb[0].mxu0
        %8579 = vmatprep.mubr.f32.mxu0 0.0
        %v8580 = vand.u32 %v7973, 4294901760
        %8581 = vmatmul.mubr.f32.gmra.mrb[0].mxu0 %v8580
        %v8582 = vpop.f32.mrb[0].mxu0
        %v8583 = vadd.f32 %v8490, %v8582
        %v8584 = vpop.f32.mrb[0].mxu0
        %8585 = vmatprep.mubr.f32.mxu0 0.0
        %v8586 = vand.u32 %v7976, 4294901760
        %8587 = vmatmul.mubr.f32.gmra.mrb[0].mxu0 %v8586
        %v8588 = vpop.f32.mrb[0].mxu0
        %v8589 = vadd.f32 %v8496, %v8588
        %v8590 = vpop.f32.mrb[0].mxu0
        %8591 = vdwg.mxu0
        %v8592 = vadd.f32 %v3526, %v8571
        %v8593 = vadd.f32 %v3532, %v8577
        %v8594 = vadd.f32 %v3538, %v8583
        %v8595 = vadd.f32 %v3544, %v8589
        %v8596 = vtanh.pop %v8592
        %v8597 = vtanh.pop %v8593
        %v8598 = vtanh.pop %v8594
        %v8599 = vtanh.pop %v8595
        %v8600 = vsub.f32 1.0, %v7950
        %v8601 = vsub.f32 1.0, %v7951
        %v8602 = vsub.f32 1.0, %v7952
        %v8603 = vsub.f32 1.0, %v7953
        %v8604 = vmul.f32 %v8600, %v8596
        %v8605 = vmul.f32 %v8601, %v8597
        %v8606 = vmul.f32 %v8602, %v8598
        %v8607 = vmul.f32 %v8603, %v8599
        %v8608 = vmul.f32 %v7946, %v6924
        %v8609 = vmul.f32 %v7947, %v6925
        %v8610 = vmul.f32 %v7948, %v6926
        %v8611 = vmul.f32 %v7949, %v6927
        %v8612 = vadd.f32 %v8604, %v8608
        %v8613 = vadd.f32 %v8605, %v8609
        %v8614 = vadd.f32 %v8606, %v8610
        %v8615 = vadd.f32 %v8607, %v8611
        %v8616 = vld [vmem:[%s9] sm:$0xff]
        %v8617 = vld [vmem:[%s9 + $0x8] sm:$0xff]
        %v8618 = vld [vmem:[%s9 + $0x10] sm:$0xff]
        %v8619 = vld [vmem:[%s9 + $0x18] sm:$0xff]
        %8621 = vset.pattern.permute.xlu0 0
        %8622 = vperm.xlu0 %8621, %v8616
        %v8623 = vpop.permute.xlu0 %8622
        %8626 = vset.pattern.permute.xlu0 0
        %8627 = vperm.xlu0 %8626, %v8617
        %v8628 = vpop.permute.xlu0 %8627
        %8631 = vset.pattern.permute.xlu0 0
        %8632 = vperm.xlu0 %8631, %v8618
        %v8633 = vpop.permute.xlu0 %8632
        %8636 = vset.pattern.permute.xlu0 0
        %8637 = vperm.xlu0 %8636, %v8619
        %v8638 = vpop.permute.xlu0 %8637
        %v8640 = vmul.f32 %v8612, %v8623
        %v8641 = vmul.f32 %v8613, %v8628
        %v8642 = vmul.f32 %v8614, %v8633
        %v8643 = vmul.f32 %v8615, %v8638
        %v8644 = vadd.f32 %v8640, %v8641
        %v8645 = vadd.f32 %v8644, %v8642
        %v8646 = vadd.f32 %v8645, %v8643
        %v8647 = vrot.slane %v8646, 4
        %v8648 = vadd.f32 %v8646, %v8647
        %v8649 = vrot.slane %v8648, 2
        %v8650 = vadd.f32 %v8648, %v8649
        %v8651 = vrot.slane %v8650, 1
        %v8652 = vadd.f32 %v8650, %v8651
        %s8653 = sld [smem:[#allocation2]]
        %v8654 = vstv %s8653
        %v8655 = vadd.f32 %v8652, %v8654
        %8656 = vst [vmem:[%s377] sm:$0x1] %v8655
        %s8657 = sand.u32 %s270, 1
        %s8658 = scalar_lea.sflag [#allocation4], %s8657
        %s8659 = sand.u32 %s270, 1
        %s8660 = scalar_lea.vmem [#allocation3], %s8659
        // Predicated region
        $region65: #{tpu_custom_call.1} parent=63 // pred_check
          %p8661 = pneg %p280
        $region66: #{tpu_custom_call.1} parent=63 // pred_check_branch
          %8663 = sbr.rel (%p8661) target = $region68
        $region67: #{tpu_custom_call.1} parent=63 // pred_region
          %s8665 = ssub.s32 16, 16
          %8666 = vsyncadd %s8658, %s8665
          %s8667 = smul.addr %s26, 16
          %s8668 = scalar_lea.hbm %s11, %s8667
          %s8670 = sshll.u32 %s8660, 4
          %s8671 = int_to_ptr.vmem [resolvable:$true] %s8670
          %8673 = dma.vmem_to_hbm [thread:$0]  %s8671, 16, %s8668, %s8658
        $region68: #{tpu_custom_call.1} parent=63 // pred_fallthru
          _
      $region64: #{tpu_custom_call.1} parent=5 // pred_fallthru
        _
      %p8674 = scmp.le.s32.totalorder 2, %s21
      // Predicated region
      $region69: #{tpu_custom_call.1} parent=5 // pred_check
        %p8675 = pneg %p8674
      $region70: #{tpu_custom_call.1} parent=5 // pred_check_branch
        %8677 = sbr.rel (%p8675) target = $region72
      $region71: #{tpu_custom_call.1} parent=5 // pred_region
        %s8678 = ssub.s32 %s21, 2
        // Predicated region
        $region73: #{tpu_custom_call.1} parent=71 // pred_check
          %p8679 = pneg %p286
        $region74: #{tpu_custom_call.1} parent=71 // pred_check_branch
          %8681 = sbr.rel (%p8679) target = $region76
        $region75: #{tpu_custom_call.1} parent=71 // pred_region
          %s8682 = sand.u32 %s271, 1
          %s8683 = scalar_lea.sflag [#allocation4], %s8682
          %s8684 = sand.u32 %s271, 1
          %s8685 = scalar_lea.vmem [#allocation3], %s8684
          %8686 = dma.done %s8683, 16
        $region76: #{tpu_custom_call.1} parent=71 // pred_fallthru
          _
      $region72: #{tpu_custom_call.1} parent=5 // pred_fallthru
        _
    $region6: #{tpu_custom_call.1} parent=1 // loop_footer
      %s25 = sadd.s32 1, %s21
    $region7: #{tpu_custom_call.1} parent=1 // loop_footer_branch
      %20 = sbr.rel target = $region3
    $region8: #{tpu_custom_call.1} parent=1 // loop_exit
      _
    %8687 = vsyncpa [#allocation4], 1
    %s8688 = scalar_lea.sflag [#allocation4], 1
    %8689 = vsyncpa %s8688, 1

</llo_original>
